<compile_context>
chip_gen: v6e
topology: v6e:2x2x1
jax: 0.10.0
libtpu: 0.0.40
codegen_flags: <defaults>
</compile_context>

<pallas_src>
import functools

import jax
import jax.numpy as jnp
from jax import lax
from jax.experimental import pallas as pl
from jax.experimental.pallas import tpu as pltpu


# ---------------------------------------------------------------------------
# Fused kernel: instance MLP + gated attention + online-softmax pooling + surv head
# ---------------------------------------------------------------------------
def mil_attention_fc_surv_kernel(
    x_ref,                          # (1, TILE_N, L)  f32
    w1_ref, b1_ref,                 # (L, H) bf16, (1, H) f32
    wa_ref, ba_ref,                 # (H, D) bf16, (1, D) f32
    wb_ref, bb_ref,                 # (H, D) bf16, (1, D) f32
    wc_ref, bc_ref,                 # (1, D) f32,  (1, 1) f32
    wr_ref, br_ref,                 # (H, D) f32,  (1, D) f32
    wcls_ref, bcls_ref,             # (D, C) f32,  (1, C) f32
    logits_ref, hazards_ref, surv_ref,   # out: (1, 1, C) f32 each
    m_sc, l_sc, acc_sc,             # scratch: (1,1) f32, (1,1) f32, (1,H) f32
    *, n_total, tile_n,
):
    k = pl.program_id(1)
    num_k = pl.num_programs(1)

    @pl.when(k == 0)
    def _init():
        m_sc[...] = jnp.full_like(m_sc, -jnp.inf)
        l_sc[...] = jnp.zeros_like(l_sc)
        acc_sc[...] = jnp.zeros_like(acc_sc)

    x = x_ref[0].astype(jnp.bfloat16)                               # (TILE_N, L) bf16

    # attention_net[0:2]: Linear(1024->512) + ReLU  (Dropout = identity in eval)
    h = jnp.dot(x, w1_ref[...], preferred_element_type=jnp.float32) + b1_ref[...]
    h = jnp.maximum(h, 0.0)                                         # (TILE_N, H) f32

    # Attn_Net_Gated: a = tanh(Lin), g = sigmoid(Lin), score = Lin(a*g)  (D -> 1)
    h_bf = h.astype(jnp.bfloat16)
    a = jnp.tanh(
        jnp.dot(h_bf, wa_ref[...], preferred_element_type=jnp.float32) + ba_ref[...])
    g = jax.nn.sigmoid(
        jnp.dot(h_bf, wb_ref[...], preferred_element_type=jnp.float32) + bb_ref[...])
    s = jnp.sum(a * g * wc_ref[...], axis=-1, keepdims=True) + bc_ref[...]  # (TILE_N,1)

    # Mask padded rows of the last (ragged) tile so they contribute nothing.
    if n_total % tile_n != 0:
        row = k * tile_n + lax.broadcasted_iota(jnp.int32, (tile_n, 1), 0)
        valid = row < n_total
        s = jnp.where(valid, s, -1e30)
        h = jnp.where(valid, h, 0.0)

    # Online softmax over instances + streaming attention pooling.
    m_prev = m_sc[...]                                              # (1, 1)
    m_new = jnp.maximum(m_prev, jnp.max(s, axis=0, keepdims=True))  # (1, 1)
    alpha = jnp.exp(m_prev - m_new)                                 # (1, 1)
    p = jnp.exp(s - m_new)                                          # (TILE_N, 1)
    l_sc[...] = alpha * l_sc[...] + jnp.sum(p, axis=0, keepdims=True)
    acc_sc[...] = alpha * acc_sc[...] + jnp.sum(p * h, axis=0, keepdims=True)
    m_sc[...] = m_new

    @pl.when(k == num_k - 1)
    def _finalize():
        # Exact normalization once per bag -> pooled bag embedding (1, H).
        pooled = acc_sc[...] / l_sc[...]

        # rho: Linear(512->256) + ReLU  (Dropout = identity in eval)
        hp = jnp.dot(pooled, wr_ref[...], preferred_element_type=jnp.float32) + br_ref[...]
        hp = jnp.maximum(hp, 0.0)                                   # (1, D)

        # classifier: Linear(256 -> n_classes), sigmoid, cumprod survival.
        logits = jnp.dot(hp, wcls_ref[...],
                         preferred_element_type=jnp.float32) + bcls_ref[...]   # (1, C)
        hazards = jax.nn.sigmoid(logits)
        logits_ref[0] = logits
        hazards_ref[0] = hazards

        one_minus = 1.0 - hazards
        C = one_minus.shape[1]
        cols = [one_minus[:, 0:1]]
        for c in range(1, C):
            cols.append(cols[-1] * one_minus[:, c:c + 1])
        surv_ref[0] = jnp.concatenate(cols, axis=1)


# ---------------------------------------------------------------------------
# Wrapper
# ---------------------------------------------------------------------------
def mil_attention_fc_surv_forward(x_path, params, *, tile_n=256, vmem_limit_bytes=None):
    B, N, L = x_path.shape
    H = params["w1"].shape[1]
    D = params["wa"].shape[1]
    C = params["w_cls"].shape[1]

    tile_n = min(tile_n, N)
    if tile_n < N:
        tile_n = max(8, (tile_n // 8) * 8)        # keep (8,128) sublane alignment
    num_k = pl.cdiv(N, tile_n)

    # bf16 only for the big MXU weights; x stays f32 in HBM (cast happens in-kernel).
    x_f32 = x_path.astype(jnp.float32)
    w1 = params["w1"].astype(jnp.bfloat16)
    wa = params["wa"].astype(jnp.bfloat16)
    wb = params["wb"].astype(jnp.bfloat16)
    b1 = params["b1"].astype(jnp.float32)
    ba = params["ba"].astype(jnp.float32)
    bb = params["bb"].astype(jnp.float32)
    wc = params["wc"].astype(jnp.float32)
    bc = params["bc"].astype(jnp.float32)
    wr = params["wr"].astype(jnp.float32)
    br = params["br"].astype(jnp.float32)
    w_cls = params["w_cls"].astype(jnp.float32)
    b_cls = params["b_cls"].astype(jnp.float32)

    const2d = lambda arr: pl.BlockSpec(arr.shape, lambda b, k: (0, 0))

    flops = 2 * B * N * (L * H + 2 * H * D + 2 * D + H) + 2 * B * (H * D + D * C)
    transcendentals = B * N * (2 * D + 1) + B * C
    bytes_accessed = (B * N * L * 4                        # f32 instance stream
                      + (L * H + 2 * H * D) * 2            # bf16 weights (fetched once)
                      + (H * D + D * C) * 4                # f32 head weights
                      + (H + 5 * D + 2 * C + 1) * 4        # biases / wc
                      + 3 * B * C * 4)                     # outputs

    out_shape = tuple(jax.ShapeDtypeStruct((B, 1, C), jnp.float32) for _ in range(3))
    out_specs = tuple(pl.BlockSpec((1, 1, C), lambda b, k: (b, 0, 0)) for _ in range(3))

    logits, hazards, surv = pl.pallas_call(
        functools.partial(mil_attention_fc_surv_kernel, n_total=N, tile_n=tile_n),
        out_shape=out_shape,
        grid=(B, num_k),
        in_specs=[
            pl.BlockSpec((1, tile_n, L), lambda b, k: (b, k, 0)),   # streamed x tiles
            const2d(w1), const2d(b1),
            const2d(wa), const2d(ba),
            const2d(wb), const2d(bb),
            const2d(wc), const2d(bc),
            const2d(wr), const2d(br),
            const2d(w_cls), const2d(b_cls),
        ],
        out_specs=out_specs,
        scratch_shapes=[
            pltpu.VMEM((1, 1), jnp.float32),     # running max
            pltpu.VMEM((1, 1), jnp.float32),     # running denom
            pltpu.VMEM((1, H), jnp.float32),     # running pooled accumulator
        ],
        compiler_params=pltpu.CompilerParams(
            dimension_semantics=("parallel", "arbitrary"),
            vmem_limit_bytes=vmem_limit_bytes,
        ),
        cost_estimate=pl.CostEstimate(
            flops=flops, transcendentals=transcendentals, bytes_accessed=bytes_accessed),
    )(x_f32, w1, b1, wa, ba, wb, bb, wc, bc, wr, br, w_cls, b_cls)

    logits = logits.reshape(B, C)
    hazards = hazards.reshape(B, C)
    surv = surv.reshape(B, C)

    # torch.topk(logits, 1, dim=1)[1] == argmax indices (glue, not hot path)
    y_hat = jnp.argmax(logits, axis=1, keepdims=True)
    return {"hazards": hazards, "survival": surv, "y_hat": y_hat, "logits": logits}


# ---------------------------------------------------------------------------
# Params / reference / test
# ---------------------------------------------------------------------------
def init_params(key, L_in=1024, H=512, D=256, n_classes=4):
    """Deterministic init matching the nn.Linear shapes; stored as (in, out)."""
    def linear(k, fan_in, fan_out):
        kw, kb = jax.random.split(k)
        bound = 1.0 / jnp.sqrt(fan_in)
        w = jax.random.uniform(kw, (fan_in, fan_out), jnp.float32, -bound, bound)
        b = jax.random.uniform(kb, (1, fan_out), jnp.float32, -bound, bound)
        return w, b

    keys = jax.random.split(key, 6)
    w1, b1 = linear(keys[0], L_in, H)              # attention_net: Linear(1024, 512)
    wa, ba = linear(keys[1], H, D)                 # Attn_Net_Gated.attention_a
    wb, bb = linear(keys[2], H, D)                 # Attn_Net_Gated.attention_b
    wc_t, bc = linear(keys[3], D, 1)               # Attn_Net_Gated.attention_c (D -> 1)
    wr, br = linear(keys[4], H, D)                 # rho: Linear(512, 256)
    w_cls, b_cls = linear(keys[5], D, n_classes)   # classifier
    return {
        "w1": w1, "b1": b1,
        "wa": wa, "ba": ba,
        "wb": wb, "bb": bb,
        "wc": wc_t.T,          # (1, 256) row vector used as a lane-reduction weight
        "bc": bc,              # (1, 1)
        "wr": wr, "br": br,
        "w_cls": w_cls, "b_cls": b_cls,
    }


def reference_forward(x, p):
    """Plain-JAX reference mirroring the PyTorch forward (eval, fusion=None) with the
    same bf16 casts on the big matmuls as the kernel."""
    xb = x.astype(jnp.bfloat16)
    w1 = p["w1"].astype(jnp.bfloat16)
    wa = p["wa"].astype(jnp.bfloat16)
    wb = p["wb"].astype(jnp.bfloat16)

    h = jax.nn.relu(
        jnp.einsum("bnl,lh->bnh", xb, w1, preferred_element_type=jnp.float32) + p["b1"])
    hb = h.astype(jnp.bfloat16)
    a = jnp.tanh(
        jnp.einsum("bnh,hd->bnd", hb, wa, preferred_element_type=jnp.float32) + p["ba"])
    g = jax.nn.sigmoid(
        jnp.einsum("bnh,hd->bnd", hb, wb, preferred_element_type=jnp.float32) + p["bb"])
    s = jnp.sum(a * g * p["wc"], axis=-1, keepdims=True) + p["bc"]      # (B, N, 1)
    A = jax.nn.softmax(jnp.swapaxes(s, 1, 2), axis=2)                   # (B, 1, N)
    pooled = jnp.einsum("bqn,bnh->bqh", A, h)[:, 0]                     # (B, 512) f32
    hp = jax.nn.relu(pooled @ p["wr"] + p["br"])                        # (B, 256)
    logits = hp @ p["w_cls"] + p["b_cls"]                               # (B, C)
    hazards = jax.nn.sigmoid(logits)
    S = jnp.cumprod(1.0 - hazards, axis=1)
    return logits, hazards, S


if __name__ == "__main__":
    key = jax.random.PRNGKey(0)
    k_x, k_p = jax.random.split(key)

    B, N, L_in, n_classes = 2, 512, 1024, 4     # 2 WSIs x 512 instances x 1024 feats
    x_path = jax.random.normal(k_x, (B, N, L_in), dtype=jnp.float32)
    params = init_params(k_p, L_in=L_in, H=512, D=256, n_classes=n_classes)

    out = mil_attention_fc_surv_forward(x_path, params, tile_n=256)
    jax.block_until_ready(out)

    ref_logits, ref_hazards, ref_S = reference_forward(x_path, params)
    assert bool(jnp.allclose(out["logits"], ref_logits, rtol=1e-2, atol=1e-3)), "logits mismatch"
    assert bool(jnp.allclose(out["hazards"], ref_hazards, rtol=1e-2, atol=1e-3)), "hazards mismatch"
    assert bool(jnp.allclose(out["survival"], ref_S, rtol=1e-2, atol=1e-3)), "survival mismatch"
    assert out["y_hat"].shape == (B, 1)

    print("KERNEL_OK")
</pallas_src>

<mosaic_0001>
module attributes {stable_mosaic.version = 11 : i64} {
  func.func @mil_attention_fc_surv_kernel(%arg0: i32, %arg1: i32, %arg2: memref<1x256x1024xf32, #tpu.memory_space<vmem>>, %arg3: memref<1024x512xbf16, #tpu.memory_space<vmem>>, %arg4: memref<1x512xf32, #tpu.memory_space<vmem>>, %arg5: memref<512x256xbf16, #tpu.memory_space<vmem>>, %arg6: memref<1x256xf32, #tpu.memory_space<vmem>>, %arg7: memref<512x256xbf16, #tpu.memory_space<vmem>>, %arg8: memref<1x256xf32, #tpu.memory_space<vmem>>, %arg9: memref<1x256xf32, #tpu.memory_space<vmem>>, %arg10: memref<1x1xf32, #tpu.memory_space<vmem>>, %arg11: memref<512x256xf32, #tpu.memory_space<vmem>>, %arg12: memref<1x256xf32, #tpu.memory_space<vmem>>, %arg13: memref<256x4xf32, #tpu.memory_space<vmem>>, %arg14: memref<1x4xf32, #tpu.memory_space<vmem>>, %arg15: memref<1x1x4xf32, #tpu.memory_space<vmem>>, %arg16: memref<1x1x4xf32, #tpu.memory_space<vmem>>, %arg17: memref<1x1x4xf32, #tpu.memory_space<vmem>>, %arg18: memref<1x1xf32, #tpu.memory_space<vmem>>, %arg19: memref<1x1xf32, #tpu.memory_space<vmem>>, %arg20: memref<1x512xf32, #tpu.memory_space<vmem>>) attributes {dimension_semantics = [#tpu.dimension_semantics<parallel>, #tpu.dimension_semantics<arbitrary>], iteration_bounds = array<i64: 2, 2>, scalar_prefetch = 0 : i64, scratch_operands = 3 : i64, tpu.core_type = #tpu.core_type<tc>, window_params = [{transform_indices = @transform_0, window_bounds = array<i64: 1, 256, 1024>}, {pipeline_mode = #tpu.pipeline_mode<synchronous>, transform_indices = @transform_1, window_bounds = array<i64: 1024, 512>}, {pipeline_mode = #tpu.pipeline_mode<synchronous>, transform_indices = @transform_2, window_bounds = array<i64: 1, 512>}, {pipeline_mode = #tpu.pipeline_mode<synchronous>, transform_indices = @transform_3, window_bounds = array<i64: 512, 256>}, {pipeline_mode = #tpu.pipeline_mode<synchronous>, transform_indices = @transform_4, window_bounds = array<i64: 1, 256>}, {pipeline_mode = #tpu.pipeline_mode<synchronous>, transform_indices = @transform_5, window_bounds = array<i64: 512, 256>}, {pipeline_mode = #tpu.pipeline_mode<synchronous>, transform_indices = @transform_6, window_bounds = array<i64: 1, 256>}, {pipeline_mode = #tpu.pipeline_mode<synchronous>, transform_indices = @transform_7, window_bounds = array<i64: 1, 256>}, {pipeline_mode = #tpu.pipeline_mode<synchronous>, transform_indices = @transform_8, window_bounds = array<i64: 1, 1>}, {pipeline_mode = #tpu.pipeline_mode<synchronous>, transform_indices = @transform_9, window_bounds = array<i64: 512, 256>}, {pipeline_mode = #tpu.pipeline_mode<synchronous>, transform_indices = @transform_10, window_bounds = array<i64: 1, 256>}, {pipeline_mode = #tpu.pipeline_mode<synchronous>, transform_indices = @transform_11, window_bounds = array<i64: 256, 4>}, {pipeline_mode = #tpu.pipeline_mode<synchronous>, transform_indices = @transform_12, window_bounds = array<i64: 1, 4>}, {transform_indices = @transform_13, window_bounds = array<i64: 1, 1, 4>}, {transform_indices = @transform_14, window_bounds = array<i64: 1, 1, 4>}, {transform_indices = @transform_15, window_bounds = array<i64: 1, 1, 4>}]} {
    %c0_i32 = arith.constant 0 : i32
    %0 = arith.cmpi eq, %arg1, %c0_i32 : i32
    %1 = arith.extui %0 : i1 to i32
    %c0_i32_0 = arith.constant 0 : i32
    %2 = arith.cmpi ne, %1, %c0_i32_0 : i32
    scf.if %2 {
      %cst_40 = arith.constant 0xFF800000 : f32
      %67 = vector.broadcast %cst_40 : f32 to vector<1x1xf32>
      %c0_41 = arith.constant 0 : index
      %c0_42 = arith.constant 0 : index
      %68 = vector.load %arg18[%c0_41, %c0_42] : memref<1x1xf32, #tpu.memory_space<vmem>>, vector<1x1xf32>
      tpu.vector_store %arg18[%c0_41, %c0_42], %67 {strides = array<i32>} : memref<1x1xf32, #tpu.memory_space<vmem>>, vector<1x1xf32>,
      %cst_43 = arith.constant 0.000000e+00 : f32
      %69 = vector.broadcast %cst_43 : f32 to vector<1x1xf32>
      %c0_44 = arith.constant 0 : index
      %c0_45 = arith.constant 0 : index
      %70 = vector.load %arg19[%c0_44, %c0_45] : memref<1x1xf32, #tpu.memory_space<vmem>>, vector<1x1xf32>
      tpu.vector_store %arg19[%c0_44, %c0_45], %69 {strides = array<i32>} : memref<1x1xf32, #tpu.memory_space<vmem>>, vector<1x1xf32>,
      %cst_46 = arith.constant 0.000000e+00 : f32
      %71 = vector.broadcast %cst_46 : f32 to vector<1x512xf32>
      %c0_47 = arith.constant 0 : index
      %c0_48 = arith.constant 0 : index
      %72 = vector.load %arg20[%c0_47, %c0_48] : memref<1x512xf32, #tpu.memory_space<vmem>>, vector<1x512xf32>
      tpu.vector_store %arg20[%c0_47, %c0_48], %71 {strides = array<i32>} : memref<1x512xf32, #tpu.memory_space<vmem>>, vector<1x512xf32>,
    } else {
    }
    %c0 = arith.constant 0 : index
    %c0_1 = arith.constant 0 : index
    %c0_2 = arith.constant 0 : index
    %3 = vector.load %arg2[%c0, %c0_1, %c0_2] : memref<1x256x1024xf32, #tpu.memory_space<vmem>>, vector<1x256x1024xf32>
    %4 = vector.shape_cast %3 : vector<1x256x1024xf32> to vector<256x1024xf32>
    %5 = arith.truncf %4 : vector<256x1024xf32> to vector<256x1024xbf16>
    %c0_3 = arith.constant 0 : index
    %c0_4 = arith.constant 0 : index
    %6 = vector.load %arg3[%c0_3, %c0_4] : memref<1024x512xbf16, #tpu.memory_space<vmem>>, vector<1024x512xbf16>
    %cst = arith.constant dense<0.000000e+00> : vector<256x512xf32>
    %7 = tpu.matmul %5, %6, %cst {dimension_numbers = #tpu.dot_dimension_numbers<[1], [0], [0], [1], [0, 0, 1, 1], [], []>} : vector<256x1024xbf16>, vector<1024x512xbf16>, vector<256x512xf32> -> vector<256x512xf32>
    %c0_5 = arith.constant 0 : index
    %c0_6 = arith.constant 0 : index
    %8 = vector.load %arg4[%c0_5, %c0_6] : memref<1x512xf32, #tpu.memory_space<vmem>>, vector<1x512xf32>
    %9 = vector.broadcast %8 : vector<1x512xf32> to vector<256x512xf32>
    %10 = arith.addf %7, %9 : vector<256x512xf32>
    %cst_7 = arith.constant 0.000000e+00 : f32
    %11 = vector.broadcast %cst_7 : f32 to vector<256x512xf32>
    %12 = arith.maximumf %10, %11 : vector<256x512xf32>
    %13 = arith.truncf %12 : vector<256x512xf32> to vector<256x512xbf16>
    %c0_8 = arith.constant 0 : index
    %c0_9 = arith.constant 0 : index
    %14 = vector.load %arg5[%c0_8, %c0_9] : memref<512x256xbf16, #tpu.memory_space<vmem>>, vector<512x256xbf16>
    %cst_10 = arith.constant dense<0.000000e+00> : vector<256x256xf32>
    %15 = tpu.matmul %13, %14, %cst_10 {dimension_numbers = #tpu.dot_dimension_numbers<[1], [0], [0], [1], [0, 0, 1, 1], [], []>} : vector<256x512xbf16>, vector<512x256xbf16>, vector<256x256xf32> -> vector<256x256xf32>
    %c0_11 = arith.constant 0 : index
    %c0_12 = arith.constant 0 : index
    %16 = vector.load %arg6[%c0_11, %c0_12] : memref<1x256xf32, #tpu.memory_space<vmem>>, vector<1x256xf32>
    %17 = vector.broadcast %16 : vector<1x256xf32> to vector<256x256xf32>
    %18 = arith.addf %15, %17 : vector<256x256xf32>
    %19 = math.tanh %18 : vector<256x256xf32>
    %c0_13 = arith.constant 0 : index
    %c0_14 = arith.constant 0 : index
    %20 = vector.load %arg7[%c0_13, %c0_14] : memref<512x256xbf16, #tpu.memory_space<vmem>>, vector<512x256xbf16>
    %cst_15 = arith.constant dense<0.000000e+00> : vector<256x256xf32>
    %21 = tpu.matmul %13, %20, %cst_15 {dimension_numbers = #tpu.dot_dimension_numbers<[1], [0], [0], [1], [0, 0, 1, 1], [], []>} : vector<256x512xbf16>, vector<512x256xbf16>, vector<256x256xf32> -> vector<256x256xf32>
    %c0_16 = arith.constant 0 : index
    %c0_17 = arith.constant 0 : index
    %22 = vector.load %arg8[%c0_16, %c0_17] : memref<1x256xf32, #tpu.memory_space<vmem>>, vector<1x256xf32>
    %23 = vector.broadcast %22 : vector<1x256xf32> to vector<256x256xf32>
    %24 = arith.addf %21, %23 : vector<256x256xf32>
    %25 = arith.negf %24 : vector<256x256xf32>
    %26 = math.exp %25 : vector<256x256xf32>
    %cst_18 = arith.constant 1.000000e+00 : f32
    %27 = vector.broadcast %cst_18 : f32 to vector<256x256xf32>
    %28 = arith.addf %27, %26 : vector<256x256xf32>
    %29 = arith.divf %27, %28 : vector<256x256xf32>
    %30 = arith.mulf %19, %29 : vector<256x256xf32>
    %c0_19 = arith.constant 0 : index
    %c0_20 = arith.constant 0 : index
    %31 = vector.load %arg9[%c0_19, %c0_20] : memref<1x256xf32, #tpu.memory_space<vmem>>, vector<1x256xf32>
    %32 = vector.broadcast %31 : vector<1x256xf32> to vector<256x256xf32>
    %33 = arith.mulf %30, %32 : vector<256x256xf32>
    %cst_21 = arith.constant dense<0.000000e+00> : vector<256xf32>
    %34 = vector.multi_reduction <add>, %33, %cst_21 [1] : vector<256x256xf32> to vector<256xf32>
    %35 = vector.shape_cast %34 : vector<256xf32> to vector<256x1xf32>
    %c0_22 = arith.constant 0 : index
    %c0_23 = arith.constant 0 : index
    %36 = vector.load %arg10[%c0_22, %c0_23] : memref<1x1xf32, #tpu.memory_space<vmem>>, vector<1x1xf32>
    %37 = vector.broadcast %36 : vector<1x1xf32> to vector<256x1xf32>
    %38 = arith.addf %35, %37 : vector<256x1xf32>
    %c0_24 = arith.constant 0 : index
    %c0_25 = arith.constant 0 : index
    %39 = vector.load %arg18[%c0_24, %c0_25] : memref<1x1xf32, #tpu.memory_space<vmem>>, vector<1x1xf32>
    %cst_26 = arith.constant dense<0xFF800000> : vector<1xf32>
    %40 = vector.multi_reduction <maximumf>, %38, %cst_26 [0] : vector<256x1xf32> to vector<1xf32>
    %41 = vector.shape_cast %40 : vector<1xf32> to vector<1x1xf32>
    %42 = arith.maximumf %39, %41 : vector<1x1xf32>
    %43 = arith.subf %39, %42 : vector<1x1xf32>
    %44 = math.exp %43 : vector<1x1xf32>
    %45 = vector.broadcast %42 : vector<1x1xf32> to vector<256x1xf32>
    %46 = arith.subf %38, %45 : vector<256x1xf32>
    %47 = math.exp %46 : vector<256x1xf32>
    %c0_27 = arith.constant 0 : index
    %c0_28 = arith.constant 0 : index
    %48 = vector.load %arg19[%c0_27, %c0_28] : memref<1x1xf32, #tpu.memory_space<vmem>>, vector<1x1xf32>
    %49 = arith.mulf %44, %48 : vector<1x1xf32>
    %cst_29 = arith.constant dense<0.000000e+00> : vector<1xf32>
    %50 = vector.multi_reduction <add>, %47, %cst_29 [0] : vector<256x1xf32> to vector<1xf32>
    %51 = vector.shape_cast %50 : vector<1xf32> to vector<1x1xf32>
    %52 = arith.addf %49, %51 : vector<1x1xf32>
    %c0_30 = arith.constant 0 : index
    %c0_31 = arith.constant 0 : index
    %53 = vector.load %arg19[%c0_30, %c0_31] : memref<1x1xf32, #tpu.memory_space<vmem>>, vector<1x1xf32>
    tpu.vector_store %arg19[%c0_30, %c0_31], %52 {strides = array<i32>} : memref<1x1xf32, #tpu.memory_space<vmem>>, vector<1x1xf32>,
    %c0_32 = arith.constant 0 : index
    %c0_33 = arith.constant 0 : index
    %54 = vector.load %arg20[%c0_32, %c0_33] : memref<1x512xf32, #tpu.memory_space<vmem>>, vector<1x512xf32>
    %55 = vector.broadcast %44 : vector<1x1xf32> to vector<1x512xf32>
    %56 = arith.mulf %55, %54 : vector<1x512xf32>
    %57 = vector.broadcast %47 : vector<256x1xf32> to vector<256x512xf32>
    %58 = arith.mulf %57, %12 : vector<256x512xf32>
    %cst_34 = arith.constant dense<0.000000e+00> : vector<512xf32>
    %59 = vector.multi_reduction <add>, %58, %cst_34 [0] : vector<256x512xf32> to vector<512xf32>
    %60 = vector.shape_cast %59 : vector<512xf32> to vector<1x512xf32>
    %61 = arith.addf %56, %60 : vector<1x512xf32>
    %c0_35 = arith.constant 0 : index
    %c0_36 = arith.constant 0 : index
    %62 = vector.load %arg20[%c0_35, %c0_36] : memref<1x512xf32, #tpu.memory_space<vmem>>, vector<1x512xf32>
    tpu.vector_store %arg20[%c0_35, %c0_36], %61 {strides = array<i32>} : memref<1x512xf32, #tpu.memory_space<vmem>>, vector<1x512xf32>,
    %c0_37 = arith.constant 0 : index
    %c0_38 = arith.constant 0 : index
    %63 = vector.load %arg18[%c0_37, %c0_38] : memref<1x1xf32, #tpu.memory_space<vmem>>, vector<1x1xf32>
    tpu.vector_store %arg18[%c0_37, %c0_38], %42 {strides = array<i32>} : memref<1x1xf32, #tpu.memory_space<vmem>>, vector<1x1xf32>,
    %c1_i32 = arith.constant 1 : i32
    %64 = arith.cmpi eq, %arg1, %c1_i32 : i32
    %65 = arith.extui %64 : i1 to i32
    %c0_i32_39 = arith.constant 0 : i32
    %66 = arith.cmpi ne, %65, %c0_i32_39 : i32
    scf.if %66 {
      %c0_40 = arith.constant 0 : index
      %c0_41 = arith.constant 0 : index
      %67 = vector.load %arg20[%c0_40, %c0_41] : memref<1x512xf32, #tpu.memory_space<vmem>>, vector<1x512xf32>
      %c0_42 = arith.constant 0 : index
      %c0_43 = arith.constant 0 : index
      %68 = vector.load %arg19[%c0_42, %c0_43] : memref<1x1xf32, #tpu.memory_space<vmem>>, vector<1x1xf32>
      %69 = vector.broadcast %68 : vector<1x1xf32> to vector<1x512xf32>
      %70 = arith.divf %67, %69 : vector<1x512xf32>
      %c0_44 = arith.constant 0 : index
      %c0_45 = arith.constant 0 : index
      %71 = vector.load %arg11[%c0_44, %c0_45] : memref<512x256xf32, #tpu.memory_space<vmem>>, vector<512x256xf32>
      %cst_46 = arith.constant dense<0.000000e+00> : vector<1x256xf32>
      %72 = tpu.matmul %70, %71, %cst_46 {dimension_numbers = #tpu.dot_dimension_numbers<[1], [0], [0], [1], [0, 0, 1, 1], [], []>} : vector<1x512xf32>, vector<512x256xf32>, vector<1x256xf32> -> vector<1x256xf32>
      %c0_47 = arith.constant 0 : index
      %c0_48 = arith.constant 0 : index
      %73 = vector.load %arg12[%c0_47, %c0_48] : memref<1x256xf32, #tpu.memory_space<vmem>>, vector<1x256xf32>
      %74 = arith.addf %72, %73 : vector<1x256xf32>
      %cst_49 = arith.constant 0.000000e+00 : f32
      %75 = vector.broadcast %cst_49 : f32 to vector<1x256xf32>
      %76 = arith.maximumf %74, %75 : vector<1x256xf32>
      %c0_50 = arith.constant 0 : index
      %c0_51 = arith.constant 0 : index
      %77 = vector.load %arg13[%c0_50, %c0_51] : memref<256x4xf32, #tpu.memory_space<vmem>>, vector<256x4xf32>
      %cst_52 = arith.constant dense<0.000000e+00> : vector<1x4xf32>
      %78 = tpu.matmul %76, %77, %cst_52 {dimension_numbers = #tpu.dot_dimension_numbers<[1], [0], [0], [1], [0, 0, 1, 1], [], []>} : vector<1x256xf32>, vector<256x4xf32>, vector<1x4xf32> -> vector<1x4xf32>
      %c0_53 = arith.constant 0 : index
      %c0_54 = arith.constant 0 : index
      %79 = vector.load %arg14[%c0_53, %c0_54] : memref<1x4xf32, #tpu.memory_space<vmem>>, vector<1x4xf32>
      %80 = arith.addf %78, %79 : vector<1x4xf32>
      %81 = arith.negf %80 : vector<1x4xf32>
      %82 = math.exp %81 : vector<1x4xf32>
      %cst_55 = arith.constant 1.000000e+00 : f32
      %83 = vector.broadcast %cst_55 : f32 to vector<1x4xf32>
      %84 = arith.addf %83, %82 : vector<1x4xf32>
      %85 = arith.divf %83, %84 : vector<1x4xf32>
      %c0_56 = arith.constant 0 : index
      %c0_57 = arith.constant 0 : index
      %c0_58 = arith.constant 0 : index
      %86 = vector.load %arg15[%c0_56, %c0_57, %c0_58] : memref<1x1x4xf32, #tpu.memory_space<vmem>>, vector<1x1x4xf32>
      %87 = vector.shape_cast %86 : vector<1x1x4xf32> to vector<1x4xf32>
      %88 = vector.shape_cast %80 : vector<1x4xf32> to vector<1x1x4xf32>
      tpu.vector_store %arg15[%c0_56, %c0_57, %c0_58], %88 {strides = array<i32>} : memref<1x1x4xf32, #tpu.memory_space<vmem>>, vector<1x1x4xf32>,
      %c0_59 = arith.constant 0 : index
      %c0_60 = arith.constant 0 : index
      %c0_61 = arith.constant 0 : index
      %89 = vector.load %arg16[%c0_59, %c0_60, %c0_61] : memref<1x1x4xf32, #tpu.memory_space<vmem>>, vector<1x1x4xf32>
      %90 = vector.shape_cast %89 : vector<1x1x4xf32> to vector<1x4xf32>
      %91 = vector.shape_cast %85 : vector<1x4xf32> to vector<1x1x4xf32>
      tpu.vector_store %arg16[%c0_59, %c0_60, %c0_61], %91 {strides = array<i32>} : memref<1x1x4xf32, #tpu.memory_space<vmem>>, vector<1x1x4xf32>,
      %cst_62 = arith.constant 1.000000e+00 : f32
      %92 = vector.broadcast %cst_62 : f32 to vector<1x4xf32>
      %93 = arith.subf %92, %85 : vector<1x4xf32>
      %94 = vector.extract_strided_slice %93 {offsets = [0, 0], sizes = [1, 1], strides = [1, 1]} : vector<1x4xf32> to vector<1x1xf32>
      %95 = vector.extract_strided_slice %93 {offsets = [0, 1], sizes = [1, 1], strides = [1, 1]} : vector<1x4xf32> to vector<1x1xf32>
      %96 = arith.mulf %94, %95 : vector<1x1xf32>
      %97 = vector.extract_strided_slice %93 {offsets = [0, 2], sizes = [1, 1], strides = [1, 1]} : vector<1x4xf32> to vector<1x1xf32>
      %98 = arith.mulf %96, %97 : vector<1x1xf32>
      %99 = vector.extract_strided_slice %93 {offsets = [0, 3], sizes = [1, 1], strides = [1, 1]} : vector<1x4xf32> to vector<1x1xf32>
      %100 = arith.mulf %98, %99 : vector<1x1xf32>
      %101 = tpu.concatenate %94, %96, %98, %100 in 1 : vector<1x1xf32>, vector<1x1xf32>, vector<1x1xf32>, vector<1x1xf32> -> vector<1x4xf32>
      %c0_63 = arith.constant 0 : index
      %c0_64 = arith.constant 0 : index
      %c0_65 = arith.constant 0 : index
      %102 = vector.load %arg17[%c0_63, %c0_64, %c0_65] : memref<1x1x4xf32, #tpu.memory_space<vmem>>, vector<1x1x4xf32>
      %103 = vector.shape_cast %102 : vector<1x1x4xf32> to vector<1x4xf32>
      %104 = vector.shape_cast %101 : vector<1x4xf32> to vector<1x1x4xf32>
      tpu.vector_store %arg17[%c0_63, %c0_64, %c0_65], %104 {strides = array<i32>} : memref<1x1x4xf32, #tpu.memory_space<vmem>>, vector<1x1x4xf32>,
    } else {
    }
    return
  }
  func.func @transform_0(%arg0: i32, %arg1: i32) -> (i32, i32, i32) {
    %c0_i32 = arith.constant 0 : i32
    %c0_i32_0 = arith.constant 0 : i32
    return %arg0, %arg1, %c0_i32 : i32, i32, i32
  }
  func.func @transform_1(%arg0: i32, %arg1: i32) -> (i32, i32) {
    %c0_i32 = arith.constant 0 : i32
    %c0_i32_0 = arith.constant 0 : i32
    %c0_i32_1 = arith.constant 0 : i32
    return %c0_i32, %c0_i32_0 : i32, i32
  }
  func.func @transform_2(%arg0: i32, %arg1: i32) -> (i32, i32) {
    %c0_i32 = arith.constant 0 : i32
    %c0_i32_0 = arith.constant 0 : i32
    %c0_i32_1 = arith.constant 0 : i32
    return %c0_i32, %c0_i32_0 : i32, i32
  }
  func.func @transform_3(%arg0: i32, %arg1: i32) -> (i32, i32) {
    %c0_i32 = arith.constant 0 : i32
    %c0_i32_0 = arith.constant 0 : i32
    %c0_i32_1 = arith.constant 0 : i32
    return %c0_i32, %c0_i32_0 : i32, i32
  }
  func.func @transform_4(%arg0: i32, %arg1: i32) -> (i32, i32) {
    %c0_i32 = arith.constant 0 : i32
    %c0_i32_0 = arith.constant 0 : i32
    %c0_i32_1 = arith.constant 0 : i32
    return %c0_i32, %c0_i32_0 : i32, i32
  }
  func.func @transform_5(%arg0: i32, %arg1: i32) -> (i32, i32) {
    %c0_i32 = arith.constant 0 : i32
    %c0_i32_0 = arith.constant 0 : i32
    %c0_i32_1 = arith.constant 0 : i32
    return %c0_i32, %c0_i32_0 : i32, i32
  }
  func.func @transform_6(%arg0: i32, %arg1: i32) -> (i32, i32) {
    %c0_i32 = arith.constant 0 : i32
    %c0_i32_0 = arith.constant 0 : i32
    %c0_i32_1 = arith.constant 0 : i32
    return %c0_i32, %c0_i32_0 : i32, i32
  }
  func.func @transform_7(%arg0: i32, %arg1: i32) -> (i32, i32) {
    %c0_i32 = arith.constant 0 : i32
    %c0_i32_0 = arith.constant 0 : i32
    %c0_i32_1 = arith.constant 0 : i32
    return %c0_i32, %c0_i32_0 : i32, i32
  }
  func.func @transform_8(%arg0: i32, %arg1: i32) -> (i32, i32) {
    %c0_i32 = arith.constant 0 : i32
    %c0_i32_0 = arith.constant 0 : i32
    %c0_i32_1 = arith.constant 0 : i32
    return %c0_i32, %c0_i32_0 : i32, i32
  }
  func.func @transform_9(%arg0: i32, %arg1: i32) -> (i32, i32) {
    %c0_i32 = arith.constant 0 : i32
    %c0_i32_0 = arith.constant 0 : i32
    %c0_i32_1 = arith.constant 0 : i32
    return %c0_i32, %c0_i32_0 : i32, i32
  }
  func.func @transform_10(%arg0: i32, %arg1: i32) -> (i32, i32) {
    %c0_i32 = arith.constant 0 : i32
    %c0_i32_0 = arith.constant 0 : i32
    %c0_i32_1 = arith.constant 0 : i32
    return %c0_i32, %c0_i32_0 : i32, i32
  }
  func.func @transform_11(%arg0: i32, %arg1: i32) -> (i32, i32) {
    %c0_i32 = arith.constant 0 : i32
    %c0_i32_0 = arith.constant 0 : i32
    %c0_i32_1 = arith.constant 0 : i32
    return %c0_i32, %c0_i32_0 : i32, i32
  }
  func.func @transform_12(%arg0: i32, %arg1: i32) -> (i32, i32) {
    %c0_i32 = arith.constant 0 : i32
    %c0_i32_0 = arith.constant 0 : i32
    %c0_i32_1 = arith.constant 0 : i32
    return %c0_i32, %c0_i32_0 : i32, i32
  }
  func.func @transform_13(%arg0: i32, %arg1: i32) -> (i32, i32, i32) {
    %c0_i32 = arith.constant 0 : i32
    %c0_i32_0 = arith.constant 0 : i32
    %c0_i32_1 = arith.constant 0 : i32
    return %arg0, %c0_i32, %c0_i32_0 : i32, i32, i32
  }
  func.func @transform_14(%arg0: i32, %arg1: i32) -> (i32, i32, i32) {
    %c0_i32 = arith.constant 0 : i32
    %c0_i32_0 = arith.constant 0 : i32
    %c0_i32_1 = arith.constant 0 : i32
    return %arg0, %c0_i32, %c0_i32_0 : i32, i32, i32
  }
  func.func @transform_15(%arg0: i32, %arg1: i32) -> (i32, i32, i32) {
    %c0_i32 = arith.constant 0 : i32
    %c0_i32_0 = arith.constant 0 : i32
    %c0_i32_1 = arith.constant 0 : i32
    return %arg0, %c0_i32, %c0_i32_0 : i32, i32, i32
  }
}

</mosaic_0001>

<llo_original>
// kernel: tpu_custom_call.1
$region0: #{tpu_custom_call.1}
  #allocation0 [shape = 'u32[]', space=smem, size = 0x4, offset = 0x4, fixed_abs, tag = 'smem constant byte address 0x4 - core index']
  #allocation1 [shape = 'u32[144,128]{1,0:T(1,128)}', space=vmem, size = 0x12000, scoped, tag = 'internal scratch']
  #allocation2 [shape = 'f32[1,1]{1,0:T(1,128)}', space=vmem, size = 0x200, scoped, tag = 'scratch operand']
  #allocation3 [shape = 'f32[1,1]{1,0:T(1,128)}', space=vmem, size = 0x200, scoped, tag = 'scratch operand']
  #allocation4 [shape = 'f32[1,512]{1,0:T(1,128)}', space=vmem, size = 0x800, scoped, tag = 'scratch operand']
  #allocation5 [shape = 'f32[1,1]{1,0:T(1,128)S(1)}', space=vmem, size = 0x200, scoped, tag = 'scoped memory for tpu_custom_call.1']
  %s0 = inlined_call_operand.hbm [shape: f32[2,512,1024], index: 0, kind: input, shape index: {}]
  %s1 = inlined_call_operand.hbm [shape: bf16[1024,512], index: 1, kind: input, shape index: {}]
  %s2 = inlined_call_operand.hbm [shape: f32[1,512], index: 2, kind: input, shape index: {}]
  %s3 = inlined_call_operand.hbm [shape: bf16[512,256], index: 3, kind: input, shape index: {}]
  %s4 = inlined_call_operand.hbm [shape: f32[1,256], index: 4, kind: input, shape index: {}]
  %s5 = inlined_call_operand.hbm [shape: bf16[512,256], index: 5, kind: input, shape index: {}]
  %s6 = inlined_call_operand.hbm [shape: f32[1,256], index: 6, kind: input, shape index: {}]
  %s7 = inlined_call_operand.hbm [shape: f32[1,256], index: 7, kind: input, shape index: {}]
  %s8 = inlined_call_operand.<no memory space> [shape: f32[1,1], index: 8, kind: input, shape index: {}]
  %s9 = inlined_call_operand.hbm [shape: f32[512,256], index: 9, kind: input, shape index: {}]
  %s10 = inlined_call_operand.hbm [shape: f32[1,256], index: 10, kind: input, shape index: {}]
  %s11 = inlined_call_operand.vmem [shape: f32[256,4], index: 11, kind: input, shape index: {}]
  %s12 = inlined_call_operand.hbm [shape: f32[1,4], index: 12, kind: input, shape index: {}]
  %s13 = inlined_call_operand.hbm [shape: f32[2,1,4], index: 13, kind: output, shape index: {0}]
  %s14 = inlined_call_operand.hbm [shape: f32[2,1,4], index: 14, kind: output, shape index: {1}]
  %s15 = inlined_call_operand.hbm [shape: f32[2,1,4], index: 15, kind: output, shape index: {2}]
  %16 = xla_tuple %s13, %s14, %s15
  %s17 = sld [smem:[#allocation0]]
  $region153: #{tpu_custom_call.1} parent=0
    _
  %s19 = ssub.s32 1, %s17
  %s20 = scalar_select 0, %s19, %s17
  %v21 = vstv %s8
  %22 = vst [vmem:[#allocation5] sm:$0x1] %v21
  $region1: #{tpu_custom_call.1} parent=0
    #allocation6 [shape = 'u8[2097152]{0}', space=vmem, size = 0x200000, scoped, tag = 'input window, operand 0']
    #allocation7 [shape = 's32[2]{0}', space=sflag, size = 0x8, scoped, tag = 'scoped memory for tpu_custom_call.1']
    #allocation8 [shape = 's32[2]{0}', space=sflag, size = 0x8, scoped, tag = 'scoped memory for tpu_custom_call.1']
    #allocation9 [shape = 'u8[1048576]{0}', space=vmem, size = 0x100000, scoped, tag = 'input window, operand 1, single buffered']
    #allocation10 [shape = 's32[1]{0}', space=sflag, size = 0x4, scoped, tag = 'scoped memory for tpu_custom_call.1']
    #allocation11 [shape = 'u8[2048]{0}', space=vmem, size = 0x800, scoped, tag = 'input window, operand 2, single buffered']
    #allocation12 [shape = 'u8[262144]{0}', space=vmem, size = 0x40000, scoped, tag = 'input window, operand 3, single buffered']
    #allocation13 [shape = 's32[1]{0}', space=sflag, size = 0x4, scoped, tag = 'scoped memory for tpu_custom_call.1']
    #allocation14 [shape = 'u8[1024]{0}', space=vmem, size = 0x400, scoped, tag = 'input window, operand 4, single buffered']
    #allocation15 [shape = 'u8[262144]{0}', space=vmem, size = 0x40000, scoped, tag = 'input window, operand 5, single buffered']
    #allocation16 [shape = 's32[1]{0}', space=sflag, size = 0x4, scoped, tag = 'scoped memory for tpu_custom_call.1']
    #allocation17 [shape = 'u8[1024]{0}', space=vmem, size = 0x400, scoped, tag = 'input window, operand 6, single buffered']
    #allocation18 [shape = 'u8[1024]{0}', space=vmem, size = 0x400, scoped, tag = 'input window, operand 7, single buffered']
    #allocation19 [shape = 's32[1]{0}', space=sflag, size = 0x4, scoped, tag = 'scoped memory for tpu_custom_call.1']
    #allocation20 [shape = 'u8[524288]{0}', space=vmem, size = 0x80000, scoped, tag = 'input window, operand 9, single buffered']
    #allocation21 [shape = 'u8[1024]{0}', space=vmem, size = 0x400, scoped, tag = 'input window, operand 10, single buffered']
    #allocation22 [shape = 's32[1]{0}', space=sflag, size = 0x4, scoped, tag = 'scoped memory for tpu_custom_call.1']
    #allocation23 [shape = 'u8[512]{0}', space=vmem, size = 0x400, scoped, tag = 'input window, operand 12, single buffered']
    #allocation24 [shape = 'u8[1024]{0}', space=vmem, size = 0x400, scoped, tag = 'output window, operand 0']
    #allocation25 [shape = 'u8[1024]{0}', space=vmem, size = 0x400, scoped, tag = 'output window, operand 1']
    #allocation26 [shape = 's32[2]{0}', space=sflag, size = 0x8, scoped, tag = 'scoped memory for tpu_custom_call.1']
    #allocation27 [shape = 'u8[1024]{0}', space=vmem, size = 0x400, scoped, tag = 'output window, operand 2']
    %23 = vsyncpa [#allocation7], 0
    %s24 = scalar_lea.sflag [#allocation7], 1
    %25 = vsyncpa %s24, 0
    %26 = vsyncpa [#allocation10], 0
    %27 = vsyncpa [#allocation13], 0
    %28 = vsyncpa [#allocation16], 0
    %29 = vsyncpa [#allocation19], 0
    %30 = vsyncpa [#allocation22], 0
    %31 = vsyncpa [#allocation8], 0
    %s32 = scalar_lea.sflag [#allocation8], 1
    %33 = vsyncpa %s32, 0
    %34 = vsyncpa [#allocation26], 0
    %s35 = scalar_lea.sflag [#allocation26], 1
    %36 = vsyncpa %s35, 0
    loop: start=0, step=1, limit=6
    $region2: #{tpu_custom_call.1} parent=1 // loop_pre_header
      _
    $region3: #{tpu_custom_call.1} parent=1 // loop_header
      %s38 = sphi 0, %s42
      %p39 = scmp.ge.s32.totalorder %s38, 6
      %s45 = sphi 0, %s57
      %s46 = sphi 0, %s53
      %s47 = sphi 0, %s45
      %s48 = sphi 0, %s46
      %s49 = sphi 0, %s47
      %s50 = sphi 0, %s48
      %s62 = sphi 0, %s64
      %s65 = sphi 0, %s62
      %s66 = sphi 0, %s65
      %s82 = sphi 0, %s66
      %s86 = sphi 0, %s86
      %s88 = sphi 0, %s86
      %s89 = sphi 0, %s88
      %s103 = sphi 0, %s89
      %s107 = sphi 0, %s107
      %s109 = sphi 0, %s107
      %s110 = sphi 0, %s109
      %s124 = sphi 0, %s110
      %s128 = sphi 0, %s128
      %s130 = sphi 0, %s128
      %s131 = sphi 0, %s130
      %s145 = sphi 0, %s131
      %s149 = sphi 0, %s149
      %s151 = sphi 0, %s149
      %s152 = sphi 0, %s151
      %s166 = sphi 0, %s152
      %s170 = sphi 0, %s170
      %s172 = sphi 0, %s170
      %s173 = sphi 0, %s172
      %s187 = sphi 0, %s173
      %s191 = sphi 0, %s191
      %s193 = sphi 0, %s191
      %s194 = sphi 0, %s193
      %s208 = sphi 0, %s194
      %s212 = sphi 0, %s212
      %s214 = sphi 0, %s212
      %s215 = sphi 0, %s214
      %s229 = sphi 0, %s215
      %s233 = sphi 0, %s233
      %s235 = sphi 0, %s233
      %s236 = sphi 0, %s235
      %s250 = sphi 0, %s236
      %s254 = sphi 0, %s254
      %s256 = sphi 0, %s254
      %s257 = sphi 0, %s256
      %s271 = sphi 0, %s257
      %s275 = sphi 0, %s275
      %s277 = sphi 0, %s275
      %s278 = sphi 0, %s277
      %s292 = sphi 0, %s278
      %s296 = sphi 0, %s296
      %s298 = sphi 0, %s296
      %s299 = sphi 0, %s298
      %s313 = sphi 0, %s299
      %s317 = sphi 0, %s317
      %s319 = sphi 0, %s317
      %s320 = sphi 0, %s319
      %s334 = sphi 0, %s320
      %s340 = sphi 0, %s342
      %s343 = sphi 0, %s340
      %s344 = sphi 0, %s343
      %s360 = sphi 0, %s344
      %s366 = sphi 0, %s368
      %s369 = sphi 0, %s366
      %s370 = sphi 0, %s369
      %s386 = sphi 0, %s370
      %s392 = sphi 0, %s394
      %s395 = sphi 0, %s392
      %s396 = sphi 0, %s395
      %s412 = sphi 0, %s396
    $region4: #{tpu_custom_call.1} parent=1 // loop_header_branch
      %41 = sbr.rel (%p39) target = $region8
    $region5: #{tpu_custom_call.1} parent=1 // loop_body
      %s43 = ssub.s32 %s38, 1
      %s44 = ssub.s32 %s38, 2
      %s51 = sadd.s32 1, %s46
      %p52 = scmp.ge.s32.totalorder %s51, 2
      %s53 = scalar_select %p52, 0, %s51
      %s54 = sadd.s32 1, %s45
      %s55 = scalar_select %p52, %s54, %s45
      %p56 = scmp.ge.s32.totalorder %s55, 2
      %s57 = scalar_select %p56, 0, %s55
      %s58 = ssub.s32 %s45, %s57
      %s59 = ssub.s32 %s46, %s53
      %s60 = sor.u32 %s58, %s59
      %p61 = scmp.eq.s32.totalorder %s60, 0
      %s63 = sadd.s32 %s62, 1
      %s64 = scalar_select %p61, %s62, %s63
      %p67 = pneg %p61
      %p68 = scmp.eq.s32.totalorder %s38, 3
      %p69 = por %p67, %p68
      %p70 = scmp.ne.s32.totalorder %s62, %s65
      %p71 = scmp.eq.s32.totalorder %s38, 0
      %p72 = por %p70, %p71
      %p73 = scmp.ne.s32.totalorder %s62, %s65
      %p74 = scmp.eq.s32.totalorder %s43, 3
      %p75 = por %p73, %p74
      %p76 = scmp.ne.s32.totalorder %s65, %s66
      %p77 = scmp.eq.s32.totalorder %s43, 0
      %p78 = por %p76, %p77
      %p79 = scmp.ne.s32.totalorder %s65, %s66
      %p80 = scmp.eq.s32.totalorder %s44, 3
      %p81 = por %p79, %p80
      %p83 = scmp.ne.s32.totalorder %s66, %s82
      %p84 = scmp.eq.s32.totalorder %s44, 0
      %p85 = por %p83, %p84
      %s87 = sadd.s32 %s86, 1
      %p90 = scmp.eq.s32.totalorder %s38, 3
      %p91 = scmp.ne.s32.totalorder %s86, %s88
      %p92 = scmp.eq.s32.totalorder %s38, 0
      %p93 = por %p91, %p92
      %p94 = scmp.ne.s32.totalorder %s86, %s88
      %p95 = scmp.eq.s32.totalorder %s43, 3
      %p96 = por %p94, %p95
      %p97 = scmp.ne.s32.totalorder %s88, %s89
      %p98 = scmp.eq.s32.totalorder %s43, 0
      %p99 = por %p97, %p98
      %p100 = scmp.ne.s32.totalorder %s88, %s89
      %p101 = scmp.eq.s32.totalorder %s44, 3
      %p102 = por %p100, %p101
      %p104 = scmp.ne.s32.totalorder %s89, %s103
      %p105 = scmp.eq.s32.totalorder %s44, 0
      %p106 = por %p104, %p105
      %s108 = sadd.s32 %s107, 1
      %p111 = scmp.eq.s32.totalorder %s38, 3
      %p112 = scmp.ne.s32.totalorder %s107, %s109
      %p113 = scmp.eq.s32.totalorder %s38, 0
      %p114 = por %p112, %p113
      %p115 = scmp.ne.s32.totalorder %s107, %s109
      %p116 = scmp.eq.s32.totalorder %s43, 3
      %p117 = por %p115, %p116
      %p118 = scmp.ne.s32.totalorder %s109, %s110
      %p119 = scmp.eq.s32.totalorder %s43, 0
      %p120 = por %p118, %p119
      %p121 = scmp.ne.s32.totalorder %s109, %s110
      %p122 = scmp.eq.s32.totalorder %s44, 3
      %p123 = por %p121, %p122
      %p125 = scmp.ne.s32.totalorder %s110, %s124
      %p126 = scmp.eq.s32.totalorder %s44, 0
      %p127 = por %p125, %p126
      %s129 = sadd.s32 %s128, 1
      %p132 = scmp.eq.s32.totalorder %s38, 3
      %p133 = scmp.ne.s32.totalorder %s128, %s130
      %p134 = scmp.eq.s32.totalorder %s38, 0
      %p135 = por %p133, %p134
      %p136 = scmp.ne.s32.totalorder %s128, %s130
      %p137 = scmp.eq.s32.totalorder %s43, 3
      %p138 = por %p136, %p137
      %p139 = scmp.ne.s32.totalorder %s130, %s131
      %p140 = scmp.eq.s32.totalorder %s43, 0
      %p141 = por %p139, %p140
      %p142 = scmp.ne.s32.totalorder %s130, %s131
      %p143 = scmp.eq.s32.totalorder %s44, 3
      %p144 = por %p142, %p143
      %p146 = scmp.ne.s32.totalorder %s131, %s145
      %p147 = scmp.eq.s32.totalorder %s44, 0
      %p148 = por %p146, %p147
      %s150 = sadd.s32 %s149, 1
      %p153 = scmp.eq.s32.totalorder %s38, 3
      %p154 = scmp.ne.s32.totalorder %s149, %s151
      %p155 = scmp.eq.s32.totalorder %s38, 0
      %p156 = por %p154, %p155
      %p157 = scmp.ne.s32.totalorder %s149, %s151
      %p158 = scmp.eq.s32.totalorder %s43, 3
      %p159 = por %p157, %p158
      %p160 = scmp.ne.s32.totalorder %s151, %s152
      %p161 = scmp.eq.s32.totalorder %s43, 0
      %p162 = por %p160, %p161
      %p163 = scmp.ne.s32.totalorder %s151, %s152
      %p164 = scmp.eq.s32.totalorder %s44, 3
      %p165 = por %p163, %p164
      %p167 = scmp.ne.s32.totalorder %s152, %s166
      %p168 = scmp.eq.s32.totalorder %s44, 0
      %p169 = por %p167, %p168
      %s171 = sadd.s32 %s170, 1
      %p174 = scmp.eq.s32.totalorder %s38, 3
      %p175 = scmp.ne.s32.totalorder %s170, %s172
      %p176 = scmp.eq.s32.totalorder %s38, 0
      %p177 = por %p175, %p176
      %p178 = scmp.ne.s32.totalorder %s170, %s172
      %p179 = scmp.eq.s32.totalorder %s43, 3
      %p180 = por %p178, %p179
      %p181 = scmp.ne.s32.totalorder %s172, %s173
      %p182 = scmp.eq.s32.totalorder %s43, 0
      %p183 = por %p181, %p182
      %p184 = scmp.ne.s32.totalorder %s172, %s173
      %p185 = scmp.eq.s32.totalorder %s44, 3
      %p186 = por %p184, %p185
      %p188 = scmp.ne.s32.totalorder %s173, %s187
      %p189 = scmp.eq.s32.totalorder %s44, 0
      %p190 = por %p188, %p189
      %s192 = sadd.s32 %s191, 1
      %p195 = scmp.eq.s32.totalorder %s38, 3
      %p196 = scmp.ne.s32.totalorder %s191, %s193
      %p197 = scmp.eq.s32.totalorder %s38, 0
      %p198 = por %p196, %p197
      %p199 = scmp.ne.s32.totalorder %s191, %s193
      %p200 = scmp.eq.s32.totalorder %s43, 3
      %p201 = por %p199, %p200
      %p202 = scmp.ne.s32.totalorder %s193, %s194
      %p203 = scmp.eq.s32.totalorder %s43, 0
      %p204 = por %p202, %p203
      %p205 = scmp.ne.s32.totalorder %s193, %s194
      %p206 = scmp.eq.s32.totalorder %s44, 3
      %p207 = por %p205, %p206
      %p209 = scmp.ne.s32.totalorder %s194, %s208
      %p210 = scmp.eq.s32.totalorder %s44, 0
      %p211 = por %p209, %p210
      %s213 = sadd.s32 %s212, 1
      %p216 = scmp.eq.s32.totalorder %s38, 3
      %p217 = scmp.ne.s32.totalorder %s212, %s214
      %p218 = scmp.eq.s32.totalorder %s38, 0
      %p219 = por %p217, %p218
      %p220 = scmp.ne.s32.totalorder %s212, %s214
      %p221 = scmp.eq.s32.totalorder %s43, 3
      %p222 = por %p220, %p221
      %p223 = scmp.ne.s32.totalorder %s214, %s215
      %p224 = scmp.eq.s32.totalorder %s43, 0
      %p225 = por %p223, %p224
      %p226 = scmp.ne.s32.totalorder %s214, %s215
      %p227 = scmp.eq.s32.totalorder %s44, 3
      %p228 = por %p226, %p227
      %p230 = scmp.ne.s32.totalorder %s215, %s229
      %p231 = scmp.eq.s32.totalorder %s44, 0
      %p232 = por %p230, %p231
      %s234 = sadd.s32 %s233, 1
      %p237 = scmp.eq.s32.totalorder %s38, 3
      %p238 = scmp.ne.s32.totalorder %s233, %s235
      %p239 = scmp.eq.s32.totalorder %s38, 0
      %p240 = por %p238, %p239
      %p241 = scmp.ne.s32.totalorder %s233, %s235
      %p242 = scmp.eq.s32.totalorder %s43, 3
      %p243 = por %p241, %p242
      %p244 = scmp.ne.s32.totalorder %s235, %s236
      %p245 = scmp.eq.s32.totalorder %s43, 0
      %p246 = por %p244, %p245
      %p247 = scmp.ne.s32.totalorder %s235, %s236
      %p248 = scmp.eq.s32.totalorder %s44, 3
      %p249 = por %p247, %p248
      %p251 = scmp.ne.s32.totalorder %s236, %s250
      %p252 = scmp.eq.s32.totalorder %s44, 0
      %p253 = por %p251, %p252
      %s255 = sadd.s32 %s254, 1
      %p258 = scmp.eq.s32.totalorder %s38, 3
      %p259 = scmp.ne.s32.totalorder %s254, %s256
      %p260 = scmp.eq.s32.totalorder %s38, 0
      %p261 = por %p259, %p260
      %p262 = scmp.ne.s32.totalorder %s254, %s256
      %p263 = scmp.eq.s32.totalorder %s43, 3
      %p264 = por %p262, %p263
      %p265 = scmp.ne.s32.totalorder %s256, %s257
      %p266 = scmp.eq.s32.totalorder %s43, 0
      %p267 = por %p265, %p266
      %p268 = scmp.ne.s32.totalorder %s256, %s257
      %p269 = scmp.eq.s32.totalorder %s44, 3
      %p270 = por %p268, %p269
      %p272 = scmp.ne.s32.totalorder %s257, %s271
      %p273 = scmp.eq.s32.totalorder %s44, 0
      %p274 = por %p272, %p273
      %s276 = sadd.s32 %s275, 1
      %p279 = scmp.eq.s32.totalorder %s38, 3
      %p280 = scmp.ne.s32.totalorder %s275, %s277
      %p281 = scmp.eq.s32.totalorder %s38, 0
      %p282 = por %p280, %p281
      %p283 = scmp.ne.s32.totalorder %s275, %s277
      %p284 = scmp.eq.s32.totalorder %s43, 3
      %p285 = por %p283, %p284
      %p286 = scmp.ne.s32.totalorder %s277, %s278
      %p287 = scmp.eq.s32.totalorder %s43, 0
      %p288 = por %p286, %p287
      %p289 = scmp.ne.s32.totalorder %s277, %s278
      %p290 = scmp.eq.s32.totalorder %s44, 3
      %p291 = por %p289, %p290
      %p293 = scmp.ne.s32.totalorder %s278, %s292
      %p294 = scmp.eq.s32.totalorder %s44, 0
      %p295 = por %p293, %p294
      %s297 = sadd.s32 %s296, 1
      %p300 = scmp.eq.s32.totalorder %s38, 3
      %p301 = scmp.ne.s32.totalorder %s296, %s298
      %p302 = scmp.eq.s32.totalorder %s38, 0
      %p303 = por %p301, %p302
      %p304 = scmp.ne.s32.totalorder %s296, %s298
      %p305 = scmp.eq.s32.totalorder %s43, 3
      %p306 = por %p304, %p305
      %p307 = scmp.ne.s32.totalorder %s298, %s299
      %p308 = scmp.eq.s32.totalorder %s43, 0
      %p309 = por %p307, %p308
      %p310 = scmp.ne.s32.totalorder %s298, %s299
      %p311 = scmp.eq.s32.totalorder %s44, 3
      %p312 = por %p310, %p311
      %p314 = scmp.ne.s32.totalorder %s299, %s313
      %p315 = scmp.eq.s32.totalorder %s44, 0
      %p316 = por %p314, %p315
      %s318 = sadd.s32 %s317, 1
      %p321 = scmp.eq.s32.totalorder %s38, 3
      %p322 = scmp.ne.s32.totalorder %s317, %s319
      %p323 = scmp.eq.s32.totalorder %s38, 0
      %p324 = por %p322, %p323
      %p325 = scmp.ne.s32.totalorder %s317, %s319
      %p326 = scmp.eq.s32.totalorder %s43, 3
      %p327 = por %p325, %p326
      %p328 = scmp.ne.s32.totalorder %s319, %s320
      %p329 = scmp.eq.s32.totalorder %s43, 0
      %p330 = por %p328, %p329
      %p331 = scmp.ne.s32.totalorder %s319, %s320
      %p332 = scmp.eq.s32.totalorder %s44, 3
      %p333 = por %p331, %p332
      %p335 = scmp.ne.s32.totalorder %s320, %s334
      %p336 = scmp.eq.s32.totalorder %s44, 0
      %p337 = por %p335, %p336
      %s338 = ssub.s32 %s45, %s57
      %p339 = scmp.eq.s32.totalorder %s338, 0
      %s341 = sadd.s32 %s340, 1
      %s342 = scalar_select %p339, %s340, %s341
      %p345 = pneg %p339
      %p346 = scmp.eq.s32.totalorder %s38, 3
      %p347 = por %p345, %p346
      %p348 = scmp.ne.s32.totalorder %s340, %s343
      %p349 = scmp.eq.s32.totalorder %s38, 0
      %p350 = por %p348, %p349
      %p351 = scmp.ne.s32.totalorder %s340, %s343
      %p352 = scmp.eq.s32.totalorder %s43, 3
      %p353 = por %p351, %p352
      %p354 = scmp.ne.s32.totalorder %s343, %s344
      %p355 = scmp.eq.s32.totalorder %s43, 0
      %p356 = por %p354, %p355
      %p357 = scmp.ne.s32.totalorder %s343, %s344
      %p358 = scmp.eq.s32.totalorder %s44, 3
      %p359 = por %p357, %p358
      %p361 = scmp.ne.s32.totalorder %s344, %s360
      %p362 = scmp.eq.s32.totalorder %s44, 0
      %p363 = por %p361, %p362
      %s364 = ssub.s32 %s45, %s57
      %p365 = scmp.eq.s32.totalorder %s364, 0
      %s367 = sadd.s32 %s366, 1
      %s368 = scalar_select %p365, %s366, %s367
      %p371 = pneg %p365
      %p372 = scmp.eq.s32.totalorder %s38, 3
      %p373 = por %p371, %p372
      %p374 = scmp.ne.s32.totalorder %s366, %s369
      %p375 = scmp.eq.s32.totalorder %s38, 0
      %p376 = por %p374, %p375
      %p377 = scmp.ne.s32.totalorder %s366, %s369
      %p378 = scmp.eq.s32.totalorder %s43, 3
      %p379 = por %p377, %p378
      %p380 = scmp.ne.s32.totalorder %s369, %s370
      %p381 = scmp.eq.s32.totalorder %s43, 0
      %p382 = por %p380, %p381
      %p383 = scmp.ne.s32.totalorder %s369, %s370
      %p384 = scmp.eq.s32.totalorder %s44, 3
      %p385 = por %p383, %p384
      %p387 = scmp.ne.s32.totalorder %s370, %s386
      %p388 = scmp.eq.s32.totalorder %s44, 0
      %p389 = por %p387, %p388
      %s390 = ssub.s32 %s45, %s57
      %p391 = scmp.eq.s32.totalorder %s390, 0
      %s393 = sadd.s32 %s392, 1
      %s394 = scalar_select %p391, %s392, %s393
      %p397 = pneg %p391
      %p398 = scmp.eq.s32.totalorder %s38, 3
      %p399 = por %p397, %p398
      %p400 = scmp.ne.s32.totalorder %s392, %s395
      %p401 = scmp.eq.s32.totalorder %s38, 0
      %p402 = por %p400, %p401
      %p403 = scmp.ne.s32.totalorder %s392, %s395
      %p404 = scmp.eq.s32.totalorder %s43, 3
      %p405 = por %p403, %p404
      %p406 = scmp.ne.s32.totalorder %s395, %s396
      %p407 = scmp.eq.s32.totalorder %s43, 0
      %p408 = por %p406, %p407
      %p409 = scmp.ne.s32.totalorder %s395, %s396
      %p410 = scmp.eq.s32.totalorder %s44, 3
      %p411 = por %p409, %p410
      %p413 = scmp.ne.s32.totalorder %s396, %s412
      %p414 = scmp.eq.s32.totalorder %s44, 0
      %p415 = por %p413, %p414
      %p416 = scmp.le.s32.totalorder 1, %s38
      %p417 = scmp.lt.s32.totalorder %s38, 5
      %p418 = pnand %p416, %p417
      %p419 = pneg %p418
      // Predicated region
      $region9: #{tpu_custom_call.1} parent=5 // pred_check
        _
      $region10: #{tpu_custom_call.1} parent=5 // pred_check_branch
        %421 = sbr.rel (%p418) target = $region12
      $region11: #{tpu_custom_call.1} parent=5 // pred_region
        %s422 = ssub.s32 %s38, 1
        // Predicated region
        $region13: #{tpu_custom_call.1} parent=11 // pred_check
          %p423 = pneg %p99
        $region14: #{tpu_custom_call.1} parent=11 // pred_check_branch
          %425 = sbr.rel (%p423) target = $region16
        $region15: #{tpu_custom_call.1} parent=11 // pred_region
          %s427 = ssub.s32 32768, 32768
          %428 = vsyncadd [#allocation10], %s427
          %s429 = sshll.u32 [#allocation9], 4
          %s430 = int_to_ptr.vmem [resolvable:$true] %s429
          %435 = dma.hbm_to_vmem [thread:$0]  %s1, 32768, %s430, [#allocation10], 256, 256, 16
        $region16: #{tpu_custom_call.1} parent=11 // pred_fallthru
          _
        // Predicated region
        $region17: #{tpu_custom_call.1} parent=11 // pred_check
          %p436 = pneg %p120
        $region18: #{tpu_custom_call.1} parent=11 // pred_check_branch
          %438 = sbr.rel (%p436) target = $region20
        $region19: #{tpu_custom_call.1} parent=11 // pred_region
          %s440 = ssub.s32 64, 64
          %441 = vsyncadd [#allocation10], %s440
          %s443 = sshll.u32 [#allocation11], 4
          %s444 = int_to_ptr.vmem [resolvable:$true] %s443
          %446 = dma.hbm_to_vmem [thread:$0]  %s2, 64, %s444, [#allocation10]
        $region20: #{tpu_custom_call.1} parent=11 // pred_fallthru
          _
        // Predicated region
        $region21: #{tpu_custom_call.1} parent=11 // pred_check
          %p447 = pneg %p141
        $region22: #{tpu_custom_call.1} parent=11 // pred_check_branch
          %449 = sbr.rel (%p447) target = $region24
        $region23: #{tpu_custom_call.1} parent=11 // pred_region
          %s451 = ssub.s32 8192, 8192
          %452 = vsyncadd [#allocation13], %s451
          %s453 = sshll.u32 [#allocation12], 4
          %s454 = int_to_ptr.vmem [resolvable:$true] %s453
          %459 = dma.hbm_to_vmem [thread:$0]  %s3, 8192, %s454, [#allocation13], 128, 128, 8
        $region24: #{tpu_custom_call.1} parent=11 // pred_fallthru
          _
        // Predicated region
        $region25: #{tpu_custom_call.1} parent=11 // pred_check
          %p460 = pneg %p162
        $region26: #{tpu_custom_call.1} parent=11 // pred_check_branch
          %462 = sbr.rel (%p460) target = $region28
        $region27: #{tpu_custom_call.1} parent=11 // pred_region
          %s464 = ssub.s32 32, 32
          %465 = vsyncadd [#allocation13], %s464
          %s467 = sshll.u32 [#allocation14], 4
          %s468 = int_to_ptr.vmem [resolvable:$true] %s467
          %470 = dma.hbm_to_vmem [thread:$0]  %s4, 32, %s468, [#allocation13]
        $region28: #{tpu_custom_call.1} parent=11 // pred_fallthru
          _
        // Predicated region
        $region29: #{tpu_custom_call.1} parent=11 // pred_check
          %p471 = pneg %p183
        $region30: #{tpu_custom_call.1} parent=11 // pred_check_branch
          %473 = sbr.rel (%p471) target = $region32
        $region31: #{tpu_custom_call.1} parent=11 // pred_region
          %s475 = ssub.s32 8192, 8192
          %476 = vsyncadd [#allocation16], %s475
          %s477 = sshll.u32 [#allocation15], 4
          %s478 = int_to_ptr.vmem [resolvable:$true] %s477
          %483 = dma.hbm_to_vmem [thread:$0]  %s5, 8192, %s478, [#allocation16], 128, 128, 8
        $region32: #{tpu_custom_call.1} parent=11 // pred_fallthru
          _
        // Predicated region
        $region33: #{tpu_custom_call.1} parent=11 // pred_check
          %p484 = pneg %p204
        $region34: #{tpu_custom_call.1} parent=11 // pred_check_branch
          %486 = sbr.rel (%p484) target = $region36
        $region35: #{tpu_custom_call.1} parent=11 // pred_region
          %s488 = ssub.s32 32, 32
          %489 = vsyncadd [#allocation16], %s488
          %s491 = sshll.u32 [#allocation17], 4
          %s492 = int_to_ptr.vmem [resolvable:$true] %s491
          %494 = dma.hbm_to_vmem [thread:$0]  %s6, 32, %s492, [#allocation16]
        $region36: #{tpu_custom_call.1} parent=11 // pred_fallthru
          _
        // Predicated region
        $region37: #{tpu_custom_call.1} parent=11 // pred_check
          %p495 = pneg %p225
        $region38: #{tpu_custom_call.1} parent=11 // pred_check_branch
          %497 = sbr.rel (%p495) target = $region40
        $region39: #{tpu_custom_call.1} parent=11 // pred_region
          %s499 = ssub.s32 32, 32
          %500 = vsyncadd [#allocation19], %s499
          %s502 = sshll.u32 [#allocation18], 4
          %s503 = int_to_ptr.vmem [resolvable:$true] %s502
          %505 = dma.hbm_to_vmem [thread:$0]  %s7, 32, %s503, [#allocation19]
        $region40: #{tpu_custom_call.1} parent=11 // pred_fallthru
          _
        // Predicated region
        $region41: #{tpu_custom_call.1} parent=11 // pred_check
          %p506 = pneg %p246
        $region42: #{tpu_custom_call.1} parent=11 // pred_check_branch
          %508 = sbr.rel (%p506) target = $region44
        $region43: #{tpu_custom_call.1} parent=11 // pred_region
          _
        $region44: #{tpu_custom_call.1} parent=11 // pred_fallthru
          _
        // Predicated region
        $region45: #{tpu_custom_call.1} parent=11 // pred_check
          %p509 = pneg %p267
        $region46: #{tpu_custom_call.1} parent=11 // pred_check_branch
          %511 = sbr.rel (%p509) target = $region48
        $region47: #{tpu_custom_call.1} parent=11 // pred_region
          %s513 = ssub.s32 16384, 16384
          %514 = vsyncadd [#allocation19], %s513
          %s515 = sshll.u32 [#allocation20], 4
          %s516 = int_to_ptr.vmem [resolvable:$true] %s515
          %521 = dma.hbm_to_vmem [thread:$0]  %s9, 16384, %s516, [#allocation19], 256, 256, 16
        $region48: #{tpu_custom_call.1} parent=11 // pred_fallthru
          _
        // Predicated region
        $region49: #{tpu_custom_call.1} parent=11 // pred_check
          %p522 = pneg %p288
        $region50: #{tpu_custom_call.1} parent=11 // pred_check_branch
          %524 = sbr.rel (%p522) target = $region52
        $region51: #{tpu_custom_call.1} parent=11 // pred_region
          %s526 = ssub.s32 32, 32
          %527 = vsyncadd [#allocation22], %s526
          %s529 = sshll.u32 [#allocation21], 4
          %s530 = int_to_ptr.vmem [resolvable:$true] %s529
          %532 = dma.hbm_to_vmem [thread:$0]  %s10, 32, %s530, [#allocation22]
        $region52: #{tpu_custom_call.1} parent=11 // pred_fallthru
          _
        // Predicated region
        $region53: #{tpu_custom_call.1} parent=11 // pred_check
          %p533 = pneg %p309
        $region54: #{tpu_custom_call.1} parent=11 // pred_check_branch
          %535 = sbr.rel (%p533) target = $region56
        $region55: #{tpu_custom_call.1} parent=11 // pred_region
          _
        $region56: #{tpu_custom_call.1} parent=11 // pred_fallthru
          _
        // Predicated region
        $region57: #{tpu_custom_call.1} parent=11 // pred_check
          %p536 = pneg %p330
        $region58: #{tpu_custom_call.1} parent=11 // pred_check_branch
          %538 = sbr.rel (%p536) target = $region60
        $region59: #{tpu_custom_call.1} parent=11 // pred_region
          %s540 = ssub.s32 16, 16
          %541 = vsyncadd [#allocation22], %s540
          %s543 = sshll.u32 [#allocation23], 4
          %s544 = int_to_ptr.vmem [resolvable:$true] %s543
          %546 = dma.hbm_to_vmem [thread:$0]  %s12, 16, %s544, [#allocation22]
        $region60: #{tpu_custom_call.1} parent=11 // pred_fallthru
          _
      $region12: #{tpu_custom_call.1} parent=5 // pred_fallthru
        _
      %p547 = scmp.lt.s32.totalorder %s38, 4
      // Predicated region
      $region61: #{tpu_custom_call.1} parent=5 // pred_check
        %p548 = pneg %p547
      $region62: #{tpu_custom_call.1} parent=5 // pred_check_branch
        %550 = sbr.rel (%p548) target = $region64
      $region63: #{tpu_custom_call.1} parent=5 // pred_region
        // Predicated region
        $region65: #{tpu_custom_call.1} parent=63 // pred_check
          %p551 = pneg %p72
        $region66: #{tpu_custom_call.1} parent=63 // pred_check_branch
          %553 = sbr.rel (%p551) target = $region68
        $region67: #{tpu_custom_call.1} parent=63 // pred_region
          %s554 = sand.u32 %s62, 1
          %s555 = scalar_lea.sflag [#allocation7], %s554
          %s556 = sand.u32 %s62, 1
          %s557 = smul.addr %s556, 2048
          %s558 = scalar_lea.vmem [#allocation6], %s557
          %s559 = smul.u32 32, %s46
          %s561 = ssub.s32 32768, 32768
          %562 = vsyncadd %s555, %s561
          %s563 = smul.addr %s559, 8
          %s564 = smul.addr %s45, 512
          %s565 = sadd.s32 %s563, %s564
          %s566 = smul.addr %s565, 128
          %s567 = scalar_lea.hbm %s0, %s566
          %s568 = sshll.u32 %s558, 4
          %s569 = int_to_ptr.vmem [resolvable:$true] %s568
          %574 = dma.hbm_to_vmem [thread:$0]  %s567, 32768, %s569, %s555, 1024, 1024, 64
        $region68: #{tpu_custom_call.1} parent=63 // pred_fallthru
          _
      $region64: #{tpu_custom_call.1} parent=5 // pred_fallthru
        _
      %p575 = scmp.le.s32.totalorder 1, %s38
      %p576 = scmp.lt.s32.totalorder %s38, 5
      %p577 = pnand %p575, %p576
      %p578 = pneg %p577
      // Predicated region
      $region69: #{tpu_custom_call.1} parent=5 // pred_check
        _
      $region70: #{tpu_custom_call.1} parent=5 // pred_check_branch
        %580 = sbr.rel (%p577) target = $region72
      $region71: #{tpu_custom_call.1} parent=5 // pred_region
        %s581 = ssub.s32 %s38, 1
        %s582 = sand.u32 %s65, 1
        %s583 = scalar_lea.sflag [#allocation7], %s582
        %s584 = sand.u32 %s65, 1
        %s585 = smul.addr %s584, 2048
        %s586 = scalar_lea.vmem [#allocation6], %s585
        // Predicated region
        $region73: #{tpu_custom_call.1} parent=71 // pred_check
          %p587 = pneg %p78
        $region74: #{tpu_custom_call.1} parent=71 // pred_check_branch
          %589 = sbr.rel (%p587) target = $region76
        $region75: #{tpu_custom_call.1} parent=71 // pred_region
          %590 = dma.done %s583, 32768
        $region76: #{tpu_custom_call.1} parent=71 // pred_fallthru
          _
        // Predicated region
        $region77: #{tpu_custom_call.1} parent=71 // pred_check
          %p591 = pneg %p99
        $region78: #{tpu_custom_call.1} parent=71 // pred_check_branch
          %593 = sbr.rel (%p591) target = $region80
        $region79: #{tpu_custom_call.1} parent=71 // pred_region
          %594 = dma.done [#allocation10], 32768
        $region80: #{tpu_custom_call.1} parent=71 // pred_fallthru
          _
        // Predicated region
        $region81: #{tpu_custom_call.1} parent=71 // pred_check
          %p595 = pneg %p120
        $region82: #{tpu_custom_call.1} parent=71 // pred_check_branch
          %597 = sbr.rel (%p595) target = $region84
        $region83: #{tpu_custom_call.1} parent=71 // pred_region
          %598 = dma.done [#allocation10], 64
        $region84: #{tpu_custom_call.1} parent=71 // pred_fallthru
          _
        // Predicated region
        $region85: #{tpu_custom_call.1} parent=71 // pred_check
          %p599 = pneg %p141
        $region86: #{tpu_custom_call.1} parent=71 // pred_check_branch
          %601 = sbr.rel (%p599) target = $region88
        $region87: #{tpu_custom_call.1} parent=71 // pred_region
          %602 = dma.done [#allocation13], 8192
        $region88: #{tpu_custom_call.1} parent=71 // pred_fallthru
          _
        // Predicated region
        $region89: #{tpu_custom_call.1} parent=71 // pred_check
          %p603 = pneg %p162
        $region90: #{tpu_custom_call.1} parent=71 // pred_check_branch
          %605 = sbr.rel (%p603) target = $region92
        $region91: #{tpu_custom_call.1} parent=71 // pred_region
          %606 = dma.done [#allocation13], 32
        $region92: #{tpu_custom_call.1} parent=71 // pred_fallthru
          _
        // Predicated region
        $region93: #{tpu_custom_call.1} parent=71 // pred_check
          %p607 = pneg %p183
        $region94: #{tpu_custom_call.1} parent=71 // pred_check_branch
          %609 = sbr.rel (%p607) target = $region96
        $region95: #{tpu_custom_call.1} parent=71 // pred_region
          %610 = dma.done [#allocation16], 8192
        $region96: #{tpu_custom_call.1} parent=71 // pred_fallthru
          _
        // Predicated region
        $region97: #{tpu_custom_call.1} parent=71 // pred_check
          %p611 = pneg %p204
        $region98: #{tpu_custom_call.1} parent=71 // pred_check_branch
          %613 = sbr.rel (%p611) target = $region100
        $region99: #{tpu_custom_call.1} parent=71 // pred_region
          %614 = dma.done [#allocation16], 32
        $region100: #{tpu_custom_call.1} parent=71 // pred_fallthru
          _
        // Predicated region
        $region101: #{tpu_custom_call.1} parent=71 // pred_check
          %p615 = pneg %p225
        $region102: #{tpu_custom_call.1} parent=71 // pred_check_branch
          %617 = sbr.rel (%p615) target = $region104
        $region103: #{tpu_custom_call.1} parent=71 // pred_region
          %618 = dma.done [#allocation19], 32
        $region104: #{tpu_custom_call.1} parent=71 // pred_fallthru
          _
        // Predicated region
        $region105: #{tpu_custom_call.1} parent=71 // pred_check
          %p619 = pneg %p267
        $region106: #{tpu_custom_call.1} parent=71 // pred_check_branch
          %621 = sbr.rel (%p619) target = $region108
        $region107: #{tpu_custom_call.1} parent=71 // pred_region
          %622 = dma.done [#allocation19], 16384
        $region108: #{tpu_custom_call.1} parent=71 // pred_fallthru
          _
        // Predicated region
        $region109: #{tpu_custom_call.1} parent=71 // pred_check
          %p623 = pneg %p288
        $region110: #{tpu_custom_call.1} parent=71 // pred_check_branch
          %625 = sbr.rel (%p623) target = $region112
        $region111: #{tpu_custom_call.1} parent=71 // pred_region
          %626 = dma.done [#allocation22], 32
        $region112: #{tpu_custom_call.1} parent=71 // pred_fallthru
          _
        // Predicated region
        $region113: #{tpu_custom_call.1} parent=71 // pred_check
          %p627 = pneg %p330
        $region114: #{tpu_custom_call.1} parent=71 // pred_check_branch
          %629 = sbr.rel (%p627) target = $region116
        $region115: #{tpu_custom_call.1} parent=71 // pred_region
          %630 = dma.done [#allocation22], 16
        $region116: #{tpu_custom_call.1} parent=71 // pred_fallthru
          _
        %s631 = sand.u32 %s65, 1
        %s632 = scalar_lea.sflag [#allocation7], %s631
        %s633 = sand.u32 %s65, 1
        %s634 = smul.addr %s633, 2048
        %s635 = scalar_lea.vmem [#allocation6], %s634
        %p636 = pneg %p78
        %p637 = pneg %p75
        %p638 = pneg %p99
        %p639 = pneg %p96
        %p640 = pneg %p120
        %p641 = pneg %p117
        %p642 = pneg %p141
        %p643 = pneg %p138
        %p644 = pneg %p162
        %p645 = pneg %p159
        %p646 = pneg %p183
        %p647 = pneg %p180
        %p648 = pneg %p204
        %p649 = pneg %p201
        %p650 = pneg %p225
        %p651 = pneg %p222
        %p652 = pneg %p246
        %p653 = pneg %p243
        %p654 = pneg %p267
        %p655 = pneg %p264
        %p656 = pneg %p288
        %p657 = pneg %p285
        %p658 = pneg %p309
        %p659 = pneg %p306
        %p660 = pneg %p330
        %p661 = pneg %p327
        %p662 = pneg %p356
        %p663 = pneg %p353
        %s664 = sand.u32 %s343, 1
        %s665 = scalar_lea.sflag [#allocation8], %s664
        %s666 = sand.u32 %s343, 1
        %s667 = scalar_lea.vmem [#allocation24], %s666
        %p668 = pneg %p382
        %p669 = pneg %p379
        %s670 = sand.u32 %s43, 1
        %s671 = scalar_lea.sflag [#allocation26], %s670
        %s672 = sand.u32 %s369, 1
        %s673 = scalar_lea.vmem [#allocation25], %s672
        %p674 = pneg %p408
        %p675 = pneg %p405
        %s676 = sand.u32 %s43, 1
        %s677 = scalar_lea.sflag [#allocation26], %s676
        %s678 = sand.u32 %s395, 1
        %s679 = scalar_lea.vmem [#allocation27], %s678
        %s680 = smul.u32 32, %s48
        %p681 = scmp.eq.s32.totalorder %s48, 0
        // Predicated region
        $region117: #{tpu_custom_call.1} parent=71 // pred_check
          %p682 = pneg %p681
        $region118: #{tpu_custom_call.1} parent=71 // pred_check_branch
          %684 = sbr.rel (%p682) target = $region120
        $region119: #{tpu_custom_call.1} parent=71 // pred_region
          %vm685 = vcmask 0
          %686 = vst.msk [vmem:[#allocation2] sm:$0x1] %vm685, -inf
          %687 = vst.msk [vmem:[#allocation3] sm:$0x1] %vm685, 0.0
          %v688 = vlaneseq
          %vm689 = vcmp.ge.s32.totalorder %v688, 0
          %vm690 = vcmp.lt.s32.totalorder %v688, 512
          %vm691 = vmand %vm689, %vm690
          %692 = vst.msk [vmem:[#allocation4] sm:$0xf] %vm691, 0.0
        $region120: #{tpu_custom_call.1} parent=71 // pred_fallthru
          _
        %v693 = vld [vmem:[%s586] sm:$0xff]
        %v694 = vld [vmem:[%s586 + $0x8] sm:$0xff]
        %v695 = vld [vmem:[%s586 + $0x10] sm:$0xff]
        %v696 = vld [vmem:[%s586 + $0x18] sm:$0xff]
        %v697 = vld [vmem:[%s586 + $0x20] sm:$0xff]
        %v698 = vld [vmem:[%s586 + $0x28] sm:$0xff]
        %v699 = vld [vmem:[%s586 + $0x30] sm:$0xff]
        %v700 = vld [vmem:[%s586 + $0x38] sm:$0xff]
        %v701 = vld [vmem:[%s586 + $0x40] sm:$0xff]
        %v702 = vld [vmem:[%s586 + $0x48] sm:$0xff]
        %v703 = vld [vmem:[%s586 + $0x50] sm:$0xff]
        %v704 = vld [vmem:[%s586 + $0x58] sm:$0xff]
        %v705 = vld [vmem:[%s586 + $0x60] sm:$0xff]
        %v706 = vld [vmem:[%s586 + $0x68] sm:$0xff]
        %v707 = vld [vmem:[%s586 + $0x70] sm:$0xff]
        %v708 = vld [vmem:[%s586 + $0x78] sm:$0xff]
        %v709 = vld [vmem:[%s586 + $0x80] sm:$0xff]
        %v710 = vld [vmem:[%s586 + $0x88] sm:$0xff]
        %v711 = vld [vmem:[%s586 + $0x90] sm:$0xff]
        %v712 = vld [vmem:[%s586 + $0x98] sm:$0xff]
        %v713 = vld [vmem:[%s586 + $0xa0] sm:$0xff]
        %v714 = vld [vmem:[%s586 + $0xa8] sm:$0xff]
        %v715 = vld [vmem:[%s586 + $0xb0] sm:$0xff]
        %v716 = vld [vmem:[%s586 + $0xb8] sm:$0xff]
        %v717 = vld [vmem:[%s586 + $0xc0] sm:$0xff]
        %v718 = vld [vmem:[%s586 + $0xc8] sm:$0xff]
        %v719 = vld [vmem:[%s586 + $0xd0] sm:$0xff]
        %v720 = vld [vmem:[%s586 + $0xd8] sm:$0xff]
        %v721 = vld [vmem:[%s586 + $0xe0] sm:$0xff]
        %v722 = vld [vmem:[%s586 + $0xe8] sm:$0xff]
        %v723 = vld [vmem:[%s586 + $0xf0] sm:$0xff]
        %v724 = vld [vmem:[%s586 + $0xf8] sm:$0xff]
        %v725 = vld [vmem:[%s586 + $0x100] sm:$0xff]
        %v726 = vld [vmem:[%s586 + $0x108] sm:$0xff]
        %v727 = vld [vmem:[%s586 + $0x110] sm:$0xff]
        %v728 = vld [vmem:[%s586 + $0x118] sm:$0xff]
        %v729 = vld [vmem:[%s586 + $0x120] sm:$0xff]
        %v730 = vld [vmem:[%s586 + $0x128] sm:$0xff]
        %v731 = vld [vmem:[%s586 + $0x130] sm:$0xff]
        %v732 = vld [vmem:[%s586 + $0x138] sm:$0xff]
        %v733 = vld [vmem:[%s586 + $0x140] sm:$0xff]
        %v734 = vld [vmem:[%s586 + $0x148] sm:$0xff]
        %v735 = vld [vmem:[%s586 + $0x150] sm:$0xff]
        %v736 = vld [vmem:[%s586 + $0x158] sm:$0xff]
        %v737 = vld [vmem:[%s586 + $0x160] sm:$0xff]
        %v738 = vld [vmem:[%s586 + $0x168] sm:$0xff]
        %v739 = vld [vmem:[%s586 + $0x170] sm:$0xff]
        %v740 = vld [vmem:[%s586 + $0x178] sm:$0xff]
        %v741 = vld [vmem:[%s586 + $0x180] sm:$0xff]
        %v742 = vld [vmem:[%s586 + $0x188] sm:$0xff]
        %v743 = vld [vmem:[%s586 + $0x190] sm:$0xff]
        %v744 = vld [vmem:[%s586 + $0x198] sm:$0xff]
        %v745 = vld [vmem:[%s586 + $0x1a0] sm:$0xff]
        %v746 = vld [vmem:[%s586 + $0x1a8] sm:$0xff]
        %v747 = vld [vmem:[%s586 + $0x1b0] sm:$0xff]
        %v748 = vld [vmem:[%s586 + $0x1b8] sm:$0xff]
        %v749 = vld [vmem:[%s586 + $0x1c0] sm:$0xff]
        %v750 = vld [vmem:[%s586 + $0x1c8] sm:$0xff]
        %v751 = vld [vmem:[%s586 + $0x1d0] sm:$0xff]
        %v752 = vld [vmem:[%s586 + $0x1d8] sm:$0xff]
        %v753 = vld [vmem:[%s586 + $0x1e0] sm:$0xff]
        %v754 = vld [vmem:[%s586 + $0x1e8] sm:$0xff]
        %v755 = vld [vmem:[%s586 + $0x1f0] sm:$0xff]
        %v756 = vld [vmem:[%s586 + $0x1f8] sm:$0xff]
        %v757 = vld [vmem:[%s586 + $0x200] sm:$0xff]
        %v758 = vld [vmem:[%s586 + $0x208] sm:$0xff]
        %v759 = vld [vmem:[%s586 + $0x210] sm:$0xff]
        %v760 = vld [vmem:[%s586 + $0x218] sm:$0xff]
        %v761 = vld [vmem:[%s586 + $0x220] sm:$0xff]
        %v762 = vld [vmem:[%s586 + $0x228] sm:$0xff]
        %v763 = vld [vmem:[%s586 + $0x230] sm:$0xff]
        %v764 = vld [vmem:[%s586 + $0x238] sm:$0xff]
        %v765 = vld [vmem:[%s586 + $0x240] sm:$0xff]
        %v766 = vld [vmem:[%s586 + $0x248] sm:$0xff]
        %v767 = vld [vmem:[%s586 + $0x250] sm:$0xff]
        %v768 = vld [vmem:[%s586 + $0x258] sm:$0xff]
        %v769 = vld [vmem:[%s586 + $0x260] sm:$0xff]
        %v770 = vld [vmem:[%s586 + $0x268] sm:$0xff]
        %v771 = vld [vmem:[%s586 + $0x270] sm:$0xff]
        %v772 = vld [vmem:[%s586 + $0x278] sm:$0xff]
        %v773 = vld [vmem:[%s586 + $0x280] sm:$0xff]
        %v774 = vld [vmem:[%s586 + $0x288] sm:$0xff]
        %v775 = vld [vmem:[%s586 + $0x290] sm:$0xff]
        %v776 = vld [vmem:[%s586 + $0x298] sm:$0xff]
        %v777 = vld [vmem:[%s586 + $0x2a0] sm:$0xff]
        %v778 = vld [vmem:[%s586 + $0x2a8] sm:$0xff]
        %v779 = vld [vmem:[%s586 + $0x2b0] sm:$0xff]
        %v780 = vld [vmem:[%s586 + $0x2b8] sm:$0xff]
        %v781 = vld [vmem:[%s586 + $0x2c0] sm:$0xff]
        %v782 = vld [vmem:[%s586 + $0x2c8] sm:$0xff]
        %v783 = vld [vmem:[%s586 + $0x2d0] sm:$0xff]
        %v784 = vld [vmem:[%s586 + $0x2d8] sm:$0xff]
        %v785 = vld [vmem:[%s586 + $0x2e0] sm:$0xff]
        %v786 = vld [vmem:[%s586 + $0x2e8] sm:$0xff]
        %v787 = vld [vmem:[%s586 + $0x2f0] sm:$0xff]
        %v788 = vld [vmem:[%s586 + $0x2f8] sm:$0xff]
        %v789 = vld [vmem:[%s586 + $0x300] sm:$0xff]
        %v790 = vld [vmem:[%s586 + $0x308] sm:$0xff]
        %v791 = vld [vmem:[%s586 + $0x310] sm:$0xff]
        %v792 = vld [vmem:[%s586 + $0x318] sm:$0xff]
        %v793 = vld [vmem:[%s586 + $0x320] sm:$0xff]
        %v794 = vld [vmem:[%s586 + $0x328] sm:$0xff]
        %v795 = vld [vmem:[%s586 + $0x330] sm:$0xff]
        %v796 = vld [vmem:[%s586 + $0x338] sm:$0xff]
        %v797 = vld [vmem:[%s586 + $0x340] sm:$0xff]
        %v798 = vld [vmem:[%s586 + $0x348] sm:$0xff]
        %v799 = vld [vmem:[%s586 + $0x350] sm:$0xff]
        %v800 = vld [vmem:[%s586 + $0x358] sm:$0xff]
        %v801 = vld [vmem:[%s586 + $0x360] sm:$0xff]
        %v802 = vld [vmem:[%s586 + $0x368] sm:$0xff]
        %v803 = vld [vmem:[%s586 + $0x370] sm:$0xff]
        %v804 = vld [vmem:[%s586 + $0x378] sm:$0xff]
        %v805 = vld [vmem:[%s586 + $0x380] sm:$0xff]
        %v806 = vld [vmem:[%s586 + $0x388] sm:$0xff]
        %v807 = vld [vmem:[%s586 + $0x390] sm:$0xff]
        %v808 = vld [vmem:[%s586 + $0x398] sm:$0xff]
        %v809 = vld [vmem:[%s586 + $0x3a0] sm:$0xff]
        %v810 = vld [vmem:[%s586 + $0x3a8] sm:$0xff]
        %v811 = vld [vmem:[%s586 + $0x3b0] sm:$0xff]
        %v812 = vld [vmem:[%s586 + $0x3b8] sm:$0xff]
        %v813 = vld [vmem:[%s586 + $0x3c0] sm:$0xff]
        %v814 = vld [vmem:[%s586 + $0x3c8] sm:$0xff]
        %v815 = vld [vmem:[%s586 + $0x3d0] sm:$0xff]
        %v816 = vld [vmem:[%s586 + $0x3d8] sm:$0xff]
        %v817 = vld [vmem:[%s586 + $0x3e0] sm:$0xff]
        %v818 = vld [vmem:[%s586 + $0x3e8] sm:$0xff]
        %v819 = vld [vmem:[%s586 + $0x3f0] sm:$0xff]
        %v820 = vld [vmem:[%s586 + $0x3f8] sm:$0xff]
        %v821 = vld [vmem:[%s586 + $0x400] sm:$0xff]
        %v822 = vld [vmem:[%s586 + $0x408] sm:$0xff]
        %v823 = vld [vmem:[%s586 + $0x410] sm:$0xff]
        %v824 = vld [vmem:[%s586 + $0x418] sm:$0xff]
        %v825 = vld [vmem:[%s586 + $0x420] sm:$0xff]
        %v826 = vld [vmem:[%s586 + $0x428] sm:$0xff]
        %v827 = vld [vmem:[%s586 + $0x430] sm:$0xff]
        %v828 = vld [vmem:[%s586 + $0x438] sm:$0xff]
        %v829 = vld [vmem:[%s586 + $0x440] sm:$0xff]
        %v830 = vld [vmem:[%s586 + $0x448] sm:$0xff]
        %v831 = vld [vmem:[%s586 + $0x450] sm:$0xff]
        %v832 = vld [vmem:[%s586 + $0x458] sm:$0xff]
        %v833 = vld [vmem:[%s586 + $0x460] sm:$0xff]
        %v834 = vld [vmem:[%s586 + $0x468] sm:$0xff]
        %v835 = vld [vmem:[%s586 + $0x470] sm:$0xff]
        %v836 = vld [vmem:[%s586 + $0x478] sm:$0xff]
        %v837 = vld [vmem:[%s586 + $0x480] sm:$0xff]
        %v838 = vld [vmem:[%s586 + $0x488] sm:$0xff]
        %v839 = vld [vmem:[%s586 + $0x490] sm:$0xff]
        %v840 = vld [vmem:[%s586 + $0x498] sm:$0xff]
        %v841 = vld [vmem:[%s586 + $0x4a0] sm:$0xff]
        %v842 = vld [vmem:[%s586 + $0x4a8] sm:$0xff]
        %v843 = vld [vmem:[%s586 + $0x4b0] sm:$0xff]
        %v844 = vld [vmem:[%s586 + $0x4b8] sm:$0xff]
        %v845 = vld [vmem:[%s586 + $0x4c0] sm:$0xff]
        %v846 = vld [vmem:[%s586 + $0x4c8] sm:$0xff]
        %v847 = vld [vmem:[%s586 + $0x4d0] sm:$0xff]
        %v848 = vld [vmem:[%s586 + $0x4d8] sm:$0xff]
        %v849 = vld [vmem:[%s586 + $0x4e0] sm:$0xff]
        %v850 = vld [vmem:[%s586 + $0x4e8] sm:$0xff]
        %v851 = vld [vmem:[%s586 + $0x4f0] sm:$0xff]
        %v852 = vld [vmem:[%s586 + $0x4f8] sm:$0xff]
        %v853 = vld [vmem:[%s586 + $0x500] sm:$0xff]
        %v854 = vld [vmem:[%s586 + $0x508] sm:$0xff]
        %v855 = vld [vmem:[%s586 + $0x510] sm:$0xff]
        %v856 = vld [vmem:[%s586 + $0x518] sm:$0xff]
        %v857 = vld [vmem:[%s586 + $0x520] sm:$0xff]
        %v858 = vld [vmem:[%s586 + $0x528] sm:$0xff]
        %v859 = vld [vmem:[%s586 + $0x530] sm:$0xff]
        %v860 = vld [vmem:[%s586 + $0x538] sm:$0xff]
        %v861 = vld [vmem:[%s586 + $0x540] sm:$0xff]
        %v862 = vld [vmem:[%s586 + $0x548] sm:$0xff]
        %v863 = vld [vmem:[%s586 + $0x550] sm:$0xff]
        %v864 = vld [vmem:[%s586 + $0x558] sm:$0xff]
        %v865 = vld [vmem:[%s586 + $0x560] sm:$0xff]
        %v866 = vld [vmem:[%s586 + $0x568] sm:$0xff]
        %v867 = vld [vmem:[%s586 + $0x570] sm:$0xff]
        %v868 = vld [vmem:[%s586 + $0x578] sm:$0xff]
        %v869 = vld [vmem:[%s586 + $0x580] sm:$0xff]
        %v870 = vld [vmem:[%s586 + $0x588] sm:$0xff]
        %v871 = vld [vmem:[%s586 + $0x590] sm:$0xff]
        %v872 = vld [vmem:[%s586 + $0x598] sm:$0xff]
        %v873 = vld [vmem:[%s586 + $0x5a0] sm:$0xff]
        %v874 = vld [vmem:[%s586 + $0x5a8] sm:$0xff]
        %v875 = vld [vmem:[%s586 + $0x5b0] sm:$0xff]
        %v876 = vld [vmem:[%s586 + $0x5b8] sm:$0xff]
        %v877 = vld [vmem:[%s586 + $0x5c0] sm:$0xff]
        %v878 = vld [vmem:[%s586 + $0x5c8] sm:$0xff]
        %v879 = vld [vmem:[%s586 + $0x5d0] sm:$0xff]
        %v880 = vld [vmem:[%s586 + $0x5d8] sm:$0xff]
        %v881 = vld [vmem:[%s586 + $0x5e0] sm:$0xff]
        %v882 = vld [vmem:[%s586 + $0x5e8] sm:$0xff]
        %v883 = vld [vmem:[%s586 + $0x5f0] sm:$0xff]
        %v884 = vld [vmem:[%s586 + $0x5f8] sm:$0xff]
        %v885 = vld [vmem:[%s586 + $0x600] sm:$0xff]
        %v886 = vld [vmem:[%s586 + $0x608] sm:$0xff]
        %v887 = vld [vmem:[%s586 + $0x610] sm:$0xff]
        %v888 = vld [vmem:[%s586 + $0x618] sm:$0xff]
        %v889 = vld [vmem:[%s586 + $0x620] sm:$0xff]
        %v890 = vld [vmem:[%s586 + $0x628] sm:$0xff]
        %v891 = vld [vmem:[%s586 + $0x630] sm:$0xff]
        %v892 = vld [vmem:[%s586 + $0x638] sm:$0xff]
        %v893 = vld [vmem:[%s586 + $0x640] sm:$0xff]
        %v894 = vld [vmem:[%s586 + $0x648] sm:$0xff]
        %v895 = vld [vmem:[%s586 + $0x650] sm:$0xff]
        %v896 = vld [vmem:[%s586 + $0x658] sm:$0xff]
        %v897 = vld [vmem:[%s586 + $0x660] sm:$0xff]
        %v898 = vld [vmem:[%s586 + $0x668] sm:$0xff]
        %v899 = vld [vmem:[%s586 + $0x670] sm:$0xff]
        %v900 = vld [vmem:[%s586 + $0x678] sm:$0xff]
        %v901 = vld [vmem:[%s586 + $0x680] sm:$0xff]
        %v902 = vld [vmem:[%s586 + $0x688] sm:$0xff]
        %v903 = vld [vmem:[%s586 + $0x690] sm:$0xff]
        %v904 = vld [vmem:[%s586 + $0x698] sm:$0xff]
        %v905 = vld [vmem:[%s586 + $0x6a0] sm:$0xff]
        %v906 = vld [vmem:[%s586 + $0x6a8] sm:$0xff]
        %v907 = vld [vmem:[%s586 + $0x6b0] sm:$0xff]
        %v908 = vld [vmem:[%s586 + $0x6b8] sm:$0xff]
        %v909 = vld [vmem:[%s586 + $0x6c0] sm:$0xff]
        %v910 = vld [vmem:[%s586 + $0x6c8] sm:$0xff]
        %v911 = vld [vmem:[%s586 + $0x6d0] sm:$0xff]
        %v912 = vld [vmem:[%s586 + $0x6d8] sm:$0xff]
        %v913 = vld [vmem:[%s586 + $0x6e0] sm:$0xff]
        %v914 = vld [vmem:[%s586 + $0x6e8] sm:$0xff]
        %v915 = vld [vmem:[%s586 + $0x6f0] sm:$0xff]
        %v916 = vld [vmem:[%s586 + $0x6f8] sm:$0xff]
        %v917 = vld [vmem:[%s586 + $0x700] sm:$0xff]
        %v918 = vld [vmem:[%s586 + $0x708] sm:$0xff]
        %v919 = vld [vmem:[%s586 + $0x710] sm:$0xff]
        %v920 = vld [vmem:[%s586 + $0x718] sm:$0xff]
        %v921 = vld [vmem:[%s586 + $0x720] sm:$0xff]
        %v922 = vld [vmem:[%s586 + $0x728] sm:$0xff]
        %v923 = vld [vmem:[%s586 + $0x730] sm:$0xff]
        %v924 = vld [vmem:[%s586 + $0x738] sm:$0xff]
        %v925 = vld [vmem:[%s586 + $0x740] sm:$0xff]
        %v926 = vld [vmem:[%s586 + $0x748] sm:$0xff]
        %v927 = vld [vmem:[%s586 + $0x750] sm:$0xff]
        %v928 = vld [vmem:[%s586 + $0x758] sm:$0xff]
        %v929 = vld [vmem:[%s586 + $0x760] sm:$0xff]
        %v930 = vld [vmem:[%s586 + $0x768] sm:$0xff]
        %v931 = vld [vmem:[%s586 + $0x770] sm:$0xff]
        %v932 = vld [vmem:[%s586 + $0x778] sm:$0xff]
        %v933 = vld [vmem:[%s586 + $0x780] sm:$0xff]
        %v934 = vld [vmem:[%s586 + $0x788] sm:$0xff]
        %v935 = vld [vmem:[%s586 + $0x790] sm:$0xff]
        %v936 = vld [vmem:[%s586 + $0x798] sm:$0xff]
        %v937 = vld [vmem:[%s586 + $0x7a0] sm:$0xff]
        %v938 = vld [vmem:[%s586 + $0x7a8] sm:$0xff]
        %v939 = vld [vmem:[%s586 + $0x7b0] sm:$0xff]
        %v940 = vld [vmem:[%s586 + $0x7b8] sm:$0xff]
        %v941 = vld [vmem:[%s586 + $0x7c0] sm:$0xff]
        %v942 = vld [vmem:[%s586 + $0x7c8] sm:$0xff]
        %v943 = vld [vmem:[%s586 + $0x7d0] sm:$0xff]
        %v944 = vld [vmem:[%s586 + $0x7d8] sm:$0xff]
        %v945 = vld [vmem:[%s586 + $0x7e0] sm:$0xff]
        %v946 = vld [vmem:[%s586 + $0x7e8] sm:$0xff]
        %v947 = vld [vmem:[%s586 + $0x7f0] sm:$0xff]
        %v948 = vld [vmem:[%s586 + $0x7f8] sm:$0xff]
        %v949 = vpack.c.bf16 %v701, %v693
        %v950 = vpack.c.bf16 %v702, %v694
        %v951 = vpack.c.bf16 %v703, %v695
        %v952 = vpack.c.bf16 %v704, %v696
        %v953 = vpack.c.bf16 %v705, %v697
        %v954 = vpack.c.bf16 %v706, %v698
        %v955 = vpack.c.bf16 %v707, %v699
        %v956 = vpack.c.bf16 %v708, %v700
        %v957 = vpack.c.bf16 %v717, %v709
        %v958 = vpack.c.bf16 %v718, %v710
        %v959 = vpack.c.bf16 %v719, %v711
        %v960 = vpack.c.bf16 %v720, %v712
        %v961 = vpack.c.bf16 %v721, %v713
        %v962 = vpack.c.bf16 %v722, %v714
        %v963 = vpack.c.bf16 %v723, %v715
        %v964 = vpack.c.bf16 %v724, %v716
        %v965 = vpack.c.bf16 %v733, %v725
        %v966 = vpack.c.bf16 %v734, %v726
        %v967 = vpack.c.bf16 %v735, %v727
        %v968 = vpack.c.bf16 %v736, %v728
        %v969 = vpack.c.bf16 %v737, %v729
        %v970 = vpack.c.bf16 %v738, %v730
        %v971 = vpack.c.bf16 %v739, %v731
        %v972 = vpack.c.bf16 %v740, %v732
        %v973 = vpack.c.bf16 %v749, %v741
        %v974 = vpack.c.bf16 %v750, %v742
        %v975 = vpack.c.bf16 %v751, %v743
        %v976 = vpack.c.bf16 %v752, %v744
        %v977 = vpack.c.bf16 %v753, %v745
        %v978 = vpack.c.bf16 %v754, %v746
        %v979 = vpack.c.bf16 %v755, %v747
        %v980 = vpack.c.bf16 %v756, %v748
        %v981 = vpack.c.bf16 %v765, %v757
        %v982 = vpack.c.bf16 %v766, %v758
        %v983 = vpack.c.bf16 %v767, %v759
        %v984 = vpack.c.bf16 %v768, %v760
        %v985 = vpack.c.bf16 %v769, %v761
        %v986 = vpack.c.bf16 %v770, %v762
        %v987 = vpack.c.bf16 %v771, %v763
        %v988 = vpack.c.bf16 %v772, %v764
        %v989 = vpack.c.bf16 %v781, %v773
        %v990 = vpack.c.bf16 %v782, %v774
        %v991 = vpack.c.bf16 %v783, %v775
        %v992 = vpack.c.bf16 %v784, %v776
        %v993 = vpack.c.bf16 %v785, %v777
        %v994 = vpack.c.bf16 %v786, %v778
        %v995 = vpack.c.bf16 %v787, %v779
        %v996 = vpack.c.bf16 %v788, %v780
        %v997 = vpack.c.bf16 %v797, %v789
        %v998 = vpack.c.bf16 %v798, %v790
        %v999 = vpack.c.bf16 %v799, %v791
        %v1000 = vpack.c.bf16 %v800, %v792
        %v1001 = vpack.c.bf16 %v801, %v793
        %v1002 = vpack.c.bf16 %v802, %v794
        %v1003 = vpack.c.bf16 %v803, %v795
        %v1004 = vpack.c.bf16 %v804, %v796
        %v1005 = vpack.c.bf16 %v813, %v805
        %v1006 = vpack.c.bf16 %v814, %v806
        %v1007 = vpack.c.bf16 %v815, %v807
        %v1008 = vpack.c.bf16 %v816, %v808
        %v1009 = vpack.c.bf16 %v817, %v809
        %v1010 = vpack.c.bf16 %v818, %v810
        %v1011 = vpack.c.bf16 %v819, %v811
        %v1012 = vpack.c.bf16 %v820, %v812
        %v1013 = vpack.c.bf16 %v829, %v821
        %v1014 = vpack.c.bf16 %v830, %v822
        %v1015 = vpack.c.bf16 %v831, %v823
        %v1016 = vpack.c.bf16 %v832, %v824
        %v1017 = vpack.c.bf16 %v833, %v825
        %v1018 = vpack.c.bf16 %v834, %v826
        %v1019 = vpack.c.bf16 %v835, %v827
        %v1020 = vpack.c.bf16 %v836, %v828
        %v1021 = vpack.c.bf16 %v845, %v837
        %v1022 = vpack.c.bf16 %v846, %v838
        %v1023 = vpack.c.bf16 %v847, %v839
        %v1024 = vpack.c.bf16 %v848, %v840
        %v1025 = vpack.c.bf16 %v849, %v841
        %v1026 = vpack.c.bf16 %v850, %v842
        %v1027 = vpack.c.bf16 %v851, %v843
        %v1028 = vpack.c.bf16 %v852, %v844
        %v1029 = vpack.c.bf16 %v861, %v853
        %v1030 = vpack.c.bf16 %v862, %v854
        %v1031 = vpack.c.bf16 %v863, %v855
        %v1032 = vpack.c.bf16 %v864, %v856
        %v1033 = vpack.c.bf16 %v865, %v857
        %v1034 = vpack.c.bf16 %v866, %v858
        %v1035 = vpack.c.bf16 %v867, %v859
        %v1036 = vpack.c.bf16 %v868, %v860
        %v1037 = vpack.c.bf16 %v877, %v869
        %v1038 = vpack.c.bf16 %v878, %v870
        %v1039 = vpack.c.bf16 %v879, %v871
        %v1040 = vpack.c.bf16 %v880, %v872
        %v1041 = vpack.c.bf16 %v881, %v873
        %v1042 = vpack.c.bf16 %v882, %v874
        %v1043 = vpack.c.bf16 %v883, %v875
        %v1044 = vpack.c.bf16 %v884, %v876
        %v1045 = vpack.c.bf16 %v893, %v885
        %v1046 = vpack.c.bf16 %v894, %v886
        %v1047 = vpack.c.bf16 %v895, %v887
        %v1048 = vpack.c.bf16 %v896, %v888
        %v1049 = vpack.c.bf16 %v897, %v889
        %v1050 = vpack.c.bf16 %v898, %v890
        %v1051 = vpack.c.bf16 %v899, %v891
        %v1052 = vpack.c.bf16 %v900, %v892
        %v1053 = vpack.c.bf16 %v909, %v901
        %v1054 = vpack.c.bf16 %v910, %v902
        %v1055 = vpack.c.bf16 %v911, %v903
        %v1056 = vpack.c.bf16 %v912, %v904
        %v1057 = vpack.c.bf16 %v913, %v905
        %v1058 = vpack.c.bf16 %v914, %v906
        %v1059 = vpack.c.bf16 %v915, %v907
        %v1060 = vpack.c.bf16 %v916, %v908
        %v1061 = vpack.c.bf16 %v925, %v917
        %v1062 = vpack.c.bf16 %v926, %v918
        %v1063 = vpack.c.bf16 %v927, %v919
        %v1064 = vpack.c.bf16 %v928, %v920
        %v1065 = vpack.c.bf16 %v929, %v921
        %v1066 = vpack.c.bf16 %v930, %v922
        %v1067 = vpack.c.bf16 %v931, %v923
        %v1068 = vpack.c.bf16 %v932, %v924
        %v1069 = vpack.c.bf16 %v941, %v933
        %v1070 = vpack.c.bf16 %v942, %v934
        %v1071 = vpack.c.bf16 %v943, %v935
        %v1072 = vpack.c.bf16 %v944, %v936
        %v1073 = vpack.c.bf16 %v945, %v937
        %v1074 = vpack.c.bf16 %v946, %v938
        %v1075 = vpack.c.bf16 %v947, %v939
        %v1076 = vpack.c.bf16 %v948, %v940
        %v1077 = vld [vmem:[#allocation9] sm:$0xff]
        %v1078 = vld [vmem:[#allocation9 + $0x8] sm:$0xff]
        %v1079 = vld [vmem:[#allocation9 + $0x10] sm:$0xff]
        %v1080 = vld [vmem:[#allocation9 + $0x18] sm:$0xff]
        %v1081 = vld [vmem:[#allocation9 + $0x20] sm:$0xff]
        %v1082 = vld [vmem:[#allocation9 + $0x28] sm:$0xff]
        %v1083 = vld [vmem:[#allocation9 + $0x30] sm:$0xff]
        %v1084 = vld [vmem:[#allocation9 + $0x38] sm:$0xff]
        %v1085 = vld [vmem:[#allocation9 + $0x40] sm:$0xff]
        %v1086 = vld [vmem:[#allocation9 + $0x48] sm:$0xff]
        %v1087 = vld [vmem:[#allocation9 + $0x50] sm:$0xff]
        %v1088 = vld [vmem:[#allocation9 + $0x58] sm:$0xff]
        %v1089 = vld [vmem:[#allocation9 + $0x60] sm:$0xff]
        %v1090 = vld [vmem:[#allocation9 + $0x68] sm:$0xff]
        %v1091 = vld [vmem:[#allocation9 + $0x70] sm:$0xff]
        %v1092 = vld [vmem:[#allocation9 + $0x78] sm:$0xff]
        %v1093 = vld [vmem:[#allocation9 + $0x80] sm:$0xff]
        %v1094 = vld [vmem:[#allocation9 + $0x88] sm:$0xff]
        %v1095 = vld [vmem:[#allocation9 + $0x90] sm:$0xff]
        %v1096 = vld [vmem:[#allocation9 + $0x98] sm:$0xff]
        %v1097 = vld [vmem:[#allocation9 + $0xa0] sm:$0xff]
        %v1098 = vld [vmem:[#allocation9 + $0xa8] sm:$0xff]
        %v1099 = vld [vmem:[#allocation9 + $0xb0] sm:$0xff]
        %v1100 = vld [vmem:[#allocation9 + $0xb8] sm:$0xff]
        %v1101 = vld [vmem:[#allocation9 + $0xc0] sm:$0xff]
        %v1102 = vld [vmem:[#allocation9 + $0xc8] sm:$0xff]
        %v1103 = vld [vmem:[#allocation9 + $0xd0] sm:$0xff]
        %v1104 = vld [vmem:[#allocation9 + $0xd8] sm:$0xff]
        %v1105 = vld [vmem:[#allocation9 + $0xe0] sm:$0xff]
        %v1106 = vld [vmem:[#allocation9 + $0xe8] sm:$0xff]
        %v1107 = vld [vmem:[#allocation9 + $0xf0] sm:$0xff]
        %v1108 = vld [vmem:[#allocation9 + $0xf8] sm:$0xff]
        %v1109 = vld [vmem:[#allocation9 + $0x100] sm:$0xff]
        %v1110 = vld [vmem:[#allocation9 + $0x108] sm:$0xff]
        %v1111 = vld [vmem:[#allocation9 + $0x110] sm:$0xff]
        %v1112 = vld [vmem:[#allocation9 + $0x118] sm:$0xff]
        %v1113 = vld [vmem:[#allocation9 + $0x120] sm:$0xff]
        %v1114 = vld [vmem:[#allocation9 + $0x128] sm:$0xff]
        %v1115 = vld [vmem:[#allocation9 + $0x130] sm:$0xff]
        %v1116 = vld [vmem:[#allocation9 + $0x138] sm:$0xff]
        %v1117 = vld [vmem:[#allocation9 + $0x140] sm:$0xff]
        %v1118 = vld [vmem:[#allocation9 + $0x148] sm:$0xff]
        %v1119 = vld [vmem:[#allocation9 + $0x150] sm:$0xff]
        %v1120 = vld [vmem:[#allocation9 + $0x158] sm:$0xff]
        %v1121 = vld [vmem:[#allocation9 + $0x160] sm:$0xff]
        %v1122 = vld [vmem:[#allocation9 + $0x168] sm:$0xff]
        %v1123 = vld [vmem:[#allocation9 + $0x170] sm:$0xff]
        %v1124 = vld [vmem:[#allocation9 + $0x178] sm:$0xff]
        %v1125 = vld [vmem:[#allocation9 + $0x180] sm:$0xff]
        %v1126 = vld [vmem:[#allocation9 + $0x188] sm:$0xff]
        %v1127 = vld [vmem:[#allocation9 + $0x190] sm:$0xff]
        %v1128 = vld [vmem:[#allocation9 + $0x198] sm:$0xff]
        %v1129 = vld [vmem:[#allocation9 + $0x1a0] sm:$0xff]
        %v1130 = vld [vmem:[#allocation9 + $0x1a8] sm:$0xff]
        %v1131 = vld [vmem:[#allocation9 + $0x1b0] sm:$0xff]
        %v1132 = vld [vmem:[#allocation9 + $0x1b8] sm:$0xff]
        %v1133 = vld [vmem:[#allocation9 + $0x1c0] sm:$0xff]
        %v1134 = vld [vmem:[#allocation9 + $0x1c8] sm:$0xff]
        %v1135 = vld [vmem:[#allocation9 + $0x1d0] sm:$0xff]
        %v1136 = vld [vmem:[#allocation9 + $0x1d8] sm:$0xff]
        %v1137 = vld [vmem:[#allocation9 + $0x1e0] sm:$0xff]
        %v1138 = vld [vmem:[#allocation9 + $0x1e8] sm:$0xff]
        %v1139 = vld [vmem:[#allocation9 + $0x1f0] sm:$0xff]
        %v1140 = vld [vmem:[#allocation9 + $0x1f8] sm:$0xff]
        %v1141 = vld [vmem:[#allocation9 + $0x200] sm:$0xff]
        %v1142 = vld [vmem:[#allocation9 + $0x208] sm:$0xff]
        %v1143 = vld [vmem:[#allocation9 + $0x210] sm:$0xff]
        %v1144 = vld [vmem:[#allocation9 + $0x218] sm:$0xff]
        %v1145 = vld [vmem:[#allocation9 + $0x220] sm:$0xff]
        %v1146 = vld [vmem:[#allocation9 + $0x228] sm:$0xff]
        %v1147 = vld [vmem:[#allocation9 + $0x230] sm:$0xff]
        %v1148 = vld [vmem:[#allocation9 + $0x238] sm:$0xff]
        %v1149 = vld [vmem:[#allocation9 + $0x240] sm:$0xff]
        %v1150 = vld [vmem:[#allocation9 + $0x248] sm:$0xff]
        %v1151 = vld [vmem:[#allocation9 + $0x250] sm:$0xff]
        %v1152 = vld [vmem:[#allocation9 + $0x258] sm:$0xff]
        %v1153 = vld [vmem:[#allocation9 + $0x260] sm:$0xff]
        %v1154 = vld [vmem:[#allocation9 + $0x268] sm:$0xff]
        %v1155 = vld [vmem:[#allocation9 + $0x270] sm:$0xff]
        %v1156 = vld [vmem:[#allocation9 + $0x278] sm:$0xff]
        %v1157 = vld [vmem:[#allocation9 + $0x280] sm:$0xff]
        %v1158 = vld [vmem:[#allocation9 + $0x288] sm:$0xff]
        %v1159 = vld [vmem:[#allocation9 + $0x290] sm:$0xff]
        %v1160 = vld [vmem:[#allocation9 + $0x298] sm:$0xff]
        %v1161 = vld [vmem:[#allocation9 + $0x2a0] sm:$0xff]
        %v1162 = vld [vmem:[#allocation9 + $0x2a8] sm:$0xff]
        %v1163 = vld [vmem:[#allocation9 + $0x2b0] sm:$0xff]
        %v1164 = vld [vmem:[#allocation9 + $0x2b8] sm:$0xff]
        %v1165 = vld [vmem:[#allocation9 + $0x2c0] sm:$0xff]
        %v1166 = vld [vmem:[#allocation9 + $0x2c8] sm:$0xff]
        %v1167 = vld [vmem:[#allocation9 + $0x2d0] sm:$0xff]
        %v1168 = vld [vmem:[#allocation9 + $0x2d8] sm:$0xff]
        %v1169 = vld [vmem:[#allocation9 + $0x2e0] sm:$0xff]
        %v1170 = vld [vmem:[#allocation9 + $0x2e8] sm:$0xff]
        %v1171 = vld [vmem:[#allocation9 + $0x2f0] sm:$0xff]
        %v1172 = vld [vmem:[#allocation9 + $0x2f8] sm:$0xff]
        %v1173 = vld [vmem:[#allocation9 + $0x300] sm:$0xff]
        %v1174 = vld [vmem:[#allocation9 + $0x308] sm:$0xff]
        %v1175 = vld [vmem:[#allocation9 + $0x310] sm:$0xff]
        %v1176 = vld [vmem:[#allocation9 + $0x318] sm:$0xff]
        %v1177 = vld [vmem:[#allocation9 + $0x320] sm:$0xff]
        %v1178 = vld [vmem:[#allocation9 + $0x328] sm:$0xff]
        %v1179 = vld [vmem:[#allocation9 + $0x330] sm:$0xff]
        %v1180 = vld [vmem:[#allocation9 + $0x338] sm:$0xff]
        %v1181 = vld [vmem:[#allocation9 + $0x340] sm:$0xff]
        %v1182 = vld [vmem:[#allocation9 + $0x348] sm:$0xff]
        %v1183 = vld [vmem:[#allocation9 + $0x350] sm:$0xff]
        %v1184 = vld [vmem:[#allocation9 + $0x358] sm:$0xff]
        %v1185 = vld [vmem:[#allocation9 + $0x360] sm:$0xff]
        %v1186 = vld [vmem:[#allocation9 + $0x368] sm:$0xff]
        %v1187 = vld [vmem:[#allocation9 + $0x370] sm:$0xff]
        %v1188 = vld [vmem:[#allocation9 + $0x378] sm:$0xff]
        %v1189 = vld [vmem:[#allocation9 + $0x380] sm:$0xff]
        %v1190 = vld [vmem:[#allocation9 + $0x388] sm:$0xff]
        %v1191 = vld [vmem:[#allocation9 + $0x390] sm:$0xff]
        %v1192 = vld [vmem:[#allocation9 + $0x398] sm:$0xff]
        %v1193 = vld [vmem:[#allocation9 + $0x3a0] sm:$0xff]
        %v1194 = vld [vmem:[#allocation9 + $0x3a8] sm:$0xff]
        %v1195 = vld [vmem:[#allocation9 + $0x3b0] sm:$0xff]
        %v1196 = vld [vmem:[#allocation9 + $0x3b8] sm:$0xff]
        %v1197 = vld [vmem:[#allocation9 + $0x3c0] sm:$0xff]
        %v1198 = vld [vmem:[#allocation9 + $0x3c8] sm:$0xff]
        %v1199 = vld [vmem:[#allocation9 + $0x3d0] sm:$0xff]
        %v1200 = vld [vmem:[#allocation9 + $0x3d8] sm:$0xff]
        %v1201 = vld [vmem:[#allocation9 + $0x3e0] sm:$0xff]
        %v1202 = vld [vmem:[#allocation9 + $0x3e8] sm:$0xff]
        %v1203 = vld [vmem:[#allocation9 + $0x3f0] sm:$0xff]
        %v1204 = vld [vmem:[#allocation9 + $0x3f8] sm:$0xff]
        %v1205 = vld [vmem:[#allocation9 + $0x400] sm:$0xff]
        %v1206 = vld [vmem:[#allocation9 + $0x408] sm:$0xff]
        %v1207 = vld [vmem:[#allocation9 + $0x410] sm:$0xff]
        %v1208 = vld [vmem:[#allocation9 + $0x418] sm:$0xff]
        %v1209 = vld [vmem:[#allocation9 + $0x420] sm:$0xff]
        %v1210 = vld [vmem:[#allocation9 + $0x428] sm:$0xff]
        %v1211 = vld [vmem:[#allocation9 + $0x430] sm:$0xff]
        %v1212 = vld [vmem:[#allocation9 + $0x438] sm:$0xff]
        %v1213 = vld [vmem:[#allocation9 + $0x440] sm:$0xff]
        %v1214 = vld [vmem:[#allocation9 + $0x448] sm:$0xff]
        %v1215 = vld [vmem:[#allocation9 + $0x450] sm:$0xff]
        %v1216 = vld [vmem:[#allocation9 + $0x458] sm:$0xff]
        %v1217 = vld [vmem:[#allocation9 + $0x460] sm:$0xff]
        %v1218 = vld [vmem:[#allocation9 + $0x468] sm:$0xff]
        %v1219 = vld [vmem:[#allocation9 + $0x470] sm:$0xff]
        %v1220 = vld [vmem:[#allocation9 + $0x478] sm:$0xff]
        %v1221 = vld [vmem:[#allocation9 + $0x480] sm:$0xff]
        %v1222 = vld [vmem:[#allocation9 + $0x488] sm:$0xff]
        %v1223 = vld [vmem:[#allocation9 + $0x490] sm:$0xff]
        %v1224 = vld [vmem:[#allocation9 + $0x498] sm:$0xff]
        %v1225 = vld [vmem:[#allocation9 + $0x4a0] sm:$0xff]
        %v1226 = vld [vmem:[#allocation9 + $0x4a8] sm:$0xff]
        %v1227 = vld [vmem:[#allocation9 + $0x4b0] sm:$0xff]
        %v1228 = vld [vmem:[#allocation9 + $0x4b8] sm:$0xff]
        %v1229 = vld [vmem:[#allocation9 + $0x4c0] sm:$0xff]
        %v1230 = vld [vmem:[#allocation9 + $0x4c8] sm:$0xff]
        %v1231 = vld [vmem:[#allocation9 + $0x4d0] sm:$0xff]
        %v1232 = vld [vmem:[#allocation9 + $0x4d8] sm:$0xff]
        %v1233 = vld [vmem:[#allocation9 + $0x4e0] sm:$0xff]
        %v1234 = vld [vmem:[#allocation9 + $0x4e8] sm:$0xff]
        %v1235 = vld [vmem:[#allocation9 + $0x4f0] sm:$0xff]
        %v1236 = vld [vmem:[#allocation9 + $0x4f8] sm:$0xff]
        %v1237 = vld [vmem:[#allocation9 + $0x500] sm:$0xff]
        %v1238 = vld [vmem:[#allocation9 + $0x508] sm:$0xff]
        %v1239 = vld [vmem:[#allocation9 + $0x510] sm:$0xff]
        %v1240 = vld [vmem:[#allocation9 + $0x518] sm:$0xff]
        %v1241 = vld [vmem:[#allocation9 + $0x520] sm:$0xff]
        %v1242 = vld [vmem:[#allocation9 + $0x528] sm:$0xff]
        %v1243 = vld [vmem:[#allocation9 + $0x530] sm:$0xff]
        %v1244 = vld [vmem:[#allocation9 + $0x538] sm:$0xff]
        %v1245 = vld [vmem:[#allocation9 + $0x540] sm:$0xff]
        %v1246 = vld [vmem:[#allocation9 + $0x548] sm:$0xff]
        %v1247 = vld [vmem:[#allocation9 + $0x550] sm:$0xff]
        %v1248 = vld [vmem:[#allocation9 + $0x558] sm:$0xff]
        %v1249 = vld [vmem:[#allocation9 + $0x560] sm:$0xff]
        %v1250 = vld [vmem:[#allocation9 + $0x568] sm:$0xff]
        %v1251 = vld [vmem:[#allocation9 + $0x570] sm:$0xff]
        %v1252 = vld [vmem:[#allocation9 + $0x578] sm:$0xff]
        %v1253 = vld [vmem:[#allocation9 + $0x580] sm:$0xff]
        %v1254 = vld [vmem:[#allocation9 + $0x588] sm:$0xff]
        %v1255 = vld [vmem:[#allocation9 + $0x590] sm:$0xff]
        %v1256 = vld [vmem:[#allocation9 + $0x598] sm:$0xff]
        %v1257 = vld [vmem:[#allocation9 + $0x5a0] sm:$0xff]
        %v1258 = vld [vmem:[#allocation9 + $0x5a8] sm:$0xff]
        %v1259 = vld [vmem:[#allocation9 + $0x5b0] sm:$0xff]
        %v1260 = vld [vmem:[#allocation9 + $0x5b8] sm:$0xff]
        %v1261 = vld [vmem:[#allocation9 + $0x5c0] sm:$0xff]
        %v1262 = vld [vmem:[#allocation9 + $0x5c8] sm:$0xff]
        %v1263 = vld [vmem:[#allocation9 + $0x5d0] sm:$0xff]
        %v1264 = vld [vmem:[#allocation9 + $0x5d8] sm:$0xff]
        %v1265 = vld [vmem:[#allocation9 + $0x5e0] sm:$0xff]
        %v1266 = vld [vmem:[#allocation9 + $0x5e8] sm:$0xff]
        %v1267 = vld [vmem:[#allocation9 + $0x5f0] sm:$0xff]
        %v1268 = vld [vmem:[#allocation9 + $0x5f8] sm:$0xff]
        %v1269 = vld [vmem:[#allocation9 + $0x600] sm:$0xff]
        %v1270 = vld [vmem:[#allocation9 + $0x608] sm:$0xff]
        %v1271 = vld [vmem:[#allocation9 + $0x610] sm:$0xff]
        %v1272 = vld [vmem:[#allocation9 + $0x618] sm:$0xff]
        %v1273 = vld [vmem:[#allocation9 + $0x620] sm:$0xff]
        %v1274 = vld [vmem:[#allocation9 + $0x628] sm:$0xff]
        %v1275 = vld [vmem:[#allocation9 + $0x630] sm:$0xff]
        %v1276 = vld [vmem:[#allocation9 + $0x638] sm:$0xff]
        %v1277 = vld [vmem:[#allocation9 + $0x640] sm:$0xff]
        %v1278 = vld [vmem:[#allocation9 + $0x648] sm:$0xff]
        %v1279 = vld [vmem:[#allocation9 + $0x650] sm:$0xff]
        %v1280 = vld [vmem:[#allocation9 + $0x658] sm:$0xff]
        %v1281 = vld [vmem:[#allocation9 + $0x660] sm:$0xff]
        %v1282 = vld [vmem:[#allocation9 + $0x668] sm:$0xff]
        %v1283 = vld [vmem:[#allocation9 + $0x670] sm:$0xff]
        %v1284 = vld [vmem:[#allocation9 + $0x678] sm:$0xff]
        %v1285 = vld [vmem:[#allocation9 + $0x680] sm:$0xff]
        %v1286 = vld [vmem:[#allocation9 + $0x688] sm:$0xff]
        %v1287 = vld [vmem:[#allocation9 + $0x690] sm:$0xff]
        %v1288 = vld [vmem:[#allocation9 + $0x698] sm:$0xff]
        %v1289 = vld [vmem:[#allocation9 + $0x6a0] sm:$0xff]
        %v1290 = vld [vmem:[#allocation9 + $0x6a8] sm:$0xff]
        %v1291 = vld [vmem:[#allocation9 + $0x6b0] sm:$0xff]
        %v1292 = vld [vmem:[#allocation9 + $0x6b8] sm:$0xff]
        %v1293 = vld [vmem:[#allocation9 + $0x6c0] sm:$0xff]
        %v1294 = vld [vmem:[#allocation9 + $0x6c8] sm:$0xff]
        %v1295 = vld [vmem:[#allocation9 + $0x6d0] sm:$0xff]
        %v1296 = vld [vmem:[#allocation9 + $0x6d8] sm:$0xff]
        %v1297 = vld [vmem:[#allocation9 + $0x6e0] sm:$0xff]
        %v1298 = vld [vmem:[#allocation9 + $0x6e8] sm:$0xff]
        %v1299 = vld [vmem:[#allocation9 + $0x6f0] sm:$0xff]
        %v1300 = vld [vmem:[#allocation9 + $0x6f8] sm:$0xff]
        %v1301 = vld [vmem:[#allocation9 + $0x700] sm:$0xff]
        %v1302 = vld [vmem:[#allocation9 + $0x708] sm:$0xff]
        %v1303 = vld [vmem:[#allocation9 + $0x710] sm:$0xff]
        %v1304 = vld [vmem:[#allocation9 + $0x718] sm:$0xff]
        %v1305 = vld [vmem:[#allocation9 + $0x720] sm:$0xff]
        %v1306 = vld [vmem:[#allocation9 + $0x728] sm:$0xff]
        %v1307 = vld [vmem:[#allocation9 + $0x730] sm:$0xff]
        %v1308 = vld [vmem:[#allocation9 + $0x738] sm:$0xff]
        %v1309 = vld [vmem:[#allocation9 + $0x740] sm:$0xff]
        %v1310 = vld [vmem:[#allocation9 + $0x748] sm:$0xff]
        %v1311 = vld [vmem:[#allocation9 + $0x750] sm:$0xff]
        %v1312 = vld [vmem:[#allocation9 + $0x758] sm:$0xff]
        %v1313 = vld [vmem:[#allocation9 + $0x760] sm:$0xff]
        %v1314 = vld [vmem:[#allocation9 + $0x768] sm:$0xff]
        %v1315 = vld [vmem:[#allocation9 + $0x770] sm:$0xff]
        %v1316 = vld [vmem:[#allocation9 + $0x778] sm:$0xff]
        %v1317 = vld [vmem:[#allocation9 + $0x780] sm:$0xff]
        %v1318 = vld [vmem:[#allocation9 + $0x788] sm:$0xff]
        %v1319 = vld [vmem:[#allocation9 + $0x790] sm:$0xff]
        %v1320 = vld [vmem:[#allocation9 + $0x798] sm:$0xff]
        %v1321 = vld [vmem:[#allocation9 + $0x7a0] sm:$0xff]
        %v1322 = vld [vmem:[#allocation9 + $0x7a8] sm:$0xff]
        %v1323 = vld [vmem:[#allocation9 + $0x7b0] sm:$0xff]
        %v1324 = vld [vmem:[#allocation9 + $0x7b8] sm:$0xff]
        %v1325 = vld [vmem:[#allocation9 + $0x7c0] sm:$0xff]
        %v1326 = vld [vmem:[#allocation9 + $0x7c8] sm:$0xff]
        %v1327 = vld [vmem:[#allocation9 + $0x7d0] sm:$0xff]
        %v1328 = vld [vmem:[#allocation9 + $0x7d8] sm:$0xff]
        %v1329 = vld [vmem:[#allocation9 + $0x7e0] sm:$0xff]
        %v1330 = vld [vmem:[#allocation9 + $0x7e8] sm:$0xff]
        %v1331 = vld [vmem:[#allocation9 + $0x7f0] sm:$0xff]
        %v1332 = vld [vmem:[#allocation9 + $0x7f8] sm:$0xff]
        %v1333 = vld [vmem:[#allocation11] sm:$0xf]
        %v1335 = vlaneseq
        %v1336 = vshrl.u32 %v1335, 7
        %v1337 = vsub.s32 0, %v1336
        %v1338 = vrot.slane %v1333, %v1337
        %v1339 = vlaneseq
        %v1340 = vshrl.u32 %v1339, 7
        %v1341 = vsub.s32 1, %v1340
        %v1342 = vrot.slane %v1333, %v1341
        %v1343 = vlaneseq
        %v1344 = vshrl.u32 %v1343, 7
        %v1345 = vsub.s32 2, %v1344
        %v1346 = vrot.slane %v1333, %v1345
        %v1347 = vlaneseq
        %v1348 = vshrl.u32 %v1347, 7
        %v1349 = vsub.s32 3, %v1348
        %v1350 = vrot.slane %v1333, %v1349
        %v1611 = vunpack.c.l.b16 %v1077
        %v1612 = vunpack.c.h.b16 %v1077
        %v1613 = vunpack.c.l.b16 %v1078
        %v1614 = vunpack.c.h.b16 %v1078
        %v1615 = vunpack.c.l.b16 %v1079
        %v1616 = vunpack.c.h.b16 %v1079
        %v1617 = vunpack.c.l.b16 %v1080
        %v1618 = vunpack.c.h.b16 %v1080
        %v1619 = vunpack.c.l.b16 %v1081
        %v1620 = vunpack.c.h.b16 %v1081
        %v1621 = vunpack.c.l.b16 %v1082
        %v1622 = vunpack.c.h.b16 %v1082
        %v1623 = vunpack.c.l.b16 %v1083
        %v1624 = vunpack.c.h.b16 %v1083
        %v1625 = vunpack.c.l.b16 %v1084
        %v1626 = vunpack.c.h.b16 %v1084
        %v1627 = vunpack.c.l.b16 %v1085
        %v1628 = vunpack.c.h.b16 %v1085
        %v1629 = vunpack.c.l.b16 %v1086
        %v1630 = vunpack.c.h.b16 %v1086
        %v1631 = vunpack.c.l.b16 %v1087
        %v1632 = vunpack.c.h.b16 %v1087
        %v1633 = vunpack.c.l.b16 %v1088
        %v1634 = vunpack.c.h.b16 %v1088
        %v1635 = vunpack.c.l.b16 %v1089
        %v1636 = vunpack.c.h.b16 %v1089
        %v1637 = vunpack.c.l.b16 %v1090
        %v1638 = vunpack.c.h.b16 %v1090
        %v1639 = vunpack.c.l.b16 %v1091
        %v1640 = vunpack.c.h.b16 %v1091
        %v1641 = vunpack.c.l.b16 %v1092
        %v1642 = vunpack.c.h.b16 %v1092
        %v1643 = vunpack.c.l.b16 %v1093
        %v1644 = vunpack.c.h.b16 %v1093
        %v1645 = vunpack.c.l.b16 %v1094
        %v1646 = vunpack.c.h.b16 %v1094
        %v1647 = vunpack.c.l.b16 %v1095
        %v1648 = vunpack.c.h.b16 %v1095
        %v1649 = vunpack.c.l.b16 %v1096
        %v1650 = vunpack.c.h.b16 %v1096
        %v1651 = vunpack.c.l.b16 %v1097
        %v1652 = vunpack.c.h.b16 %v1097
        %v1653 = vunpack.c.l.b16 %v1098
        %v1654 = vunpack.c.h.b16 %v1098
        %v1655 = vunpack.c.l.b16 %v1099
        %v1656 = vunpack.c.h.b16 %v1099
        %v1657 = vunpack.c.l.b16 %v1100
        %v1658 = vunpack.c.h.b16 %v1100
        %v1659 = vunpack.c.l.b16 %v1101
        %v1660 = vunpack.c.h.b16 %v1101
        %v1661 = vunpack.c.l.b16 %v1102
        %v1662 = vunpack.c.h.b16 %v1102
        %v1663 = vunpack.c.l.b16 %v1103
        %v1664 = vunpack.c.h.b16 %v1103
        %v1665 = vunpack.c.l.b16 %v1104
        %v1666 = vunpack.c.h.b16 %v1104
        %v1667 = vunpack.c.l.b16 %v1105
        %v1668 = vunpack.c.h.b16 %v1105
        %v1669 = vunpack.c.l.b16 %v1106
        %v1670 = vunpack.c.h.b16 %v1106
        %v1671 = vunpack.c.l.b16 %v1107
        %v1672 = vunpack.c.h.b16 %v1107
        %v1673 = vunpack.c.l.b16 %v1108
        %v1674 = vunpack.c.h.b16 %v1108
        %v1675 = vunpack.c.l.b16 %v1109
        %v1676 = vunpack.c.h.b16 %v1109
        %v1677 = vunpack.c.l.b16 %v1110
        %v1678 = vunpack.c.h.b16 %v1110
        %v1679 = vunpack.c.l.b16 %v1111
        %v1680 = vunpack.c.h.b16 %v1111
        %v1681 = vunpack.c.l.b16 %v1112
        %v1682 = vunpack.c.h.b16 %v1112
        %v1683 = vunpack.c.l.b16 %v1113
        %v1684 = vunpack.c.h.b16 %v1113
        %v1685 = vunpack.c.l.b16 %v1114
        %v1686 = vunpack.c.h.b16 %v1114
        %v1687 = vunpack.c.l.b16 %v1115
        %v1688 = vunpack.c.h.b16 %v1115
        %v1689 = vunpack.c.l.b16 %v1116
        %v1690 = vunpack.c.h.b16 %v1116
        %v1691 = vunpack.c.l.b16 %v1117
        %v1692 = vunpack.c.h.b16 %v1117
        %v1693 = vunpack.c.l.b16 %v1118
        %v1694 = vunpack.c.h.b16 %v1118
        %v1695 = vunpack.c.l.b16 %v1119
        %v1696 = vunpack.c.h.b16 %v1119
        %v1697 = vunpack.c.l.b16 %v1120
        %v1698 = vunpack.c.h.b16 %v1120
        %v1699 = vunpack.c.l.b16 %v1121
        %v1700 = vunpack.c.h.b16 %v1121
        %v1701 = vunpack.c.l.b16 %v1122
        %v1702 = vunpack.c.h.b16 %v1122
        %v1703 = vunpack.c.l.b16 %v1123
        %v1704 = vunpack.c.h.b16 %v1123
        %v1705 = vunpack.c.l.b16 %v1124
        %v1706 = vunpack.c.h.b16 %v1124
        %v1707 = vunpack.c.l.b16 %v1125
        %v1708 = vunpack.c.h.b16 %v1125
        %v1709 = vunpack.c.l.b16 %v1126
        %v1710 = vunpack.c.h.b16 %v1126
        %v1711 = vunpack.c.l.b16 %v1127
        %v1712 = vunpack.c.h.b16 %v1127
        %v1713 = vunpack.c.l.b16 %v1128
        %v1714 = vunpack.c.h.b16 %v1128
        %v1715 = vunpack.c.l.b16 %v1129
        %v1716 = vunpack.c.h.b16 %v1129
        %v1717 = vunpack.c.l.b16 %v1130
        %v1718 = vunpack.c.h.b16 %v1130
        %v1719 = vunpack.c.l.b16 %v1131
        %v1720 = vunpack.c.h.b16 %v1131
        %v1721 = vunpack.c.l.b16 %v1132
        %v1722 = vunpack.c.h.b16 %v1132
        %v1723 = vunpack.c.l.b16 %v1133
        %v1724 = vunpack.c.h.b16 %v1133
        %v1725 = vunpack.c.l.b16 %v1134
        %v1726 = vunpack.c.h.b16 %v1134
        %v1727 = vunpack.c.l.b16 %v1135
        %v1728 = vunpack.c.h.b16 %v1135
        %v1729 = vunpack.c.l.b16 %v1136
        %v1730 = vunpack.c.h.b16 %v1136
        %v1731 = vunpack.c.l.b16 %v1137
        %v1732 = vunpack.c.h.b16 %v1137
        %v1733 = vunpack.c.l.b16 %v1138
        %v1734 = vunpack.c.h.b16 %v1138
        %v1735 = vunpack.c.l.b16 %v1139
        %v1736 = vunpack.c.h.b16 %v1139
        %v1737 = vunpack.c.l.b16 %v1140
        %v1738 = vunpack.c.h.b16 %v1140
        %v1739 = vunpack.c.l.b16 %v1141
        %v1740 = vunpack.c.h.b16 %v1141
        %v1741 = vunpack.c.l.b16 %v1142
        %v1742 = vunpack.c.h.b16 %v1142
        %v1743 = vunpack.c.l.b16 %v1143
        %v1744 = vunpack.c.h.b16 %v1143
        %v1745 = vunpack.c.l.b16 %v1144
        %v1746 = vunpack.c.h.b16 %v1144
        %v1747 = vunpack.c.l.b16 %v1145
        %v1748 = vunpack.c.h.b16 %v1145
        %v1749 = vunpack.c.l.b16 %v1146
        %v1750 = vunpack.c.h.b16 %v1146
        %v1751 = vunpack.c.l.b16 %v1147
        %v1752 = vunpack.c.h.b16 %v1147
        %v1753 = vunpack.c.l.b16 %v1148
        %v1754 = vunpack.c.h.b16 %v1148
        %v1755 = vunpack.c.l.b16 %v1149
        %v1756 = vunpack.c.h.b16 %v1149
        %v1757 = vunpack.c.l.b16 %v1150
        %v1758 = vunpack.c.h.b16 %v1150
        %v1759 = vunpack.c.l.b16 %v1151
        %v1760 = vunpack.c.h.b16 %v1151
        %v1761 = vunpack.c.l.b16 %v1152
        %v1762 = vunpack.c.h.b16 %v1152
        %v1763 = vunpack.c.l.b16 %v1153
        %v1764 = vunpack.c.h.b16 %v1153
        %v1765 = vunpack.c.l.b16 %v1154
        %v1766 = vunpack.c.h.b16 %v1154
        %v1767 = vunpack.c.l.b16 %v1155
        %v1768 = vunpack.c.h.b16 %v1155
        %v1769 = vunpack.c.l.b16 %v1156
        %v1770 = vunpack.c.h.b16 %v1156
        %v1771 = vunpack.c.l.b16 %v1157
        %v1772 = vunpack.c.h.b16 %v1157
        %v1773 = vunpack.c.l.b16 %v1158
        %v1774 = vunpack.c.h.b16 %v1158
        %v1775 = vunpack.c.l.b16 %v1159
        %v1776 = vunpack.c.h.b16 %v1159
        %v1777 = vunpack.c.l.b16 %v1160
        %v1778 = vunpack.c.h.b16 %v1160
        %v1779 = vunpack.c.l.b16 %v1161
        %v1780 = vunpack.c.h.b16 %v1161
        %v1781 = vunpack.c.l.b16 %v1162
        %v1782 = vunpack.c.h.b16 %v1162
        %v1783 = vunpack.c.l.b16 %v1163
        %v1784 = vunpack.c.h.b16 %v1163
        %v1785 = vunpack.c.l.b16 %v1164
        %v1786 = vunpack.c.h.b16 %v1164
        %v1787 = vunpack.c.l.b16 %v1165
        %v1788 = vunpack.c.h.b16 %v1165
        %v1789 = vunpack.c.l.b16 %v1166
        %v1790 = vunpack.c.h.b16 %v1166
        %v1791 = vunpack.c.l.b16 %v1167
        %v1792 = vunpack.c.h.b16 %v1167
        %v1793 = vunpack.c.l.b16 %v1168
        %v1794 = vunpack.c.h.b16 %v1168
        %v1795 = vunpack.c.l.b16 %v1169
        %v1796 = vunpack.c.h.b16 %v1169
        %v1797 = vunpack.c.l.b16 %v1170
        %v1798 = vunpack.c.h.b16 %v1170
        %v1799 = vunpack.c.l.b16 %v1171
        %v1800 = vunpack.c.h.b16 %v1171
        %v1801 = vunpack.c.l.b16 %v1172
        %v1802 = vunpack.c.h.b16 %v1172
        %v1803 = vunpack.c.l.b16 %v1173
        %v1804 = vunpack.c.h.b16 %v1173
        %v1805 = vunpack.c.l.b16 %v1174
        %v1806 = vunpack.c.h.b16 %v1174
        %v1807 = vunpack.c.l.b16 %v1175
        %v1808 = vunpack.c.h.b16 %v1175
        %v1809 = vunpack.c.l.b16 %v1176
        %v1810 = vunpack.c.h.b16 %v1176
        %v1811 = vunpack.c.l.b16 %v1177
        %v1812 = vunpack.c.h.b16 %v1177
        %v1813 = vunpack.c.l.b16 %v1178
        %v1814 = vunpack.c.h.b16 %v1178
        %v1815 = vunpack.c.l.b16 %v1179
        %v1816 = vunpack.c.h.b16 %v1179
        %v1817 = vunpack.c.l.b16 %v1180
        %v1818 = vunpack.c.h.b16 %v1180
        %v1819 = vunpack.c.l.b16 %v1181
        %v1820 = vunpack.c.h.b16 %v1181
        %v1821 = vunpack.c.l.b16 %v1182
        %v1822 = vunpack.c.h.b16 %v1182
        %v1823 = vunpack.c.l.b16 %v1183
        %v1824 = vunpack.c.h.b16 %v1183
        %v1825 = vunpack.c.l.b16 %v1184
        %v1826 = vunpack.c.h.b16 %v1184
        %v1827 = vunpack.c.l.b16 %v1185
        %v1828 = vunpack.c.h.b16 %v1185
        %v1829 = vunpack.c.l.b16 %v1186
        %v1830 = vunpack.c.h.b16 %v1186
        %v1831 = vunpack.c.l.b16 %v1187
        %v1832 = vunpack.c.h.b16 %v1187
        %v1833 = vunpack.c.l.b16 %v1188
        %v1834 = vunpack.c.h.b16 %v1188
        %v1835 = vunpack.c.l.b16 %v1189
        %v1836 = vunpack.c.h.b16 %v1189
        %v1837 = vunpack.c.l.b16 %v1190
        %v1838 = vunpack.c.h.b16 %v1190
        %v1839 = vunpack.c.l.b16 %v1191
        %v1840 = vunpack.c.h.b16 %v1191
        %v1841 = vunpack.c.l.b16 %v1192
        %v1842 = vunpack.c.h.b16 %v1192
        %v1843 = vunpack.c.l.b16 %v1193
        %v1844 = vunpack.c.h.b16 %v1193
        %v1845 = vunpack.c.l.b16 %v1194
        %v1846 = vunpack.c.h.b16 %v1194
        %v1847 = vunpack.c.l.b16 %v1195
        %v1848 = vunpack.c.h.b16 %v1195
        %v1849 = vunpack.c.l.b16 %v1196
        %v1850 = vunpack.c.h.b16 %v1196
        %v1851 = vunpack.c.l.b16 %v1197
        %v1852 = vunpack.c.h.b16 %v1197
        %v1853 = vunpack.c.l.b16 %v1198
        %v1854 = vunpack.c.h.b16 %v1198
        %v1855 = vunpack.c.l.b16 %v1199
        %v1856 = vunpack.c.h.b16 %v1199
        %v1857 = vunpack.c.l.b16 %v1200
        %v1858 = vunpack.c.h.b16 %v1200
        %v1859 = vunpack.c.l.b16 %v1201
        %v1860 = vunpack.c.h.b16 %v1201
        %v1861 = vunpack.c.l.b16 %v1202
        %v1862 = vunpack.c.h.b16 %v1202
        %v1863 = vunpack.c.l.b16 %v1203
        %v1864 = vunpack.c.h.b16 %v1203
        %v1865 = vunpack.c.l.b16 %v1204
        %v1866 = vunpack.c.h.b16 %v1204
        %v1867 = vunpack.c.l.b16 %v1205
        %v1868 = vunpack.c.h.b16 %v1205
        %v1869 = vunpack.c.l.b16 %v1206
        %v1870 = vunpack.c.h.b16 %v1206
        %v1871 = vunpack.c.l.b16 %v1207
        %v1872 = vunpack.c.h.b16 %v1207
        %v1873 = vunpack.c.l.b16 %v1208
        %v1874 = vunpack.c.h.b16 %v1208
        %v1875 = vunpack.c.l.b16 %v1209
        %v1876 = vunpack.c.h.b16 %v1209
        %v1877 = vunpack.c.l.b16 %v1210
        %v1878 = vunpack.c.h.b16 %v1210
        %v1879 = vunpack.c.l.b16 %v1211
        %v1880 = vunpack.c.h.b16 %v1211
        %v1881 = vunpack.c.l.b16 %v1212
        %v1882 = vunpack.c.h.b16 %v1212
        %v1883 = vunpack.c.l.b16 %v1213
        %v1884 = vunpack.c.h.b16 %v1213
        %v1885 = vunpack.c.l.b16 %v1214
        %v1886 = vunpack.c.h.b16 %v1214
        %v1887 = vunpack.c.l.b16 %v1215
        %v1888 = vunpack.c.h.b16 %v1215
        %v1889 = vunpack.c.l.b16 %v1216
        %v1890 = vunpack.c.h.b16 %v1216
        %v1891 = vunpack.c.l.b16 %v1217
        %v1892 = vunpack.c.h.b16 %v1217
        %v1893 = vunpack.c.l.b16 %v1218
        %v1894 = vunpack.c.h.b16 %v1218
        %v1895 = vunpack.c.l.b16 %v1219
        %v1896 = vunpack.c.h.b16 %v1219
        %v1897 = vunpack.c.l.b16 %v1220
        %v1898 = vunpack.c.h.b16 %v1220
        %v1899 = vunpack.c.l.b16 %v1221
        %v1900 = vunpack.c.h.b16 %v1221
        %v1901 = vunpack.c.l.b16 %v1222
        %v1902 = vunpack.c.h.b16 %v1222
        %v1903 = vunpack.c.l.b16 %v1223
        %v1904 = vunpack.c.h.b16 %v1223
        %v1905 = vunpack.c.l.b16 %v1224
        %v1906 = vunpack.c.h.b16 %v1224
        %v1907 = vunpack.c.l.b16 %v1225
        %v1908 = vunpack.c.h.b16 %v1225
        %v1909 = vunpack.c.l.b16 %v1226
        %v1910 = vunpack.c.h.b16 %v1226
        %v1911 = vunpack.c.l.b16 %v1227
        %v1912 = vunpack.c.h.b16 %v1227
        %v1913 = vunpack.c.l.b16 %v1228
        %v1914 = vunpack.c.h.b16 %v1228
        %v1915 = vunpack.c.l.b16 %v1229
        %v1916 = vunpack.c.h.b16 %v1229
        %v1917 = vunpack.c.l.b16 %v1230
        %v1918 = vunpack.c.h.b16 %v1230
        %v1919 = vunpack.c.l.b16 %v1231
        %v1920 = vunpack.c.h.b16 %v1231
        %v1921 = vunpack.c.l.b16 %v1232
        %v1922 = vunpack.c.h.b16 %v1232
        %v1923 = vunpack.c.l.b16 %v1233
        %v1924 = vunpack.c.h.b16 %v1233
        %v1925 = vunpack.c.l.b16 %v1234
        %v1926 = vunpack.c.h.b16 %v1234
        %v1927 = vunpack.c.l.b16 %v1235
        %v1928 = vunpack.c.h.b16 %v1235
        %v1929 = vunpack.c.l.b16 %v1236
        %v1930 = vunpack.c.h.b16 %v1236
        %v1931 = vunpack.c.l.b16 %v1237
        %v1932 = vunpack.c.h.b16 %v1237
        %v1933 = vunpack.c.l.b16 %v1238
        %v1934 = vunpack.c.h.b16 %v1238
        %v1935 = vunpack.c.l.b16 %v1239
        %v1936 = vunpack.c.h.b16 %v1239
        %v1937 = vunpack.c.l.b16 %v1240
        %v1938 = vunpack.c.h.b16 %v1240
        %v1939 = vunpack.c.l.b16 %v1241
        %v1940 = vunpack.c.h.b16 %v1241
        %v1941 = vunpack.c.l.b16 %v1242
        %v1942 = vunpack.c.h.b16 %v1242
        %v1943 = vunpack.c.l.b16 %v1243
        %v1944 = vunpack.c.h.b16 %v1243
        %v1945 = vunpack.c.l.b16 %v1244
        %v1946 = vunpack.c.h.b16 %v1244
        %v1947 = vunpack.c.l.b16 %v1245
        %v1948 = vunpack.c.h.b16 %v1245
        %v1949 = vunpack.c.l.b16 %v1246
        %v1950 = vunpack.c.h.b16 %v1246
        %v1951 = vunpack.c.l.b16 %v1247
        %v1952 = vunpack.c.h.b16 %v1247
        %v1953 = vunpack.c.l.b16 %v1248
        %v1954 = vunpack.c.h.b16 %v1248
        %v1955 = vunpack.c.l.b16 %v1249
        %v1956 = vunpack.c.h.b16 %v1249
        %v1957 = vunpack.c.l.b16 %v1250
        %v1958 = vunpack.c.h.b16 %v1250
        %v1959 = vunpack.c.l.b16 %v1251
        %v1960 = vunpack.c.h.b16 %v1251
        %v1961 = vunpack.c.l.b16 %v1252
        %v1962 = vunpack.c.h.b16 %v1252
        %v1963 = vunpack.c.l.b16 %v1253
        %v1964 = vunpack.c.h.b16 %v1253
        %v1965 = vunpack.c.l.b16 %v1254
        %v1966 = vunpack.c.h.b16 %v1254
        %v1967 = vunpack.c.l.b16 %v1255
        %v1968 = vunpack.c.h.b16 %v1255
        %v1969 = vunpack.c.l.b16 %v1256
        %v1970 = vunpack.c.h.b16 %v1256
        %v1971 = vunpack.c.l.b16 %v1257
        %v1972 = vunpack.c.h.b16 %v1257
        %v1973 = vunpack.c.l.b16 %v1258
        %v1974 = vunpack.c.h.b16 %v1258
        %v1975 = vunpack.c.l.b16 %v1259
        %v1976 = vunpack.c.h.b16 %v1259
        %v1977 = vunpack.c.l.b16 %v1260
        %v1978 = vunpack.c.h.b16 %v1260
        %v1979 = vunpack.c.l.b16 %v1261
        %v1980 = vunpack.c.h.b16 %v1261
        %v1981 = vunpack.c.l.b16 %v1262
        %v1982 = vunpack.c.h.b16 %v1262
        %v1983 = vunpack.c.l.b16 %v1263
        %v1984 = vunpack.c.h.b16 %v1263
        %v1985 = vunpack.c.l.b16 %v1264
        %v1986 = vunpack.c.h.b16 %v1264
        %v1987 = vunpack.c.l.b16 %v1265
        %v1988 = vunpack.c.h.b16 %v1265
        %v1989 = vunpack.c.l.b16 %v1266
        %v1990 = vunpack.c.h.b16 %v1266
        %v1991 = vunpack.c.l.b16 %v1267
        %v1992 = vunpack.c.h.b16 %v1267
        %v1993 = vunpack.c.l.b16 %v1268
        %v1994 = vunpack.c.h.b16 %v1268
        %v1995 = vunpack.c.l.b16 %v1269
        %v1996 = vunpack.c.h.b16 %v1269
        %v1997 = vunpack.c.l.b16 %v1270
        %v1998 = vunpack.c.h.b16 %v1270
        %v1999 = vunpack.c.l.b16 %v1271
        %v2000 = vunpack.c.h.b16 %v1271
        %v2001 = vunpack.c.l.b16 %v1272
        %v2002 = vunpack.c.h.b16 %v1272
        %v2003 = vunpack.c.l.b16 %v1273
        %v2004 = vunpack.c.h.b16 %v1273
        %v2005 = vunpack.c.l.b16 %v1274
        %v2006 = vunpack.c.h.b16 %v1274
        %v2007 = vunpack.c.l.b16 %v1275
        %v2008 = vunpack.c.h.b16 %v1275
        %v2009 = vunpack.c.l.b16 %v1276
        %v2010 = vunpack.c.h.b16 %v1276
        %v2011 = vunpack.c.l.b16 %v1277
        %v2012 = vunpack.c.h.b16 %v1277
        %v2013 = vunpack.c.l.b16 %v1278
        %v2014 = vunpack.c.h.b16 %v1278
        %v2015 = vunpack.c.l.b16 %v1279
        %v2016 = vunpack.c.h.b16 %v1279
        %v2017 = vunpack.c.l.b16 %v1280
        %v2018 = vunpack.c.h.b16 %v1280
        %v2019 = vunpack.c.l.b16 %v1281
        %v2020 = vunpack.c.h.b16 %v1281
        %v2021 = vunpack.c.l.b16 %v1282
        %v2022 = vunpack.c.h.b16 %v1282
        %v2023 = vunpack.c.l.b16 %v1283
        %v2024 = vunpack.c.h.b16 %v1283
        %v2025 = vunpack.c.l.b16 %v1284
        %v2026 = vunpack.c.h.b16 %v1284
        %v2027 = vunpack.c.l.b16 %v1285
        %v2028 = vunpack.c.h.b16 %v1285
        %v2029 = vunpack.c.l.b16 %v1286
        %v2030 = vunpack.c.h.b16 %v1286
        %v2031 = vunpack.c.l.b16 %v1287
        %v2032 = vunpack.c.h.b16 %v1287
        %v2033 = vunpack.c.l.b16 %v1288
        %v2034 = vunpack.c.h.b16 %v1288
        %v2035 = vunpack.c.l.b16 %v1289
        %v2036 = vunpack.c.h.b16 %v1289
        %v2037 = vunpack.c.l.b16 %v1290
        %v2038 = vunpack.c.h.b16 %v1290
        %v2039 = vunpack.c.l.b16 %v1291
        %v2040 = vunpack.c.h.b16 %v1291
        %v2041 = vunpack.c.l.b16 %v1292
        %v2042 = vunpack.c.h.b16 %v1292
        %v2043 = vunpack.c.l.b16 %v1293
        %v2044 = vunpack.c.h.b16 %v1293
        %v2045 = vunpack.c.l.b16 %v1294
        %v2046 = vunpack.c.h.b16 %v1294
        %v2047 = vunpack.c.l.b16 %v1295
        %v2048 = vunpack.c.h.b16 %v1295
        %v2049 = vunpack.c.l.b16 %v1296
        %v2050 = vunpack.c.h.b16 %v1296
        %v2051 = vunpack.c.l.b16 %v1297
        %v2052 = vunpack.c.h.b16 %v1297
        %v2053 = vunpack.c.l.b16 %v1298
        %v2054 = vunpack.c.h.b16 %v1298
        %v2055 = vunpack.c.l.b16 %v1299
        %v2056 = vunpack.c.h.b16 %v1299
        %v2057 = vunpack.c.l.b16 %v1300
        %v2058 = vunpack.c.h.b16 %v1300
        %v2059 = vunpack.c.l.b16 %v1301
        %v2060 = vunpack.c.h.b16 %v1301
        %v2061 = vunpack.c.l.b16 %v1302
        %v2062 = vunpack.c.h.b16 %v1302
        %v2063 = vunpack.c.l.b16 %v1303
        %v2064 = vunpack.c.h.b16 %v1303
        %v2065 = vunpack.c.l.b16 %v1304
        %v2066 = vunpack.c.h.b16 %v1304
        %v2067 = vunpack.c.l.b16 %v1305
        %v2068 = vunpack.c.h.b16 %v1305
        %v2069 = vunpack.c.l.b16 %v1306
        %v2070 = vunpack.c.h.b16 %v1306
        %v2071 = vunpack.c.l.b16 %v1307
        %v2072 = vunpack.c.h.b16 %v1307
        %v2073 = vunpack.c.l.b16 %v1308
        %v2074 = vunpack.c.h.b16 %v1308
        %v2075 = vunpack.c.l.b16 %v1309
        %v2076 = vunpack.c.h.b16 %v1309
        %v2077 = vunpack.c.l.b16 %v1310
        %v2078 = vunpack.c.h.b16 %v1310
        %v2079 = vunpack.c.l.b16 %v1311
        %v2080 = vunpack.c.h.b16 %v1311
        %v2081 = vunpack.c.l.b16 %v1312
        %v2082 = vunpack.c.h.b16 %v1312
        %v2083 = vunpack.c.l.b16 %v1313
        %v2084 = vunpack.c.h.b16 %v1313
        %v2085 = vunpack.c.l.b16 %v1314
        %v2086 = vunpack.c.h.b16 %v1314
        %v2087 = vunpack.c.l.b16 %v1315
        %v2088 = vunpack.c.h.b16 %v1315
        %v2089 = vunpack.c.l.b16 %v1316
        %v2090 = vunpack.c.h.b16 %v1316
        %v2091 = vunpack.c.l.b16 %v1317
        %v2092 = vunpack.c.h.b16 %v1317
        %v2093 = vunpack.c.l.b16 %v1318
        %v2094 = vunpack.c.h.b16 %v1318
        %v2095 = vunpack.c.l.b16 %v1319
        %v2096 = vunpack.c.h.b16 %v1319
        %v2097 = vunpack.c.l.b16 %v1320
        %v2098 = vunpack.c.h.b16 %v1320
        %v2099 = vunpack.c.l.b16 %v1321
        %v2100 = vunpack.c.h.b16 %v1321
        %v2101 = vunpack.c.l.b16 %v1322
        %v2102 = vunpack.c.h.b16 %v1322
        %v2103 = vunpack.c.l.b16 %v1323
        %v2104 = vunpack.c.h.b16 %v1323
        %v2105 = vunpack.c.l.b16 %v1324
        %v2106 = vunpack.c.h.b16 %v1324
        %v2107 = vunpack.c.l.b16 %v1325
        %v2108 = vunpack.c.h.b16 %v1325
        %v2109 = vunpack.c.l.b16 %v1326
        %v2110 = vunpack.c.h.b16 %v1326
        %v2111 = vunpack.c.l.b16 %v1327
        %v2112 = vunpack.c.h.b16 %v1327
        %v2113 = vunpack.c.l.b16 %v1328
        %v2114 = vunpack.c.h.b16 %v1328
        %v2115 = vunpack.c.l.b16 %v1329
        %v2116 = vunpack.c.h.b16 %v1329
        %v2117 = vunpack.c.l.b16 %v1330
        %v2118 = vunpack.c.h.b16 %v1330
        %v2119 = vunpack.c.l.b16 %v1331
        %v2120 = vunpack.c.h.b16 %v1331
        %v2121 = vunpack.c.l.b16 %v1332
        %v2122 = vunpack.c.h.b16 %v1332
        %v2123 = vpack.c.b16 %v1615, %v1611
        %v2124 = vpack.c.b16 %v1616, %v1612
        %v2125 = vpack.c.b16 %v1617, %v1613
        %v2126 = vpack.c.b16 %v1618, %v1614
        %v2127 = vpack.c.b16 %v1623, %v1619
        %v2128 = vpack.c.b16 %v1624, %v1620
        %v2129 = vpack.c.b16 %v1625, %v1621
        %v2130 = vpack.c.b16 %v1626, %v1622
        %v2131 = vpack.c.b16 %v1631, %v1627
        %v2132 = vpack.c.b16 %v1632, %v1628
        %v2133 = vpack.c.b16 %v1633, %v1629
        %v2134 = vpack.c.b16 %v1634, %v1630
        %v2135 = vpack.c.b16 %v1639, %v1635
        %v2136 = vpack.c.b16 %v1640, %v1636
        %v2137 = vpack.c.b16 %v1641, %v1637
        %v2138 = vpack.c.b16 %v1642, %v1638
        %v2139 = vpack.c.b16 %v1647, %v1643
        %v2140 = vpack.c.b16 %v1648, %v1644
        %v2141 = vpack.c.b16 %v1649, %v1645
        %v2142 = vpack.c.b16 %v1650, %v1646
        %v2143 = vpack.c.b16 %v1655, %v1651
        %v2144 = vpack.c.b16 %v1656, %v1652
        %v2145 = vpack.c.b16 %v1657, %v1653
        %v2146 = vpack.c.b16 %v1658, %v1654
        %v2147 = vpack.c.b16 %v1663, %v1659
        %v2148 = vpack.c.b16 %v1664, %v1660
        %v2149 = vpack.c.b16 %v1665, %v1661
        %v2150 = vpack.c.b16 %v1666, %v1662
        %v2151 = vpack.c.b16 %v1671, %v1667
        %v2152 = vpack.c.b16 %v1672, %v1668
        %v2153 = vpack.c.b16 %v1673, %v1669
        %v2154 = vpack.c.b16 %v1674, %v1670
        %v2155 = vpack.c.b16 %v1679, %v1675
        %v2156 = vpack.c.b16 %v1680, %v1676
        %v2157 = vpack.c.b16 %v1681, %v1677
        %v2158 = vpack.c.b16 %v1682, %v1678
        %v2159 = vpack.c.b16 %v1687, %v1683
        %v2160 = vpack.c.b16 %v1688, %v1684
        %v2161 = vpack.c.b16 %v1689, %v1685
        %v2162 = vpack.c.b16 %v1690, %v1686
        %v2163 = vpack.c.b16 %v1695, %v1691
        %v2164 = vpack.c.b16 %v1696, %v1692
        %v2165 = vpack.c.b16 %v1697, %v1693
        %v2166 = vpack.c.b16 %v1698, %v1694
        %v2167 = vpack.c.b16 %v1703, %v1699
        %v2168 = vpack.c.b16 %v1704, %v1700
        %v2169 = vpack.c.b16 %v1705, %v1701
        %v2170 = vpack.c.b16 %v1706, %v1702
        %v2171 = vpack.c.b16 %v1711, %v1707
        %v2172 = vpack.c.b16 %v1712, %v1708
        %v2173 = vpack.c.b16 %v1713, %v1709
        %v2174 = vpack.c.b16 %v1714, %v1710
        %v2175 = vpack.c.b16 %v1719, %v1715
        %v2176 = vpack.c.b16 %v1720, %v1716
        %v2177 = vpack.c.b16 %v1721, %v1717
        %v2178 = vpack.c.b16 %v1722, %v1718
        %v2179 = vpack.c.b16 %v1727, %v1723
        %v2180 = vpack.c.b16 %v1728, %v1724
        %v2181 = vpack.c.b16 %v1729, %v1725
        %v2182 = vpack.c.b16 %v1730, %v1726
        %v2183 = vpack.c.b16 %v1735, %v1731
        %v2184 = vpack.c.b16 %v1736, %v1732
        %v2185 = vpack.c.b16 %v1737, %v1733
        %v2186 = vpack.c.b16 %v1738, %v1734
        %v2187 = vpack.c.b16 %v1743, %v1739
        %v2188 = vpack.c.b16 %v1744, %v1740
        %v2189 = vpack.c.b16 %v1745, %v1741
        %v2190 = vpack.c.b16 %v1746, %v1742
        %v2191 = vpack.c.b16 %v1751, %v1747
        %v2192 = vpack.c.b16 %v1752, %v1748
        %v2193 = vpack.c.b16 %v1753, %v1749
        %v2194 = vpack.c.b16 %v1754, %v1750
        %v2195 = vpack.c.b16 %v1759, %v1755
        %v2196 = vpack.c.b16 %v1760, %v1756
        %v2197 = vpack.c.b16 %v1761, %v1757
        %v2198 = vpack.c.b16 %v1762, %v1758
        %v2199 = vpack.c.b16 %v1767, %v1763
        %v2200 = vpack.c.b16 %v1768, %v1764
        %v2201 = vpack.c.b16 %v1769, %v1765
        %v2202 = vpack.c.b16 %v1770, %v1766
        %v2203 = vpack.c.b16 %v1775, %v1771
        %v2204 = vpack.c.b16 %v1776, %v1772
        %v2205 = vpack.c.b16 %v1777, %v1773
        %v2206 = vpack.c.b16 %v1778, %v1774
        %v2207 = vpack.c.b16 %v1783, %v1779
        %v2208 = vpack.c.b16 %v1784, %v1780
        %v2209 = vpack.c.b16 %v1785, %v1781
        %v2210 = vpack.c.b16 %v1786, %v1782
        %v2211 = vpack.c.b16 %v1791, %v1787
        %v2212 = vpack.c.b16 %v1792, %v1788
        %v2213 = vpack.c.b16 %v1793, %v1789
        %v2214 = vpack.c.b16 %v1794, %v1790
        %v2215 = vpack.c.b16 %v1799, %v1795
        %v2216 = vpack.c.b16 %v1800, %v1796
        %v2217 = vpack.c.b16 %v1801, %v1797
        %v2218 = vpack.c.b16 %v1802, %v1798
        %v2219 = vpack.c.b16 %v1807, %v1803
        %v2220 = vpack.c.b16 %v1808, %v1804
        %v2221 = vpack.c.b16 %v1809, %v1805
        %v2222 = vpack.c.b16 %v1810, %v1806
        %v2223 = vpack.c.b16 %v1815, %v1811
        %v2224 = vpack.c.b16 %v1816, %v1812
        %v2225 = vpack.c.b16 %v1817, %v1813
        %v2226 = vpack.c.b16 %v1818, %v1814
        %v2227 = vpack.c.b16 %v1823, %v1819
        %v2228 = vpack.c.b16 %v1824, %v1820
        %v2229 = vpack.c.b16 %v1825, %v1821
        %v2230 = vpack.c.b16 %v1826, %v1822
        %v2231 = vpack.c.b16 %v1831, %v1827
        %v2232 = vpack.c.b16 %v1832, %v1828
        %v2233 = vpack.c.b16 %v1833, %v1829
        %v2234 = vpack.c.b16 %v1834, %v1830
        %v2235 = vpack.c.b16 %v1839, %v1835
        %v2236 = vpack.c.b16 %v1840, %v1836
        %v2237 = vpack.c.b16 %v1841, %v1837
        %v2238 = vpack.c.b16 %v1842, %v1838
        %v2239 = vpack.c.b16 %v1847, %v1843
        %v2240 = vpack.c.b16 %v1848, %v1844
        %v2241 = vpack.c.b16 %v1849, %v1845
        %v2242 = vpack.c.b16 %v1850, %v1846
        %v2243 = vpack.c.b16 %v1855, %v1851
        %v2244 = vpack.c.b16 %v1856, %v1852
        %v2245 = vpack.c.b16 %v1857, %v1853
        %v2246 = vpack.c.b16 %v1858, %v1854
        %v2247 = vpack.c.b16 %v1863, %v1859
        %v2248 = vpack.c.b16 %v1864, %v1860
        %v2249 = vpack.c.b16 %v1865, %v1861
        %v2250 = vpack.c.b16 %v1866, %v1862
        %v2251 = vpack.c.b16 %v1871, %v1867
        %v2252 = vpack.c.b16 %v1872, %v1868
        %v2253 = vpack.c.b16 %v1873, %v1869
        %v2254 = vpack.c.b16 %v1874, %v1870
        %v2255 = vpack.c.b16 %v1879, %v1875
        %v2256 = vpack.c.b16 %v1880, %v1876
        %v2257 = vpack.c.b16 %v1881, %v1877
        %v2258 = vpack.c.b16 %v1882, %v1878
        %v2259 = vpack.c.b16 %v1887, %v1883
        %v2260 = vpack.c.b16 %v1888, %v1884
        %v2261 = vpack.c.b16 %v1889, %v1885
        %v2262 = vpack.c.b16 %v1890, %v1886
        %v2263 = vpack.c.b16 %v1895, %v1891
        %v2264 = vpack.c.b16 %v1896, %v1892
        %v2265 = vpack.c.b16 %v1897, %v1893
        %v2266 = vpack.c.b16 %v1898, %v1894
        %v2267 = vpack.c.b16 %v1903, %v1899
        %v2268 = vpack.c.b16 %v1904, %v1900
        %v2269 = vpack.c.b16 %v1905, %v1901
        %v2270 = vpack.c.b16 %v1906, %v1902
        %v2271 = vpack.c.b16 %v1911, %v1907
        %v2272 = vpack.c.b16 %v1912, %v1908
        %v2273 = vpack.c.b16 %v1913, %v1909
        %v2274 = vpack.c.b16 %v1914, %v1910
        %v2275 = vpack.c.b16 %v1919, %v1915
        %v2276 = vpack.c.b16 %v1920, %v1916
        %v2277 = vpack.c.b16 %v1921, %v1917
        %v2278 = vpack.c.b16 %v1922, %v1918
        %v2279 = vpack.c.b16 %v1927, %v1923
        %v2280 = vpack.c.b16 %v1928, %v1924
        %v2281 = vpack.c.b16 %v1929, %v1925
        %v2282 = vpack.c.b16 %v1930, %v1926
        %v2283 = vpack.c.b16 %v1935, %v1931
        %v2284 = vpack.c.b16 %v1936, %v1932
        %v2285 = vpack.c.b16 %v1937, %v1933
        %v2286 = vpack.c.b16 %v1938, %v1934
        %v2287 = vpack.c.b16 %v1943, %v1939
        %v2288 = vpack.c.b16 %v1944, %v1940
        %v2289 = vpack.c.b16 %v1945, %v1941
        %v2290 = vpack.c.b16 %v1946, %v1942
        %v2291 = vpack.c.b16 %v1951, %v1947
        %v2292 = vpack.c.b16 %v1952, %v1948
        %v2293 = vpack.c.b16 %v1953, %v1949
        %v2294 = vpack.c.b16 %v1954, %v1950
        %v2295 = vpack.c.b16 %v1959, %v1955
        %v2296 = vpack.c.b16 %v1960, %v1956
        %v2297 = vpack.c.b16 %v1961, %v1957
        %v2298 = vpack.c.b16 %v1962, %v1958
        %v2299 = vpack.c.b16 %v1967, %v1963
        %v2300 = vpack.c.b16 %v1968, %v1964
        %v2301 = vpack.c.b16 %v1969, %v1965
        %v2302 = vpack.c.b16 %v1970, %v1966
        %v2303 = vpack.c.b16 %v1975, %v1971
        %v2304 = vpack.c.b16 %v1976, %v1972
        %v2305 = vpack.c.b16 %v1977, %v1973
        %v2306 = vpack.c.b16 %v1978, %v1974
        %v2307 = vpack.c.b16 %v1983, %v1979
        %v2308 = vpack.c.b16 %v1984, %v1980
        %v2309 = vpack.c.b16 %v1985, %v1981
        %v2310 = vpack.c.b16 %v1986, %v1982
        %v2311 = vpack.c.b16 %v1991, %v1987
        %v2312 = vpack.c.b16 %v1992, %v1988
        %v2313 = vpack.c.b16 %v1993, %v1989
        %v2314 = vpack.c.b16 %v1994, %v1990
        %v2315 = vpack.c.b16 %v1999, %v1995
        %v2316 = vpack.c.b16 %v2000, %v1996
        %v2317 = vpack.c.b16 %v2001, %v1997
        %v2318 = vpack.c.b16 %v2002, %v1998
        %v2319 = vpack.c.b16 %v2007, %v2003
        %v2320 = vpack.c.b16 %v2008, %v2004
        %v2321 = vpack.c.b16 %v2009, %v2005
        %v2322 = vpack.c.b16 %v2010, %v2006
        %v2323 = vpack.c.b16 %v2015, %v2011
        %v2324 = vpack.c.b16 %v2016, %v2012
        %v2325 = vpack.c.b16 %v2017, %v2013
        %v2326 = vpack.c.b16 %v2018, %v2014
        %v2327 = vpack.c.b16 %v2023, %v2019
        %v2328 = vpack.c.b16 %v2024, %v2020
        %v2329 = vpack.c.b16 %v2025, %v2021
        %v2330 = vpack.c.b16 %v2026, %v2022
        %v2331 = vpack.c.b16 %v2031, %v2027
        %v2332 = vpack.c.b16 %v2032, %v2028
        %v2333 = vpack.c.b16 %v2033, %v2029
        %v2334 = vpack.c.b16 %v2034, %v2030
        %v2335 = vpack.c.b16 %v2039, %v2035
        %v2336 = vpack.c.b16 %v2040, %v2036
        %v2337 = vpack.c.b16 %v2041, %v2037
        %v2338 = vpack.c.b16 %v2042, %v2038
        %v2339 = vpack.c.b16 %v2047, %v2043
        %v2340 = vpack.c.b16 %v2048, %v2044
        %v2341 = vpack.c.b16 %v2049, %v2045
        %v2342 = vpack.c.b16 %v2050, %v2046
        %v2343 = vpack.c.b16 %v2055, %v2051
        %v2344 = vpack.c.b16 %v2056, %v2052
        %v2345 = vpack.c.b16 %v2057, %v2053
        %v2346 = vpack.c.b16 %v2058, %v2054
        %v2347 = vpack.c.b16 %v2063, %v2059
        %v2348 = vpack.c.b16 %v2064, %v2060
        %v2349 = vpack.c.b16 %v2065, %v2061
        %v2350 = vpack.c.b16 %v2066, %v2062
        %v2351 = vpack.c.b16 %v2071, %v2067
        %v2352 = vpack.c.b16 %v2072, %v2068
        %v2353 = vpack.c.b16 %v2073, %v2069
        %v2354 = vpack.c.b16 %v2074, %v2070
        %v2355 = vpack.c.b16 %v2079, %v2075
        %v2356 = vpack.c.b16 %v2080, %v2076
        %v2357 = vpack.c.b16 %v2081, %v2077
        %v2358 = vpack.c.b16 %v2082, %v2078
        %v2359 = vpack.c.b16 %v2087, %v2083
        %v2360 = vpack.c.b16 %v2088, %v2084
        %v2361 = vpack.c.b16 %v2089, %v2085
        %v2362 = vpack.c.b16 %v2090, %v2086
        %v2363 = vpack.c.b16 %v2095, %v2091
        %v2364 = vpack.c.b16 %v2096, %v2092
        %v2365 = vpack.c.b16 %v2097, %v2093
        %v2366 = vpack.c.b16 %v2098, %v2094
        %v2367 = vpack.c.b16 %v2103, %v2099
        %v2368 = vpack.c.b16 %v2104, %v2100
        %v2369 = vpack.c.b16 %v2105, %v2101
        %v2370 = vpack.c.b16 %v2106, %v2102
        %v2371 = vpack.c.b16 %v2111, %v2107
        %v2372 = vpack.c.b16 %v2112, %v2108
        %v2373 = vpack.c.b16 %v2113, %v2109
        %v2374 = vpack.c.b16 %v2114, %v2110
        %v2375 = vpack.c.b16 %v2119, %v2115
        %v2376 = vpack.c.b16 %v2120, %v2116
        %v2377 = vpack.c.b16 %v2121, %v2117
        %v2378 = vpack.c.b16 %v2122, %v2118
        %2635 = vmatprep.subr.bf16.mxu0 %v2152
        %2636 = vmatpush1.bf16.msra.mxu0 %v2151
        %2637 = vmatprep.subr.bf16.mxu0 %v2148
        %2638 = vmatpush1.bf16.msra.mxu0 %v2147
        %2639 = vmatprep.subr.bf16.mxu0 %v2144
        %2640 = vmatpush1.bf16.msra.mxu0 %v2143
        %2641 = vmatprep.subr.bf16.mxu0 %v2140
        %2642 = vmatpush1.bf16.msra.mxu0 %v2139
        %2643 = vmatprep.subr.bf16.mxu0 %v2136
        %2644 = vmatpush1.bf16.msra.mxu0 %v2135
        %2645 = vmatprep.subr.bf16.mxu0 %v2132
        %2646 = vmatpush1.bf16.msra.mxu0 %v2131
        %2647 = vmatprep.subr.bf16.mxu0 %v2128
        %2648 = vmatpush1.bf16.msra.mxu0 %v2127
        %2649 = vmatprep.subr.bf16.mxu0 %v2124
        %2650 = vmatpush1.bf16.msra.mxu0 %v2123
        %2651 = vmatprep.subr.bf16.mxu0 %v2184
        %2652 = vmatpush2.bf16.msra.mxu0 %v2183
        %2653 = vmatprep.subr.bf16.mxu0 %v2180
        %2654 = vmatpush2.bf16.msra.mxu0 %v2179
        %2655 = vmatprep.subr.bf16.mxu0 %v2176
        %2656 = vmatpush2.bf16.msra.mxu0 %v2175
        %2657 = vmatprep.subr.bf16.mxu0 %v2172
        %2658 = vmatpush2.bf16.msra.mxu0 %v2171
        %2659 = vmatprep.subr.bf16.mxu0 %v2168
        %2660 = vmatpush2.bf16.msra.mxu0 %v2167
        %2661 = vmatprep.subr.bf16.mxu0 %v2164
        %2662 = vmatpush2.bf16.msra.mxu0 %v2163
        %2663 = vmatprep.subr.bf16.mxu0 %v2160
        %2664 = vmatpush2.bf16.msra.mxu0 %v2159
        %2665 = vmatprep.subr.bf16.mxu0 %v2156
        %2666 = vmatpush2.bf16.msra.mxu0 %v2155
        %2667 = vmatprep.mubr.bf16.mxu0 %v950
        %2668 = vmatmul.mubr.bf16.gmra.mxu0 %v949
        %v2669 = vpop.f32.mrf.mxu0
        %v2670 = vadd.f32 %v1338, %v2669
        %v2671 = vpop.f32.mrf.mxu0
        %v2672 = vadd.f32 %v1342, %v2671
        %v2673 = vpop.f32.mrf.mxu0
        %v2674 = vadd.f32 %v1338, %v2673
        %v2675 = vpop.f32.mrf.mxu0
        %v2676 = vadd.f32 %v1342, %v2675
        %2677 = vmatprep.mubr.bf16.mxu0 %v958
        %2678 = vmatmul.mubr.bf16.gmra.mxu0 %v957
        %v2679 = vpop.f32.mrf.mxu0
        %v2680 = vadd.f32 %v1338, %v2679
        %v2681 = vpop.f32.mrf.mxu0
        %v2682 = vadd.f32 %v1342, %v2681
        %v2683 = vpop.f32.mrf.mxu0
        %v2684 = vadd.f32 %v1338, %v2683
        %v2685 = vpop.f32.mrf.mxu0
        %v2686 = vadd.f32 %v1342, %v2685
        %2687 = vmatprep.mubr.bf16.mxu0 %v966
        %2688 = vmatmul.mubr.bf16.gmra.mxu0 %v965
        %v2689 = vpop.f32.mrf.mxu0
        %v2690 = vadd.f32 %v1338, %v2689
        %v2691 = vpop.f32.mrf.mxu0
        %v2692 = vadd.f32 %v1342, %v2691
        %v2693 = vpop.f32.mrf.mxu0
        %v2694 = vadd.f32 %v1338, %v2693
        %v2695 = vpop.f32.mrf.mxu0
        %v2696 = vadd.f32 %v1342, %v2695
        %2697 = vmatprep.mubr.bf16.mxu0 %v974
        %2698 = vmatmul.mubr.bf16.gmra.mxu0 %v973
        %v2699 = vpop.f32.mrf.mxu0
        %v2700 = vadd.f32 %v1338, %v2699
        %v2701 = vpop.f32.mrf.mxu0
        %v2702 = vadd.f32 %v1342, %v2701
        %v2703 = vpop.f32.mrf.mxu0
        %v2704 = vadd.f32 %v1338, %v2703
        %v2705 = vpop.f32.mrf.mxu0
        %v2706 = vadd.f32 %v1342, %v2705
        %2707 = vmatprep.mubr.bf16.mxu0 %v982
        %2708 = vmatmul.mubr.bf16.gmra.mxu0 %v981
        %v2709 = vpop.f32.mrf.mxu0
        %v2710 = vadd.f32 %v1338, %v2709
        %v2711 = vpop.f32.mrf.mxu0
        %v2712 = vadd.f32 %v1342, %v2711
        %v2713 = vpop.f32.mrf.mxu0
        %v2714 = vadd.f32 %v1338, %v2713
        %v2715 = vpop.f32.mrf.mxu0
        %v2716 = vadd.f32 %v1342, %v2715
        %2717 = vmatprep.mubr.bf16.mxu0 %v990
        %2718 = vmatmul.mubr.bf16.gmra.mxu0 %v989
        %v2719 = vpop.f32.mrf.mxu0
        %v2720 = vadd.f32 %v1338, %v2719
        %v2721 = vpop.f32.mrf.mxu0
        %v2722 = vadd.f32 %v1342, %v2721
        %v2723 = vpop.f32.mrf.mxu0
        %v2724 = vadd.f32 %v1338, %v2723
        %v2725 = vpop.f32.mrf.mxu0
        %v2726 = vadd.f32 %v1342, %v2725
        %2727 = vmatprep.mubr.bf16.mxu0 %v998
        %2728 = vmatmul.mubr.bf16.gmra.mxu0 %v997
        %v2729 = vpop.f32.mrf.mxu0
        %v2730 = vadd.f32 %v1338, %v2729
        %v2731 = vpop.f32.mrf.mxu0
        %v2732 = vadd.f32 %v1342, %v2731
        %v2733 = vpop.f32.mrf.mxu0
        %v2734 = vadd.f32 %v1338, %v2733
        %v2735 = vpop.f32.mrf.mxu0
        %v2736 = vadd.f32 %v1342, %v2735
        %2737 = vmatprep.mubr.bf16.mxu0 %v1006
        %2738 = vmatmul.mubr.bf16.gmra.mxu0 %v1005
        %v2739 = vpop.f32.mrf.mxu0
        %v2740 = vadd.f32 %v1338, %v2739
        %v2741 = vpop.f32.mrf.mxu0
        %v2742 = vadd.f32 %v1342, %v2741
        %v2743 = vpop.f32.mrf.mxu0
        %v2744 = vadd.f32 %v1338, %v2743
        %v2745 = vpop.f32.mrf.mxu0
        %v2746 = vadd.f32 %v1342, %v2745
        %2747 = vmatprep.mubr.bf16.mxu0 %v1014
        %2748 = vmatmul.mubr.bf16.gmra.mxu0 %v1013
        %v2749 = vpop.f32.mrf.mxu0
        %v2750 = vadd.f32 %v1338, %v2749
        %v2751 = vpop.f32.mrf.mxu0
        %v2752 = vadd.f32 %v1342, %v2751
        %v2753 = vpop.f32.mrf.mxu0
        %v2754 = vadd.f32 %v1338, %v2753
        %v2755 = vpop.f32.mrf.mxu0
        %v2756 = vadd.f32 %v1342, %v2755
        %2757 = vmatprep.mubr.bf16.mxu0 %v1022
        %2758 = vmatmul.mubr.bf16.gmra.mxu0 %v1021
        %v2759 = vpop.f32.mrf.mxu0
        %v2760 = vadd.f32 %v1338, %v2759
        %v2761 = vpop.f32.mrf.mxu0
        %v2762 = vadd.f32 %v1342, %v2761
        %v2763 = vpop.f32.mrf.mxu0
        %v2764 = vadd.f32 %v1338, %v2763
        %v2765 = vpop.f32.mrf.mxu0
        %v2766 = vadd.f32 %v1342, %v2765
        %2767 = vmatprep.mubr.bf16.mxu0 %v1030
        %2768 = vmatmul.mubr.bf16.gmra.mxu0 %v1029
        %v2769 = vpop.f32.mrf.mxu0
        %v2770 = vadd.f32 %v1338, %v2769
        %v2771 = vpop.f32.mrf.mxu0
        %v2772 = vadd.f32 %v1342, %v2771
        %v2773 = vpop.f32.mrf.mxu0
        %v2774 = vadd.f32 %v1338, %v2773
        %v2775 = vpop.f32.mrf.mxu0
        %v2776 = vadd.f32 %v1342, %v2775
        %2777 = vmatprep.mubr.bf16.mxu0 %v1038
        %2778 = vmatmul.mubr.bf16.gmra.mxu0 %v1037
        %v2779 = vpop.f32.mrf.mxu0
        %v2780 = vadd.f32 %v1338, %v2779
        %v2781 = vpop.f32.mrf.mxu0
        %v2782 = vadd.f32 %v1342, %v2781
        %v2783 = vpop.f32.mrf.mxu0
        %v2784 = vadd.f32 %v1338, %v2783
        %v2785 = vpop.f32.mrf.mxu0
        %v2786 = vadd.f32 %v1342, %v2785
        %2787 = vmatprep.mubr.bf16.mxu0 %v1046
        %2788 = vmatmul.mubr.bf16.gmra.mxu0 %v1045
        %v2789 = vpop.f32.mrf.mxu0
        %v2790 = vadd.f32 %v1338, %v2789
        %v2791 = vpop.f32.mrf.mxu0
        %v2792 = vadd.f32 %v1342, %v2791
        %v2793 = vpop.f32.mrf.mxu0
        %v2794 = vadd.f32 %v1338, %v2793
        %v2795 = vpop.f32.mrf.mxu0
        %v2796 = vadd.f32 %v1342, %v2795
        %2797 = vmatprep.mubr.bf16.mxu0 %v1054
        %2798 = vmatmul.mubr.bf16.gmra.mxu0 %v1053
        %v2799 = vpop.f32.mrf.mxu0
        %v2800 = vadd.f32 %v1338, %v2799
        %v2801 = vpop.f32.mrf.mxu0
        %v2802 = vadd.f32 %v1342, %v2801
        %v2803 = vpop.f32.mrf.mxu0
        %v2804 = vadd.f32 %v1338, %v2803
        %v2805 = vpop.f32.mrf.mxu0
        %v2806 = vadd.f32 %v1342, %v2805
        %2807 = vmatprep.mubr.bf16.mxu0 %v1062
        %2808 = vmatmul.mubr.bf16.gmra.mxu0 %v1061
        %v2809 = vpop.f32.mrf.mxu0
        %v2810 = vadd.f32 %v1338, %v2809
        %v2811 = vpop.f32.mrf.mxu0
        %v2812 = vadd.f32 %v1342, %v2811
        %v2813 = vpop.f32.mrf.mxu0
        %v2814 = vadd.f32 %v1338, %v2813
        %v2815 = vpop.f32.mrf.mxu0
        %v2816 = vadd.f32 %v1342, %v2815
        %2817 = vmatprep.mubr.bf16.mxu0 %v1070
        %2818 = vmatmul.mubr.bf16.gmra.mxu0 %v1069
        %v2819 = vpop.f32.mrf.mxu0
        %v2820 = vadd.f32 %v1338, %v2819
        %v2821 = vpop.f32.mrf.mxu0
        %v2822 = vadd.f32 %v1342, %v2821
        %v2823 = vpop.f32.mrf.mxu0
        %v2824 = vadd.f32 %v1338, %v2823
        %v2825 = vpop.f32.mrf.mxu0
        %v2826 = vadd.f32 %v1342, %v2825
        %2827 = vdwg.mxu0
        %2828 = vmatprep.subr.bf16.mxu0 %v2216
        %2829 = vmatpush1.bf16.msra.mxu0 %v2215
        %2830 = vmatprep.subr.bf16.mxu0 %v2212
        %2831 = vmatpush1.bf16.msra.mxu0 %v2211
        %2832 = vmatprep.subr.bf16.mxu0 %v2208
        %2833 = vmatpush1.bf16.msra.mxu0 %v2207
        %2834 = vmatprep.subr.bf16.mxu0 %v2204
        %2835 = vmatpush1.bf16.msra.mxu0 %v2203
        %2836 = vmatprep.subr.bf16.mxu0 %v2200
        %2837 = vmatpush1.bf16.msra.mxu0 %v2199
        %2838 = vmatprep.subr.bf16.mxu0 %v2196
        %2839 = vmatpush1.bf16.msra.mxu0 %v2195
        %2840 = vmatprep.subr.bf16.mxu0 %v2192
        %2841 = vmatpush1.bf16.msra.mxu0 %v2191
        %2842 = vmatprep.subr.bf16.mxu0 %v2188
        %2843 = vmatpush1.bf16.msra.mxu0 %v2187
        %2844 = vmatprep.subr.bf16.mxu0 %v2248
        %2845 = vmatpush2.bf16.msra.mxu0 %v2247
        %2846 = vmatprep.subr.bf16.mxu0 %v2244
        %2847 = vmatpush2.bf16.msra.mxu0 %v2243
        %2848 = vmatprep.subr.bf16.mxu0 %v2240
        %2849 = vmatpush2.bf16.msra.mxu0 %v2239
        %2850 = vmatprep.subr.bf16.mxu0 %v2236
        %2851 = vmatpush2.bf16.msra.mxu0 %v2235
        %2852 = vmatprep.subr.bf16.mxu0 %v2232
        %2853 = vmatpush2.bf16.msra.mxu0 %v2231
        %2854 = vmatprep.subr.bf16.mxu0 %v2228
        %2855 = vmatpush2.bf16.msra.mxu0 %v2227
        %2856 = vmatprep.subr.bf16.mxu0 %v2224
        %2857 = vmatpush2.bf16.msra.mxu0 %v2223
        %2858 = vmatprep.subr.bf16.mxu0 %v2220
        %2859 = vmatpush2.bf16.msra.mxu0 %v2219
        %2860 = vmatprep.mubr.bf16.mxu0 %v952
        %2861 = vmatmul.mubr.bf16.gmra.mxu0 %v951
        %v2862 = vpop.f32.mrf.mxu0
        %v2863 = vadd.f32 %v2670, %v2862
        %v2864 = vpop.f32.mrf.mxu0
        %v2865 = vadd.f32 %v2672, %v2864
        %v2866 = vpop.f32.mrf.mxu0
        %v2867 = vadd.f32 %v2674, %v2866
        %v2868 = vpop.f32.mrf.mxu0
        %v2869 = vadd.f32 %v2676, %v2868
        %2870 = vmatprep.mubr.bf16.mxu0 %v960
        %2871 = vmatmul.mubr.bf16.gmra.mxu0 %v959
        %v2872 = vpop.f32.mrf.mxu0
        %v2873 = vadd.f32 %v2680, %v2872
        %v2874 = vpop.f32.mrf.mxu0
        %v2875 = vadd.f32 %v2682, %v2874
        %v2876 = vpop.f32.mrf.mxu0
        %v2877 = vadd.f32 %v2684, %v2876
        %v2878 = vpop.f32.mrf.mxu0
        %v2879 = vadd.f32 %v2686, %v2878
        %2880 = vmatprep.mubr.bf16.mxu0 %v968
        %2881 = vmatmul.mubr.bf16.gmra.mxu0 %v967
        %v2882 = vpop.f32.mrf.mxu0
        %v2883 = vadd.f32 %v2690, %v2882
        %v2884 = vpop.f32.mrf.mxu0
        %v2885 = vadd.f32 %v2692, %v2884
        %v2886 = vpop.f32.mrf.mxu0
        %v2887 = vadd.f32 %v2694, %v2886
        %v2888 = vpop.f32.mrf.mxu0
        %v2889 = vadd.f32 %v2696, %v2888
        %2890 = vmatprep.mubr.bf16.mxu0 %v976
        %2891 = vmatmul.mubr.bf16.gmra.mxu0 %v975
        %v2892 = vpop.f32.mrf.mxu0
        %v2893 = vadd.f32 %v2700, %v2892
        %v2894 = vpop.f32.mrf.mxu0
        %v2895 = vadd.f32 %v2702, %v2894
        %v2896 = vpop.f32.mrf.mxu0
        %v2897 = vadd.f32 %v2704, %v2896
        %v2898 = vpop.f32.mrf.mxu0
        %v2899 = vadd.f32 %v2706, %v2898
        %2900 = vmatprep.mubr.bf16.mxu0 %v984
        %2901 = vmatmul.mubr.bf16.gmra.mxu0 %v983
        %v2902 = vpop.f32.mrf.mxu0
        %v2903 = vadd.f32 %v2710, %v2902
        %v2904 = vpop.f32.mrf.mxu0
        %v2905 = vadd.f32 %v2712, %v2904
        %v2906 = vpop.f32.mrf.mxu0
        %v2907 = vadd.f32 %v2714, %v2906
        %v2908 = vpop.f32.mrf.mxu0
        %v2909 = vadd.f32 %v2716, %v2908
        %2910 = vmatprep.mubr.bf16.mxu0 %v992
        %2911 = vmatmul.mubr.bf16.gmra.mxu0 %v991
        %v2912 = vpop.f32.mrf.mxu0
        %v2913 = vadd.f32 %v2720, %v2912
        %v2914 = vpop.f32.mrf.mxu0
        %v2915 = vadd.f32 %v2722, %v2914
        %v2916 = vpop.f32.mrf.mxu0
        %v2917 = vadd.f32 %v2724, %v2916
        %v2918 = vpop.f32.mrf.mxu0
        %v2919 = vadd.f32 %v2726, %v2918
        %2920 = vmatprep.mubr.bf16.mxu0 %v1000
        %2921 = vmatmul.mubr.bf16.gmra.mxu0 %v999
        %v2922 = vpop.f32.mrf.mxu0
        %v2923 = vadd.f32 %v2730, %v2922
        %v2924 = vpop.f32.mrf.mxu0
        %v2925 = vadd.f32 %v2732, %v2924
        %v2926 = vpop.f32.mrf.mxu0
        %v2927 = vadd.f32 %v2734, %v2926
        %v2928 = vpop.f32.mrf.mxu0
        %v2929 = vadd.f32 %v2736, %v2928
        %2930 = vmatprep.mubr.bf16.mxu0 %v1008
        %2931 = vmatmul.mubr.bf16.gmra.mxu0 %v1007
        %v2932 = vpop.f32.mrf.mxu0
        %v2933 = vadd.f32 %v2740, %v2932
        %v2934 = vpop.f32.mrf.mxu0
        %v2935 = vadd.f32 %v2742, %v2934
        %v2936 = vpop.f32.mrf.mxu0
        %v2937 = vadd.f32 %v2744, %v2936
        %v2938 = vpop.f32.mrf.mxu0
        %v2939 = vadd.f32 %v2746, %v2938
        %2940 = vmatprep.mubr.bf16.mxu0 %v1016
        %2941 = vmatmul.mubr.bf16.gmra.mxu0 %v1015
        %v2942 = vpop.f32.mrf.mxu0
        %v2943 = vadd.f32 %v2750, %v2942
        %v2944 = vpop.f32.mrf.mxu0
        %v2945 = vadd.f32 %v2752, %v2944
        %v2946 = vpop.f32.mrf.mxu0
        %v2947 = vadd.f32 %v2754, %v2946
        %v2948 = vpop.f32.mrf.mxu0
        %v2949 = vadd.f32 %v2756, %v2948
        %2950 = vmatprep.mubr.bf16.mxu0 %v1024
        %2951 = vmatmul.mubr.bf16.gmra.mxu0 %v1023
        %v2952 = vpop.f32.mrf.mxu0
        %v2953 = vadd.f32 %v2760, %v2952
        %v2954 = vpop.f32.mrf.mxu0
        %v2955 = vadd.f32 %v2762, %v2954
        %v2956 = vpop.f32.mrf.mxu0
        %v2957 = vadd.f32 %v2764, %v2956
        %v2958 = vpop.f32.mrf.mxu0
        %v2959 = vadd.f32 %v2766, %v2958
        %2960 = vmatprep.mubr.bf16.mxu0 %v1032
        %2961 = vmatmul.mubr.bf16.gmra.mxu0 %v1031
        %v2962 = vpop.f32.mrf.mxu0
        %v2963 = vadd.f32 %v2770, %v2962
        %v2964 = vpop.f32.mrf.mxu0
        %v2965 = vadd.f32 %v2772, %v2964
        %v2966 = vpop.f32.mrf.mxu0
        %v2967 = vadd.f32 %v2774, %v2966
        %v2968 = vpop.f32.mrf.mxu0
        %v2969 = vadd.f32 %v2776, %v2968
        %2970 = vmatprep.mubr.bf16.mxu0 %v1040
        %2971 = vmatmul.mubr.bf16.gmra.mxu0 %v1039
        %v2972 = vpop.f32.mrf.mxu0
        %v2973 = vadd.f32 %v2780, %v2972
        %v2974 = vpop.f32.mrf.mxu0
        %v2975 = vadd.f32 %v2782, %v2974
        %v2976 = vpop.f32.mrf.mxu0
        %v2977 = vadd.f32 %v2784, %v2976
        %v2978 = vpop.f32.mrf.mxu0
        %v2979 = vadd.f32 %v2786, %v2978
        %2980 = vmatprep.mubr.bf16.mxu0 %v1048
        %2981 = vmatmul.mubr.bf16.gmra.mxu0 %v1047
        %v2982 = vpop.f32.mrf.mxu0
        %v2983 = vadd.f32 %v2790, %v2982
        %v2984 = vpop.f32.mrf.mxu0
        %v2985 = vadd.f32 %v2792, %v2984
        %v2986 = vpop.f32.mrf.mxu0
        %v2987 = vadd.f32 %v2794, %v2986
        %v2988 = vpop.f32.mrf.mxu0
        %v2989 = vadd.f32 %v2796, %v2988
        %2990 = vmatprep.mubr.bf16.mxu0 %v1056
        %2991 = vmatmul.mubr.bf16.gmra.mxu0 %v1055
        %v2992 = vpop.f32.mrf.mxu0
        %v2993 = vadd.f32 %v2800, %v2992
        %v2994 = vpop.f32.mrf.mxu0
        %v2995 = vadd.f32 %v2802, %v2994
        %v2996 = vpop.f32.mrf.mxu0
        %v2997 = vadd.f32 %v2804, %v2996
        %v2998 = vpop.f32.mrf.mxu0
        %v2999 = vadd.f32 %v2806, %v2998
        %3000 = vmatprep.mubr.bf16.mxu0 %v1064
        %3001 = vmatmul.mubr.bf16.gmra.mxu0 %v1063
        %v3002 = vpop.f32.mrf.mxu0
        %v3003 = vadd.f32 %v2810, %v3002
        %v3004 = vpop.f32.mrf.mxu0
        %v3005 = vadd.f32 %v2812, %v3004
        %v3006 = vpop.f32.mrf.mxu0
        %v3007 = vadd.f32 %v2814, %v3006
        %v3008 = vpop.f32.mrf.mxu0
        %v3009 = vadd.f32 %v2816, %v3008
        %3010 = vmatprep.mubr.bf16.mxu0 %v1072
        %3011 = vmatmul.mubr.bf16.gmra.mxu0 %v1071
        %v3012 = vpop.f32.mrf.mxu0
        %v3013 = vadd.f32 %v2820, %v3012
        %v3014 = vpop.f32.mrf.mxu0
        %v3015 = vadd.f32 %v2822, %v3014
        %v3016 = vpop.f32.mrf.mxu0
        %v3017 = vadd.f32 %v2824, %v3016
        %v3018 = vpop.f32.mrf.mxu0
        %v3019 = vadd.f32 %v2826, %v3018
        %3020 = vdwg.mxu0
        %3021 = vmatprep.subr.bf16.mxu0 %v2280
        %3022 = vmatpush1.bf16.msra.mxu0 %v2279
        %3023 = vmatprep.subr.bf16.mxu0 %v2276
        %3024 = vmatpush1.bf16.msra.mxu0 %v2275
        %3025 = vmatprep.subr.bf16.mxu0 %v2272
        %3026 = vmatpush1.bf16.msra.mxu0 %v2271
        %3027 = vmatprep.subr.bf16.mxu0 %v2268
        %3028 = vmatpush1.bf16.msra.mxu0 %v2267
        %3029 = vmatprep.subr.bf16.mxu0 %v2264
        %3030 = vmatpush1.bf16.msra.mxu0 %v2263
        %3031 = vmatprep.subr.bf16.mxu0 %v2260
        %3032 = vmatpush1.bf16.msra.mxu0 %v2259
        %3033 = vmatprep.subr.bf16.mxu0 %v2256
        %3034 = vmatpush1.bf16.msra.mxu0 %v2255
        %3035 = vmatprep.subr.bf16.mxu0 %v2252
        %3036 = vmatpush1.bf16.msra.mxu0 %v2251
        %3037 = vmatprep.subr.bf16.mxu0 %v2312
        %3038 = vmatpush2.bf16.msra.mxu0 %v2311
        %3039 = vmatprep.subr.bf16.mxu0 %v2308
        %3040 = vmatpush2.bf16.msra.mxu0 %v2307
        %3041 = vmatprep.subr.bf16.mxu0 %v2304
        %3042 = vmatpush2.bf16.msra.mxu0 %v2303
        %3043 = vmatprep.subr.bf16.mxu0 %v2300
        %3044 = vmatpush2.bf16.msra.mxu0 %v2299
        %3045 = vmatprep.subr.bf16.mxu0 %v2296
        %3046 = vmatpush2.bf16.msra.mxu0 %v2295
        %3047 = vmatprep.subr.bf16.mxu0 %v2292
        %3048 = vmatpush2.bf16.msra.mxu0 %v2291
        %3049 = vmatprep.subr.bf16.mxu0 %v2288
        %3050 = vmatpush2.bf16.msra.mxu0 %v2287
        %3051 = vmatprep.subr.bf16.mxu0 %v2284
        %3052 = vmatpush2.bf16.msra.mxu0 %v2283
        %3053 = vmatprep.mubr.bf16.mxu0 %v954
        %3054 = vmatmul.mubr.bf16.gmra.mxu0 %v953
        %v3055 = vpop.f32.mrf.mxu0
        %v3056 = vadd.f32 %v2863, %v3055
        %v3057 = vpop.f32.mrf.mxu0
        %v3058 = vadd.f32 %v2865, %v3057
        %v3059 = vpop.f32.mrf.mxu0
        %v3060 = vadd.f32 %v2867, %v3059
        %v3061 = vpop.f32.mrf.mxu0
        %v3062 = vadd.f32 %v2869, %v3061
        %3063 = vmatprep.mubr.bf16.mxu0 %v962
        %3064 = vmatmul.mubr.bf16.gmra.mxu0 %v961
        %v3065 = vpop.f32.mrf.mxu0
        %v3066 = vadd.f32 %v2873, %v3065
        %v3067 = vpop.f32.mrf.mxu0
        %v3068 = vadd.f32 %v2875, %v3067
        %v3069 = vpop.f32.mrf.mxu0
        %v3070 = vadd.f32 %v2877, %v3069
        %v3071 = vpop.f32.mrf.mxu0
        %v3072 = vadd.f32 %v2879, %v3071
        %3073 = vmatprep.mubr.bf16.mxu0 %v970
        %3074 = vmatmul.mubr.bf16.gmra.mxu0 %v969
        %v3075 = vpop.f32.mrf.mxu0
        %v3076 = vadd.f32 %v2883, %v3075
        %v3077 = vpop.f32.mrf.mxu0
        %v3078 = vadd.f32 %v2885, %v3077
        %v3079 = vpop.f32.mrf.mxu0
        %v3080 = vadd.f32 %v2887, %v3079
        %v3081 = vpop.f32.mrf.mxu0
        %v3082 = vadd.f32 %v2889, %v3081
        %3083 = vmatprep.mubr.bf16.mxu0 %v978
        %3084 = vmatmul.mubr.bf16.gmra.mxu0 %v977
        %v3085 = vpop.f32.mrf.mxu0
        %v3086 = vadd.f32 %v2893, %v3085
        %v3087 = vpop.f32.mrf.mxu0
        %v3088 = vadd.f32 %v2895, %v3087
        %v3089 = vpop.f32.mrf.mxu0
        %v3090 = vadd.f32 %v2897, %v3089
        %v3091 = vpop.f32.mrf.mxu0
        %v3092 = vadd.f32 %v2899, %v3091
        %3093 = vmatprep.mubr.bf16.mxu0 %v986
        %3094 = vmatmul.mubr.bf16.gmra.mxu0 %v985
        %v3095 = vpop.f32.mrf.mxu0
        %v3096 = vadd.f32 %v2903, %v3095
        %v3097 = vpop.f32.mrf.mxu0
        %v3098 = vadd.f32 %v2905, %v3097
        %v3099 = vpop.f32.mrf.mxu0
        %v3100 = vadd.f32 %v2907, %v3099
        %v3101 = vpop.f32.mrf.mxu0
        %v3102 = vadd.f32 %v2909, %v3101
        %3103 = vmatprep.mubr.bf16.mxu0 %v994
        %3104 = vmatmul.mubr.bf16.gmra.mxu0 %v993
        %v3105 = vpop.f32.mrf.mxu0
        %v3106 = vadd.f32 %v2913, %v3105
        %v3107 = vpop.f32.mrf.mxu0
        %v3108 = vadd.f32 %v2915, %v3107
        %v3109 = vpop.f32.mrf.mxu0
        %v3110 = vadd.f32 %v2917, %v3109
        %v3111 = vpop.f32.mrf.mxu0
        %v3112 = vadd.f32 %v2919, %v3111
        %3113 = vmatprep.mubr.bf16.mxu0 %v1002
        %3114 = vmatmul.mubr.bf16.gmra.mxu0 %v1001
        %v3115 = vpop.f32.mrf.mxu0
        %v3116 = vadd.f32 %v2923, %v3115
        %v3117 = vpop.f32.mrf.mxu0
        %v3118 = vadd.f32 %v2925, %v3117
        %v3119 = vpop.f32.mrf.mxu0
        %v3120 = vadd.f32 %v2927, %v3119
        %v3121 = vpop.f32.mrf.mxu0
        %v3122 = vadd.f32 %v2929, %v3121
        %3123 = vmatprep.mubr.bf16.mxu0 %v1010
        %3124 = vmatmul.mubr.bf16.gmra.mxu0 %v1009
        %v3125 = vpop.f32.mrf.mxu0
        %v3126 = vadd.f32 %v2933, %v3125
        %v3127 = vpop.f32.mrf.mxu0
        %v3128 = vadd.f32 %v2935, %v3127
        %v3129 = vpop.f32.mrf.mxu0
        %v3130 = vadd.f32 %v2937, %v3129
        %v3131 = vpop.f32.mrf.mxu0
        %v3132 = vadd.f32 %v2939, %v3131
        %3133 = vmatprep.mubr.bf16.mxu0 %v1018
        %3134 = vmatmul.mubr.bf16.gmra.mxu0 %v1017
        %v3135 = vpop.f32.mrf.mxu0
        %v3136 = vadd.f32 %v2943, %v3135
        %v3137 = vpop.f32.mrf.mxu0
        %v3138 = vadd.f32 %v2945, %v3137
        %v3139 = vpop.f32.mrf.mxu0
        %v3140 = vadd.f32 %v2947, %v3139
        %v3141 = vpop.f32.mrf.mxu0
        %v3142 = vadd.f32 %v2949, %v3141
        %3143 = vmatprep.mubr.bf16.mxu0 %v1026
        %3144 = vmatmul.mubr.bf16.gmra.mxu0 %v1025
        %v3145 = vpop.f32.mrf.mxu0
        %v3146 = vadd.f32 %v2953, %v3145
        %v3147 = vpop.f32.mrf.mxu0
        %v3148 = vadd.f32 %v2955, %v3147
        %v3149 = vpop.f32.mrf.mxu0
        %v3150 = vadd.f32 %v2957, %v3149
        %v3151 = vpop.f32.mrf.mxu0
        %v3152 = vadd.f32 %v2959, %v3151
        %3153 = vmatprep.mubr.bf16.mxu0 %v1034
        %3154 = vmatmul.mubr.bf16.gmra.mxu0 %v1033
        %v3155 = vpop.f32.mrf.mxu0
        %v3156 = vadd.f32 %v2963, %v3155
        %v3157 = vpop.f32.mrf.mxu0
        %v3158 = vadd.f32 %v2965, %v3157
        %v3159 = vpop.f32.mrf.mxu0
        %v3160 = vadd.f32 %v2967, %v3159
        %v3161 = vpop.f32.mrf.mxu0
        %v3162 = vadd.f32 %v2969, %v3161
        %3163 = vmatprep.mubr.bf16.mxu0 %v1042
        %3164 = vmatmul.mubr.bf16.gmra.mxu0 %v1041
        %v3165 = vpop.f32.mrf.mxu0
        %v3166 = vadd.f32 %v2973, %v3165
        %v3167 = vpop.f32.mrf.mxu0
        %v3168 = vadd.f32 %v2975, %v3167
        %v3169 = vpop.f32.mrf.mxu0
        %v3170 = vadd.f32 %v2977, %v3169
        %v3171 = vpop.f32.mrf.mxu0
        %v3172 = vadd.f32 %v2979, %v3171
        %3173 = vmatprep.mubr.bf16.mxu0 %v1050
        %3174 = vmatmul.mubr.bf16.gmra.mxu0 %v1049
        %v3175 = vpop.f32.mrf.mxu0
        %v3176 = vadd.f32 %v2983, %v3175
        %v3177 = vpop.f32.mrf.mxu0
        %v3178 = vadd.f32 %v2985, %v3177
        %v3179 = vpop.f32.mrf.mxu0
        %v3180 = vadd.f32 %v2987, %v3179
        %v3181 = vpop.f32.mrf.mxu0
        %v3182 = vadd.f32 %v2989, %v3181
        %3183 = vmatprep.mubr.bf16.mxu0 %v1058
        %3184 = vmatmul.mubr.bf16.gmra.mxu0 %v1057
        %v3185 = vpop.f32.mrf.mxu0
        %v3186 = vadd.f32 %v2993, %v3185
        %v3187 = vpop.f32.mrf.mxu0
        %v3188 = vadd.f32 %v2995, %v3187
        %v3189 = vpop.f32.mrf.mxu0
        %v3190 = vadd.f32 %v2997, %v3189
        %v3191 = vpop.f32.mrf.mxu0
        %v3192 = vadd.f32 %v2999, %v3191
        %3193 = vmatprep.mubr.bf16.mxu0 %v1066
        %3194 = vmatmul.mubr.bf16.gmra.mxu0 %v1065
        %v3195 = vpop.f32.mrf.mxu0
        %v3196 = vadd.f32 %v3003, %v3195
        %v3197 = vpop.f32.mrf.mxu0
        %v3198 = vadd.f32 %v3005, %v3197
        %v3199 = vpop.f32.mrf.mxu0
        %v3200 = vadd.f32 %v3007, %v3199
        %v3201 = vpop.f32.mrf.mxu0
        %v3202 = vadd.f32 %v3009, %v3201
        %3203 = vmatprep.mubr.bf16.mxu0 %v1074
        %3204 = vmatmul.mubr.bf16.gmra.mxu0 %v1073
        %v3205 = vpop.f32.mrf.mxu0
        %v3206 = vadd.f32 %v3013, %v3205
        %v3207 = vpop.f32.mrf.mxu0
        %v3208 = vadd.f32 %v3015, %v3207
        %v3209 = vpop.f32.mrf.mxu0
        %v3210 = vadd.f32 %v3017, %v3209
        %v3211 = vpop.f32.mrf.mxu0
        %v3212 = vadd.f32 %v3019, %v3211
        %3213 = vdwg.mxu0
        %3214 = vmatprep.subr.bf16.mxu0 %v2344
        %3215 = vmatpush1.bf16.msra.mxu0 %v2343
        %3216 = vmatprep.subr.bf16.mxu0 %v2340
        %3217 = vmatpush1.bf16.msra.mxu0 %v2339
        %3218 = vmatprep.subr.bf16.mxu0 %v2336
        %3219 = vmatpush1.bf16.msra.mxu0 %v2335
        %3220 = vmatprep.subr.bf16.mxu0 %v2332
        %3221 = vmatpush1.bf16.msra.mxu0 %v2331
        %3222 = vmatprep.subr.bf16.mxu0 %v2328
        %3223 = vmatpush1.bf16.msra.mxu0 %v2327
        %3224 = vmatprep.subr.bf16.mxu0 %v2324
        %3225 = vmatpush1.bf16.msra.mxu0 %v2323
        %3226 = vmatprep.subr.bf16.mxu0 %v2320
        %3227 = vmatpush1.bf16.msra.mxu0 %v2319
        %3228 = vmatprep.subr.bf16.mxu0 %v2316
        %3229 = vmatpush1.bf16.msra.mxu0 %v2315
        %3230 = vmatprep.subr.bf16.mxu0 %v2376
        %3231 = vmatpush2.bf16.msra.mxu0 %v2375
        %3232 = vmatprep.subr.bf16.mxu0 %v2372
        %3233 = vmatpush2.bf16.msra.mxu0 %v2371
        %3234 = vmatprep.subr.bf16.mxu0 %v2368
        %3235 = vmatpush2.bf16.msra.mxu0 %v2367
        %3236 = vmatprep.subr.bf16.mxu0 %v2364
        %3237 = vmatpush2.bf16.msra.mxu0 %v2363
        %3238 = vmatprep.subr.bf16.mxu0 %v2360
        %3239 = vmatpush2.bf16.msra.mxu0 %v2359
        %3240 = vmatprep.subr.bf16.mxu0 %v2356
        %3241 = vmatpush2.bf16.msra.mxu0 %v2355
        %3242 = vmatprep.subr.bf16.mxu0 %v2352
        %3243 = vmatpush2.bf16.msra.mxu0 %v2351
        %3244 = vmatprep.subr.bf16.mxu0 %v2348
        %3245 = vmatpush2.bf16.msra.mxu0 %v2347
        %3246 = vmatprep.mubr.bf16.mxu0 %v956
        %3247 = vmatmul.mubr.bf16.gmra.mxu0 %v955
        %v3248 = vpop.f32.mrf.mxu0
        %v3249 = vadd.f32 %v3056, %v3248
        %v3250 = vpop.f32.mrf.mxu0
        %v3251 = vadd.f32 %v3058, %v3250
        %v3252 = vpop.f32.mrf.mxu0
        %v3253 = vadd.f32 %v3060, %v3252
        %v3254 = vpop.f32.mrf.mxu0
        %v3255 = vadd.f32 %v3062, %v3254
        %3256 = vmatprep.mubr.bf16.mxu0 %v964
        %3257 = vmatmul.mubr.bf16.gmra.mxu0 %v963
        %v3258 = vpop.f32.mrf.mxu0
        %v3259 = vadd.f32 %v3066, %v3258
        %v3260 = vpop.f32.mrf.mxu0
        %v3261 = vadd.f32 %v3068, %v3260
        %v3262 = vpop.f32.mrf.mxu0
        %v3263 = vadd.f32 %v3070, %v3262
        %v3264 = vpop.f32.mrf.mxu0
        %v3265 = vadd.f32 %v3072, %v3264
        %3266 = vmatprep.mubr.bf16.mxu0 %v972
        %3267 = vmatmul.mubr.bf16.gmra.mxu0 %v971
        %v3268 = vpop.f32.mrf.mxu0
        %v3269 = vadd.f32 %v3076, %v3268
        %v3270 = vpop.f32.mrf.mxu0
        %v3271 = vadd.f32 %v3078, %v3270
        %v3272 = vpop.f32.mrf.mxu0
        %v3273 = vadd.f32 %v3080, %v3272
        %v3274 = vpop.f32.mrf.mxu0
        %v3275 = vadd.f32 %v3082, %v3274
        %3276 = vmatprep.mubr.bf16.mxu0 %v980
        %3277 = vmatmul.mubr.bf16.gmra.mxu0 %v979
        %v3278 = vpop.f32.mrf.mxu0
        %v3279 = vadd.f32 %v3086, %v3278
        %v3280 = vpop.f32.mrf.mxu0
        %v3281 = vadd.f32 %v3088, %v3280
        %v3282 = vpop.f32.mrf.mxu0
        %v3283 = vadd.f32 %v3090, %v3282
        %v3284 = vpop.f32.mrf.mxu0
        %v3285 = vadd.f32 %v3092, %v3284
        %3286 = vmatprep.mubr.bf16.mxu0 %v988
        %3287 = vmatmul.mubr.bf16.gmra.mxu0 %v987
        %v3288 = vpop.f32.mrf.mxu0
        %v3289 = vadd.f32 %v3096, %v3288
        %v3290 = vpop.f32.mrf.mxu0
        %v3291 = vadd.f32 %v3098, %v3290
        %v3292 = vpop.f32.mrf.mxu0
        %v3293 = vadd.f32 %v3100, %v3292
        %v3294 = vpop.f32.mrf.mxu0
        %v3295 = vadd.f32 %v3102, %v3294
        %3296 = vmatprep.mubr.bf16.mxu0 %v996
        %3297 = vmatmul.mubr.bf16.gmra.mxu0 %v995
        %v3298 = vpop.f32.mrf.mxu0
        %v3299 = vadd.f32 %v3106, %v3298
        %v3300 = vpop.f32.mrf.mxu0
        %v3301 = vadd.f32 %v3108, %v3300
        %v3302 = vpop.f32.mrf.mxu0
        %v3303 = vadd.f32 %v3110, %v3302
        %v3304 = vpop.f32.mrf.mxu0
        %v3305 = vadd.f32 %v3112, %v3304
        %3306 = vmatprep.mubr.bf16.mxu0 %v1004
        %3307 = vmatmul.mubr.bf16.gmra.mxu0 %v1003
        %v3308 = vpop.f32.mrf.mxu0
        %v3309 = vadd.f32 %v3116, %v3308
        %v3310 = vpop.f32.mrf.mxu0
        %v3311 = vadd.f32 %v3118, %v3310
        %v3312 = vpop.f32.mrf.mxu0
        %v3313 = vadd.f32 %v3120, %v3312
        %v3314 = vpop.f32.mrf.mxu0
        %v3315 = vadd.f32 %v3122, %v3314
        %3316 = vmatprep.mubr.bf16.mxu0 %v1012
        %3317 = vmatmul.mubr.bf16.gmra.mxu0 %v1011
        %v3318 = vpop.f32.mrf.mxu0
        %v3319 = vadd.f32 %v3126, %v3318
        %v3320 = vpop.f32.mrf.mxu0
        %v3321 = vadd.f32 %v3128, %v3320
        %v3322 = vpop.f32.mrf.mxu0
        %v3323 = vadd.f32 %v3130, %v3322
        %v3324 = vpop.f32.mrf.mxu0
        %v3325 = vadd.f32 %v3132, %v3324
        %3326 = vmatprep.mubr.bf16.mxu0 %v1020
        %3327 = vmatmul.mubr.bf16.gmra.mxu0 %v1019
        %v3328 = vpop.f32.mrf.mxu0
        %v3329 = vadd.f32 %v3136, %v3328
        %v3330 = vpop.f32.mrf.mxu0
        %v3331 = vadd.f32 %v3138, %v3330
        %v3332 = vpop.f32.mrf.mxu0
        %v3333 = vadd.f32 %v3140, %v3332
        %v3334 = vpop.f32.mrf.mxu0
        %v3335 = vadd.f32 %v3142, %v3334
        %3336 = vmatprep.mubr.bf16.mxu0 %v1028
        %3337 = vmatmul.mubr.bf16.gmra.mxu0 %v1027
        %v3338 = vpop.f32.mrf.mxu0
        %v3339 = vadd.f32 %v3146, %v3338
        %v3340 = vpop.f32.mrf.mxu0
        %v3341 = vadd.f32 %v3148, %v3340
        %v3342 = vpop.f32.mrf.mxu0
        %v3343 = vadd.f32 %v3150, %v3342
        %v3344 = vpop.f32.mrf.mxu0
        %v3345 = vadd.f32 %v3152, %v3344
        %3346 = vmatprep.mubr.bf16.mxu0 %v1036
        %3347 = vmatmul.mubr.bf16.gmra.mxu0 %v1035
        %v3348 = vpop.f32.mrf.mxu0
        %v3349 = vadd.f32 %v3156, %v3348
        %v3350 = vpop.f32.mrf.mxu0
        %v3351 = vadd.f32 %v3158, %v3350
        %v3352 = vpop.f32.mrf.mxu0
        %v3353 = vadd.f32 %v3160, %v3352
        %v3354 = vpop.f32.mrf.mxu0
        %v3355 = vadd.f32 %v3162, %v3354
        %3356 = vmatprep.mubr.bf16.mxu0 %v1044
        %3357 = vmatmul.mubr.bf16.gmra.mxu0 %v1043
        %v3358 = vpop.f32.mrf.mxu0
        %v3359 = vadd.f32 %v3166, %v3358
        %v3360 = vpop.f32.mrf.mxu0
        %v3361 = vadd.f32 %v3168, %v3360
        %v3362 = vpop.f32.mrf.mxu0
        %v3363 = vadd.f32 %v3170, %v3362
        %v3364 = vpop.f32.mrf.mxu0
        %v3365 = vadd.f32 %v3172, %v3364
        %3366 = vmatprep.mubr.bf16.mxu0 %v1052
        %3367 = vmatmul.mubr.bf16.gmra.mxu0 %v1051
        %v3368 = vpop.f32.mrf.mxu0
        %v3369 = vadd.f32 %v3176, %v3368
        %v3370 = vpop.f32.mrf.mxu0
        %v3371 = vadd.f32 %v3178, %v3370
        %v3372 = vpop.f32.mrf.mxu0
        %v3373 = vadd.f32 %v3180, %v3372
        %v3374 = vpop.f32.mrf.mxu0
        %v3375 = vadd.f32 %v3182, %v3374
        %3376 = vmatprep.mubr.bf16.mxu0 %v1060
        %3377 = vmatmul.mubr.bf16.gmra.mxu0 %v1059
        %v3378 = vpop.f32.mrf.mxu0
        %v3379 = vadd.f32 %v3186, %v3378
        %v3380 = vpop.f32.mrf.mxu0
        %v3381 = vadd.f32 %v3188, %v3380
        %v3382 = vpop.f32.mrf.mxu0
        %v3383 = vadd.f32 %v3190, %v3382
        %v3384 = vpop.f32.mrf.mxu0
        %v3385 = vadd.f32 %v3192, %v3384
        %3386 = vmatprep.mubr.bf16.mxu0 %v1068
        %3387 = vmatmul.mubr.bf16.gmra.mxu0 %v1067
        %v3388 = vpop.f32.mrf.mxu0
        %v3389 = vadd.f32 %v3196, %v3388
        %v3390 = vpop.f32.mrf.mxu0
        %v3391 = vadd.f32 %v3198, %v3390
        %v3392 = vpop.f32.mrf.mxu0
        %v3393 = vadd.f32 %v3200, %v3392
        %v3394 = vpop.f32.mrf.mxu0
        %v3395 = vadd.f32 %v3202, %v3394
        %3396 = vmatprep.mubr.bf16.mxu0 %v1076
        %3397 = vmatmul.mubr.bf16.gmra.mxu0 %v1075
        %v3398 = vpop.f32.mrf.mxu0
        %v3399 = vadd.f32 %v3206, %v3398
        %v3400 = vpop.f32.mrf.mxu0
        %v3401 = vadd.f32 %v3208, %v3400
        %v3402 = vpop.f32.mrf.mxu0
        %v3403 = vadd.f32 %v3210, %v3402
        %v3404 = vpop.f32.mrf.mxu0
        %v3405 = vadd.f32 %v3212, %v3404
        %3406 = vdwg.mxu0
        %3407 = vmatprep.subr.bf16.mxu0 %v2154
        %3408 = vmatpush1.bf16.msra.mxu0 %v2153
        %3409 = vmatprep.subr.bf16.mxu0 %v2150
        %3410 = vmatpush1.bf16.msra.mxu0 %v2149
        %3411 = vmatprep.subr.bf16.mxu0 %v2146
        %3412 = vmatpush1.bf16.msra.mxu0 %v2145
        %3413 = vmatprep.subr.bf16.mxu0 %v2142
        %3414 = vmatpush1.bf16.msra.mxu0 %v2141
        %3415 = vmatprep.subr.bf16.mxu0 %v2138
        %3416 = vmatpush1.bf16.msra.mxu0 %v2137
        %3417 = vmatprep.subr.bf16.mxu0 %v2134
        %3418 = vmatpush1.bf16.msra.mxu0 %v2133
        %3419 = vmatprep.subr.bf16.mxu0 %v2130
        %3420 = vmatpush1.bf16.msra.mxu0 %v2129
        %3421 = vmatprep.subr.bf16.mxu0 %v2126
        %3422 = vmatpush1.bf16.msra.mxu0 %v2125
        %3423 = vmatprep.subr.bf16.mxu0 %v2186
        %3424 = vmatpush2.bf16.msra.mxu0 %v2185
        %3425 = vmatprep.subr.bf16.mxu0 %v2182
        %3426 = vmatpush2.bf16.msra.mxu0 %v2181
        %3427 = vmatprep.subr.bf16.mxu0 %v2178
        %3428 = vmatpush2.bf16.msra.mxu0 %v2177
        %3429 = vmatprep.subr.bf16.mxu0 %v2174
        %3430 = vmatpush2.bf16.msra.mxu0 %v2173
        %3431 = vmatprep.subr.bf16.mxu0 %v2170
        %3432 = vmatpush2.bf16.msra.mxu0 %v2169
        %3433 = vmatprep.subr.bf16.mxu0 %v2166
        %3434 = vmatpush2.bf16.msra.mxu0 %v2165
        %3435 = vmatprep.subr.bf16.mxu0 %v2162
        %3436 = vmatpush2.bf16.msra.mxu0 %v2161
        %3437 = vmatprep.subr.bf16.mxu0 %v2158
        %3438 = vmatpush2.bf16.msra.mxu0 %v2157
        %3439 = vmatprep.mubr.bf16.mxu0 %v950
        %3440 = vmatmul.mubr.bf16.gmra.mxu0 %v949
        %v3441 = vpop.f32.mrf.mxu0
        %v3442 = vadd.f32 %v1346, %v3441
        %v3443 = vpop.f32.mrf.mxu0
        %v3444 = vadd.f32 %v1350, %v3443
        %v3445 = vpop.f32.mrf.mxu0
        %v3446 = vadd.f32 %v1346, %v3445
        %v3447 = vpop.f32.mrf.mxu0
        %v3448 = vadd.f32 %v1350, %v3447
        %3449 = vmatprep.mubr.bf16.mxu0 %v958
        %3450 = vmatmul.mubr.bf16.gmra.mxu0 %v957
        %v3451 = vpop.f32.mrf.mxu0
        %v3452 = vadd.f32 %v1346, %v3451
        %v3453 = vpop.f32.mrf.mxu0
        %v3454 = vadd.f32 %v1350, %v3453
        %v3455 = vpop.f32.mrf.mxu0
        %v3456 = vadd.f32 %v1346, %v3455
        %v3457 = vpop.f32.mrf.mxu0
        %v3458 = vadd.f32 %v1350, %v3457
        %3459 = vmatprep.mubr.bf16.mxu0 %v966
        %3460 = vmatmul.mubr.bf16.gmra.mxu0 %v965
        %v3461 = vpop.f32.mrf.mxu0
        %v3462 = vadd.f32 %v1346, %v3461
        %v3463 = vpop.f32.mrf.mxu0
        %v3464 = vadd.f32 %v1350, %v3463
        %v3465 = vpop.f32.mrf.mxu0
        %v3466 = vadd.f32 %v1346, %v3465
        %v3467 = vpop.f32.mrf.mxu0
        %v3468 = vadd.f32 %v1350, %v3467
        %3469 = vmatprep.mubr.bf16.mxu0 %v974
        %3470 = vmatmul.mubr.bf16.gmra.mxu0 %v973
        %v3471 = vpop.f32.mrf.mxu0
        %v3472 = vadd.f32 %v1346, %v3471
        %v3473 = vpop.f32.mrf.mxu0
        %v3474 = vadd.f32 %v1350, %v3473
        %v3475 = vpop.f32.mrf.mxu0
        %v3476 = vadd.f32 %v1346, %v3475
        %v3477 = vpop.f32.mrf.mxu0
        %v3478 = vadd.f32 %v1350, %v3477
        %3479 = vmatprep.mubr.bf16.mxu0 %v982
        %3480 = vmatmul.mubr.bf16.gmra.mxu0 %v981
        %v3481 = vpop.f32.mrf.mxu0
        %v3482 = vadd.f32 %v1346, %v3481
        %v3483 = vpop.f32.mrf.mxu0
        %v3484 = vadd.f32 %v1350, %v3483
        %v3485 = vpop.f32.mrf.mxu0
        %v3486 = vadd.f32 %v1346, %v3485
        %v3487 = vpop.f32.mrf.mxu0
        %v3488 = vadd.f32 %v1350, %v3487
        %3489 = vmatprep.mubr.bf16.mxu0 %v990
        %3490 = vmatmul.mubr.bf16.gmra.mxu0 %v989
        %v3491 = vpop.f32.mrf.mxu0
        %v3492 = vadd.f32 %v1346, %v3491
        %v3493 = vpop.f32.mrf.mxu0
        %v3494 = vadd.f32 %v1350, %v3493
        %v3495 = vpop.f32.mrf.mxu0
        %v3496 = vadd.f32 %v1346, %v3495
        %v3497 = vpop.f32.mrf.mxu0
        %v3498 = vadd.f32 %v1350, %v3497
        %3499 = vmatprep.mubr.bf16.mxu0 %v998
        %3500 = vmatmul.mubr.bf16.gmra.mxu0 %v997
        %v3501 = vpop.f32.mrf.mxu0
        %v3502 = vadd.f32 %v1346, %v3501
        %v3503 = vpop.f32.mrf.mxu0
        %v3504 = vadd.f32 %v1350, %v3503
        %v3505 = vpop.f32.mrf.mxu0
        %v3506 = vadd.f32 %v1346, %v3505
        %v3507 = vpop.f32.mrf.mxu0
        %v3508 = vadd.f32 %v1350, %v3507
        %3509 = vmatprep.mubr.bf16.mxu0 %v1006
        %3510 = vmatmul.mubr.bf16.gmra.mxu0 %v1005
        %v3511 = vpop.f32.mrf.mxu0
        %v3512 = vadd.f32 %v1346, %v3511
        %v3513 = vpop.f32.mrf.mxu0
        %v3514 = vadd.f32 %v1350, %v3513
        %v3515 = vpop.f32.mrf.mxu0
        %v3516 = vadd.f32 %v1346, %v3515
        %v3517 = vpop.f32.mrf.mxu0
        %v3518 = vadd.f32 %v1350, %v3517
        %3519 = vmatprep.mubr.bf16.mxu0 %v1014
        %3520 = vmatmul.mubr.bf16.gmra.mxu0 %v1013
        %v3521 = vpop.f32.mrf.mxu0
        %v3522 = vadd.f32 %v1346, %v3521
        %v3523 = vpop.f32.mrf.mxu0
        %v3524 = vadd.f32 %v1350, %v3523
        %v3525 = vpop.f32.mrf.mxu0
        %v3526 = vadd.f32 %v1346, %v3525
        %v3527 = vpop.f32.mrf.mxu0
        %v3528 = vadd.f32 %v1350, %v3527
        %3529 = vmatprep.mubr.bf16.mxu0 %v1022
        %3530 = vmatmul.mubr.bf16.gmra.mxu0 %v1021
        %v3531 = vpop.f32.mrf.mxu0
        %v3532 = vadd.f32 %v1346, %v3531
        %v3533 = vpop.f32.mrf.mxu0
        %v3534 = vadd.f32 %v1350, %v3533
        %v3535 = vpop.f32.mrf.mxu0
        %v3536 = vadd.f32 %v1346, %v3535
        %v3537 = vpop.f32.mrf.mxu0
        %v3538 = vadd.f32 %v1350, %v3537
        %3539 = vmatprep.mubr.bf16.mxu0 %v1030
        %3540 = vmatmul.mubr.bf16.gmra.mxu0 %v1029
        %v3541 = vpop.f32.mrf.mxu0
        %v3542 = vadd.f32 %v1346, %v3541
        %v3543 = vpop.f32.mrf.mxu0
        %v3544 = vadd.f32 %v1350, %v3543
        %v3545 = vpop.f32.mrf.mxu0
        %v3546 = vadd.f32 %v1346, %v3545
        %v3547 = vpop.f32.mrf.mxu0
        %v3548 = vadd.f32 %v1350, %v3547
        %3549 = vmatprep.mubr.bf16.mxu0 %v1038
        %3550 = vmatmul.mubr.bf16.gmra.mxu0 %v1037
        %v3551 = vpop.f32.mrf.mxu0
        %v3552 = vadd.f32 %v1346, %v3551
        %v3553 = vpop.f32.mrf.mxu0
        %v3554 = vadd.f32 %v1350, %v3553
        %v3555 = vpop.f32.mrf.mxu0
        %v3556 = vadd.f32 %v1346, %v3555
        %v3557 = vpop.f32.mrf.mxu0
        %v3558 = vadd.f32 %v1350, %v3557
        %3559 = vmatprep.mubr.bf16.mxu0 %v1046
        %3560 = vmatmul.mubr.bf16.gmra.mxu0 %v1045
        %v3561 = vpop.f32.mrf.mxu0
        %v3562 = vadd.f32 %v1346, %v3561
        %v3563 = vpop.f32.mrf.mxu0
        %v3564 = vadd.f32 %v1350, %v3563
        %v3565 = vpop.f32.mrf.mxu0
        %v3566 = vadd.f32 %v1346, %v3565
        %v3567 = vpop.f32.mrf.mxu0
        %v3568 = vadd.f32 %v1350, %v3567
        %3569 = vmatprep.mubr.bf16.mxu0 %v1054
        %3570 = vmatmul.mubr.bf16.gmra.mxu0 %v1053
        %v3571 = vpop.f32.mrf.mxu0
        %v3572 = vadd.f32 %v1346, %v3571
        %v3573 = vpop.f32.mrf.mxu0
        %v3574 = vadd.f32 %v1350, %v3573
        %v3575 = vpop.f32.mrf.mxu0
        %v3576 = vadd.f32 %v1346, %v3575
        %v3577 = vpop.f32.mrf.mxu0
        %v3578 = vadd.f32 %v1350, %v3577
        %3579 = vmatprep.mubr.bf16.mxu0 %v1062
        %3580 = vmatmul.mubr.bf16.gmra.mxu0 %v1061
        %v3581 = vpop.f32.mrf.mxu0
        %v3582 = vadd.f32 %v1346, %v3581
        %v3583 = vpop.f32.mrf.mxu0
        %v3584 = vadd.f32 %v1350, %v3583
        %v3585 = vpop.f32.mrf.mxu0
        %v3586 = vadd.f32 %v1346, %v3585
        %v3587 = vpop.f32.mrf.mxu0
        %v3588 = vadd.f32 %v1350, %v3587
        %3589 = vmatprep.mubr.bf16.mxu0 %v1070
        %3590 = vmatmul.mubr.bf16.gmra.mxu0 %v1069
        %v3591 = vpop.f32.mrf.mxu0
        %v3592 = vadd.f32 %v1346, %v3591
        %v3593 = vpop.f32.mrf.mxu0
        %v3594 = vadd.f32 %v1350, %v3593
        %v3595 = vpop.f32.mrf.mxu0
        %v3596 = vadd.f32 %v1346, %v3595
        %v3597 = vpop.f32.mrf.mxu0
        %v3598 = vadd.f32 %v1350, %v3597
        %3599 = vdwg.mxu0
        %3600 = vmatprep.subr.bf16.mxu0 %v2218
        %3601 = vmatpush1.bf16.msra.mxu0 %v2217
        %3602 = vmatprep.subr.bf16.mxu0 %v2214
        %3603 = vmatpush1.bf16.msra.mxu0 %v2213
        %3604 = vmatprep.subr.bf16.mxu0 %v2210
        %3605 = vmatpush1.bf16.msra.mxu0 %v2209
        %3606 = vmatprep.subr.bf16.mxu0 %v2206
        %3607 = vmatpush1.bf16.msra.mxu0 %v2205
        %3608 = vmatprep.subr.bf16.mxu0 %v2202
        %3609 = vmatpush1.bf16.msra.mxu0 %v2201
        %3610 = vmatprep.subr.bf16.mxu0 %v2198
        %3611 = vmatpush1.bf16.msra.mxu0 %v2197
        %3612 = vmatprep.subr.bf16.mxu0 %v2194
        %3613 = vmatpush1.bf16.msra.mxu0 %v2193
        %3614 = vmatprep.subr.bf16.mxu0 %v2190
        %3615 = vmatpush1.bf16.msra.mxu0 %v2189
        %3616 = vmatprep.subr.bf16.mxu0 %v2250
        %3617 = vmatpush2.bf16.msra.mxu0 %v2249
        %3618 = vmatprep.subr.bf16.mxu0 %v2246
        %3619 = vmatpush2.bf16.msra.mxu0 %v2245
        %3620 = vmatprep.subr.bf16.mxu0 %v2242
        %3621 = vmatpush2.bf16.msra.mxu0 %v2241
        %3622 = vmatprep.subr.bf16.mxu0 %v2238
        %3623 = vmatpush2.bf16.msra.mxu0 %v2237
        %3624 = vmatprep.subr.bf16.mxu0 %v2234
        %3625 = vmatpush2.bf16.msra.mxu0 %v2233
        %3626 = vmatprep.subr.bf16.mxu0 %v2230
        %3627 = vmatpush2.bf16.msra.mxu0 %v2229
        %3628 = vmatprep.subr.bf16.mxu0 %v2226
        %3629 = vmatpush2.bf16.msra.mxu0 %v2225
        %3630 = vmatprep.subr.bf16.mxu0 %v2222
        %3631 = vmatpush2.bf16.msra.mxu0 %v2221
        %3632 = vmatprep.mubr.bf16.mxu0 %v952
        %3633 = vmatmul.mubr.bf16.gmra.mxu0 %v951
        %v3634 = vpop.f32.mrf.mxu0
        %v3635 = vadd.f32 %v3442, %v3634
        %v3636 = vpop.f32.mrf.mxu0
        %v3637 = vadd.f32 %v3444, %v3636
        %v3638 = vpop.f32.mrf.mxu0
        %v3639 = vadd.f32 %v3446, %v3638
        %v3640 = vpop.f32.mrf.mxu0
        %v3641 = vadd.f32 %v3448, %v3640
        %3642 = vmatprep.mubr.bf16.mxu0 %v960
        %3643 = vmatmul.mubr.bf16.gmra.mxu0 %v959
        %v3644 = vpop.f32.mrf.mxu0
        %v3645 = vadd.f32 %v3452, %v3644
        %v3646 = vpop.f32.mrf.mxu0
        %v3647 = vadd.f32 %v3454, %v3646
        %v3648 = vpop.f32.mrf.mxu0
        %v3649 = vadd.f32 %v3456, %v3648
        %v3650 = vpop.f32.mrf.mxu0
        %v3651 = vadd.f32 %v3458, %v3650
        %3652 = vmatprep.mubr.bf16.mxu0 %v968
        %3653 = vmatmul.mubr.bf16.gmra.mxu0 %v967
        %v3654 = vpop.f32.mrf.mxu0
        %v3655 = vadd.f32 %v3462, %v3654
        %v3656 = vpop.f32.mrf.mxu0
        %v3657 = vadd.f32 %v3464, %v3656
        %v3658 = vpop.f32.mrf.mxu0
        %v3659 = vadd.f32 %v3466, %v3658
        %v3660 = vpop.f32.mrf.mxu0
        %v3661 = vadd.f32 %v3468, %v3660
        %3662 = vmatprep.mubr.bf16.mxu0 %v976
        %3663 = vmatmul.mubr.bf16.gmra.mxu0 %v975
        %v3664 = vpop.f32.mrf.mxu0
        %v3665 = vadd.f32 %v3472, %v3664
        %v3666 = vpop.f32.mrf.mxu0
        %v3667 = vadd.f32 %v3474, %v3666
        %v3668 = vpop.f32.mrf.mxu0
        %v3669 = vadd.f32 %v3476, %v3668
        %v3670 = vpop.f32.mrf.mxu0
        %v3671 = vadd.f32 %v3478, %v3670
        %3672 = vmatprep.mubr.bf16.mxu0 %v984
        %3673 = vmatmul.mubr.bf16.gmra.mxu0 %v983
        %v3674 = vpop.f32.mrf.mxu0
        %v3675 = vadd.f32 %v3482, %v3674
        %v3676 = vpop.f32.mrf.mxu0
        %v3677 = vadd.f32 %v3484, %v3676
        %v3678 = vpop.f32.mrf.mxu0
        %v3679 = vadd.f32 %v3486, %v3678
        %v3680 = vpop.f32.mrf.mxu0
        %v3681 = vadd.f32 %v3488, %v3680
        %3682 = vmatprep.mubr.bf16.mxu0 %v992
        %3683 = vmatmul.mubr.bf16.gmra.mxu0 %v991
        %v3684 = vpop.f32.mrf.mxu0
        %v3685 = vadd.f32 %v3492, %v3684
        %v3686 = vpop.f32.mrf.mxu0
        %v3687 = vadd.f32 %v3494, %v3686
        %v3688 = vpop.f32.mrf.mxu0
        %v3689 = vadd.f32 %v3496, %v3688
        %v3690 = vpop.f32.mrf.mxu0
        %v3691 = vadd.f32 %v3498, %v3690
        %3692 = vmatprep.mubr.bf16.mxu0 %v1000
        %3693 = vmatmul.mubr.bf16.gmra.mxu0 %v999
        %v3694 = vpop.f32.mrf.mxu0
        %v3695 = vadd.f32 %v3502, %v3694
        %v3696 = vpop.f32.mrf.mxu0
        %v3697 = vadd.f32 %v3504, %v3696
        %v3698 = vpop.f32.mrf.mxu0
        %v3699 = vadd.f32 %v3506, %v3698
        %v3700 = vpop.f32.mrf.mxu0
        %v3701 = vadd.f32 %v3508, %v3700
        %3702 = vmatprep.mubr.bf16.mxu0 %v1008
        %3703 = vmatmul.mubr.bf16.gmra.mxu0 %v1007
        %v3704 = vpop.f32.mrf.mxu0
        %v3705 = vadd.f32 %v3512, %v3704
        %v3706 = vpop.f32.mrf.mxu0
        %v3707 = vadd.f32 %v3514, %v3706
        %v3708 = vpop.f32.mrf.mxu0
        %v3709 = vadd.f32 %v3516, %v3708
        %v3710 = vpop.f32.mrf.mxu0
        %v3711 = vadd.f32 %v3518, %v3710
        %3712 = vmatprep.mubr.bf16.mxu0 %v1016
        %3713 = vmatmul.mubr.bf16.gmra.mxu0 %v1015
        %v3714 = vpop.f32.mrf.mxu0
        %v3715 = vadd.f32 %v3522, %v3714
        %v3716 = vpop.f32.mrf.mxu0
        %v3717 = vadd.f32 %v3524, %v3716
        %v3718 = vpop.f32.mrf.mxu0
        %v3719 = vadd.f32 %v3526, %v3718
        %v3720 = vpop.f32.mrf.mxu0
        %v3721 = vadd.f32 %v3528, %v3720
        %3722 = vmatprep.mubr.bf16.mxu0 %v1024
        %3723 = vmatmul.mubr.bf16.gmra.mxu0 %v1023
        %v3724 = vpop.f32.mrf.mxu0
        %v3725 = vadd.f32 %v3532, %v3724
        %v3726 = vpop.f32.mrf.mxu0
        %v3727 = vadd.f32 %v3534, %v3726
        %v3728 = vpop.f32.mrf.mxu0
        %v3729 = vadd.f32 %v3536, %v3728
        %v3730 = vpop.f32.mrf.mxu0
        %v3731 = vadd.f32 %v3538, %v3730
        %3732 = vmatprep.mubr.bf16.mxu0 %v1032
        %3733 = vmatmul.mubr.bf16.gmra.mxu0 %v1031
        %v3734 = vpop.f32.mrf.mxu0
        %v3735 = vadd.f32 %v3542, %v3734
        %v3736 = vpop.f32.mrf.mxu0
        %v3737 = vadd.f32 %v3544, %v3736
        %v3738 = vpop.f32.mrf.mxu0
        %v3739 = vadd.f32 %v3546, %v3738
        %v3740 = vpop.f32.mrf.mxu0
        %v3741 = vadd.f32 %v3548, %v3740
        %3742 = vmatprep.mubr.bf16.mxu0 %v1040
        %3743 = vmatmul.mubr.bf16.gmra.mxu0 %v1039
        %v3744 = vpop.f32.mrf.mxu0
        %v3745 = vadd.f32 %v3552, %v3744
        %v3746 = vpop.f32.mrf.mxu0
        %v3747 = vadd.f32 %v3554, %v3746
        %v3748 = vpop.f32.mrf.mxu0
        %v3749 = vadd.f32 %v3556, %v3748
        %v3750 = vpop.f32.mrf.mxu0
        %v3751 = vadd.f32 %v3558, %v3750
        %3752 = vmatprep.mubr.bf16.mxu0 %v1048
        %3753 = vmatmul.mubr.bf16.gmra.mxu0 %v1047
        %v3754 = vpop.f32.mrf.mxu0
        %v3755 = vadd.f32 %v3562, %v3754
        %v3756 = vpop.f32.mrf.mxu0
        %v3757 = vadd.f32 %v3564, %v3756
        %v3758 = vpop.f32.mrf.mxu0
        %v3759 = vadd.f32 %v3566, %v3758
        %v3760 = vpop.f32.mrf.mxu0
        %v3761 = vadd.f32 %v3568, %v3760
        %3762 = vmatprep.mubr.bf16.mxu0 %v1056
        %3763 = vmatmul.mubr.bf16.gmra.mxu0 %v1055
        %v3764 = vpop.f32.mrf.mxu0
        %v3765 = vadd.f32 %v3572, %v3764
        %v3766 = vpop.f32.mrf.mxu0
        %v3767 = vadd.f32 %v3574, %v3766
        %v3768 = vpop.f32.mrf.mxu0
        %v3769 = vadd.f32 %v3576, %v3768
        %v3770 = vpop.f32.mrf.mxu0
        %v3771 = vadd.f32 %v3578, %v3770
        %3772 = vmatprep.mubr.bf16.mxu0 %v1064
        %3773 = vmatmul.mubr.bf16.gmra.mxu0 %v1063
        %v3774 = vpop.f32.mrf.mxu0
        %v3775 = vadd.f32 %v3582, %v3774
        %v3776 = vpop.f32.mrf.mxu0
        %v3777 = vadd.f32 %v3584, %v3776
        %v3778 = vpop.f32.mrf.mxu0
        %v3779 = vadd.f32 %v3586, %v3778
        %v3780 = vpop.f32.mrf.mxu0
        %v3781 = vadd.f32 %v3588, %v3780
        %3782 = vmatprep.mubr.bf16.mxu0 %v1072
        %3783 = vmatmul.mubr.bf16.gmra.mxu0 %v1071
        %v3784 = vpop.f32.mrf.mxu0
        %v3785 = vadd.f32 %v3592, %v3784
        %v3786 = vpop.f32.mrf.mxu0
        %v3787 = vadd.f32 %v3594, %v3786
        %v3788 = vpop.f32.mrf.mxu0
        %v3789 = vadd.f32 %v3596, %v3788
        %v3790 = vpop.f32.mrf.mxu0
        %v3791 = vadd.f32 %v3598, %v3790
        %3792 = vdwg.mxu0
        %3793 = vmatprep.subr.bf16.mxu0 %v2282
        %3794 = vmatpush1.bf16.msra.mxu0 %v2281
        %3795 = vmatprep.subr.bf16.mxu0 %v2278
        %3796 = vmatpush1.bf16.msra.mxu0 %v2277
        %3797 = vmatprep.subr.bf16.mxu0 %v2274
        %3798 = vmatpush1.bf16.msra.mxu0 %v2273
        %3799 = vmatprep.subr.bf16.mxu0 %v2270
        %3800 = vmatpush1.bf16.msra.mxu0 %v2269
        %3801 = vmatprep.subr.bf16.mxu0 %v2266
        %3802 = vmatpush1.bf16.msra.mxu0 %v2265
        %3803 = vmatprep.subr.bf16.mxu0 %v2262
        %3804 = vmatpush1.bf16.msra.mxu0 %v2261
        %3805 = vmatprep.subr.bf16.mxu0 %v2258
        %3806 = vmatpush1.bf16.msra.mxu0 %v2257
        %3807 = vmatprep.subr.bf16.mxu0 %v2254
        %3808 = vmatpush1.bf16.msra.mxu0 %v2253
        %3809 = vmatprep.subr.bf16.mxu0 %v2314
        %3810 = vmatpush2.bf16.msra.mxu0 %v2313
        %3811 = vmatprep.subr.bf16.mxu0 %v2310
        %3812 = vmatpush2.bf16.msra.mxu0 %v2309
        %3813 = vmatprep.subr.bf16.mxu0 %v2306
        %3814 = vmatpush2.bf16.msra.mxu0 %v2305
        %3815 = vmatprep.subr.bf16.mxu0 %v2302
        %3816 = vmatpush2.bf16.msra.mxu0 %v2301
        %3817 = vmatprep.subr.bf16.mxu0 %v2298
        %3818 = vmatpush2.bf16.msra.mxu0 %v2297
        %3819 = vmatprep.subr.bf16.mxu0 %v2294
        %3820 = vmatpush2.bf16.msra.mxu0 %v2293
        %3821 = vmatprep.subr.bf16.mxu0 %v2290
        %3822 = vmatpush2.bf16.msra.mxu0 %v2289
        %3823 = vmatprep.subr.bf16.mxu0 %v2286
        %3824 = vmatpush2.bf16.msra.mxu0 %v2285
        %3825 = vmatprep.mubr.bf16.mxu0 %v954
        %3826 = vmatmul.mubr.bf16.gmra.mxu0 %v953
        %v3827 = vpop.f32.mrf.mxu0
        %v3828 = vadd.f32 %v3635, %v3827
        %v3829 = vpop.f32.mrf.mxu0
        %v3830 = vadd.f32 %v3637, %v3829
        %v3831 = vpop.f32.mrf.mxu0
        %v3832 = vadd.f32 %v3639, %v3831
        %v3833 = vpop.f32.mrf.mxu0
        %v3834 = vadd.f32 %v3641, %v3833
        %3835 = vmatprep.mubr.bf16.mxu0 %v962
        %3836 = vmatmul.mubr.bf16.gmra.mxu0 %v961
        %v3837 = vpop.f32.mrf.mxu0
        %v3838 = vadd.f32 %v3645, %v3837
        %v3839 = vpop.f32.mrf.mxu0
        %v3840 = vadd.f32 %v3647, %v3839
        %v3841 = vpop.f32.mrf.mxu0
        %v3842 = vadd.f32 %v3649, %v3841
        %v3843 = vpop.f32.mrf.mxu0
        %v3844 = vadd.f32 %v3651, %v3843
        %3845 = vmatprep.mubr.bf16.mxu0 %v970
        %3846 = vmatmul.mubr.bf16.gmra.mxu0 %v969
        %v3847 = vpop.f32.mrf.mxu0
        %v3848 = vadd.f32 %v3655, %v3847
        %v3849 = vpop.f32.mrf.mxu0
        %v3850 = vadd.f32 %v3657, %v3849
        %v3851 = vpop.f32.mrf.mxu0
        %v3852 = vadd.f32 %v3659, %v3851
        %v3853 = vpop.f32.mrf.mxu0
        %v3854 = vadd.f32 %v3661, %v3853
        %3855 = vmatprep.mubr.bf16.mxu0 %v978
        %3856 = vmatmul.mubr.bf16.gmra.mxu0 %v977
        %v3857 = vpop.f32.mrf.mxu0
        %v3858 = vadd.f32 %v3665, %v3857
        %v3859 = vpop.f32.mrf.mxu0
        %v3860 = vadd.f32 %v3667, %v3859
        %v3861 = vpop.f32.mrf.mxu0
        %v3862 = vadd.f32 %v3669, %v3861
        %v3863 = vpop.f32.mrf.mxu0
        %v3864 = vadd.f32 %v3671, %v3863
        %3865 = vmatprep.mubr.bf16.mxu0 %v986
        %3866 = vmatmul.mubr.bf16.gmra.mxu0 %v985
        %v3867 = vpop.f32.mrf.mxu0
        %v3868 = vadd.f32 %v3675, %v3867
        %v3869 = vpop.f32.mrf.mxu0
        %v3870 = vadd.f32 %v3677, %v3869
        %v3871 = vpop.f32.mrf.mxu0
        %v3872 = vadd.f32 %v3679, %v3871
        %v3873 = vpop.f32.mrf.mxu0
        %v3874 = vadd.f32 %v3681, %v3873
        %3875 = vmatprep.mubr.bf16.mxu0 %v994
        %3876 = vmatmul.mubr.bf16.gmra.mxu0 %v993
        %v3877 = vpop.f32.mrf.mxu0
        %v3878 = vadd.f32 %v3685, %v3877
        %v3879 = vpop.f32.mrf.mxu0
        %v3880 = vadd.f32 %v3687, %v3879
        %v3881 = vpop.f32.mrf.mxu0
        %v3882 = vadd.f32 %v3689, %v3881
        %v3883 = vpop.f32.mrf.mxu0
        %v3884 = vadd.f32 %v3691, %v3883
        %3885 = vmatprep.mubr.bf16.mxu0 %v1002
        %3886 = vmatmul.mubr.bf16.gmra.mxu0 %v1001
        %v3887 = vpop.f32.mrf.mxu0
        %v3888 = vadd.f32 %v3695, %v3887
        %v3889 = vpop.f32.mrf.mxu0
        %v3890 = vadd.f32 %v3697, %v3889
        %v3891 = vpop.f32.mrf.mxu0
        %v3892 = vadd.f32 %v3699, %v3891
        %v3893 = vpop.f32.mrf.mxu0
        %v3894 = vadd.f32 %v3701, %v3893
        %3895 = vmatprep.mubr.bf16.mxu0 %v1010
        %3896 = vmatmul.mubr.bf16.gmra.mxu0 %v1009
        %v3897 = vpop.f32.mrf.mxu0
        %v3898 = vadd.f32 %v3705, %v3897
        %v3899 = vpop.f32.mrf.mxu0
        %v3900 = vadd.f32 %v3707, %v3899
        %v3901 = vpop.f32.mrf.mxu0
        %v3902 = vadd.f32 %v3709, %v3901
        %v3903 = vpop.f32.mrf.mxu0
        %v3904 = vadd.f32 %v3711, %v3903
        %3905 = vmatprep.mubr.bf16.mxu0 %v1018
        %3906 = vmatmul.mubr.bf16.gmra.mxu0 %v1017
        %v3907 = vpop.f32.mrf.mxu0
        %v3908 = vadd.f32 %v3715, %v3907
        %v3909 = vpop.f32.mrf.mxu0
        %v3910 = vadd.f32 %v3717, %v3909
        %v3911 = vpop.f32.mrf.mxu0
        %v3912 = vadd.f32 %v3719, %v3911
        %v3913 = vpop.f32.mrf.mxu0
        %v3914 = vadd.f32 %v3721, %v3913
        %3915 = vmatprep.mubr.bf16.mxu0 %v1026
        %3916 = vmatmul.mubr.bf16.gmra.mxu0 %v1025
        %v3917 = vpop.f32.mrf.mxu0
        %v3918 = vadd.f32 %v3725, %v3917
        %v3919 = vpop.f32.mrf.mxu0
        %v3920 = vadd.f32 %v3727, %v3919
        %v3921 = vpop.f32.mrf.mxu0
        %v3922 = vadd.f32 %v3729, %v3921
        %v3923 = vpop.f32.mrf.mxu0
        %v3924 = vadd.f32 %v3731, %v3923
        %3925 = vmatprep.mubr.bf16.mxu0 %v1034
        %3926 = vmatmul.mubr.bf16.gmra.mxu0 %v1033
        %v3927 = vpop.f32.mrf.mxu0
        %v3928 = vadd.f32 %v3735, %v3927
        %v3929 = vpop.f32.mrf.mxu0
        %v3930 = vadd.f32 %v3737, %v3929
        %v3931 = vpop.f32.mrf.mxu0
        %v3932 = vadd.f32 %v3739, %v3931
        %v3933 = vpop.f32.mrf.mxu0
        %v3934 = vadd.f32 %v3741, %v3933
        %3935 = vmatprep.mubr.bf16.mxu0 %v1042
        %3936 = vmatmul.mubr.bf16.gmra.mxu0 %v1041
        %v3937 = vpop.f32.mrf.mxu0
        %v3938 = vadd.f32 %v3745, %v3937
        %v3939 = vpop.f32.mrf.mxu0
        %v3940 = vadd.f32 %v3747, %v3939
        %v3941 = vpop.f32.mrf.mxu0
        %v3942 = vadd.f32 %v3749, %v3941
        %v3943 = vpop.f32.mrf.mxu0
        %v3944 = vadd.f32 %v3751, %v3943
        %3945 = vmatprep.mubr.bf16.mxu0 %v1050
        %3946 = vmatmul.mubr.bf16.gmra.mxu0 %v1049
        %v3947 = vpop.f32.mrf.mxu0
        %v3948 = vadd.f32 %v3755, %v3947
        %v3949 = vpop.f32.mrf.mxu0
        %v3950 = vadd.f32 %v3757, %v3949
        %v3951 = vpop.f32.mrf.mxu0
        %v3952 = vadd.f32 %v3759, %v3951
        %v3953 = vpop.f32.mrf.mxu0
        %v3954 = vadd.f32 %v3761, %v3953
        %3955 = vmatprep.mubr.bf16.mxu0 %v1058
        %3956 = vmatmul.mubr.bf16.gmra.mxu0 %v1057
        %v3957 = vpop.f32.mrf.mxu0
        %v3958 = vadd.f32 %v3765, %v3957
        %v3959 = vpop.f32.mrf.mxu0
        %v3960 = vadd.f32 %v3767, %v3959
        %v3961 = vpop.f32.mrf.mxu0
        %v3962 = vadd.f32 %v3769, %v3961
        %v3963 = vpop.f32.mrf.mxu0
        %v3964 = vadd.f32 %v3771, %v3963
        %3965 = vmatprep.mubr.bf16.mxu0 %v1066
        %3966 = vmatmul.mubr.bf16.gmra.mxu0 %v1065
        %v3967 = vpop.f32.mrf.mxu0
        %v3968 = vadd.f32 %v3775, %v3967
        %v3969 = vpop.f32.mrf.mxu0
        %v3970 = vadd.f32 %v3777, %v3969
        %v3971 = vpop.f32.mrf.mxu0
        %v3972 = vadd.f32 %v3779, %v3971
        %v3973 = vpop.f32.mrf.mxu0
        %v3974 = vadd.f32 %v3781, %v3973
        %3975 = vmatprep.mubr.bf16.mxu0 %v1074
        %3976 = vmatmul.mubr.bf16.gmra.mxu0 %v1073
        %v3977 = vpop.f32.mrf.mxu0
        %v3978 = vadd.f32 %v3785, %v3977
        %v3979 = vpop.f32.mrf.mxu0
        %v3980 = vadd.f32 %v3787, %v3979
        %v3981 = vpop.f32.mrf.mxu0
        %v3982 = vadd.f32 %v3789, %v3981
        %v3983 = vpop.f32.mrf.mxu0
        %v3984 = vadd.f32 %v3791, %v3983
        %3985 = vdwg.mxu0
        %3986 = vmatprep.subr.bf16.mxu0 %v2346
        %3987 = vmatpush1.bf16.msra.mxu0 %v2345
        %3988 = vmatprep.subr.bf16.mxu0 %v2342
        %3989 = vmatpush1.bf16.msra.mxu0 %v2341
        %3990 = vmatprep.subr.bf16.mxu0 %v2338
        %3991 = vmatpush1.bf16.msra.mxu0 %v2337
        %3992 = vmatprep.subr.bf16.mxu0 %v2334
        %3993 = vmatpush1.bf16.msra.mxu0 %v2333
        %3994 = vmatprep.subr.bf16.mxu0 %v2330
        %3995 = vmatpush1.bf16.msra.mxu0 %v2329
        %3996 = vmatprep.subr.bf16.mxu0 %v2326
        %3997 = vmatpush1.bf16.msra.mxu0 %v2325
        %3998 = vmatprep.subr.bf16.mxu0 %v2322
        %3999 = vmatpush1.bf16.msra.mxu0 %v2321
        %4000 = vmatprep.subr.bf16.mxu0 %v2318
        %4001 = vmatpush1.bf16.msra.mxu0 %v2317
        %4002 = vmatprep.subr.bf16.mxu0 %v2378
        %4003 = vmatpush2.bf16.msra.mxu0 %v2377
        %4004 = vmatprep.subr.bf16.mxu0 %v2374
        %4005 = vmatpush2.bf16.msra.mxu0 %v2373
        %4006 = vmatprep.subr.bf16.mxu0 %v2370
        %4007 = vmatpush2.bf16.msra.mxu0 %v2369
        %4008 = vmatprep.subr.bf16.mxu0 %v2366
        %4009 = vmatpush2.bf16.msra.mxu0 %v2365
        %4010 = vmatprep.subr.bf16.mxu0 %v2362
        %4011 = vmatpush2.bf16.msra.mxu0 %v2361
        %4012 = vmatprep.subr.bf16.mxu0 %v2358
        %4013 = vmatpush2.bf16.msra.mxu0 %v2357
        %4014 = vmatprep.subr.bf16.mxu0 %v2354
        %4015 = vmatpush2.bf16.msra.mxu0 %v2353
        %4016 = vmatprep.subr.bf16.mxu0 %v2350
        %4017 = vmatpush2.bf16.msra.mxu0 %v2349
        %4018 = vmatprep.mubr.bf16.mxu0 %v956
        %4019 = vmatmul.mubr.bf16.gmra.mxu0 %v955
        %v4020 = vpop.f32.mrf.mxu0
        %v4021 = vadd.f32 %v3828, %v4020
        %v4022 = vpop.f32.mrf.mxu0
        %v4023 = vadd.f32 %v3830, %v4022
        %v4024 = vpop.f32.mrf.mxu0
        %v4025 = vadd.f32 %v3832, %v4024
        %v4026 = vpop.f32.mrf.mxu0
        %v4027 = vadd.f32 %v3834, %v4026
        %4028 = vmatprep.mubr.bf16.mxu0 %v964
        %4029 = vmatmul.mubr.bf16.gmra.mxu0 %v963
        %v4030 = vpop.f32.mrf.mxu0
        %v4031 = vadd.f32 %v3838, %v4030
        %v4032 = vpop.f32.mrf.mxu0
        %v4033 = vadd.f32 %v3840, %v4032
        %v4034 = vpop.f32.mrf.mxu0
        %v4035 = vadd.f32 %v3842, %v4034
        %v4036 = vpop.f32.mrf.mxu0
        %v4037 = vadd.f32 %v3844, %v4036
        %4038 = vmatprep.mubr.bf16.mxu0 %v972
        %4039 = vmatmul.mubr.bf16.gmra.mxu0 %v971
        %v4040 = vpop.f32.mrf.mxu0
        %v4041 = vadd.f32 %v3848, %v4040
        %v4042 = vpop.f32.mrf.mxu0
        %v4043 = vadd.f32 %v3850, %v4042
        %v4044 = vpop.f32.mrf.mxu0
        %v4045 = vadd.f32 %v3852, %v4044
        %v4046 = vpop.f32.mrf.mxu0
        %v4047 = vadd.f32 %v3854, %v4046
        %4048 = vmatprep.mubr.bf16.mxu0 %v980
        %4049 = vmatmul.mubr.bf16.gmra.mxu0 %v979
        %v4050 = vpop.f32.mrf.mxu0
        %v4051 = vadd.f32 %v3858, %v4050
        %v4052 = vpop.f32.mrf.mxu0
        %v4053 = vadd.f32 %v3860, %v4052
        %v4054 = vpop.f32.mrf.mxu0
        %v4055 = vadd.f32 %v3862, %v4054
        %v4056 = vpop.f32.mrf.mxu0
        %v4057 = vadd.f32 %v3864, %v4056
        %4058 = vmatprep.mubr.bf16.mxu0 %v988
        %4059 = vmatmul.mubr.bf16.gmra.mxu0 %v987
        %v4060 = vpop.f32.mrf.mxu0
        %v4061 = vadd.f32 %v3868, %v4060
        %v4062 = vpop.f32.mrf.mxu0
        %v4063 = vadd.f32 %v3870, %v4062
        %v4064 = vpop.f32.mrf.mxu0
        %v4065 = vadd.f32 %v3872, %v4064
        %v4066 = vpop.f32.mrf.mxu0
        %v4067 = vadd.f32 %v3874, %v4066
        %4068 = vmatprep.mubr.bf16.mxu0 %v996
        %4069 = vmatmul.mubr.bf16.gmra.mxu0 %v995
        %v4070 = vpop.f32.mrf.mxu0
        %v4071 = vadd.f32 %v3878, %v4070
        %v4072 = vpop.f32.mrf.mxu0
        %v4073 = vadd.f32 %v3880, %v4072
        %v4074 = vpop.f32.mrf.mxu0
        %v4075 = vadd.f32 %v3882, %v4074
        %v4076 = vpop.f32.mrf.mxu0
        %v4077 = vadd.f32 %v3884, %v4076
        %4078 = vmatprep.mubr.bf16.mxu0 %v1004
        %4079 = vmatmul.mubr.bf16.gmra.mxu0 %v1003
        %v4080 = vpop.f32.mrf.mxu0
        %v4081 = vadd.f32 %v3888, %v4080
        %v4082 = vpop.f32.mrf.mxu0
        %v4083 = vadd.f32 %v3890, %v4082
        %v4084 = vpop.f32.mrf.mxu0
        %v4085 = vadd.f32 %v3892, %v4084
        %v4086 = vpop.f32.mrf.mxu0
        %v4087 = vadd.f32 %v3894, %v4086
        %4088 = vmatprep.mubr.bf16.mxu0 %v1012
        %4089 = vmatmul.mubr.bf16.gmra.mxu0 %v1011
        %v4090 = vpop.f32.mrf.mxu0
        %v4091 = vadd.f32 %v3898, %v4090
        %v4092 = vpop.f32.mrf.mxu0
        %v4093 = vadd.f32 %v3900, %v4092
        %v4094 = vpop.f32.mrf.mxu0
        %v4095 = vadd.f32 %v3902, %v4094
        %v4096 = vpop.f32.mrf.mxu0
        %v4097 = vadd.f32 %v3904, %v4096
        %4098 = vmatprep.mubr.bf16.mxu0 %v1020
        %4099 = vmatmul.mubr.bf16.gmra.mxu0 %v1019
        %v4100 = vpop.f32.mrf.mxu0
        %v4101 = vadd.f32 %v3908, %v4100
        %v4102 = vpop.f32.mrf.mxu0
        %v4103 = vadd.f32 %v3910, %v4102
        %v4104 = vpop.f32.mrf.mxu0
        %v4105 = vadd.f32 %v3912, %v4104
        %v4106 = vpop.f32.mrf.mxu0
        %v4107 = vadd.f32 %v3914, %v4106
        %4108 = vmatprep.mubr.bf16.mxu0 %v1028
        %4109 = vmatmul.mubr.bf16.gmra.mxu0 %v1027
        %v4110 = vpop.f32.mrf.mxu0
        %v4111 = vadd.f32 %v3918, %v4110
        %v4112 = vpop.f32.mrf.mxu0
        %v4113 = vadd.f32 %v3920, %v4112
        %v4114 = vpop.f32.mrf.mxu0
        %v4115 = vadd.f32 %v3922, %v4114
        %v4116 = vpop.f32.mrf.mxu0
        %v4117 = vadd.f32 %v3924, %v4116
        %4118 = vmatprep.mubr.bf16.mxu0 %v1036
        %4119 = vmatmul.mubr.bf16.gmra.mxu0 %v1035
        %v4120 = vpop.f32.mrf.mxu0
        %v4121 = vadd.f32 %v3928, %v4120
        %v4122 = vpop.f32.mrf.mxu0
        %v4123 = vadd.f32 %v3930, %v4122
        %v4124 = vpop.f32.mrf.mxu0
        %v4125 = vadd.f32 %v3932, %v4124
        %v4126 = vpop.f32.mrf.mxu0
        %v4127 = vadd.f32 %v3934, %v4126
        %4128 = vmatprep.mubr.bf16.mxu0 %v1044
        %4129 = vmatmul.mubr.bf16.gmra.mxu0 %v1043
        %v4130 = vpop.f32.mrf.mxu0
        %v4131 = vadd.f32 %v3938, %v4130
        %v4132 = vpop.f32.mrf.mxu0
        %v4133 = vadd.f32 %v3940, %v4132
        %v4134 = vpop.f32.mrf.mxu0
        %v4135 = vadd.f32 %v3942, %v4134
        %v4136 = vpop.f32.mrf.mxu0
        %v4137 = vadd.f32 %v3944, %v4136
        %4138 = vmatprep.mubr.bf16.mxu0 %v1052
        %4139 = vmatmul.mubr.bf16.gmra.mxu0 %v1051
        %v4140 = vpop.f32.mrf.mxu0
        %v4141 = vadd.f32 %v3948, %v4140
        %v4142 = vpop.f32.mrf.mxu0
        %v4143 = vadd.f32 %v3950, %v4142
        %v4144 = vpop.f32.mrf.mxu0
        %v4145 = vadd.f32 %v3952, %v4144
        %v4146 = vpop.f32.mrf.mxu0
        %v4147 = vadd.f32 %v3954, %v4146
        %4148 = vmatprep.mubr.bf16.mxu0 %v1060
        %4149 = vmatmul.mubr.bf16.gmra.mxu0 %v1059
        %v4150 = vpop.f32.mrf.mxu0
        %v4151 = vadd.f32 %v3958, %v4150
        %v4152 = vpop.f32.mrf.mxu0
        %v4153 = vadd.f32 %v3960, %v4152
        %v4154 = vpop.f32.mrf.mxu0
        %v4155 = vadd.f32 %v3962, %v4154
        %v4156 = vpop.f32.mrf.mxu0
        %v4157 = vadd.f32 %v3964, %v4156
        %4158 = vmatprep.mubr.bf16.mxu0 %v1068
        %4159 = vmatmul.mubr.bf16.gmra.mxu0 %v1067
        %v4160 = vpop.f32.mrf.mxu0
        %v4161 = vadd.f32 %v3968, %v4160
        %v4162 = vpop.f32.mrf.mxu0
        %v4163 = vadd.f32 %v3970, %v4162
        %v4164 = vpop.f32.mrf.mxu0
        %v4165 = vadd.f32 %v3972, %v4164
        %v4166 = vpop.f32.mrf.mxu0
        %v4167 = vadd.f32 %v3974, %v4166
        %4168 = vmatprep.mubr.bf16.mxu0 %v1076
        %4169 = vmatmul.mubr.bf16.gmra.mxu0 %v1075
        %v4170 = vpop.f32.mrf.mxu0
        %v4171 = vadd.f32 %v3978, %v4170
        %v4172 = vpop.f32.mrf.mxu0
        %v4173 = vadd.f32 %v3980, %v4172
        %v4174 = vpop.f32.mrf.mxu0
        %v4175 = vadd.f32 %v3982, %v4174
        %v4176 = vpop.f32.mrf.mxu0
        %v4177 = vadd.f32 %v3984, %v4176
        %4178 = vdwg.mxu0
        %v4179 = vmax.f32 %v3249, 0.0
        %v4180 = vmax.f32 %v3251, 0.0
        %v4181 = vmax.f32 %v4021, 0.0
        %v4182 = vmax.f32 %v4023, 0.0
        %v4183 = vmax.f32 %v3253, 0.0
        %v4184 = vmax.f32 %v3255, 0.0
        %v4185 = vmax.f32 %v4025, 0.0
        %v4186 = vmax.f32 %v4027, 0.0
        %v4187 = vmax.f32 %v3259, 0.0
        %v4188 = vmax.f32 %v3261, 0.0
        %v4189 = vmax.f32 %v4031, 0.0
        %v4190 = vmax.f32 %v4033, 0.0
        %v4191 = vmax.f32 %v3263, 0.0
        %v4192 = vmax.f32 %v3265, 0.0
        %v4193 = vmax.f32 %v4035, 0.0
        %v4194 = vmax.f32 %v4037, 0.0
        %v4195 = vmax.f32 %v3269, 0.0
        %v4196 = vmax.f32 %v3271, 0.0
        %v4197 = vmax.f32 %v4041, 0.0
        %v4198 = vmax.f32 %v4043, 0.0
        %v4199 = vmax.f32 %v3273, 0.0
        %v4200 = vmax.f32 %v3275, 0.0
        %v4201 = vmax.f32 %v4045, 0.0
        %v4202 = vmax.f32 %v4047, 0.0
        %v4203 = vmax.f32 %v3279, 0.0
        %v4204 = vmax.f32 %v3281, 0.0
        %v4205 = vmax.f32 %v4051, 0.0
        %v4206 = vmax.f32 %v4053, 0.0
        %v4207 = vmax.f32 %v3283, 0.0
        %v4208 = vmax.f32 %v3285, 0.0
        %v4209 = vmax.f32 %v4055, 0.0
        %v4210 = vmax.f32 %v4057, 0.0
        %v4211 = vmax.f32 %v3289, 0.0
        %v4212 = vmax.f32 %v3291, 0.0
        %v4213 = vmax.f32 %v4061, 0.0
        %v4214 = vmax.f32 %v4063, 0.0
        %v4215 = vmax.f32 %v3293, 0.0
        %v4216 = vmax.f32 %v3295, 0.0
        %v4217 = vmax.f32 %v4065, 0.0
        %v4218 = vmax.f32 %v4067, 0.0
        %v4219 = vmax.f32 %v3299, 0.0
        %v4220 = vmax.f32 %v3301, 0.0
        %v4221 = vmax.f32 %v4071, 0.0
        %v4222 = vmax.f32 %v4073, 0.0
        %v4223 = vmax.f32 %v3303, 0.0
        %v4224 = vmax.f32 %v3305, 0.0
        %v4225 = vmax.f32 %v4075, 0.0
        %v4226 = vmax.f32 %v4077, 0.0
        %v4227 = vmax.f32 %v3309, 0.0
        %v4228 = vmax.f32 %v3311, 0.0
        %v4229 = vmax.f32 %v4081, 0.0
        %v4230 = vmax.f32 %v4083, 0.0
        %v4231 = vmax.f32 %v3313, 0.0
        %v4232 = vmax.f32 %v3315, 0.0
        %v4233 = vmax.f32 %v4085, 0.0
        %v4234 = vmax.f32 %v4087, 0.0
        %v4235 = vmax.f32 %v3319, 0.0
        %v4236 = vmax.f32 %v3321, 0.0
        %v4237 = vmax.f32 %v4091, 0.0
        %v4238 = vmax.f32 %v4093, 0.0
        %v4239 = vmax.f32 %v3323, 0.0
        %v4240 = vmax.f32 %v3325, 0.0
        %v4241 = vmax.f32 %v4095, 0.0
        %v4242 = vmax.f32 %v4097, 0.0
        %v4243 = vmax.f32 %v3329, 0.0
        %v4244 = vmax.f32 %v3331, 0.0
        %v4245 = vmax.f32 %v4101, 0.0
        %v4246 = vmax.f32 %v4103, 0.0
        %v4247 = vmax.f32 %v3333, 0.0
        %v4248 = vmax.f32 %v3335, 0.0
        %v4249 = vmax.f32 %v4105, 0.0
        %v4250 = vmax.f32 %v4107, 0.0
        %v4251 = vmax.f32 %v3339, 0.0
        %v4252 = vmax.f32 %v3341, 0.0
        %v4253 = vmax.f32 %v4111, 0.0
        %v4254 = vmax.f32 %v4113, 0.0
        %v4255 = vmax.f32 %v3343, 0.0
        %v4256 = vmax.f32 %v3345, 0.0
        %v4257 = vmax.f32 %v4115, 0.0
        %v4258 = vmax.f32 %v4117, 0.0
        %v4259 = vmax.f32 %v3349, 0.0
        %v4260 = vmax.f32 %v3351, 0.0
        %v4261 = vmax.f32 %v4121, 0.0
        %v4262 = vmax.f32 %v4123, 0.0
        %v4263 = vmax.f32 %v3353, 0.0
        %v4264 = vmax.f32 %v3355, 0.0
        %v4265 = vmax.f32 %v4125, 0.0
        %v4266 = vmax.f32 %v4127, 0.0
        %v4267 = vmax.f32 %v3359, 0.0
        %v4268 = vmax.f32 %v3361, 0.0
        %v4269 = vmax.f32 %v4131, 0.0
        %v4270 = vmax.f32 %v4133, 0.0
        %v4271 = vmax.f32 %v3363, 0.0
        %v4272 = vmax.f32 %v3365, 0.0
        %v4273 = vmax.f32 %v4135, 0.0
        %v4274 = vmax.f32 %v4137, 0.0
        %v4275 = vmax.f32 %v3369, 0.0
        %v4276 = vmax.f32 %v3371, 0.0
        %v4277 = vmax.f32 %v4141, 0.0
        %v4278 = vmax.f32 %v4143, 0.0
        %v4279 = vmax.f32 %v3373, 0.0
        %v4280 = vmax.f32 %v3375, 0.0
        %v4281 = vmax.f32 %v4145, 0.0
        %v4282 = vmax.f32 %v4147, 0.0
        %v4283 = vmax.f32 %v3379, 0.0
        %v4284 = vmax.f32 %v3381, 0.0
        %v4285 = vmax.f32 %v4151, 0.0
        %v4286 = vmax.f32 %v4153, 0.0
        %v4287 = vmax.f32 %v3383, 0.0
        %v4288 = vmax.f32 %v3385, 0.0
        %v4289 = vmax.f32 %v4155, 0.0
        %v4290 = vmax.f32 %v4157, 0.0
        %v4291 = vmax.f32 %v3389, 0.0
        %v4292 = vmax.f32 %v3391, 0.0
        %v4293 = vmax.f32 %v4161, 0.0
        %v4294 = vmax.f32 %v4163, 0.0
        %v4295 = vmax.f32 %v3393, 0.0
        %v4296 = vmax.f32 %v3395, 0.0
        %v4297 = vmax.f32 %v4165, 0.0
        %v4298 = vmax.f32 %v4167, 0.0
        %v4299 = vmax.f32 %v3399, 0.0
        %v4300 = vmax.f32 %v3401, 0.0
        %v4301 = vmax.f32 %v4171, 0.0
        %v4302 = vmax.f32 %v4173, 0.0
        %v4303 = vmax.f32 %v3403, 0.0
        %v4304 = vmax.f32 %v3405, 0.0
        %v4305 = vmax.f32 %v4175, 0.0
        %v4306 = vmax.f32 %v4177, 0.0
        %v4307 = vpack.c.bf16 %v4183, %v4179
        %v4308 = vpack.c.bf16 %v4184, %v4180
        %v4309 = vpack.c.bf16 %v4185, %v4181
        %v4310 = vpack.c.bf16 %v4186, %v4182
        %v4311 = vpack.c.bf16 %v4191, %v4187
        %v4312 = vpack.c.bf16 %v4192, %v4188
        %v4313 = vpack.c.bf16 %v4193, %v4189
        %v4314 = vpack.c.bf16 %v4194, %v4190
        %v4315 = vpack.c.bf16 %v4199, %v4195
        %v4316 = vpack.c.bf16 %v4200, %v4196
        %v4317 = vpack.c.bf16 %v4201, %v4197
        %v4318 = vpack.c.bf16 %v4202, %v4198
        %v4319 = vpack.c.bf16 %v4207, %v4203
        %v4320 = vpack.c.bf16 %v4208, %v4204
        %v4321 = vpack.c.bf16 %v4209, %v4205
        %v4322 = vpack.c.bf16 %v4210, %v4206
        %v4323 = vpack.c.bf16 %v4215, %v4211
        %v4324 = vpack.c.bf16 %v4216, %v4212
        %v4325 = vpack.c.bf16 %v4217, %v4213
        %v4326 = vpack.c.bf16 %v4218, %v4214
        %v4327 = vpack.c.bf16 %v4223, %v4219
        %v4328 = vpack.c.bf16 %v4224, %v4220
        %v4329 = vpack.c.bf16 %v4225, %v4221
        %v4330 = vpack.c.bf16 %v4226, %v4222
        %v4331 = vpack.c.bf16 %v4231, %v4227
        %v4332 = vpack.c.bf16 %v4232, %v4228
        %v4333 = vpack.c.bf16 %v4233, %v4229
        %v4334 = vpack.c.bf16 %v4234, %v4230
        %v4335 = vpack.c.bf16 %v4239, %v4235
        %v4336 = vpack.c.bf16 %v4240, %v4236
        %v4337 = vpack.c.bf16 %v4241, %v4237
        %v4338 = vpack.c.bf16 %v4242, %v4238
        %v4339 = vpack.c.bf16 %v4247, %v4243
        %v4340 = vpack.c.bf16 %v4248, %v4244
        %v4341 = vpack.c.bf16 %v4249, %v4245
        %v4342 = vpack.c.bf16 %v4250, %v4246
        %v4343 = vpack.c.bf16 %v4255, %v4251
        %v4344 = vpack.c.bf16 %v4256, %v4252
        %v4345 = vpack.c.bf16 %v4257, %v4253
        %v4346 = vpack.c.bf16 %v4258, %v4254
        %v4347 = vpack.c.bf16 %v4263, %v4259
        %v4348 = vpack.c.bf16 %v4264, %v4260
        %v4349 = vpack.c.bf16 %v4265, %v4261
        %v4350 = vpack.c.bf16 %v4266, %v4262
        %v4351 = vpack.c.bf16 %v4271, %v4267
        %v4352 = vpack.c.bf16 %v4272, %v4268
        %v4353 = vpack.c.bf16 %v4273, %v4269
        %v4354 = vpack.c.bf16 %v4274, %v4270
        %v4355 = vpack.c.bf16 %v4279, %v4275
        %v4356 = vpack.c.bf16 %v4280, %v4276
        %v4357 = vpack.c.bf16 %v4281, %v4277
        %v4358 = vpack.c.bf16 %v4282, %v4278
        %v4359 = vpack.c.bf16 %v4287, %v4283
        %v4360 = vpack.c.bf16 %v4288, %v4284
        %v4361 = vpack.c.bf16 %v4289, %v4285
        %v4362 = vpack.c.bf16 %v4290, %v4286
        %v4363 = vpack.c.bf16 %v4295, %v4291
        %v4364 = vpack.c.bf16 %v4296, %v4292
        %v4365 = vpack.c.bf16 %v4297, %v4293
        %v4366 = vpack.c.bf16 %v4298, %v4294
        %v4367 = vpack.c.bf16 %v4303, %v4299
        %v4368 = vpack.c.bf16 %v4304, %v4300
        %v4369 = vpack.c.bf16 %v4305, %v4301
        %v4370 = vpack.c.bf16 %v4306, %v4302
        %v4371 = vld [vmem:[#allocation12] sm:$0xff]
        %v4372 = vld [vmem:[#allocation12 + $0x8] sm:$0xff]
        %v4373 = vld [vmem:[#allocation12 + $0x10] sm:$0xff]
        %v4374 = vld [vmem:[#allocation12 + $0x18] sm:$0xff]
        %v4375 = vld [vmem:[#allocation12 + $0x20] sm:$0xff]
        %v4376 = vld [vmem:[#allocation12 + $0x28] sm:$0xff]
        %v4377 = vld [vmem:[#allocation12 + $0x30] sm:$0xff]
        %v4378 = vld [vmem:[#allocation12 + $0x38] sm:$0xff]
        %v4379 = vld [vmem:[#allocation12 + $0x40] sm:$0xff]
        %v4380 = vld [vmem:[#allocation12 + $0x48] sm:$0xff]
        %v4381 = vld [vmem:[#allocation12 + $0x50] sm:$0xff]
        %v4382 = vld [vmem:[#allocation12 + $0x58] sm:$0xff]
        %v4383 = vld [vmem:[#allocation12 + $0x60] sm:$0xff]
        %v4384 = vld [vmem:[#allocation12 + $0x68] sm:$0xff]
        %v4385 = vld [vmem:[#allocation12 + $0x70] sm:$0xff]
        %v4386 = vld [vmem:[#allocation12 + $0x78] sm:$0xff]
        %v4387 = vld [vmem:[#allocation12 + $0x80] sm:$0xff]
        %v4388 = vld [vmem:[#allocation12 + $0x88] sm:$0xff]
        %v4389 = vld [vmem:[#allocation12 + $0x90] sm:$0xff]
        %v4390 = vld [vmem:[#allocation12 + $0x98] sm:$0xff]
        %v4391 = vld [vmem:[#allocation12 + $0xa0] sm:$0xff]
        %v4392 = vld [vmem:[#allocation12 + $0xa8] sm:$0xff]
        %v4393 = vld [vmem:[#allocation12 + $0xb0] sm:$0xff]
        %v4394 = vld [vmem:[#allocation12 + $0xb8] sm:$0xff]
        %v4395 = vld [vmem:[#allocation12 + $0xc0] sm:$0xff]
        %v4396 = vld [vmem:[#allocation12 + $0xc8] sm:$0xff]
        %v4397 = vld [vmem:[#allocation12 + $0xd0] sm:$0xff]
        %v4398 = vld [vmem:[#allocation12 + $0xd8] sm:$0xff]
        %v4399 = vld [vmem:[#allocation12 + $0xe0] sm:$0xff]
        %v4400 = vld [vmem:[#allocation12 + $0xe8] sm:$0xff]
        %v4401 = vld [vmem:[#allocation12 + $0xf0] sm:$0xff]
        %v4402 = vld [vmem:[#allocation12 + $0xf8] sm:$0xff]
        %v4403 = vld [vmem:[#allocation12 + $0x100] sm:$0xff]
        %v4404 = vld [vmem:[#allocation12 + $0x108] sm:$0xff]
        %v4405 = vld [vmem:[#allocation12 + $0x110] sm:$0xff]
        %v4406 = vld [vmem:[#allocation12 + $0x118] sm:$0xff]
        %v4407 = vld [vmem:[#allocation12 + $0x120] sm:$0xff]
        %v4408 = vld [vmem:[#allocation12 + $0x128] sm:$0xff]
        %v4409 = vld [vmem:[#allocation12 + $0x130] sm:$0xff]
        %v4410 = vld [vmem:[#allocation12 + $0x138] sm:$0xff]
        %v4411 = vld [vmem:[#allocation12 + $0x140] sm:$0xff]
        %v4412 = vld [vmem:[#allocation12 + $0x148] sm:$0xff]
        %v4413 = vld [vmem:[#allocation12 + $0x150] sm:$0xff]
        %v4414 = vld [vmem:[#allocation12 + $0x158] sm:$0xff]
        %v4415 = vld [vmem:[#allocation12 + $0x160] sm:$0xff]
        %v4416 = vld [vmem:[#allocation12 + $0x168] sm:$0xff]
        %v4417 = vld [vmem:[#allocation12 + $0x170] sm:$0xff]
        %v4418 = vld [vmem:[#allocation12 + $0x178] sm:$0xff]
        %v4419 = vld [vmem:[#allocation12 + $0x180] sm:$0xff]
        %v4420 = vld [vmem:[#allocation12 + $0x188] sm:$0xff]
        %v4421 = vld [vmem:[#allocation12 + $0x190] sm:$0xff]
        %v4422 = vld [vmem:[#allocation12 + $0x198] sm:$0xff]
        %v4423 = vld [vmem:[#allocation12 + $0x1a0] sm:$0xff]
        %v4424 = vld [vmem:[#allocation12 + $0x1a8] sm:$0xff]
        %v4425 = vld [vmem:[#allocation12 + $0x1b0] sm:$0xff]
        %v4426 = vld [vmem:[#allocation12 + $0x1b8] sm:$0xff]
        %v4427 = vld [vmem:[#allocation12 + $0x1c0] sm:$0xff]
        %v4428 = vld [vmem:[#allocation12 + $0x1c8] sm:$0xff]
        %v4429 = vld [vmem:[#allocation12 + $0x1d0] sm:$0xff]
        %v4430 = vld [vmem:[#allocation12 + $0x1d8] sm:$0xff]
        %v4431 = vld [vmem:[#allocation12 + $0x1e0] sm:$0xff]
        %v4432 = vld [vmem:[#allocation12 + $0x1e8] sm:$0xff]
        %v4433 = vld [vmem:[#allocation12 + $0x1f0] sm:$0xff]
        %v4434 = vld [vmem:[#allocation12 + $0x1f8] sm:$0xff]
        %v4435 = vld [vmem:[#allocation14] sm:$0x3]
        %v4437 = vlaneseq
        %v4438 = vshrl.u32 %v4437, 7
        %v4439 = vsub.s32 0, %v4438
        %v4440 = vrot.slane %v4435, %v4439
        %v4441 = vlaneseq
        %v4442 = vshrl.u32 %v4441, 7
        %v4443 = vsub.s32 1, %v4442
        %v4444 = vrot.slane %v4435, %v4443
        %v4511 = vunpack.c.l.b16 %v4371
        %v4512 = vunpack.c.h.b16 %v4371
        %v4513 = vunpack.c.l.b16 %v4372
        %v4514 = vunpack.c.h.b16 %v4372
        %v4515 = vunpack.c.l.b16 %v4373
        %v4516 = vunpack.c.h.b16 %v4373
        %v4517 = vunpack.c.l.b16 %v4374
        %v4518 = vunpack.c.h.b16 %v4374
        %v4519 = vunpack.c.l.b16 %v4375
        %v4520 = vunpack.c.h.b16 %v4375
        %v4521 = vunpack.c.l.b16 %v4376
        %v4522 = vunpack.c.h.b16 %v4376
        %v4523 = vunpack.c.l.b16 %v4377
        %v4524 = vunpack.c.h.b16 %v4377
        %v4525 = vunpack.c.l.b16 %v4378
        %v4526 = vunpack.c.h.b16 %v4378
        %v4527 = vunpack.c.l.b16 %v4379
        %v4528 = vunpack.c.h.b16 %v4379
        %v4529 = vunpack.c.l.b16 %v4380
        %v4530 = vunpack.c.h.b16 %v4380
        %v4531 = vunpack.c.l.b16 %v4381
        %v4532 = vunpack.c.h.b16 %v4381
        %v4533 = vunpack.c.l.b16 %v4382
        %v4534 = vunpack.c.h.b16 %v4382
        %v4535 = vunpack.c.l.b16 %v4383
        %v4536 = vunpack.c.h.b16 %v4383
        %v4537 = vunpack.c.l.b16 %v4384
        %v4538 = vunpack.c.h.b16 %v4384
        %v4539 = vunpack.c.l.b16 %v4385
        %v4540 = vunpack.c.h.b16 %v4385
        %v4541 = vunpack.c.l.b16 %v4386
        %v4542 = vunpack.c.h.b16 %v4386
        %v4543 = vunpack.c.l.b16 %v4387
        %v4544 = vunpack.c.h.b16 %v4387
        %v4545 = vunpack.c.l.b16 %v4388
        %v4546 = vunpack.c.h.b16 %v4388
        %v4547 = vunpack.c.l.b16 %v4389
        %v4548 = vunpack.c.h.b16 %v4389
        %v4549 = vunpack.c.l.b16 %v4390
        %v4550 = vunpack.c.h.b16 %v4390
        %v4551 = vunpack.c.l.b16 %v4391
        %v4552 = vunpack.c.h.b16 %v4391
        %v4553 = vunpack.c.l.b16 %v4392
        %v4554 = vunpack.c.h.b16 %v4392
        %v4555 = vunpack.c.l.b16 %v4393
        %v4556 = vunpack.c.h.b16 %v4393
        %v4557 = vunpack.c.l.b16 %v4394
        %v4558 = vunpack.c.h.b16 %v4394
        %v4559 = vunpack.c.l.b16 %v4395
        %v4560 = vunpack.c.h.b16 %v4395
        %v4561 = vunpack.c.l.b16 %v4396
        %v4562 = vunpack.c.h.b16 %v4396
        %v4563 = vunpack.c.l.b16 %v4397
        %v4564 = vunpack.c.h.b16 %v4397
        %v4565 = vunpack.c.l.b16 %v4398
        %v4566 = vunpack.c.h.b16 %v4398
        %v4567 = vunpack.c.l.b16 %v4399
        %v4568 = vunpack.c.h.b16 %v4399
        %v4569 = vunpack.c.l.b16 %v4400
        %v4570 = vunpack.c.h.b16 %v4400
        %v4571 = vunpack.c.l.b16 %v4401
        %v4572 = vunpack.c.h.b16 %v4401
        %v4573 = vunpack.c.l.b16 %v4402
        %v4574 = vunpack.c.h.b16 %v4402
        %v4575 = vunpack.c.l.b16 %v4403
        %v4576 = vunpack.c.h.b16 %v4403
        %v4577 = vunpack.c.l.b16 %v4404
        %v4578 = vunpack.c.h.b16 %v4404
        %v4579 = vunpack.c.l.b16 %v4405
        %v4580 = vunpack.c.h.b16 %v4405
        %v4581 = vunpack.c.l.b16 %v4406
        %v4582 = vunpack.c.h.b16 %v4406
        %v4583 = vunpack.c.l.b16 %v4407
        %v4584 = vunpack.c.h.b16 %v4407
        %v4585 = vunpack.c.l.b16 %v4408
        %v4586 = vunpack.c.h.b16 %v4408
        %v4587 = vunpack.c.l.b16 %v4409
        %v4588 = vunpack.c.h.b16 %v4409
        %v4589 = vunpack.c.l.b16 %v4410
        %v4590 = vunpack.c.h.b16 %v4410
        %v4591 = vunpack.c.l.b16 %v4411
        %v4592 = vunpack.c.h.b16 %v4411
        %v4593 = vunpack.c.l.b16 %v4412
        %v4594 = vunpack.c.h.b16 %v4412
        %v4595 = vunpack.c.l.b16 %v4413
        %v4596 = vunpack.c.h.b16 %v4413
        %v4597 = vunpack.c.l.b16 %v4414
        %v4598 = vunpack.c.h.b16 %v4414
        %v4599 = vunpack.c.l.b16 %v4415
        %v4600 = vunpack.c.h.b16 %v4415
        %v4601 = vunpack.c.l.b16 %v4416
        %v4602 = vunpack.c.h.b16 %v4416
        %v4603 = vunpack.c.l.b16 %v4417
        %v4604 = vunpack.c.h.b16 %v4417
        %v4605 = vunpack.c.l.b16 %v4418
        %v4606 = vunpack.c.h.b16 %v4418
        %v4607 = vunpack.c.l.b16 %v4419
        %v4608 = vunpack.c.h.b16 %v4419
        %v4609 = vunpack.c.l.b16 %v4420
        %v4610 = vunpack.c.h.b16 %v4420
        %v4611 = vunpack.c.l.b16 %v4421
        %v4612 = vunpack.c.h.b16 %v4421
        %v4613 = vunpack.c.l.b16 %v4422
        %v4614 = vunpack.c.h.b16 %v4422
        %v4615 = vunpack.c.l.b16 %v4423
        %v4616 = vunpack.c.h.b16 %v4423
        %v4617 = vunpack.c.l.b16 %v4424
        %v4618 = vunpack.c.h.b16 %v4424
        %v4619 = vunpack.c.l.b16 %v4425
        %v4620 = vunpack.c.h.b16 %v4425
        %v4621 = vunpack.c.l.b16 %v4426
        %v4622 = vunpack.c.h.b16 %v4426
        %v4623 = vunpack.c.l.b16 %v4427
        %v4624 = vunpack.c.h.b16 %v4427
        %v4625 = vunpack.c.l.b16 %v4428
        %v4626 = vunpack.c.h.b16 %v4428
        %v4627 = vunpack.c.l.b16 %v4429
        %v4628 = vunpack.c.h.b16 %v4429
        %v4629 = vunpack.c.l.b16 %v4430
        %v4630 = vunpack.c.h.b16 %v4430
        %v4631 = vunpack.c.l.b16 %v4431
        %v4632 = vunpack.c.h.b16 %v4431
        %v4633 = vunpack.c.l.b16 %v4432
        %v4634 = vunpack.c.h.b16 %v4432
        %v4635 = vunpack.c.l.b16 %v4433
        %v4636 = vunpack.c.h.b16 %v4433
        %v4637 = vunpack.c.l.b16 %v4434
        %v4638 = vunpack.c.h.b16 %v4434
        %v4639 = vpack.c.b16 %v4513, %v4511
        %v4640 = vpack.c.b16 %v4514, %v4512
        %v4641 = vpack.c.b16 %v4517, %v4515
        %v4642 = vpack.c.b16 %v4518, %v4516
        %v4643 = vpack.c.b16 %v4521, %v4519
        %v4644 = vpack.c.b16 %v4522, %v4520
        %v4645 = vpack.c.b16 %v4525, %v4523
        %v4646 = vpack.c.b16 %v4526, %v4524
        %v4647 = vpack.c.b16 %v4529, %v4527
        %v4648 = vpack.c.b16 %v4530, %v4528
        %v4649 = vpack.c.b16 %v4533, %v4531
        %v4650 = vpack.c.b16 %v4534, %v4532
        %v4651 = vpack.c.b16 %v4537, %v4535
        %v4652 = vpack.c.b16 %v4538, %v4536
        %v4653 = vpack.c.b16 %v4541, %v4539
        %v4654 = vpack.c.b16 %v4542, %v4540
        %v4655 = vpack.c.b16 %v4545, %v4543
        %v4656 = vpack.c.b16 %v4546, %v4544
        %v4657 = vpack.c.b16 %v4549, %v4547
        %v4658 = vpack.c.b16 %v4550, %v4548
        %v4659 = vpack.c.b16 %v4553, %v4551
        %v4660 = vpack.c.b16 %v4554, %v4552
        %v4661 = vpack.c.b16 %v4557, %v4555
        %v4662 = vpack.c.b16 %v4558, %v4556
        %v4663 = vpack.c.b16 %v4561, %v4559
        %v4664 = vpack.c.b16 %v4562, %v4560
        %v4665 = vpack.c.b16 %v4565, %v4563
        %v4666 = vpack.c.b16 %v4566, %v4564
        %v4667 = vpack.c.b16 %v4569, %v4567
        %v4668 = vpack.c.b16 %v4570, %v4568
        %v4669 = vpack.c.b16 %v4573, %v4571
        %v4670 = vpack.c.b16 %v4574, %v4572
        %v4671 = vpack.c.b16 %v4577, %v4575
        %v4672 = vpack.c.b16 %v4578, %v4576
        %v4673 = vpack.c.b16 %v4581, %v4579
        %v4674 = vpack.c.b16 %v4582, %v4580
        %v4675 = vpack.c.b16 %v4585, %v4583
        %v4676 = vpack.c.b16 %v4586, %v4584
        %v4677 = vpack.c.b16 %v4589, %v4587
        %v4678 = vpack.c.b16 %v4590, %v4588
        %v4679 = vpack.c.b16 %v4593, %v4591
        %v4680 = vpack.c.b16 %v4594, %v4592
        %v4681 = vpack.c.b16 %v4597, %v4595
        %v4682 = vpack.c.b16 %v4598, %v4596
        %v4683 = vpack.c.b16 %v4601, %v4599
        %v4684 = vpack.c.b16 %v4602, %v4600
        %v4685 = vpack.c.b16 %v4605, %v4603
        %v4686 = vpack.c.b16 %v4606, %v4604
        %v4687 = vpack.c.b16 %v4609, %v4607
        %v4688 = vpack.c.b16 %v4610, %v4608
        %v4689 = vpack.c.b16 %v4613, %v4611
        %v4690 = vpack.c.b16 %v4614, %v4612
        %v4691 = vpack.c.b16 %v4617, %v4615
        %v4692 = vpack.c.b16 %v4618, %v4616
        %v4693 = vpack.c.b16 %v4621, %v4619
        %v4694 = vpack.c.b16 %v4622, %v4620
        %v4695 = vpack.c.b16 %v4625, %v4623
        %v4696 = vpack.c.b16 %v4626, %v4624
        %v4697 = vpack.c.b16 %v4629, %v4627
        %v4698 = vpack.c.b16 %v4630, %v4628
        %v4699 = vpack.c.b16 %v4633, %v4631
        %v4700 = vpack.c.b16 %v4634, %v4632
        %v4701 = vpack.c.b16 %v4637, %v4635
        %v4702 = vpack.c.b16 %v4638, %v4636
        %4767 = vmatprep.subr.bf16.mxu0 %v4654
        %4768 = vmatpush1.bf16.msra.mxu0 %v4653
        %4769 = vmatprep.subr.bf16.mxu0 %v4652
        %4770 = vmatpush1.bf16.msra.mxu0 %v4651
        %4771 = vmatprep.subr.bf16.mxu0 %v4650
        %4772 = vmatpush1.bf16.msra.mxu0 %v4649
        %4773 = vmatprep.subr.bf16.mxu0 %v4648
        %4774 = vmatpush1.bf16.msra.mxu0 %v4647
        %4775 = vmatprep.subr.bf16.mxu0 %v4646
        %4776 = vmatpush1.bf16.msra.mxu0 %v4645
        %4777 = vmatprep.subr.bf16.mxu0 %v4644
        %4778 = vmatpush1.bf16.msra.mxu0 %v4643
        %4779 = vmatprep.subr.bf16.mxu0 %v4642
        %4780 = vmatpush1.bf16.msra.mxu0 %v4641
        %4781 = vmatprep.subr.bf16.mxu0 %v4640
        %4782 = vmatpush1.bf16.msra.mxu0 %v4639
        %4783 = vmatprep.subr.bf16.mxu0 %v4670
        %4784 = vmatpush2.bf16.msra.mxu0 %v4669
        %4785 = vmatprep.subr.bf16.mxu0 %v4668
        %4786 = vmatpush2.bf16.msra.mxu0 %v4667
        %4787 = vmatprep.subr.bf16.mxu0 %v4666
        %4788 = vmatpush2.bf16.msra.mxu0 %v4665
        %4789 = vmatprep.subr.bf16.mxu0 %v4664
        %4790 = vmatpush2.bf16.msra.mxu0 %v4663
        %4791 = vmatprep.subr.bf16.mxu0 %v4662
        %4792 = vmatpush2.bf16.msra.mxu0 %v4661
        %4793 = vmatprep.subr.bf16.mxu0 %v4660
        %4794 = vmatpush2.bf16.msra.mxu0 %v4659
        %4795 = vmatprep.subr.bf16.mxu0 %v4658
        %4796 = vmatpush2.bf16.msra.mxu0 %v4657
        %4797 = vmatprep.subr.bf16.mxu0 %v4656
        %4798 = vmatpush2.bf16.msra.mxu0 %v4655
        %4799 = vmatprep.mubr.bf16.mxu0 %v4308
        %4800 = vmatmul.mubr.bf16.gmra.mxu0 %v4307
        %v4801 = vpop.f32.mrf.mxu0
        %v4802 = vadd.f32 %v4440, %v4801
        %v4803 = vpop.f32.mrf.mxu0
        %v4804 = vadd.f32 %v4444, %v4803
        %v4805 = vpop.f32.mrf.mxu0
        %v4806 = vadd.f32 %v4440, %v4805
        %v4807 = vpop.f32.mrf.mxu0
        %v4808 = vadd.f32 %v4444, %v4807
        %4809 = vmatprep.mubr.bf16.mxu0 %v4312
        %4810 = vmatmul.mubr.bf16.gmra.mxu0 %v4311
        %v4811 = vpop.f32.mrf.mxu0
        %v4812 = vadd.f32 %v4440, %v4811
        %v4813 = vpop.f32.mrf.mxu0
        %v4814 = vadd.f32 %v4444, %v4813
        %v4815 = vpop.f32.mrf.mxu0
        %v4816 = vadd.f32 %v4440, %v4815
        %v4817 = vpop.f32.mrf.mxu0
        %v4818 = vadd.f32 %v4444, %v4817
        %4819 = vmatprep.mubr.bf16.mxu0 %v4316
        %4820 = vmatmul.mubr.bf16.gmra.mxu0 %v4315
        %v4821 = vpop.f32.mrf.mxu0
        %v4822 = vadd.f32 %v4440, %v4821
        %v4823 = vpop.f32.mrf.mxu0
        %v4824 = vadd.f32 %v4444, %v4823
        %v4825 = vpop.f32.mrf.mxu0
        %v4826 = vadd.f32 %v4440, %v4825
        %v4827 = vpop.f32.mrf.mxu0
        %v4828 = vadd.f32 %v4444, %v4827
        %4829 = vmatprep.mubr.bf16.mxu0 %v4320
        %4830 = vmatmul.mubr.bf16.gmra.mxu0 %v4319
        %v4831 = vpop.f32.mrf.mxu0
        %v4832 = vadd.f32 %v4440, %v4831
        %v4833 = vpop.f32.mrf.mxu0
        %v4834 = vadd.f32 %v4444, %v4833
        %v4835 = vpop.f32.mrf.mxu0
        %v4836 = vadd.f32 %v4440, %v4835
        %v4837 = vpop.f32.mrf.mxu0
        %v4838 = vadd.f32 %v4444, %v4837
        %4839 = vmatprep.mubr.bf16.mxu0 %v4324
        %4840 = vmatmul.mubr.bf16.gmra.mxu0 %v4323
        %v4841 = vpop.f32.mrf.mxu0
        %v4842 = vadd.f32 %v4440, %v4841
        %v4843 = vpop.f32.mrf.mxu0
        %v4844 = vadd.f32 %v4444, %v4843
        %v4845 = vpop.f32.mrf.mxu0
        %v4846 = vadd.f32 %v4440, %v4845
        %v4847 = vpop.f32.mrf.mxu0
        %v4848 = vadd.f32 %v4444, %v4847
        %4849 = vmatprep.mubr.bf16.mxu0 %v4328
        %4850 = vmatmul.mubr.bf16.gmra.mxu0 %v4327
        %v4851 = vpop.f32.mrf.mxu0
        %v4852 = vadd.f32 %v4440, %v4851
        %v4853 = vpop.f32.mrf.mxu0
        %v4854 = vadd.f32 %v4444, %v4853
        %v4855 = vpop.f32.mrf.mxu0
        %v4856 = vadd.f32 %v4440, %v4855
        %v4857 = vpop.f32.mrf.mxu0
        %v4858 = vadd.f32 %v4444, %v4857
        %4859 = vmatprep.mubr.bf16.mxu0 %v4332
        %4860 = vmatmul.mubr.bf16.gmra.mxu0 %v4331
        %v4861 = vpop.f32.mrf.mxu0
        %v4862 = vadd.f32 %v4440, %v4861
        %v4863 = vpop.f32.mrf.mxu0
        %v4864 = vadd.f32 %v4444, %v4863
        %v4865 = vpop.f32.mrf.mxu0
        %v4866 = vadd.f32 %v4440, %v4865
        %v4867 = vpop.f32.mrf.mxu0
        %v4868 = vadd.f32 %v4444, %v4867
        %4869 = vmatprep.mubr.bf16.mxu0 %v4336
        %4870 = vmatmul.mubr.bf16.gmra.mxu0 %v4335
        %v4871 = vpop.f32.mrf.mxu0
        %v4872 = vadd.f32 %v4440, %v4871
        %v4873 = vpop.f32.mrf.mxu0
        %v4874 = vadd.f32 %v4444, %v4873
        %v4875 = vpop.f32.mrf.mxu0
        %v4876 = vadd.f32 %v4440, %v4875
        %v4877 = vpop.f32.mrf.mxu0
        %v4878 = vadd.f32 %v4444, %v4877
        %4879 = vmatprep.mubr.bf16.mxu0 %v4340
        %4880 = vmatmul.mubr.bf16.gmra.mxu0 %v4339
        %v4881 = vpop.f32.mrf.mxu0
        %v4882 = vadd.f32 %v4440, %v4881
        %v4883 = vpop.f32.mrf.mxu0
        %v4884 = vadd.f32 %v4444, %v4883
        %v4885 = vpop.f32.mrf.mxu0
        %v4886 = vadd.f32 %v4440, %v4885
        %v4887 = vpop.f32.mrf.mxu0
        %v4888 = vadd.f32 %v4444, %v4887
        %4889 = vmatprep.mubr.bf16.mxu0 %v4344
        %4890 = vmatmul.mubr.bf16.gmra.mxu0 %v4343
        %v4891 = vpop.f32.mrf.mxu0
        %v4892 = vadd.f32 %v4440, %v4891
        %v4893 = vpop.f32.mrf.mxu0
        %v4894 = vadd.f32 %v4444, %v4893
        %v4895 = vpop.f32.mrf.mxu0
        %v4896 = vadd.f32 %v4440, %v4895
        %v4897 = vpop.f32.mrf.mxu0
        %v4898 = vadd.f32 %v4444, %v4897
        %4899 = vmatprep.mubr.bf16.mxu0 %v4348
        %4900 = vmatmul.mubr.bf16.gmra.mxu0 %v4347
        %v4901 = vpop.f32.mrf.mxu0
        %v4902 = vadd.f32 %v4440, %v4901
        %v4903 = vpop.f32.mrf.mxu0
        %v4904 = vadd.f32 %v4444, %v4903
        %v4905 = vpop.f32.mrf.mxu0
        %v4906 = vadd.f32 %v4440, %v4905
        %v4907 = vpop.f32.mrf.mxu0
        %v4908 = vadd.f32 %v4444, %v4907
        %4909 = vmatprep.mubr.bf16.mxu0 %v4352
        %4910 = vmatmul.mubr.bf16.gmra.mxu0 %v4351
        %v4911 = vpop.f32.mrf.mxu0
        %v4912 = vadd.f32 %v4440, %v4911
        %v4913 = vpop.f32.mrf.mxu0
        %v4914 = vadd.f32 %v4444, %v4913
        %v4915 = vpop.f32.mrf.mxu0
        %v4916 = vadd.f32 %v4440, %v4915
        %v4917 = vpop.f32.mrf.mxu0
        %v4918 = vadd.f32 %v4444, %v4917
        %4919 = vmatprep.mubr.bf16.mxu0 %v4356
        %4920 = vmatmul.mubr.bf16.gmra.mxu0 %v4355
        %v4921 = vpop.f32.mrf.mxu0
        %v4922 = vadd.f32 %v4440, %v4921
        %v4923 = vpop.f32.mrf.mxu0
        %v4924 = vadd.f32 %v4444, %v4923
        %v4925 = vpop.f32.mrf.mxu0
        %v4926 = vadd.f32 %v4440, %v4925
        %v4927 = vpop.f32.mrf.mxu0
        %v4928 = vadd.f32 %v4444, %v4927
        %4929 = vmatprep.mubr.bf16.mxu0 %v4360
        %4930 = vmatmul.mubr.bf16.gmra.mxu0 %v4359
        %v4931 = vpop.f32.mrf.mxu0
        %v4932 = vadd.f32 %v4440, %v4931
        %v4933 = vpop.f32.mrf.mxu0
        %v4934 = vadd.f32 %v4444, %v4933
        %v4935 = vpop.f32.mrf.mxu0
        %v4936 = vadd.f32 %v4440, %v4935
        %v4937 = vpop.f32.mrf.mxu0
        %v4938 = vadd.f32 %v4444, %v4937
        %4939 = vmatprep.mubr.bf16.mxu0 %v4364
        %4940 = vmatmul.mubr.bf16.gmra.mxu0 %v4363
        %v4941 = vpop.f32.mrf.mxu0
        %v4942 = vadd.f32 %v4440, %v4941
        %v4943 = vpop.f32.mrf.mxu0
        %v4944 = vadd.f32 %v4444, %v4943
        %v4945 = vpop.f32.mrf.mxu0
        %v4946 = vadd.f32 %v4440, %v4945
        %v4947 = vpop.f32.mrf.mxu0
        %v4948 = vadd.f32 %v4444, %v4947
        %4949 = vmatprep.mubr.bf16.mxu0 %v4368
        %4950 = vmatmul.mubr.bf16.gmra.mxu0 %v4367
        %v4951 = vpop.f32.mrf.mxu0
        %v4952 = vadd.f32 %v4440, %v4951
        %v4953 = vpop.f32.mrf.mxu0
        %v4954 = vadd.f32 %v4444, %v4953
        %v4955 = vpop.f32.mrf.mxu0
        %v4956 = vadd.f32 %v4440, %v4955
        %v4957 = vpop.f32.mrf.mxu0
        %v4958 = vadd.f32 %v4444, %v4957
        %4959 = vdwg.mxu0
        %4960 = vmatprep.subr.bf16.mxu0 %v4686
        %4961 = vmatpush1.bf16.msra.mxu0 %v4685
        %4962 = vmatprep.subr.bf16.mxu0 %v4684
        %4963 = vmatpush1.bf16.msra.mxu0 %v4683
        %4964 = vmatprep.subr.bf16.mxu0 %v4682
        %4965 = vmatpush1.bf16.msra.mxu0 %v4681
        %4966 = vmatprep.subr.bf16.mxu0 %v4680
        %4967 = vmatpush1.bf16.msra.mxu0 %v4679
        %4968 = vmatprep.subr.bf16.mxu0 %v4678
        %4969 = vmatpush1.bf16.msra.mxu0 %v4677
        %4970 = vmatprep.subr.bf16.mxu0 %v4676
        %4971 = vmatpush1.bf16.msra.mxu0 %v4675
        %4972 = vmatprep.subr.bf16.mxu0 %v4674
        %4973 = vmatpush1.bf16.msra.mxu0 %v4673
        %4974 = vmatprep.subr.bf16.mxu0 %v4672
        %4975 = vmatpush1.bf16.msra.mxu0 %v4671
        %4976 = vmatprep.subr.bf16.mxu0 %v4702
        %4977 = vmatpush2.bf16.msra.mxu0 %v4701
        %4978 = vmatprep.subr.bf16.mxu0 %v4700
        %4979 = vmatpush2.bf16.msra.mxu0 %v4699
        %4980 = vmatprep.subr.bf16.mxu0 %v4698
        %4981 = vmatpush2.bf16.msra.mxu0 %v4697
        %4982 = vmatprep.subr.bf16.mxu0 %v4696
        %4983 = vmatpush2.bf16.msra.mxu0 %v4695
        %4984 = vmatprep.subr.bf16.mxu0 %v4694
        %4985 = vmatpush2.bf16.msra.mxu0 %v4693
        %4986 = vmatprep.subr.bf16.mxu0 %v4692
        %4987 = vmatpush2.bf16.msra.mxu0 %v4691
        %4988 = vmatprep.subr.bf16.mxu0 %v4690
        %4989 = vmatpush2.bf16.msra.mxu0 %v4689
        %4990 = vmatprep.subr.bf16.mxu0 %v4688
        %4991 = vmatpush2.bf16.msra.mxu0 %v4687
        %4992 = vmatprep.mubr.bf16.mxu0 %v4310
        %4993 = vmatmul.mubr.bf16.gmra.mxu0 %v4309
        %v4994 = vpop.f32.mrf.mxu0
        %v4995 = vadd.f32 %v4802, %v4994
        %v4996 = vpop.f32.mrf.mxu0
        %v4997 = vadd.f32 %v4804, %v4996
        %v4998 = vpop.f32.mrf.mxu0
        %v4999 = vadd.f32 %v4806, %v4998
        %v5000 = vpop.f32.mrf.mxu0
        %v5001 = vadd.f32 %v4808, %v5000
        %5002 = vmatprep.mubr.bf16.mxu0 %v4314
        %5003 = vmatmul.mubr.bf16.gmra.mxu0 %v4313
        %v5004 = vpop.f32.mrf.mxu0
        %v5005 = vadd.f32 %v4812, %v5004
        %v5006 = vpop.f32.mrf.mxu0
        %v5007 = vadd.f32 %v4814, %v5006
        %v5008 = vpop.f32.mrf.mxu0
        %v5009 = vadd.f32 %v4816, %v5008
        %v5010 = vpop.f32.mrf.mxu0
        %v5011 = vadd.f32 %v4818, %v5010
        %5012 = vmatprep.mubr.bf16.mxu0 %v4318
        %5013 = vmatmul.mubr.bf16.gmra.mxu0 %v4317
        %v5014 = vpop.f32.mrf.mxu0
        %v5015 = vadd.f32 %v4822, %v5014
        %v5016 = vpop.f32.mrf.mxu0
        %v5017 = vadd.f32 %v4824, %v5016
        %v5018 = vpop.f32.mrf.mxu0
        %v5019 = vadd.f32 %v4826, %v5018
        %v5020 = vpop.f32.mrf.mxu0
        %v5021 = vadd.f32 %v4828, %v5020
        %5022 = vmatprep.mubr.bf16.mxu0 %v4322
        %5023 = vmatmul.mubr.bf16.gmra.mxu0 %v4321
        %v5024 = vpop.f32.mrf.mxu0
        %v5025 = vadd.f32 %v4832, %v5024
        %v5026 = vpop.f32.mrf.mxu0
        %v5027 = vadd.f32 %v4834, %v5026
        %v5028 = vpop.f32.mrf.mxu0
        %v5029 = vadd.f32 %v4836, %v5028
        %v5030 = vpop.f32.mrf.mxu0
        %v5031 = vadd.f32 %v4838, %v5030
        %5032 = vmatprep.mubr.bf16.mxu0 %v4326
        %5033 = vmatmul.mubr.bf16.gmra.mxu0 %v4325
        %v5034 = vpop.f32.mrf.mxu0
        %v5035 = vadd.f32 %v4842, %v5034
        %v5036 = vpop.f32.mrf.mxu0
        %v5037 = vadd.f32 %v4844, %v5036
        %v5038 = vpop.f32.mrf.mxu0
        %v5039 = vadd.f32 %v4846, %v5038
        %v5040 = vpop.f32.mrf.mxu0
        %v5041 = vadd.f32 %v4848, %v5040
        %5042 = vmatprep.mubr.bf16.mxu0 %v4330
        %5043 = vmatmul.mubr.bf16.gmra.mxu0 %v4329
        %v5044 = vpop.f32.mrf.mxu0
        %v5045 = vadd.f32 %v4852, %v5044
        %v5046 = vpop.f32.mrf.mxu0
        %v5047 = vadd.f32 %v4854, %v5046
        %v5048 = vpop.f32.mrf.mxu0
        %v5049 = vadd.f32 %v4856, %v5048
        %v5050 = vpop.f32.mrf.mxu0
        %v5051 = vadd.f32 %v4858, %v5050
        %5052 = vmatprep.mubr.bf16.mxu0 %v4334
        %5053 = vmatmul.mubr.bf16.gmra.mxu0 %v4333
        %v5054 = vpop.f32.mrf.mxu0
        %v5055 = vadd.f32 %v4862, %v5054
        %v5056 = vpop.f32.mrf.mxu0
        %v5057 = vadd.f32 %v4864, %v5056
        %v5058 = vpop.f32.mrf.mxu0
        %v5059 = vadd.f32 %v4866, %v5058
        %v5060 = vpop.f32.mrf.mxu0
        %v5061 = vadd.f32 %v4868, %v5060
        %5062 = vmatprep.mubr.bf16.mxu0 %v4338
        %5063 = vmatmul.mubr.bf16.gmra.mxu0 %v4337
        %v5064 = vpop.f32.mrf.mxu0
        %v5065 = vadd.f32 %v4872, %v5064
        %v5066 = vpop.f32.mrf.mxu0
        %v5067 = vadd.f32 %v4874, %v5066
        %v5068 = vpop.f32.mrf.mxu0
        %v5069 = vadd.f32 %v4876, %v5068
        %v5070 = vpop.f32.mrf.mxu0
        %v5071 = vadd.f32 %v4878, %v5070
        %5072 = vmatprep.mubr.bf16.mxu0 %v4342
        %5073 = vmatmul.mubr.bf16.gmra.mxu0 %v4341
        %v5074 = vpop.f32.mrf.mxu0
        %v5075 = vadd.f32 %v4882, %v5074
        %v5076 = vpop.f32.mrf.mxu0
        %v5077 = vadd.f32 %v4884, %v5076
        %v5078 = vpop.f32.mrf.mxu0
        %v5079 = vadd.f32 %v4886, %v5078
        %v5080 = vpop.f32.mrf.mxu0
        %v5081 = vadd.f32 %v4888, %v5080
        %5082 = vmatprep.mubr.bf16.mxu0 %v4346
        %5083 = vmatmul.mubr.bf16.gmra.mxu0 %v4345
        %v5084 = vpop.f32.mrf.mxu0
        %v5085 = vadd.f32 %v4892, %v5084
        %v5086 = vpop.f32.mrf.mxu0
        %v5087 = vadd.f32 %v4894, %v5086
        %v5088 = vpop.f32.mrf.mxu0
        %v5089 = vadd.f32 %v4896, %v5088
        %v5090 = vpop.f32.mrf.mxu0
        %v5091 = vadd.f32 %v4898, %v5090
        %5092 = vmatprep.mubr.bf16.mxu0 %v4350
        %5093 = vmatmul.mubr.bf16.gmra.mxu0 %v4349
        %v5094 = vpop.f32.mrf.mxu0
        %v5095 = vadd.f32 %v4902, %v5094
        %v5096 = vpop.f32.mrf.mxu0
        %v5097 = vadd.f32 %v4904, %v5096
        %v5098 = vpop.f32.mrf.mxu0
        %v5099 = vadd.f32 %v4906, %v5098
        %v5100 = vpop.f32.mrf.mxu0
        %v5101 = vadd.f32 %v4908, %v5100
        %5102 = vmatprep.mubr.bf16.mxu0 %v4354
        %5103 = vmatmul.mubr.bf16.gmra.mxu0 %v4353
        %v5104 = vpop.f32.mrf.mxu0
        %v5105 = vadd.f32 %v4912, %v5104
        %v5106 = vpop.f32.mrf.mxu0
        %v5107 = vadd.f32 %v4914, %v5106
        %v5108 = vpop.f32.mrf.mxu0
        %v5109 = vadd.f32 %v4916, %v5108
        %v5110 = vpop.f32.mrf.mxu0
        %v5111 = vadd.f32 %v4918, %v5110
        %5112 = vmatprep.mubr.bf16.mxu0 %v4358
        %5113 = vmatmul.mubr.bf16.gmra.mxu0 %v4357
        %v5114 = vpop.f32.mrf.mxu0
        %v5115 = vadd.f32 %v4922, %v5114
        %v5116 = vpop.f32.mrf.mxu0
        %v5117 = vadd.f32 %v4924, %v5116
        %v5118 = vpop.f32.mrf.mxu0
        %v5119 = vadd.f32 %v4926, %v5118
        %v5120 = vpop.f32.mrf.mxu0
        %v5121 = vadd.f32 %v4928, %v5120
        %5122 = vmatprep.mubr.bf16.mxu0 %v4362
        %5123 = vmatmul.mubr.bf16.gmra.mxu0 %v4361
        %v5124 = vpop.f32.mrf.mxu0
        %v5125 = vadd.f32 %v4932, %v5124
        %v5126 = vpop.f32.mrf.mxu0
        %v5127 = vadd.f32 %v4934, %v5126
        %v5128 = vpop.f32.mrf.mxu0
        %v5129 = vadd.f32 %v4936, %v5128
        %v5130 = vpop.f32.mrf.mxu0
        %v5131 = vadd.f32 %v4938, %v5130
        %5132 = vmatprep.mubr.bf16.mxu0 %v4366
        %5133 = vmatmul.mubr.bf16.gmra.mxu0 %v4365
        %v5134 = vpop.f32.mrf.mxu0
        %v5135 = vadd.f32 %v4942, %v5134
        %v5136 = vpop.f32.mrf.mxu0
        %v5137 = vadd.f32 %v4944, %v5136
        %v5138 = vpop.f32.mrf.mxu0
        %v5139 = vadd.f32 %v4946, %v5138
        %v5140 = vpop.f32.mrf.mxu0
        %v5141 = vadd.f32 %v4948, %v5140
        %5142 = vmatprep.mubr.bf16.mxu0 %v4370
        %5143 = vmatmul.mubr.bf16.gmra.mxu0 %v4369
        %v5144 = vpop.f32.mrf.mxu0
        %v5145 = vadd.f32 %v4952, %v5144
        %v5146 = vpop.f32.mrf.mxu0
        %v5147 = vadd.f32 %v4954, %v5146
        %v5148 = vpop.f32.mrf.mxu0
        %v5149 = vadd.f32 %v4956, %v5148
        %v5150 = vpop.f32.mrf.mxu0
        %v5151 = vadd.f32 %v4958, %v5150
        %5152 = vdwg.mxu0
        %v5153 = vtanh.pop %v4995
        %v5154 = vtanh.pop %v4997
        %v5155 = vtanh.pop %v4999
        %v5156 = vtanh.pop %v5001
        %v5157 = vtanh.pop %v5005
        %v5158 = vtanh.pop %v5007
        %v5159 = vtanh.pop %v5009
        %v5160 = vtanh.pop %v5011
        %v5161 = vtanh.pop %v5015
        %v5162 = vtanh.pop %v5017
        %v5163 = vtanh.pop %v5019
        %v5164 = vtanh.pop %v5021
        %v5165 = vtanh.pop %v5025
        %v5166 = vtanh.pop %v5027
        %v5167 = vtanh.pop %v5029
        %v5168 = vtanh.pop %v5031
        %v5169 = vtanh.pop %v5035
        %v5170 = vtanh.pop %v5037
        %v5171 = vtanh.pop %v5039
        %v5172 = vtanh.pop %v5041
        %v5173 = vtanh.pop %v5045
        %v5174 = vtanh.pop %v5047
        %v5175 = vtanh.pop %v5049
        %v5176 = vtanh.pop %v5051
        %v5177 = vtanh.pop %v5055
        %v5178 = vtanh.pop %v5057
        %v5179 = vtanh.pop %v5059
        %v5180 = vtanh.pop %v5061
        %v5181 = vtanh.pop %v5065
        %v5182 = vtanh.pop %v5067
        %v5183 = vtanh.pop %v5069
        %v5184 = vtanh.pop %v5071
        %v5185 = vtanh.pop %v5075
        %v5186 = vtanh.pop %v5077
        %v5187 = vtanh.pop %v5079
        %v5188 = vtanh.pop %v5081
        %v5189 = vtanh.pop %v5085
        %v5190 = vtanh.pop %v5087
        %v5191 = vtanh.pop %v5089
        %v5192 = vtanh.pop %v5091
        %v5193 = vtanh.pop %v5095
        %v5194 = vtanh.pop %v5097
        %v5195 = vtanh.pop %v5099
        %v5196 = vtanh.pop %v5101
        %v5197 = vtanh.pop %v5105
        %v5198 = vtanh.pop %v5107
        %v5199 = vtanh.pop %v5109
        %v5200 = vtanh.pop %v5111
        %v5201 = vtanh.pop %v5115
        %v5202 = vtanh.pop %v5117
        %v5203 = vtanh.pop %v5119
        %v5204 = vtanh.pop %v5121
        %v5205 = vtanh.pop %v5125
        %v5206 = vtanh.pop %v5127
        %v5207 = vtanh.pop %v5129
        %v5208 = vtanh.pop %v5131
        %v5209 = vtanh.pop %v5135
        %v5210 = vtanh.pop %v5137
        %v5211 = vtanh.pop %v5139
        %v5212 = vtanh.pop %v5141
        %v5213 = vtanh.pop %v5145
        %v5214 = vtanh.pop %v5147
        %v5215 = vtanh.pop %v5149
        %v5216 = vtanh.pop %v5151
        %v5217 = vld [vmem:[#allocation15] sm:$0xff]
        %v5218 = vld [vmem:[#allocation15 + $0x8] sm:$0xff]
        %v5219 = vld [vmem:[#allocation15 + $0x10] sm:$0xff]
        %v5220 = vld [vmem:[#allocation15 + $0x18] sm:$0xff]
        %v5221 = vld [vmem:[#allocation15 + $0x20] sm:$0xff]
        %v5222 = vld [vmem:[#allocation15 + $0x28] sm:$0xff]
        %v5223 = vld [vmem:[#allocation15 + $0x30] sm:$0xff]
        %v5224 = vld [vmem:[#allocation15 + $0x38] sm:$0xff]
        %v5225 = vld [vmem:[#allocation15 + $0x40] sm:$0xff]
        %v5226 = vld [vmem:[#allocation15 + $0x48] sm:$0xff]
        %v5227 = vld [vmem:[#allocation15 + $0x50] sm:$0xff]
        %v5228 = vld [vmem:[#allocation15 + $0x58] sm:$0xff]
        %v5229 = vld [vmem:[#allocation15 + $0x60] sm:$0xff]
        %v5230 = vld [vmem:[#allocation15 + $0x68] sm:$0xff]
        %v5231 = vld [vmem:[#allocation15 + $0x70] sm:$0xff]
        %v5232 = vld [vmem:[#allocation15 + $0x78] sm:$0xff]
        %v5233 = vld [vmem:[#allocation15 + $0x80] sm:$0xff]
        %v5234 = vld [vmem:[#allocation15 + $0x88] sm:$0xff]
        %v5235 = vld [vmem:[#allocation15 + $0x90] sm:$0xff]
        %v5236 = vld [vmem:[#allocation15 + $0x98] sm:$0xff]
        %v5237 = vld [vmem:[#allocation15 + $0xa0] sm:$0xff]
        %v5238 = vld [vmem:[#allocation15 + $0xa8] sm:$0xff]
        %v5239 = vld [vmem:[#allocation15 + $0xb0] sm:$0xff]
        %v5240 = vld [vmem:[#allocation15 + $0xb8] sm:$0xff]
        %v5241 = vld [vmem:[#allocation15 + $0xc0] sm:$0xff]
        %v5242 = vld [vmem:[#allocation15 + $0xc8] sm:$0xff]
        %v5243 = vld [vmem:[#allocation15 + $0xd0] sm:$0xff]
        %v5244 = vld [vmem:[#allocation15 + $0xd8] sm:$0xff]
        %v5245 = vld [vmem:[#allocation15 + $0xe0] sm:$0xff]
        %v5246 = vld [vmem:[#allocation15 + $0xe8] sm:$0xff]
        %v5247 = vld [vmem:[#allocation15 + $0xf0] sm:$0xff]
        %v5248 = vld [vmem:[#allocation15 + $0xf8] sm:$0xff]
        %v5249 = vld [vmem:[#allocation15 + $0x100] sm:$0xff]
        %v5250 = vld [vmem:[#allocation15 + $0x108] sm:$0xff]
        %v5251 = vld [vmem:[#allocation15 + $0x110] sm:$0xff]
        %v5252 = vld [vmem:[#allocation15 + $0x118] sm:$0xff]
        %v5253 = vld [vmem:[#allocation15 + $0x120] sm:$0xff]
        %v5254 = vld [vmem:[#allocation15 + $0x128] sm:$0xff]
        %v5255 = vld [vmem:[#allocation15 + $0x130] sm:$0xff]
        %v5256 = vld [vmem:[#allocation15 + $0x138] sm:$0xff]
        %v5257 = vld [vmem:[#allocation15 + $0x140] sm:$0xff]
        %v5258 = vld [vmem:[#allocation15 + $0x148] sm:$0xff]
        %v5259 = vld [vmem:[#allocation15 + $0x150] sm:$0xff]
        %v5260 = vld [vmem:[#allocation15 + $0x158] sm:$0xff]
        %v5261 = vld [vmem:[#allocation15 + $0x160] sm:$0xff]
        %v5262 = vld [vmem:[#allocation15 + $0x168] sm:$0xff]
        %v5263 = vld [vmem:[#allocation15 + $0x170] sm:$0xff]
        %v5264 = vld [vmem:[#allocation15 + $0x178] sm:$0xff]
        %v5265 = vld [vmem:[#allocation15 + $0x180] sm:$0xff]
        %v5266 = vld [vmem:[#allocation15 + $0x188] sm:$0xff]
        %v5267 = vld [vmem:[#allocation15 + $0x190] sm:$0xff]
        %v5268 = vld [vmem:[#allocation15 + $0x198] sm:$0xff]
        %v5269 = vld [vmem:[#allocation15 + $0x1a0] sm:$0xff]
        %v5270 = vld [vmem:[#allocation15 + $0x1a8] sm:$0xff]
        %v5271 = vld [vmem:[#allocation15 + $0x1b0] sm:$0xff]
        %v5272 = vld [vmem:[#allocation15 + $0x1b8] sm:$0xff]
        %v5273 = vld [vmem:[#allocation15 + $0x1c0] sm:$0xff]
        %v5274 = vld [vmem:[#allocation15 + $0x1c8] sm:$0xff]
        %v5275 = vld [vmem:[#allocation15 + $0x1d0] sm:$0xff]
        %v5276 = vld [vmem:[#allocation15 + $0x1d8] sm:$0xff]
        %v5277 = vld [vmem:[#allocation15 + $0x1e0] sm:$0xff]
        %v5278 = vld [vmem:[#allocation15 + $0x1e8] sm:$0xff]
        %v5279 = vld [vmem:[#allocation15 + $0x1f0] sm:$0xff]
        %v5280 = vld [vmem:[#allocation15 + $0x1f8] sm:$0xff]
        %v5281 = vld [vmem:[#allocation17] sm:$0x3]
        %v5283 = vlaneseq
        %v5284 = vshrl.u32 %v5283, 7
        %v5285 = vsub.s32 0, %v5284
        %v5286 = vrot.slane %v5281, %v5285
        %v5287 = vlaneseq
        %v5288 = vshrl.u32 %v5287, 7
        %v5289 = vsub.s32 1, %v5288
        %v5290 = vrot.slane %v5281, %v5289
        %v5357 = vunpack.c.l.b16 %v5217
        %v5358 = vunpack.c.h.b16 %v5217
        %v5359 = vunpack.c.l.b16 %v5218
        %v5360 = vunpack.c.h.b16 %v5218
        %v5361 = vunpack.c.l.b16 %v5219
        %v5362 = vunpack.c.h.b16 %v5219
        %v5363 = vunpack.c.l.b16 %v5220
        %v5364 = vunpack.c.h.b16 %v5220
        %v5365 = vunpack.c.l.b16 %v5221
        %v5366 = vunpack.c.h.b16 %v5221
        %v5367 = vunpack.c.l.b16 %v5222
        %v5368 = vunpack.c.h.b16 %v5222
        %v5369 = vunpack.c.l.b16 %v5223
        %v5370 = vunpack.c.h.b16 %v5223
        %v5371 = vunpack.c.l.b16 %v5224
        %v5372 = vunpack.c.h.b16 %v5224
        %v5373 = vunpack.c.l.b16 %v5225
        %v5374 = vunpack.c.h.b16 %v5225
        %v5375 = vunpack.c.l.b16 %v5226
        %v5376 = vunpack.c.h.b16 %v5226
        %v5377 = vunpack.c.l.b16 %v5227
        %v5378 = vunpack.c.h.b16 %v5227
        %v5379 = vunpack.c.l.b16 %v5228
        %v5380 = vunpack.c.h.b16 %v5228
        %v5381 = vunpack.c.l.b16 %v5229
        %v5382 = vunpack.c.h.b16 %v5229
        %v5383 = vunpack.c.l.b16 %v5230
        %v5384 = vunpack.c.h.b16 %v5230
        %v5385 = vunpack.c.l.b16 %v5231
        %v5386 = vunpack.c.h.b16 %v5231
        %v5387 = vunpack.c.l.b16 %v5232
        %v5388 = vunpack.c.h.b16 %v5232
        %v5389 = vunpack.c.l.b16 %v5233
        %v5390 = vunpack.c.h.b16 %v5233
        %v5391 = vunpack.c.l.b16 %v5234
        %v5392 = vunpack.c.h.b16 %v5234
        %v5393 = vunpack.c.l.b16 %v5235
        %v5394 = vunpack.c.h.b16 %v5235
        %v5395 = vunpack.c.l.b16 %v5236
        %v5396 = vunpack.c.h.b16 %v5236
        %v5397 = vunpack.c.l.b16 %v5237
        %v5398 = vunpack.c.h.b16 %v5237
        %v5399 = vunpack.c.l.b16 %v5238
        %v5400 = vunpack.c.h.b16 %v5238
        %v5401 = vunpack.c.l.b16 %v5239
        %v5402 = vunpack.c.h.b16 %v5239
        %v5403 = vunpack.c.l.b16 %v5240
        %v5404 = vunpack.c.h.b16 %v5240
        %v5405 = vunpack.c.l.b16 %v5241
        %v5406 = vunpack.c.h.b16 %v5241
        %v5407 = vunpack.c.l.b16 %v5242
        %v5408 = vunpack.c.h.b16 %v5242
        %v5409 = vunpack.c.l.b16 %v5243
        %v5410 = vunpack.c.h.b16 %v5243
        %v5411 = vunpack.c.l.b16 %v5244
        %v5412 = vunpack.c.h.b16 %v5244
        %v5413 = vunpack.c.l.b16 %v5245
        %v5414 = vunpack.c.h.b16 %v5245
        %v5415 = vunpack.c.l.b16 %v5246
        %v5416 = vunpack.c.h.b16 %v5246
        %v5417 = vunpack.c.l.b16 %v5247
        %v5418 = vunpack.c.h.b16 %v5247
        %v5419 = vunpack.c.l.b16 %v5248
        %v5420 = vunpack.c.h.b16 %v5248
        %v5421 = vunpack.c.l.b16 %v5249
        %v5422 = vunpack.c.h.b16 %v5249
        %v5423 = vunpack.c.l.b16 %v5250
        %v5424 = vunpack.c.h.b16 %v5250
        %v5425 = vunpack.c.l.b16 %v5251
        %v5426 = vunpack.c.h.b16 %v5251
        %v5427 = vunpack.c.l.b16 %v5252
        %v5428 = vunpack.c.h.b16 %v5252
        %v5429 = vunpack.c.l.b16 %v5253
        %v5430 = vunpack.c.h.b16 %v5253
        %v5431 = vunpack.c.l.b16 %v5254
        %v5432 = vunpack.c.h.b16 %v5254
        %v5433 = vunpack.c.l.b16 %v5255
        %v5434 = vunpack.c.h.b16 %v5255
        %v5435 = vunpack.c.l.b16 %v5256
        %v5436 = vunpack.c.h.b16 %v5256
        %v5437 = vunpack.c.l.b16 %v5257
        %v5438 = vunpack.c.h.b16 %v5257
        %v5439 = vunpack.c.l.b16 %v5258
        %v5440 = vunpack.c.h.b16 %v5258
        %v5441 = vunpack.c.l.b16 %v5259
        %v5442 = vunpack.c.h.b16 %v5259
        %v5443 = vunpack.c.l.b16 %v5260
        %v5444 = vunpack.c.h.b16 %v5260
        %v5445 = vunpack.c.l.b16 %v5261
        %v5446 = vunpack.c.h.b16 %v5261
        %v5447 = vunpack.c.l.b16 %v5262
        %v5448 = vunpack.c.h.b16 %v5262
        %v5449 = vunpack.c.l.b16 %v5263
        %v5450 = vunpack.c.h.b16 %v5263
        %v5451 = vunpack.c.l.b16 %v5264
        %v5452 = vunpack.c.h.b16 %v5264
        %v5453 = vunpack.c.l.b16 %v5265
        %v5454 = vunpack.c.h.b16 %v5265
        %v5455 = vunpack.c.l.b16 %v5266
        %v5456 = vunpack.c.h.b16 %v5266
        %v5457 = vunpack.c.l.b16 %v5267
        %v5458 = vunpack.c.h.b16 %v5267
        %v5459 = vunpack.c.l.b16 %v5268
        %v5460 = vunpack.c.h.b16 %v5268
        %v5461 = vunpack.c.l.b16 %v5269
        %v5462 = vunpack.c.h.b16 %v5269
        %v5463 = vunpack.c.l.b16 %v5270
        %v5464 = vunpack.c.h.b16 %v5270
        %v5465 = vunpack.c.l.b16 %v5271
        %v5466 = vunpack.c.h.b16 %v5271
        %v5467 = vunpack.c.l.b16 %v5272
        %v5468 = vunpack.c.h.b16 %v5272
        %v5469 = vunpack.c.l.b16 %v5273
        %v5470 = vunpack.c.h.b16 %v5273
        %v5471 = vunpack.c.l.b16 %v5274
        %v5472 = vunpack.c.h.b16 %v5274
        %v5473 = vunpack.c.l.b16 %v5275
        %v5474 = vunpack.c.h.b16 %v5275
        %v5475 = vunpack.c.l.b16 %v5276
        %v5476 = vunpack.c.h.b16 %v5276
        %v5477 = vunpack.c.l.b16 %v5277
        %v5478 = vunpack.c.h.b16 %v5277
        %v5479 = vunpack.c.l.b16 %v5278
        %v5480 = vunpack.c.h.b16 %v5278
        %v5481 = vunpack.c.l.b16 %v5279
        %v5482 = vunpack.c.h.b16 %v5279
        %v5483 = vunpack.c.l.b16 %v5280
        %v5484 = vunpack.c.h.b16 %v5280
        %v5485 = vpack.c.b16 %v5359, %v5357
        %v5486 = vpack.c.b16 %v5360, %v5358
        %v5487 = vpack.c.b16 %v5363, %v5361
        %v5488 = vpack.c.b16 %v5364, %v5362
        %v5489 = vpack.c.b16 %v5367, %v5365
        %v5490 = vpack.c.b16 %v5368, %v5366
        %v5491 = vpack.c.b16 %v5371, %v5369
        %v5492 = vpack.c.b16 %v5372, %v5370
        %v5493 = vpack.c.b16 %v5375, %v5373
        %v5494 = vpack.c.b16 %v5376, %v5374
        %v5495 = vpack.c.b16 %v5379, %v5377
        %v5496 = vpack.c.b16 %v5380, %v5378
        %v5497 = vpack.c.b16 %v5383, %v5381
        %v5498 = vpack.c.b16 %v5384, %v5382
        %v5499 = vpack.c.b16 %v5387, %v5385
        %v5500 = vpack.c.b16 %v5388, %v5386
        %v5501 = vpack.c.b16 %v5391, %v5389
        %v5502 = vpack.c.b16 %v5392, %v5390
        %v5503 = vpack.c.b16 %v5395, %v5393
        %v5504 = vpack.c.b16 %v5396, %v5394
        %v5505 = vpack.c.b16 %v5399, %v5397
        %v5506 = vpack.c.b16 %v5400, %v5398
        %v5507 = vpack.c.b16 %v5403, %v5401
        %v5508 = vpack.c.b16 %v5404, %v5402
        %v5509 = vpack.c.b16 %v5407, %v5405
        %v5510 = vpack.c.b16 %v5408, %v5406
        %v5511 = vpack.c.b16 %v5411, %v5409
        %v5512 = vpack.c.b16 %v5412, %v5410
        %v5513 = vpack.c.b16 %v5415, %v5413
        %v5514 = vpack.c.b16 %v5416, %v5414
        %v5515 = vpack.c.b16 %v5419, %v5417
        %v5516 = vpack.c.b16 %v5420, %v5418
        %v5517 = vpack.c.b16 %v5423, %v5421
        %v5518 = vpack.c.b16 %v5424, %v5422
        %v5519 = vpack.c.b16 %v5427, %v5425
        %v5520 = vpack.c.b16 %v5428, %v5426
        %v5521 = vpack.c.b16 %v5431, %v5429
        %v5522 = vpack.c.b16 %v5432, %v5430
        %v5523 = vpack.c.b16 %v5435, %v5433
        %v5524 = vpack.c.b16 %v5436, %v5434
        %v5525 = vpack.c.b16 %v5439, %v5437
        %v5526 = vpack.c.b16 %v5440, %v5438
        %v5527 = vpack.c.b16 %v5443, %v5441
        %v5528 = vpack.c.b16 %v5444, %v5442
        %v5529 = vpack.c.b16 %v5447, %v5445
        %v5530 = vpack.c.b16 %v5448, %v5446
        %v5531 = vpack.c.b16 %v5451, %v5449
        %v5532 = vpack.c.b16 %v5452, %v5450
        %v5533 = vpack.c.b16 %v5455, %v5453
        %v5534 = vpack.c.b16 %v5456, %v5454
        %v5535 = vpack.c.b16 %v5459, %v5457
        %v5536 = vpack.c.b16 %v5460, %v5458
        %v5537 = vpack.c.b16 %v5463, %v5461
        %v5538 = vpack.c.b16 %v5464, %v5462
        %v5539 = vpack.c.b16 %v5467, %v5465
        %v5540 = vpack.c.b16 %v5468, %v5466
        %v5541 = vpack.c.b16 %v5471, %v5469
        %v5542 = vpack.c.b16 %v5472, %v5470
        %v5543 = vpack.c.b16 %v5475, %v5473
        %v5544 = vpack.c.b16 %v5476, %v5474
        %v5545 = vpack.c.b16 %v5479, %v5477
        %v5546 = vpack.c.b16 %v5480, %v5478
        %v5547 = vpack.c.b16 %v5483, %v5481
        %v5548 = vpack.c.b16 %v5484, %v5482
        %5613 = vmatprep.subr.bf16.mxu0 %v5500
        %5614 = vmatpush1.bf16.msra.mxu0 %v5499
        %5615 = vmatprep.subr.bf16.mxu0 %v5498
        %5616 = vmatpush1.bf16.msra.mxu0 %v5497
        %5617 = vmatprep.subr.bf16.mxu0 %v5496
        %5618 = vmatpush1.bf16.msra.mxu0 %v5495
        %5619 = vmatprep.subr.bf16.mxu0 %v5494
        %5620 = vmatpush1.bf16.msra.mxu0 %v5493
        %5621 = vmatprep.subr.bf16.mxu0 %v5492
        %5622 = vmatpush1.bf16.msra.mxu0 %v5491
        %5623 = vmatprep.subr.bf16.mxu0 %v5490
        %5624 = vmatpush1.bf16.msra.mxu0 %v5489
        %5625 = vmatprep.subr.bf16.mxu0 %v5488
        %5626 = vmatpush1.bf16.msra.mxu0 %v5487
        %5627 = vmatprep.subr.bf16.mxu0 %v5486
        %5628 = vmatpush1.bf16.msra.mxu0 %v5485
        %5629 = vmatprep.subr.bf16.mxu0 %v5516
        %5630 = vmatpush2.bf16.msra.mxu0 %v5515
        %5631 = vmatprep.subr.bf16.mxu0 %v5514
        %5632 = vmatpush2.bf16.msra.mxu0 %v5513
        %5633 = vmatprep.subr.bf16.mxu0 %v5512
        %5634 = vmatpush2.bf16.msra.mxu0 %v5511
        %5635 = vmatprep.subr.bf16.mxu0 %v5510
        %5636 = vmatpush2.bf16.msra.mxu0 %v5509
        %5637 = vmatprep.subr.bf16.mxu0 %v5508
        %5638 = vmatpush2.bf16.msra.mxu0 %v5507
        %5639 = vmatprep.subr.bf16.mxu0 %v5506
        %5640 = vmatpush2.bf16.msra.mxu0 %v5505
        %5641 = vmatprep.subr.bf16.mxu0 %v5504
        %5642 = vmatpush2.bf16.msra.mxu0 %v5503
        %5643 = vmatprep.subr.bf16.mxu0 %v5502
        %5644 = vmatpush2.bf16.msra.mxu0 %v5501
        %5645 = vmatprep.mubr.bf16.mxu0 %v4308
        %5646 = vmatmul.mubr.bf16.gmra.mxu0 %v4307
        %v5647 = vpop.f32.mrf.mxu0
        %v5648 = vadd.f32 %v5286, %v5647
        %v5649 = vpop.f32.mrf.mxu0
        %v5650 = vadd.f32 %v5290, %v5649
        %v5651 = vpop.f32.mrf.mxu0
        %v5652 = vadd.f32 %v5286, %v5651
        %v5653 = vpop.f32.mrf.mxu0
        %v5654 = vadd.f32 %v5290, %v5653
        %5655 = vmatprep.mubr.bf16.mxu0 %v4312
        %5656 = vmatmul.mubr.bf16.gmra.mxu0 %v4311
        %v5657 = vpop.f32.mrf.mxu0
        %v5658 = vadd.f32 %v5286, %v5657
        %v5659 = vpop.f32.mrf.mxu0
        %v5660 = vadd.f32 %v5290, %v5659
        %v5661 = vpop.f32.mrf.mxu0
        %v5662 = vadd.f32 %v5286, %v5661
        %v5663 = vpop.f32.mrf.mxu0
        %v5664 = vadd.f32 %v5290, %v5663
        %5665 = vmatprep.mubr.bf16.mxu0 %v4316
        %5666 = vmatmul.mubr.bf16.gmra.mxu0 %v4315
        %v5667 = vpop.f32.mrf.mxu0
        %v5668 = vadd.f32 %v5286, %v5667
        %v5669 = vpop.f32.mrf.mxu0
        %v5670 = vadd.f32 %v5290, %v5669
        %v5671 = vpop.f32.mrf.mxu0
        %v5672 = vadd.f32 %v5286, %v5671
        %v5673 = vpop.f32.mrf.mxu0
        %v5674 = vadd.f32 %v5290, %v5673
        %5675 = vmatprep.mubr.bf16.mxu0 %v4320
        %5676 = vmatmul.mubr.bf16.gmra.mxu0 %v4319
        %v5677 = vpop.f32.mrf.mxu0
        %v5678 = vadd.f32 %v5286, %v5677
        %v5679 = vpop.f32.mrf.mxu0
        %v5680 = vadd.f32 %v5290, %v5679
        %v5681 = vpop.f32.mrf.mxu0
        %v5682 = vadd.f32 %v5286, %v5681
        %v5683 = vpop.f32.mrf.mxu0
        %v5684 = vadd.f32 %v5290, %v5683
        %5685 = vmatprep.mubr.bf16.mxu0 %v4324
        %5686 = vmatmul.mubr.bf16.gmra.mxu0 %v4323
        %v5687 = vpop.f32.mrf.mxu0
        %v5688 = vadd.f32 %v5286, %v5687
        %v5689 = vpop.f32.mrf.mxu0
        %v5690 = vadd.f32 %v5290, %v5689
        %v5691 = vpop.f32.mrf.mxu0
        %v5692 = vadd.f32 %v5286, %v5691
        %v5693 = vpop.f32.mrf.mxu0
        %v5694 = vadd.f32 %v5290, %v5693
        %5695 = vmatprep.mubr.bf16.mxu0 %v4328
        %5696 = vmatmul.mubr.bf16.gmra.mxu0 %v4327
        %v5697 = vpop.f32.mrf.mxu0
        %v5698 = vadd.f32 %v5286, %v5697
        %v5699 = vpop.f32.mrf.mxu0
        %v5700 = vadd.f32 %v5290, %v5699
        %v5701 = vpop.f32.mrf.mxu0
        %v5702 = vadd.f32 %v5286, %v5701
        %v5703 = vpop.f32.mrf.mxu0
        %v5704 = vadd.f32 %v5290, %v5703
        %5705 = vmatprep.mubr.bf16.mxu0 %v4332
        %5706 = vmatmul.mubr.bf16.gmra.mxu0 %v4331
        %v5707 = vpop.f32.mrf.mxu0
        %v5708 = vadd.f32 %v5286, %v5707
        %v5709 = vpop.f32.mrf.mxu0
        %v5710 = vadd.f32 %v5290, %v5709
        %v5711 = vpop.f32.mrf.mxu0
        %v5712 = vadd.f32 %v5286, %v5711
        %v5713 = vpop.f32.mrf.mxu0
        %v5714 = vadd.f32 %v5290, %v5713
        %5715 = vmatprep.mubr.bf16.mxu0 %v4336
        %5716 = vmatmul.mubr.bf16.gmra.mxu0 %v4335
        %v5717 = vpop.f32.mrf.mxu0
        %v5718 = vadd.f32 %v5286, %v5717
        %v5719 = vpop.f32.mrf.mxu0
        %v5720 = vadd.f32 %v5290, %v5719
        %v5721 = vpop.f32.mrf.mxu0
        %v5722 = vadd.f32 %v5286, %v5721
        %v5723 = vpop.f32.mrf.mxu0
        %v5724 = vadd.f32 %v5290, %v5723
        %5725 = vmatprep.mubr.bf16.mxu0 %v4340
        %5726 = vmatmul.mubr.bf16.gmra.mxu0 %v4339
        %v5727 = vpop.f32.mrf.mxu0
        %v5728 = vadd.f32 %v5286, %v5727
        %v5729 = vpop.f32.mrf.mxu0
        %v5730 = vadd.f32 %v5290, %v5729
        %v5731 = vpop.f32.mrf.mxu0
        %v5732 = vadd.f32 %v5286, %v5731
        %v5733 = vpop.f32.mrf.mxu0
        %v5734 = vadd.f32 %v5290, %v5733
        %5735 = vmatprep.mubr.bf16.mxu0 %v4344
        %5736 = vmatmul.mubr.bf16.gmra.mxu0 %v4343
        %v5737 = vpop.f32.mrf.mxu0
        %v5738 = vadd.f32 %v5286, %v5737
        %v5739 = vpop.f32.mrf.mxu0
        %v5740 = vadd.f32 %v5290, %v5739
        %v5741 = vpop.f32.mrf.mxu0
        %v5742 = vadd.f32 %v5286, %v5741
        %v5743 = vpop.f32.mrf.mxu0
        %v5744 = vadd.f32 %v5290, %v5743
        %5745 = vmatprep.mubr.bf16.mxu0 %v4348
        %5746 = vmatmul.mubr.bf16.gmra.mxu0 %v4347
        %v5747 = vpop.f32.mrf.mxu0
        %v5748 = vadd.f32 %v5286, %v5747
        %v5749 = vpop.f32.mrf.mxu0
        %v5750 = vadd.f32 %v5290, %v5749
        %v5751 = vpop.f32.mrf.mxu0
        %v5752 = vadd.f32 %v5286, %v5751
        %v5753 = vpop.f32.mrf.mxu0
        %v5754 = vadd.f32 %v5290, %v5753
        %5755 = vmatprep.mubr.bf16.mxu0 %v4352
        %5756 = vmatmul.mubr.bf16.gmra.mxu0 %v4351
        %v5757 = vpop.f32.mrf.mxu0
        %v5758 = vadd.f32 %v5286, %v5757
        %v5759 = vpop.f32.mrf.mxu0
        %v5760 = vadd.f32 %v5290, %v5759
        %v5761 = vpop.f32.mrf.mxu0
        %v5762 = vadd.f32 %v5286, %v5761
        %v5763 = vpop.f32.mrf.mxu0
        %v5764 = vadd.f32 %v5290, %v5763
        %5765 = vmatprep.mubr.bf16.mxu0 %v4356
        %5766 = vmatmul.mubr.bf16.gmra.mxu0 %v4355
        %v5767 = vpop.f32.mrf.mxu0
        %v5768 = vadd.f32 %v5286, %v5767
        %v5769 = vpop.f32.mrf.mxu0
        %v5770 = vadd.f32 %v5290, %v5769
        %v5771 = vpop.f32.mrf.mxu0
        %v5772 = vadd.f32 %v5286, %v5771
        %v5773 = vpop.f32.mrf.mxu0
        %v5774 = vadd.f32 %v5290, %v5773
        %5775 = vmatprep.mubr.bf16.mxu0 %v4360
        %5776 = vmatmul.mubr.bf16.gmra.mxu0 %v4359
        %v5777 = vpop.f32.mrf.mxu0
        %v5778 = vadd.f32 %v5286, %v5777
        %v5779 = vpop.f32.mrf.mxu0
        %v5780 = vadd.f32 %v5290, %v5779
        %v5781 = vpop.f32.mrf.mxu0
        %v5782 = vadd.f32 %v5286, %v5781
        %v5783 = vpop.f32.mrf.mxu0
        %v5784 = vadd.f32 %v5290, %v5783
        %5785 = vmatprep.mubr.bf16.mxu0 %v4364
        %5786 = vmatmul.mubr.bf16.gmra.mxu0 %v4363
        %v5787 = vpop.f32.mrf.mxu0
        %v5788 = vadd.f32 %v5286, %v5787
        %v5789 = vpop.f32.mrf.mxu0
        %v5790 = vadd.f32 %v5290, %v5789
        %v5791 = vpop.f32.mrf.mxu0
        %v5792 = vadd.f32 %v5286, %v5791
        %v5793 = vpop.f32.mrf.mxu0
        %v5794 = vadd.f32 %v5290, %v5793
        %5795 = vmatprep.mubr.bf16.mxu0 %v4368
        %5796 = vmatmul.mubr.bf16.gmra.mxu0 %v4367
        %v5797 = vpop.f32.mrf.mxu0
        %v5798 = vadd.f32 %v5286, %v5797
        %v5799 = vpop.f32.mrf.mxu0
        %v5800 = vadd.f32 %v5290, %v5799
        %v5801 = vpop.f32.mrf.mxu0
        %v5802 = vadd.f32 %v5286, %v5801
        %v5803 = vpop.f32.mrf.mxu0
        %v5804 = vadd.f32 %v5290, %v5803
        %5805 = vdwg.mxu0
        %5806 = vmatprep.subr.bf16.mxu0 %v5532
        %5807 = vmatpush1.bf16.msra.mxu0 %v5531
        %5808 = vmatprep.subr.bf16.mxu0 %v5530
        %5809 = vmatpush1.bf16.msra.mxu0 %v5529
        %5810 = vmatprep.subr.bf16.mxu0 %v5528
        %5811 = vmatpush1.bf16.msra.mxu0 %v5527
        %5812 = vmatprep.subr.bf16.mxu0 %v5526
        %5813 = vmatpush1.bf16.msra.mxu0 %v5525
        %5814 = vmatprep.subr.bf16.mxu0 %v5524
        %5815 = vmatpush1.bf16.msra.mxu0 %v5523
        %5816 = vmatprep.subr.bf16.mxu0 %v5522
        %5817 = vmatpush1.bf16.msra.mxu0 %v5521
        %5818 = vmatprep.subr.bf16.mxu0 %v5520
        %5819 = vmatpush1.bf16.msra.mxu0 %v5519
        %5820 = vmatprep.subr.bf16.mxu0 %v5518
        %5821 = vmatpush1.bf16.msra.mxu0 %v5517
        %5822 = vmatprep.subr.bf16.mxu0 %v5548
        %5823 = vmatpush2.bf16.msra.mxu0 %v5547
        %5824 = vmatprep.subr.bf16.mxu0 %v5546
        %5825 = vmatpush2.bf16.msra.mxu0 %v5545
        %5826 = vmatprep.subr.bf16.mxu0 %v5544
        %5827 = vmatpush2.bf16.msra.mxu0 %v5543
        %5828 = vmatprep.subr.bf16.mxu0 %v5542
        %5829 = vmatpush2.bf16.msra.mxu0 %v5541
        %5830 = vmatprep.subr.bf16.mxu0 %v5540
        %5831 = vmatpush2.bf16.msra.mxu0 %v5539
        %5832 = vmatprep.subr.bf16.mxu0 %v5538
        %5833 = vmatpush2.bf16.msra.mxu0 %v5537
        %5834 = vmatprep.subr.bf16.mxu0 %v5536
        %5835 = vmatpush2.bf16.msra.mxu0 %v5535
        %5836 = vmatprep.subr.bf16.mxu0 %v5534
        %5837 = vmatpush2.bf16.msra.mxu0 %v5533
        %5838 = vmatprep.mubr.bf16.mxu0 %v4310
        %5839 = vmatmul.mubr.bf16.gmra.mxu0 %v4309
        %v5840 = vpop.f32.mrf.mxu0
        %v5841 = vadd.f32 %v5648, %v5840
        %v5842 = vpop.f32.mrf.mxu0
        %v5843 = vadd.f32 %v5650, %v5842
        %v5844 = vpop.f32.mrf.mxu0
        %v5845 = vadd.f32 %v5652, %v5844
        %v5846 = vpop.f32.mrf.mxu0
        %v5847 = vadd.f32 %v5654, %v5846
        %5848 = vmatprep.mubr.bf16.mxu0 %v4314
        %5849 = vmatmul.mubr.bf16.gmra.mxu0 %v4313
        %v5850 = vpop.f32.mrf.mxu0
        %v5851 = vadd.f32 %v5658, %v5850
        %v5852 = vpop.f32.mrf.mxu0
        %v5853 = vadd.f32 %v5660, %v5852
        %v5854 = vpop.f32.mrf.mxu0
        %v5855 = vadd.f32 %v5662, %v5854
        %v5856 = vpop.f32.mrf.mxu0
        %v5857 = vadd.f32 %v5664, %v5856
        %5858 = vmatprep.mubr.bf16.mxu0 %v4318
        %5859 = vmatmul.mubr.bf16.gmra.mxu0 %v4317
        %v5860 = vpop.f32.mrf.mxu0
        %v5861 = vadd.f32 %v5668, %v5860
        %v5862 = vpop.f32.mrf.mxu0
        %v5863 = vadd.f32 %v5670, %v5862
        %v5864 = vpop.f32.mrf.mxu0
        %v5865 = vadd.f32 %v5672, %v5864
        %v5866 = vpop.f32.mrf.mxu0
        %v5867 = vadd.f32 %v5674, %v5866
        %5868 = vmatprep.mubr.bf16.mxu0 %v4322
        %5869 = vmatmul.mubr.bf16.gmra.mxu0 %v4321
        %v5870 = vpop.f32.mrf.mxu0
        %v5871 = vadd.f32 %v5678, %v5870
        %v5872 = vpop.f32.mrf.mxu0
        %v5873 = vadd.f32 %v5680, %v5872
        %v5874 = vpop.f32.mrf.mxu0
        %v5875 = vadd.f32 %v5682, %v5874
        %v5876 = vpop.f32.mrf.mxu0
        %v5877 = vadd.f32 %v5684, %v5876
        %5878 = vmatprep.mubr.bf16.mxu0 %v4326
        %5879 = vmatmul.mubr.bf16.gmra.mxu0 %v4325
        %v5880 = vpop.f32.mrf.mxu0
        %v5881 = vadd.f32 %v5688, %v5880
        %v5882 = vpop.f32.mrf.mxu0
        %v5883 = vadd.f32 %v5690, %v5882
        %v5884 = vpop.f32.mrf.mxu0
        %v5885 = vadd.f32 %v5692, %v5884
        %v5886 = vpop.f32.mrf.mxu0
        %v5887 = vadd.f32 %v5694, %v5886
        %5888 = vmatprep.mubr.bf16.mxu0 %v4330
        %5889 = vmatmul.mubr.bf16.gmra.mxu0 %v4329
        %v5890 = vpop.f32.mrf.mxu0
        %v5891 = vadd.f32 %v5698, %v5890
        %v5892 = vpop.f32.mrf.mxu0
        %v5893 = vadd.f32 %v5700, %v5892
        %v5894 = vpop.f32.mrf.mxu0
        %v5895 = vadd.f32 %v5702, %v5894
        %v5896 = vpop.f32.mrf.mxu0
        %v5897 = vadd.f32 %v5704, %v5896
        %5898 = vmatprep.mubr.bf16.mxu0 %v4334
        %5899 = vmatmul.mubr.bf16.gmra.mxu0 %v4333
        %v5900 = vpop.f32.mrf.mxu0
        %v5901 = vadd.f32 %v5708, %v5900
        %v5902 = vpop.f32.mrf.mxu0
        %v5903 = vadd.f32 %v5710, %v5902
        %v5904 = vpop.f32.mrf.mxu0
        %v5905 = vadd.f32 %v5712, %v5904
        %v5906 = vpop.f32.mrf.mxu0
        %v5907 = vadd.f32 %v5714, %v5906
        %5908 = vmatprep.mubr.bf16.mxu0 %v4338
        %5909 = vmatmul.mubr.bf16.gmra.mxu0 %v4337
        %v5910 = vpop.f32.mrf.mxu0
        %v5911 = vadd.f32 %v5718, %v5910
        %v5912 = vpop.f32.mrf.mxu0
        %v5913 = vadd.f32 %v5720, %v5912
        %v5914 = vpop.f32.mrf.mxu0
        %v5915 = vadd.f32 %v5722, %v5914
        %v5916 = vpop.f32.mrf.mxu0
        %v5917 = vadd.f32 %v5724, %v5916
        %5918 = vmatprep.mubr.bf16.mxu0 %v4342
        %5919 = vmatmul.mubr.bf16.gmra.mxu0 %v4341
        %v5920 = vpop.f32.mrf.mxu0
        %v5921 = vadd.f32 %v5728, %v5920
        %v5922 = vpop.f32.mrf.mxu0
        %v5923 = vadd.f32 %v5730, %v5922
        %v5924 = vpop.f32.mrf.mxu0
        %v5925 = vadd.f32 %v5732, %v5924
        %v5926 = vpop.f32.mrf.mxu0
        %v5927 = vadd.f32 %v5734, %v5926
        %5928 = vmatprep.mubr.bf16.mxu0 %v4346
        %5929 = vmatmul.mubr.bf16.gmra.mxu0 %v4345
        %v5930 = vpop.f32.mrf.mxu0
        %v5931 = vadd.f32 %v5738, %v5930
        %v5932 = vpop.f32.mrf.mxu0
        %v5933 = vadd.f32 %v5740, %v5932
        %v5934 = vpop.f32.mrf.mxu0
        %v5935 = vadd.f32 %v5742, %v5934
        %v5936 = vpop.f32.mrf.mxu0
        %v5937 = vadd.f32 %v5744, %v5936
        %5938 = vmatprep.mubr.bf16.mxu0 %v4350
        %5939 = vmatmul.mubr.bf16.gmra.mxu0 %v4349
        %v5940 = vpop.f32.mrf.mxu0
        %v5941 = vadd.f32 %v5748, %v5940
        %v5942 = vpop.f32.mrf.mxu0
        %v5943 = vadd.f32 %v5750, %v5942
        %v5944 = vpop.f32.mrf.mxu0
        %v5945 = vadd.f32 %v5752, %v5944
        %v5946 = vpop.f32.mrf.mxu0
        %v5947 = vadd.f32 %v5754, %v5946
        %5948 = vmatprep.mubr.bf16.mxu0 %v4354
        %5949 = vmatmul.mubr.bf16.gmra.mxu0 %v4353
        %v5950 = vpop.f32.mrf.mxu0
        %v5951 = vadd.f32 %v5758, %v5950
        %v5952 = vpop.f32.mrf.mxu0
        %v5953 = vadd.f32 %v5760, %v5952
        %v5954 = vpop.f32.mrf.mxu0
        %v5955 = vadd.f32 %v5762, %v5954
        %v5956 = vpop.f32.mrf.mxu0
        %v5957 = vadd.f32 %v5764, %v5956
        %5958 = vmatprep.mubr.bf16.mxu0 %v4358
        %5959 = vmatmul.mubr.bf16.gmra.mxu0 %v4357
        %v5960 = vpop.f32.mrf.mxu0
        %v5961 = vadd.f32 %v5768, %v5960
        %v5962 = vpop.f32.mrf.mxu0
        %v5963 = vadd.f32 %v5770, %v5962
        %v5964 = vpop.f32.mrf.mxu0
        %v5965 = vadd.f32 %v5772, %v5964
        %v5966 = vpop.f32.mrf.mxu0
        %v5967 = vadd.f32 %v5774, %v5966
        %5968 = vmatprep.mubr.bf16.mxu0 %v4362
        %5969 = vmatmul.mubr.bf16.gmra.mxu0 %v4361
        %v5970 = vpop.f32.mrf.mxu0
        %v5971 = vadd.f32 %v5778, %v5970
        %v5972 = vpop.f32.mrf.mxu0
        %v5973 = vadd.f32 %v5780, %v5972
        %v5974 = vpop.f32.mrf.mxu0
        %v5975 = vadd.f32 %v5782, %v5974
        %v5976 = vpop.f32.mrf.mxu0
        %v5977 = vadd.f32 %v5784, %v5976
        %5978 = vmatprep.mubr.bf16.mxu0 %v4366
        %5979 = vmatmul.mubr.bf16.gmra.mxu0 %v4365
        %v5980 = vpop.f32.mrf.mxu0
        %v5981 = vadd.f32 %v5788, %v5980
        %v5982 = vpop.f32.mrf.mxu0
        %v5983 = vadd.f32 %v5790, %v5982
        %v5984 = vpop.f32.mrf.mxu0
        %v5985 = vadd.f32 %v5792, %v5984
        %v5986 = vpop.f32.mrf.mxu0
        %v5987 = vadd.f32 %v5794, %v5986
        %5988 = vmatprep.mubr.bf16.mxu0 %v4370
        %5989 = vmatmul.mubr.bf16.gmra.mxu0 %v4369
        %v5990 = vpop.f32.mrf.mxu0
        %v5991 = vadd.f32 %v5798, %v5990
        %v5992 = vpop.f32.mrf.mxu0
        %v5993 = vadd.f32 %v5800, %v5992
        %v5994 = vpop.f32.mrf.mxu0
        %v5995 = vadd.f32 %v5802, %v5994
        %v5996 = vpop.f32.mrf.mxu0
        %v5997 = vadd.f32 %v5804, %v5996
        %5998 = vdwg.mxu0
        %v5999 = vxor.u32 %v5841, 2147483648
        %v6000 = vxor.u32 %v5843, 2147483648
        %v6001 = vxor.u32 %v5845, 2147483648
        %v6002 = vxor.u32 %v5847, 2147483648
        %v6003 = vxor.u32 %v5851, 2147483648
        %v6004 = vxor.u32 %v5853, 2147483648
        %v6005 = vxor.u32 %v5855, 2147483648
        %v6006 = vxor.u32 %v5857, 2147483648
        %v6007 = vxor.u32 %v5861, 2147483648
        %v6008 = vxor.u32 %v5863, 2147483648
        %v6009 = vxor.u32 %v5865, 2147483648
        %v6010 = vxor.u32 %v5867, 2147483648
        %v6011 = vxor.u32 %v5871, 2147483648
        %v6012 = vxor.u32 %v5873, 2147483648
        %v6013 = vxor.u32 %v5875, 2147483648
        %v6014 = vxor.u32 %v5877, 2147483648
        %v6015 = vxor.u32 %v5881, 2147483648
        %v6016 = vxor.u32 %v5883, 2147483648
        %v6017 = vxor.u32 %v5885, 2147483648
        %v6018 = vxor.u32 %v5887, 2147483648
        %v6019 = vxor.u32 %v5891, 2147483648
        %v6020 = vxor.u32 %v5893, 2147483648
        %v6021 = vxor.u32 %v5895, 2147483648
        %v6022 = vxor.u32 %v5897, 2147483648
        %v6023 = vxor.u32 %v5901, 2147483648
        %v6024 = vxor.u32 %v5903, 2147483648
        %v6025 = vxor.u32 %v5905, 2147483648
        %v6026 = vxor.u32 %v5907, 2147483648
        %v6027 = vxor.u32 %v5911, 2147483648
        %v6028 = vxor.u32 %v5913, 2147483648
        %v6029 = vxor.u32 %v5915, 2147483648
        %v6030 = vxor.u32 %v5917, 2147483648
        %v6031 = vxor.u32 %v5921, 2147483648
        %v6032 = vxor.u32 %v5923, 2147483648
        %v6033 = vxor.u32 %v5925, 2147483648
        %v6034 = vxor.u32 %v5927, 2147483648
        %v6035 = vxor.u32 %v5931, 2147483648
        %v6036 = vxor.u32 %v5933, 2147483648
        %v6037 = vxor.u32 %v5935, 2147483648
        %v6038 = vxor.u32 %v5937, 2147483648
        %v6039 = vxor.u32 %v5941, 2147483648
        %v6040 = vxor.u32 %v5943, 2147483648
        %v6041 = vxor.u32 %v5945, 2147483648
        %v6042 = vxor.u32 %v5947, 2147483648
        %v6043 = vxor.u32 %v5951, 2147483648
        %v6044 = vxor.u32 %v5953, 2147483648
        %v6045 = vxor.u32 %v5955, 2147483648
        %v6046 = vxor.u32 %v5957, 2147483648
        %v6047 = vxor.u32 %v5961, 2147483648
        %v6048 = vxor.u32 %v5963, 2147483648
        %v6049 = vxor.u32 %v5965, 2147483648
        %v6050 = vxor.u32 %v5967, 2147483648
        %v6051 = vxor.u32 %v5971, 2147483648
        %v6052 = vxor.u32 %v5973, 2147483648
        %v6053 = vxor.u32 %v5975, 2147483648
        %v6054 = vxor.u32 %v5977, 2147483648
        %v6055 = vxor.u32 %v5981, 2147483648
        %v6056 = vxor.u32 %v5983, 2147483648
        %v6057 = vxor.u32 %v5985, 2147483648
        %v6058 = vxor.u32 %v5987, 2147483648
        %v6059 = vxor.u32 %v5991, 2147483648
        %v6060 = vxor.u32 %v5993, 2147483648
        %v6061 = vxor.u32 %v5995, 2147483648
        %v6062 = vxor.u32 %v5997, 2147483648
        %v6063 = vmul.f32 %v5999, 1.442695
        %v6064 = vpow.pop %v6063
        %v6065 = vmul.f32 %v6000, 1.442695
        %v6066 = vpow.pop %v6065
        %v6067 = vmul.f32 %v6001, 1.442695
        %v6068 = vpow.pop %v6067
        %v6069 = vmul.f32 %v6002, 1.442695
        %v6070 = vpow.pop %v6069
        %v6071 = vmul.f32 %v6003, 1.442695
        %v6072 = vpow.pop %v6071
        %v6073 = vmul.f32 %v6004, 1.442695
        %v6074 = vpow.pop %v6073
        %v6075 = vmul.f32 %v6005, 1.442695
        %v6076 = vpow.pop %v6075
        %v6077 = vmul.f32 %v6006, 1.442695
        %v6078 = vpow.pop %v6077
        %v6079 = vmul.f32 %v6007, 1.442695
        %v6080 = vpow.pop %v6079
        %v6081 = vmul.f32 %v6008, 1.442695
        %v6082 = vpow.pop %v6081
        %v6083 = vmul.f32 %v6009, 1.442695
        %v6084 = vpow.pop %v6083
        %v6085 = vmul.f32 %v6010, 1.442695
        %v6086 = vpow.pop %v6085
        %v6087 = vmul.f32 %v6011, 1.442695
        %v6088 = vpow.pop %v6087
        %v6089 = vmul.f32 %v6012, 1.442695
        %v6090 = vpow.pop %v6089
        %v6091 = vmul.f32 %v6013, 1.442695
        %v6092 = vpow.pop %v6091
        %v6093 = vmul.f32 %v6014, 1.442695
        %v6094 = vpow.pop %v6093
        %v6095 = vmul.f32 %v6015, 1.442695
        %v6096 = vpow.pop %v6095
        %v6097 = vmul.f32 %v6016, 1.442695
        %v6098 = vpow.pop %v6097
        %v6099 = vmul.f32 %v6017, 1.442695
        %v6100 = vpow.pop %v6099
        %v6101 = vmul.f32 %v6018, 1.442695
        %v6102 = vpow.pop %v6101
        %v6103 = vmul.f32 %v6019, 1.442695
        %v6104 = vpow.pop %v6103
        %v6105 = vmul.f32 %v6020, 1.442695
        %v6106 = vpow.pop %v6105
        %v6107 = vmul.f32 %v6021, 1.442695
        %v6108 = vpow.pop %v6107
        %v6109 = vmul.f32 %v6022, 1.442695
        %v6110 = vpow.pop %v6109
        %v6111 = vmul.f32 %v6023, 1.442695
        %v6112 = vpow.pop %v6111
        %v6113 = vmul.f32 %v6024, 1.442695
        %v6114 = vpow.pop %v6113
        %v6115 = vmul.f32 %v6025, 1.442695
        %v6116 = vpow.pop %v6115
        %v6117 = vmul.f32 %v6026, 1.442695
        %v6118 = vpow.pop %v6117
        %v6119 = vmul.f32 %v6027, 1.442695
        %v6120 = vpow.pop %v6119
        %v6121 = vmul.f32 %v6028, 1.442695
        %v6122 = vpow.pop %v6121
        %v6123 = vmul.f32 %v6029, 1.442695
        %v6124 = vpow.pop %v6123
        %v6125 = vmul.f32 %v6030, 1.442695
        %v6126 = vpow.pop %v6125
        %v6127 = vmul.f32 %v6031, 1.442695
        %v6128 = vpow.pop %v6127
        %v6129 = vmul.f32 %v6032, 1.442695
        %v6130 = vpow.pop %v6129
        %v6131 = vmul.f32 %v6033, 1.442695
        %v6132 = vpow.pop %v6131
        %v6133 = vmul.f32 %v6034, 1.442695
        %v6134 = vpow.pop %v6133
        %v6135 = vmul.f32 %v6035, 1.442695
        %v6136 = vpow.pop %v6135
        %v6137 = vmul.f32 %v6036, 1.442695
        %v6138 = vpow.pop %v6137
        %v6139 = vmul.f32 %v6037, 1.442695
        %v6140 = vpow.pop %v6139
        %v6141 = vmul.f32 %v6038, 1.442695
        %v6142 = vpow.pop %v6141
        %v6143 = vmul.f32 %v6039, 1.442695
        %v6144 = vpow.pop %v6143
        %v6145 = vmul.f32 %v6040, 1.442695
        %v6146 = vpow.pop %v6145
        %v6147 = vmul.f32 %v6041, 1.442695
        %v6148 = vpow.pop %v6147
        %v6149 = vmul.f32 %v6042, 1.442695
        %v6150 = vpow.pop %v6149
        %v6151 = vmul.f32 %v6043, 1.442695
        %v6152 = vpow.pop %v6151
        %v6153 = vmul.f32 %v6044, 1.442695
        %v6154 = vpow.pop %v6153
        %v6155 = vmul.f32 %v6045, 1.442695
        %v6156 = vpow.pop %v6155
        %v6157 = vmul.f32 %v6046, 1.442695
        %v6158 = vpow.pop %v6157
        %v6159 = vmul.f32 %v6047, 1.442695
        %v6160 = vpow.pop %v6159
        %v6161 = vmul.f32 %v6048, 1.442695
        %v6162 = vpow.pop %v6161
        %v6163 = vmul.f32 %v6049, 1.442695
        %v6164 = vpow.pop %v6163
        %v6165 = vmul.f32 %v6050, 1.442695
        %v6166 = vpow.pop %v6165
        %v6167 = vmul.f32 %v6051, 1.442695
        %v6168 = vpow.pop %v6167
        %v6169 = vmul.f32 %v6052, 1.442695
        %v6170 = vpow.pop %v6169
        %v6171 = vmul.f32 %v6053, 1.442695
        %v6172 = vpow.pop %v6171
        %v6173 = vmul.f32 %v6054, 1.442695
        %v6174 = vpow.pop %v6173
        %v6175 = vmul.f32 %v6055, 1.442695
        %v6176 = vpow.pop %v6175
        %v6177 = vmul.f32 %v6056, 1.442695
        %v6178 = vpow.pop %v6177
        %v6179 = vmul.f32 %v6057, 1.442695
        %v6180 = vpow.pop %v6179
        %v6181 = vmul.f32 %v6058, 1.442695
        %v6182 = vpow.pop %v6181
        %v6183 = vmul.f32 %v6059, 1.442695
        %v6184 = vpow.pop %v6183
        %v6185 = vmul.f32 %v6060, 1.442695
        %v6186 = vpow.pop %v6185
        %v6187 = vmul.f32 %v6061, 1.442695
        %v6188 = vpow.pop %v6187
        %v6189 = vmul.f32 %v6062, 1.442695
        %v6190 = vpow.pop %v6189
        %v6191 = vadd.f32 %v6064, 1.0
        %v6192 = vadd.f32 %v6066, 1.0
        %v6193 = vadd.f32 %v6068, 1.0
        %v6194 = vadd.f32 %v6070, 1.0
        %v6195 = vadd.f32 %v6072, 1.0
        %v6196 = vadd.f32 %v6074, 1.0
        %v6197 = vadd.f32 %v6076, 1.0
        %v6198 = vadd.f32 %v6078, 1.0
        %v6199 = vadd.f32 %v6080, 1.0
        %v6200 = vadd.f32 %v6082, 1.0
        %v6201 = vadd.f32 %v6084, 1.0
        %v6202 = vadd.f32 %v6086, 1.0
        %v6203 = vadd.f32 %v6088, 1.0
        %v6204 = vadd.f32 %v6090, 1.0
        %v6205 = vadd.f32 %v6092, 1.0
        %v6206 = vadd.f32 %v6094, 1.0
        %v6207 = vadd.f32 %v6096, 1.0
        %v6208 = vadd.f32 %v6098, 1.0
        %v6209 = vadd.f32 %v6100, 1.0
        %v6210 = vadd.f32 %v6102, 1.0
        %v6211 = vadd.f32 %v6104, 1.0
        %v6212 = vadd.f32 %v6106, 1.0
        %v6213 = vadd.f32 %v6108, 1.0
        %v6214 = vadd.f32 %v6110, 1.0
        %v6215 = vadd.f32 %v6112, 1.0
        %v6216 = vadd.f32 %v6114, 1.0
        %v6217 = vadd.f32 %v6116, 1.0
        %v6218 = vadd.f32 %v6118, 1.0
        %v6219 = vadd.f32 %v6120, 1.0
        %v6220 = vadd.f32 %v6122, 1.0
        %v6221 = vadd.f32 %v6124, 1.0
        %v6222 = vadd.f32 %v6126, 1.0
        %v6223 = vadd.f32 %v6128, 1.0
        %v6224 = vadd.f32 %v6130, 1.0
        %v6225 = vadd.f32 %v6132, 1.0
        %v6226 = vadd.f32 %v6134, 1.0
        %v6227 = vadd.f32 %v6136, 1.0
        %v6228 = vadd.f32 %v6138, 1.0
        %v6229 = vadd.f32 %v6140, 1.0
        %v6230 = vadd.f32 %v6142, 1.0
        %v6231 = vadd.f32 %v6144, 1.0
        %v6232 = vadd.f32 %v6146, 1.0
        %v6233 = vadd.f32 %v6148, 1.0
        %v6234 = vadd.f32 %v6150, 1.0
        %v6235 = vadd.f32 %v6152, 1.0
        %v6236 = vadd.f32 %v6154, 1.0
        %v6237 = vadd.f32 %v6156, 1.0
        %v6238 = vadd.f32 %v6158, 1.0
        %v6239 = vadd.f32 %v6160, 1.0
        %v6240 = vadd.f32 %v6162, 1.0
        %v6241 = vadd.f32 %v6164, 1.0
        %v6242 = vadd.f32 %v6166, 1.0
        %v6243 = vadd.f32 %v6168, 1.0
        %v6244 = vadd.f32 %v6170, 1.0
        %v6245 = vadd.f32 %v6172, 1.0
        %v6246 = vadd.f32 %v6174, 1.0
        %v6247 = vadd.f32 %v6176, 1.0
        %v6248 = vadd.f32 %v6178, 1.0
        %v6249 = vadd.f32 %v6180, 1.0
        %v6250 = vadd.f32 %v6182, 1.0
        %v6251 = vadd.f32 %v6184, 1.0
        %v6252 = vadd.f32 %v6186, 1.0
        %v6253 = vadd.f32 %v6188, 1.0
        %v6254 = vadd.f32 %v6190, 1.0
        %v6255 = vrcp.pop %v6191
        %v6256 = vmul.f32 1.0, %v6255
        %v6257 = vrcp.pop %v6192
        %v6258 = vmul.f32 1.0, %v6257
        %v6259 = vrcp.pop %v6193
        %v6260 = vmul.f32 1.0, %v6259
        %v6261 = vrcp.pop %v6194
        %v6262 = vmul.f32 1.0, %v6261
        %v6263 = vrcp.pop %v6195
        %v6264 = vmul.f32 1.0, %v6263
        %v6265 = vrcp.pop %v6196
        %v6266 = vmul.f32 1.0, %v6265
        %v6267 = vrcp.pop %v6197
        %v6268 = vmul.f32 1.0, %v6267
        %v6269 = vrcp.pop %v6198
        %v6270 = vmul.f32 1.0, %v6269
        %v6271 = vrcp.pop %v6199
        %v6272 = vmul.f32 1.0, %v6271
        %v6273 = vrcp.pop %v6200
        %v6274 = vmul.f32 1.0, %v6273
        %v6275 = vrcp.pop %v6201
        %v6276 = vmul.f32 1.0, %v6275
        %v6277 = vrcp.pop %v6202
        %v6278 = vmul.f32 1.0, %v6277
        %v6279 = vrcp.pop %v6203
        %v6280 = vmul.f32 1.0, %v6279
        %v6281 = vrcp.pop %v6204
        %v6282 = vmul.f32 1.0, %v6281
        %v6283 = vrcp.pop %v6205
        %v6284 = vmul.f32 1.0, %v6283
        %v6285 = vrcp.pop %v6206
        %v6286 = vmul.f32 1.0, %v6285
        %v6287 = vrcp.pop %v6207
        %v6288 = vmul.f32 1.0, %v6287
        %v6289 = vrcp.pop %v6208
        %v6290 = vmul.f32 1.0, %v6289
        %v6291 = vrcp.pop %v6209
        %v6292 = vmul.f32 1.0, %v6291
        %v6293 = vrcp.pop %v6210
        %v6294 = vmul.f32 1.0, %v6293
        %v6295 = vrcp.pop %v6211
        %v6296 = vmul.f32 1.0, %v6295
        %v6297 = vrcp.pop %v6212
        %v6298 = vmul.f32 1.0, %v6297
        %v6299 = vrcp.pop %v6213
        %v6300 = vmul.f32 1.0, %v6299
        %v6301 = vrcp.pop %v6214
        %v6302 = vmul.f32 1.0, %v6301
        %v6303 = vrcp.pop %v6215
        %v6304 = vmul.f32 1.0, %v6303
        %v6305 = vrcp.pop %v6216
        %v6306 = vmul.f32 1.0, %v6305
        %v6307 = vrcp.pop %v6217
        %v6308 = vmul.f32 1.0, %v6307
        %v6309 = vrcp.pop %v6218
        %v6310 = vmul.f32 1.0, %v6309
        %v6311 = vrcp.pop %v6219
        %v6312 = vmul.f32 1.0, %v6311
        %v6313 = vrcp.pop %v6220
        %v6314 = vmul.f32 1.0, %v6313
        %v6315 = vrcp.pop %v6221
        %v6316 = vmul.f32 1.0, %v6315
        %v6317 = vrcp.pop %v6222
        %v6318 = vmul.f32 1.0, %v6317
        %v6319 = vrcp.pop %v6223
        %v6320 = vmul.f32 1.0, %v6319
        %v6321 = vrcp.pop %v6224
        %v6322 = vmul.f32 1.0, %v6321
        %v6323 = vrcp.pop %v6225
        %v6324 = vmul.f32 1.0, %v6323
        %v6325 = vrcp.pop %v6226
        %v6326 = vmul.f32 1.0, %v6325
        %v6327 = vrcp.pop %v6227
        %v6328 = vmul.f32 1.0, %v6327
        %v6329 = vrcp.pop %v6228
        %v6330 = vmul.f32 1.0, %v6329
        %v6331 = vrcp.pop %v6229
        %v6332 = vmul.f32 1.0, %v6331
        %v6333 = vrcp.pop %v6230
        %v6334 = vmul.f32 1.0, %v6333
        %v6335 = vrcp.pop %v6231
        %v6336 = vmul.f32 1.0, %v6335
        %v6337 = vrcp.pop %v6232
        %v6338 = vmul.f32 1.0, %v6337
        %v6339 = vrcp.pop %v6233
        %v6340 = vmul.f32 1.0, %v6339
        %v6341 = vrcp.pop %v6234
        %v6342 = vmul.f32 1.0, %v6341
        %v6343 = vrcp.pop %v6235
        %v6344 = vmul.f32 1.0, %v6343
        %v6345 = vrcp.pop %v6236
        %v6346 = vmul.f32 1.0, %v6345
        %v6347 = vrcp.pop %v6237
        %v6348 = vmul.f32 1.0, %v6347
        %v6349 = vrcp.pop %v6238
        %v6350 = vmul.f32 1.0, %v6349
        %v6351 = vrcp.pop %v6239
        %v6352 = vmul.f32 1.0, %v6351
        %v6353 = vrcp.pop %v6240
        %v6354 = vmul.f32 1.0, %v6353
        %v6355 = vrcp.pop %v6241
        %v6356 = vmul.f32 1.0, %v6355
        %v6357 = vrcp.pop %v6242
        %v6358 = vmul.f32 1.0, %v6357
        %v6359 = vrcp.pop %v6243
        %v6360 = vmul.f32 1.0, %v6359
        %v6361 = vrcp.pop %v6244
        %v6362 = vmul.f32 1.0, %v6361
        %v6363 = vrcp.pop %v6245
        %v6364 = vmul.f32 1.0, %v6363
        %v6365 = vrcp.pop %v6246
        %v6366 = vmul.f32 1.0, %v6365
        %v6367 = vrcp.pop %v6247
        %v6368 = vmul.f32 1.0, %v6367
        %v6369 = vrcp.pop %v6248
        %v6370 = vmul.f32 1.0, %v6369
        %v6371 = vrcp.pop %v6249
        %v6372 = vmul.f32 1.0, %v6371
        %v6373 = vrcp.pop %v6250
        %v6374 = vmul.f32 1.0, %v6373
        %v6375 = vrcp.pop %v6251
        %v6376 = vmul.f32 1.0, %v6375
        %v6377 = vrcp.pop %v6252
        %v6378 = vmul.f32 1.0, %v6377
        %v6379 = vrcp.pop %v6253
        %v6380 = vmul.f32 1.0, %v6379
        %v6381 = vrcp.pop %v6254
        %v6382 = vmul.f32 1.0, %v6381
        %v6383 = vmul.f32 %v5153, %v6256
        %v6384 = vmul.f32 %v5154, %v6258
        %v6385 = vmul.f32 %v5155, %v6260
        %v6386 = vmul.f32 %v5156, %v6262
        %v6387 = vmul.f32 %v5157, %v6264
        %v6388 = vmul.f32 %v5158, %v6266
        %v6389 = vmul.f32 %v5159, %v6268
        %v6390 = vmul.f32 %v5160, %v6270
        %v6391 = vmul.f32 %v5161, %v6272
        %v6392 = vmul.f32 %v5162, %v6274
        %v6393 = vmul.f32 %v5163, %v6276
        %v6394 = vmul.f32 %v5164, %v6278
        %v6395 = vmul.f32 %v5165, %v6280
        %v6396 = vmul.f32 %v5166, %v6282
        %v6397 = vmul.f32 %v5167, %v6284
        %v6398 = vmul.f32 %v5168, %v6286
        %v6399 = vmul.f32 %v5169, %v6288
        %v6400 = vmul.f32 %v5170, %v6290
        %v6401 = vmul.f32 %v5171, %v6292
        %v6402 = vmul.f32 %v5172, %v6294
        %v6403 = vmul.f32 %v5173, %v6296
        %v6404 = vmul.f32 %v5174, %v6298
        %v6405 = vmul.f32 %v5175, %v6300
        %v6406 = vmul.f32 %v5176, %v6302
        %v6407 = vmul.f32 %v5177, %v6304
        %v6408 = vmul.f32 %v5178, %v6306
        %v6409 = vmul.f32 %v5179, %v6308
        %v6410 = vmul.f32 %v5180, %v6310
        %v6411 = vmul.f32 %v5181, %v6312
        %v6412 = vmul.f32 %v5182, %v6314
        %v6413 = vmul.f32 %v5183, %v6316
        %v6414 = vmul.f32 %v5184, %v6318
        %v6415 = vmul.f32 %v5185, %v6320
        %v6416 = vmul.f32 %v5186, %v6322
        %v6417 = vmul.f32 %v5187, %v6324
        %v6418 = vmul.f32 %v5188, %v6326
        %v6419 = vmul.f32 %v5189, %v6328
        %v6420 = vmul.f32 %v5190, %v6330
        %v6421 = vmul.f32 %v5191, %v6332
        %v6422 = vmul.f32 %v5192, %v6334
        %v6423 = vmul.f32 %v5193, %v6336
        %v6424 = vmul.f32 %v5194, %v6338
        %v6425 = vmul.f32 %v5195, %v6340
        %v6426 = vmul.f32 %v5196, %v6342
        %v6427 = vmul.f32 %v5197, %v6344
        %v6428 = vmul.f32 %v5198, %v6346
        %v6429 = vmul.f32 %v5199, %v6348
        %v6430 = vmul.f32 %v5200, %v6350
        %v6431 = vmul.f32 %v5201, %v6352
        %v6432 = vmul.f32 %v5202, %v6354
        %v6433 = vmul.f32 %v5203, %v6356
        %v6434 = vmul.f32 %v5204, %v6358
        %v6435 = vmul.f32 %v5205, %v6360
        %v6436 = vmul.f32 %v5206, %v6362
        %v6437 = vmul.f32 %v5207, %v6364
        %v6438 = vmul.f32 %v5208, %v6366
        %v6439 = vmul.f32 %v5209, %v6368
        %v6440 = vmul.f32 %v5210, %v6370
        %v6441 = vmul.f32 %v5211, %v6372
        %v6442 = vmul.f32 %v5212, %v6374
        %v6443 = vmul.f32 %v5213, %v6376
        %v6444 = vmul.f32 %v5214, %v6378
        %v6445 = vmul.f32 %v5215, %v6380
        %v6446 = vmul.f32 %v5216, %v6382
        %v6447 = vld [vmem:[#allocation18] sm:$0x3]
        %v6449 = vlaneseq
        %v6450 = vshrl.u32 %v6449, 7
        %v6451 = vsub.s32 0, %v6450
        %v6452 = vrot.slane %v6447, %v6451
        %v6453 = vlaneseq
        %v6454 = vshrl.u32 %v6453, 7
        %v6455 = vsub.s32 1, %v6454
        %v6456 = vrot.slane %v6447, %v6455
        %v6459 = vmul.f32 %v6383, %v6452
        %v6460 = vmul.f32 %v6384, %v6456
        %v6461 = vmul.f32 %v6385, %v6452
        %v6462 = vmul.f32 %v6386, %v6456
        %v6463 = vmul.f32 %v6387, %v6452
        %v6464 = vmul.f32 %v6388, %v6456
        %v6465 = vmul.f32 %v6389, %v6452
        %v6466 = vmul.f32 %v6390, %v6456
        %v6467 = vmul.f32 %v6391, %v6452
        %v6468 = vmul.f32 %v6392, %v6456
        %v6469 = vmul.f32 %v6393, %v6452
        %v6470 = vmul.f32 %v6394, %v6456
        %v6471 = vmul.f32 %v6395, %v6452
        %v6472 = vmul.f32 %v6396, %v6456
        %v6473 = vmul.f32 %v6397, %v6452
        %v6474 = vmul.f32 %v6398, %v6456
        %v6475 = vmul.f32 %v6399, %v6452
        %v6476 = vmul.f32 %v6400, %v6456
        %v6477 = vmul.f32 %v6401, %v6452
        %v6478 = vmul.f32 %v6402, %v6456
        %v6479 = vmul.f32 %v6403, %v6452
        %v6480 = vmul.f32 %v6404, %v6456
        %v6481 = vmul.f32 %v6405, %v6452
        %v6482 = vmul.f32 %v6406, %v6456
        %v6483 = vmul.f32 %v6407, %v6452
        %v6484 = vmul.f32 %v6408, %v6456
        %v6485 = vmul.f32 %v6409, %v6452
        %v6486 = vmul.f32 %v6410, %v6456
        %v6487 = vmul.f32 %v6411, %v6452
        %v6488 = vmul.f32 %v6412, %v6456
        %v6489 = vmul.f32 %v6413, %v6452
        %v6490 = vmul.f32 %v6414, %v6456
        %v6491 = vmul.f32 %v6415, %v6452
        %v6492 = vmul.f32 %v6416, %v6456
        %v6493 = vmul.f32 %v6417, %v6452
        %v6494 = vmul.f32 %v6418, %v6456
        %v6495 = vmul.f32 %v6419, %v6452
        %v6496 = vmul.f32 %v6420, %v6456
        %v6497 = vmul.f32 %v6421, %v6452
        %v6498 = vmul.f32 %v6422, %v6456
        %v6499 = vmul.f32 %v6423, %v6452
        %v6500 = vmul.f32 %v6424, %v6456
        %v6501 = vmul.f32 %v6425, %v6452
        %v6502 = vmul.f32 %v6426, %v6456
        %v6503 = vmul.f32 %v6427, %v6452
        %v6504 = vmul.f32 %v6428, %v6456
        %v6505 = vmul.f32 %v6429, %v6452
        %v6506 = vmul.f32 %v6430, %v6456
        %v6507 = vmul.f32 %v6431, %v6452
        %v6508 = vmul.f32 %v6432, %v6456
        %v6509 = vmul.f32 %v6433, %v6452
        %v6510 = vmul.f32 %v6434, %v6456
        %v6511 = vmul.f32 %v6435, %v6452
        %v6512 = vmul.f32 %v6436, %v6456
        %v6513 = vmul.f32 %v6437, %v6452
        %v6514 = vmul.f32 %v6438, %v6456
        %v6515 = vmul.f32 %v6439, %v6452
        %v6516 = vmul.f32 %v6440, %v6456
        %v6517 = vmul.f32 %v6441, %v6452
        %v6518 = vmul.f32 %v6442, %v6456
        %v6519 = vmul.f32 %v6443, %v6452
        %v6520 = vmul.f32 %v6444, %v6456
        %v6521 = vmul.f32 %v6445, %v6452
        %v6522 = vmul.f32 %v6446, %v6456
        %v6523 = vadd.f32 %v6459, %v6460
        %6524 = vadd.xlane.f32.xlu0 %v6523
        %v6525 = vpop.xlane.xlu0 %6524
        %v6526 = vadd.f32 %v6461, %v6462
        %6527 = vadd.xlane.f32.xlu0 %v6526
        %v6528 = vpop.xlane.xlu0 %6527
        %v6529 = vadd.f32 %v6463, %v6464
        %6530 = vadd.xlane.f32.xlu0 %v6529
        %v6531 = vpop.xlane.xlu0 %6530
        %v6532 = vadd.f32 %v6465, %v6466
        %6533 = vadd.xlane.f32.xlu0 %v6532
        %v6534 = vpop.xlane.xlu0 %6533
        %v6535 = vadd.f32 %v6467, %v6468
        %6536 = vadd.xlane.f32.xlu0 %v6535
        %v6537 = vpop.xlane.xlu0 %6536
        %v6538 = vadd.f32 %v6469, %v6470
        %6539 = vadd.xlane.f32.xlu0 %v6538
        %v6540 = vpop.xlane.xlu0 %6539
        %v6541 = vadd.f32 %v6471, %v6472
        %6542 = vadd.xlane.f32.xlu0 %v6541
        %v6543 = vpop.xlane.xlu0 %6542
        %v6544 = vadd.f32 %v6473, %v6474
        %6545 = vadd.xlane.f32.xlu0 %v6544
        %v6546 = vpop.xlane.xlu0 %6545
        %v6547 = vadd.f32 %v6475, %v6476
        %6548 = vadd.xlane.f32.xlu0 %v6547
        %v6549 = vpop.xlane.xlu0 %6548
        %v6550 = vadd.f32 %v6477, %v6478
        %6551 = vadd.xlane.f32.xlu0 %v6550
        %v6552 = vpop.xlane.xlu0 %6551
        %v6553 = vadd.f32 %v6479, %v6480
        %6554 = vadd.xlane.f32.xlu0 %v6553
        %v6555 = vpop.xlane.xlu0 %6554
        %v6556 = vadd.f32 %v6481, %v6482
        %6557 = vadd.xlane.f32.xlu0 %v6556
        %v6558 = vpop.xlane.xlu0 %6557
        %v6559 = vadd.f32 %v6483, %v6484
        %6560 = vadd.xlane.f32.xlu0 %v6559
        %v6561 = vpop.xlane.xlu0 %6560
        %v6562 = vadd.f32 %v6485, %v6486
        %6563 = vadd.xlane.f32.xlu0 %v6562
        %v6564 = vpop.xlane.xlu0 %6563
        %v6565 = vadd.f32 %v6487, %v6488
        %6566 = vadd.xlane.f32.xlu0 %v6565
        %v6567 = vpop.xlane.xlu0 %6566
        %v6568 = vadd.f32 %v6489, %v6490
        %6569 = vadd.xlane.f32.xlu0 %v6568
        %v6570 = vpop.xlane.xlu0 %6569
        %v6571 = vadd.f32 %v6491, %v6492
        %6572 = vadd.xlane.f32.xlu0 %v6571
        %v6573 = vpop.xlane.xlu0 %6572
        %v6574 = vadd.f32 %v6493, %v6494
        %6575 = vadd.xlane.f32.xlu0 %v6574
        %v6576 = vpop.xlane.xlu0 %6575
        %v6577 = vadd.f32 %v6495, %v6496
        %6578 = vadd.xlane.f32.xlu0 %v6577
        %v6579 = vpop.xlane.xlu0 %6578
        %v6580 = vadd.f32 %v6497, %v6498
        %6581 = vadd.xlane.f32.xlu0 %v6580
        %v6582 = vpop.xlane.xlu0 %6581
        %v6583 = vadd.f32 %v6499, %v6500
        %6584 = vadd.xlane.f32.xlu0 %v6583
        %v6585 = vpop.xlane.xlu0 %6584
        %v6586 = vadd.f32 %v6501, %v6502
        %6587 = vadd.xlane.f32.xlu0 %v6586
        %v6588 = vpop.xlane.xlu0 %6587
        %v6589 = vadd.f32 %v6503, %v6504
        %6590 = vadd.xlane.f32.xlu0 %v6589
        %v6591 = vpop.xlane.xlu0 %6590
        %v6592 = vadd.f32 %v6505, %v6506
        %6593 = vadd.xlane.f32.xlu0 %v6592
        %v6594 = vpop.xlane.xlu0 %6593
        %v6595 = vadd.f32 %v6507, %v6508
        %6596 = vadd.xlane.f32.xlu0 %v6595
        %v6597 = vpop.xlane.xlu0 %6596
        %v6598 = vadd.f32 %v6509, %v6510
        %6599 = vadd.xlane.f32.xlu0 %v6598
        %v6600 = vpop.xlane.xlu0 %6599
        %v6601 = vadd.f32 %v6511, %v6512
        %6602 = vadd.xlane.f32.xlu0 %v6601
        %v6603 = vpop.xlane.xlu0 %6602
        %v6604 = vadd.f32 %v6513, %v6514
        %6605 = vadd.xlane.f32.xlu0 %v6604
        %v6606 = vpop.xlane.xlu0 %6605
        %v6607 = vadd.f32 %v6515, %v6516
        %6608 = vadd.xlane.f32.xlu0 %v6607
        %v6609 = vpop.xlane.xlu0 %6608
        %v6610 = vadd.f32 %v6517, %v6518
        %6611 = vadd.xlane.f32.xlu0 %v6610
        %v6612 = vpop.xlane.xlu0 %6611
        %v6613 = vadd.f32 %v6519, %v6520
        %6614 = vadd.xlane.f32.xlu0 %v6613
        %v6615 = vpop.xlane.xlu0 %6614
        %v6616 = vadd.f32 %v6521, %v6522
        %6617 = vadd.xlane.f32.xlu0 %v6616
        %v6618 = vpop.xlane.xlu0 %6617
        %v6619 = vld [vmem:[#allocation5] sm:$0x1]
        %v6621 = vlaneseq
        %v6622 = vshrl.u32 %v6621, 7
        %v6623 = vsub.s32 0, %v6622
        %v6624 = vrot.slane %v6619, %v6623
        %v6626 = vadd.f32 %v6525, %v6624
        %v6627 = vadd.f32 %v6528, %v6624
        %v6628 = vadd.f32 %v6531, %v6624
        %v6629 = vadd.f32 %v6534, %v6624
        %v6630 = vadd.f32 %v6537, %v6624
        %v6631 = vadd.f32 %v6540, %v6624
        %v6632 = vadd.f32 %v6543, %v6624
        %v6633 = vadd.f32 %v6546, %v6624
        %v6634 = vadd.f32 %v6549, %v6624
        %v6635 = vadd.f32 %v6552, %v6624
        %v6636 = vadd.f32 %v6555, %v6624
        %v6637 = vadd.f32 %v6558, %v6624
        %v6638 = vadd.f32 %v6561, %v6624
        %v6639 = vadd.f32 %v6564, %v6624
        %v6640 = vadd.f32 %v6567, %v6624
        %v6641 = vadd.f32 %v6570, %v6624
        %v6642 = vadd.f32 %v6573, %v6624
        %v6643 = vadd.f32 %v6576, %v6624
        %v6644 = vadd.f32 %v6579, %v6624
        %v6645 = vadd.f32 %v6582, %v6624
        %v6646 = vadd.f32 %v6585, %v6624
        %v6647 = vadd.f32 %v6588, %v6624
        %v6648 = vadd.f32 %v6591, %v6624
        %v6649 = vadd.f32 %v6594, %v6624
        %v6650 = vadd.f32 %v6597, %v6624
        %v6651 = vadd.f32 %v6600, %v6624
        %v6652 = vadd.f32 %v6603, %v6624
        %v6653 = vadd.f32 %v6606, %v6624
        %v6654 = vadd.f32 %v6609, %v6624
        %v6655 = vadd.f32 %v6612, %v6624
        %v6656 = vadd.f32 %v6615, %v6624
        %v6657 = vadd.f32 %v6618, %v6624
        %v6658 = vld [vmem:[#allocation2] sm:$0x1]
        %vm6659 = vcmask 7168
        %v6660 = vsel %vm6659, %v6626, -inf
        %v6661 = vsel %vm6659, %v6627, -inf
        %v6662 = vsel %vm6659, %v6628, -inf
        %v6663 = vsel %vm6659, %v6629, -inf
        %v6664 = vsel %vm6659, %v6630, -inf
        %v6665 = vmax.f32 %v6660, %v6664
        %v6666 = vsel %vm6659, %v6631, -inf
        %v6667 = vmax.f32 %v6661, %v6666
        %v6668 = vsel %vm6659, %v6632, -inf
        %v6669 = vmax.f32 %v6662, %v6668
        %v6670 = vsel %vm6659, %v6633, -inf
        %v6671 = vmax.f32 %v6663, %v6670
        %v6672 = vsel %vm6659, %v6634, -inf
        %v6673 = vmax.f32 %v6665, %v6672
        %v6674 = vsel %vm6659, %v6635, -inf
        %v6675 = vmax.f32 %v6667, %v6674
        %v6676 = vsel %vm6659, %v6636, -inf
        %v6677 = vmax.f32 %v6669, %v6676
        %v6678 = vsel %vm6659, %v6637, -inf
        %v6679 = vmax.f32 %v6671, %v6678
        %v6680 = vsel %vm6659, %v6638, -inf
        %v6681 = vmax.f32 %v6673, %v6680
        %v6682 = vsel %vm6659, %v6639, -inf
        %v6683 = vmax.f32 %v6675, %v6682
        %v6684 = vsel %vm6659, %v6640, -inf
        %v6685 = vmax.f32 %v6677, %v6684
        %v6686 = vsel %vm6659, %v6641, -inf
        %v6687 = vmax.f32 %v6679, %v6686
        %v6688 = vsel %vm6659, %v6642, -inf
        %v6689 = vmax.f32 %v6681, %v6688
        %v6690 = vsel %vm6659, %v6643, -inf
        %v6691 = vmax.f32 %v6683, %v6690
        %v6692 = vsel %vm6659, %v6644, -inf
        %v6693 = vmax.f32 %v6685, %v6692
        %v6694 = vsel %vm6659, %v6645, -inf
        %v6695 = vmax.f32 %v6687, %v6694
        %v6696 = vsel %vm6659, %v6646, -inf
        %v6697 = vmax.f32 %v6689, %v6696
        %v6698 = vsel %vm6659, %v6647, -inf
        %v6699 = vmax.f32 %v6691, %v6698
        %v6700 = vsel %vm6659, %v6648, -inf
        %v6701 = vmax.f32 %v6693, %v6700
        %v6702 = vsel %vm6659, %v6649, -inf
        %v6703 = vmax.f32 %v6695, %v6702
        %v6704 = vsel %vm6659, %v6650, -inf
        %v6705 = vmax.f32 %v6697, %v6704
        %v6706 = vsel %vm6659, %v6651, -inf
        %v6707 = vmax.f32 %v6699, %v6706
        %v6708 = vsel %vm6659, %v6652, -inf
        %v6709 = vmax.f32 %v6701, %v6708
        %v6710 = vsel %vm6659, %v6653, -inf
        %v6711 = vmax.f32 %v6703, %v6710
        %v6712 = vsel %vm6659, %v6654, -inf
        %v6713 = vmax.f32 %v6705, %v6712
        %v6714 = vsel %vm6659, %v6655, -inf
        %v6715 = vmax.f32 %v6707, %v6714
        %v6716 = vsel %vm6659, %v6656, -inf
        %v6717 = vmax.f32 %v6709, %v6716
        %v6718 = vsel %vm6659, %v6657, -inf
        %v6719 = vmax.f32 %v6711, %v6718
        %v6720 = vmax.f32 %v6713, %v6715
        %v6721 = vmax.f32 %v6717, %v6719
        %v6722 = vmax.f32 %v6720, %v6721
        %v6723 = vrot.slane %v6722, 4
        %v6724 = vmax.f32 %v6722, %v6723
        %v6725 = vrot.slane %v6724, 2
        %v6726 = vmax.f32 %v6724, %v6725
        %v6727 = vrot.slane %v6726, 1
        %v6728 = vmax.f32 %v6726, %v6727
        %v6729 = vmax.f32 %v6658, %v6728
        %v6730 = vsub.f32 %v6658, %v6729
        %v6731 = vmul.f32 %v6730, 1.442695
        %v6732 = vpow.pop %v6731
        %v6734 = vlaneseq
        %v6735 = vshrl.u32 %v6734, 7
        %v6736 = vsub.s32 0, %v6735
        %v6737 = vrot.slane %v6729, %v6736
        %v6739 = vsub.f32 %v6626, %v6737
        %v6740 = vsub.f32 %v6627, %v6737
        %v6741 = vsub.f32 %v6628, %v6737
        %v6742 = vsub.f32 %v6629, %v6737
        %v6743 = vsub.f32 %v6630, %v6737
        %v6744 = vsub.f32 %v6631, %v6737
        %v6745 = vsub.f32 %v6632, %v6737
        %v6746 = vsub.f32 %v6633, %v6737
        %v6747 = vsub.f32 %v6634, %v6737
        %v6748 = vsub.f32 %v6635, %v6737
        %v6749 = vsub.f32 %v6636, %v6737
        %v6750 = vsub.f32 %v6637, %v6737
        %v6751 = vsub.f32 %v6638, %v6737
        %v6752 = vsub.f32 %v6639, %v6737
        %v6753 = vsub.f32 %v6640, %v6737
        %v6754 = vsub.f32 %v6641, %v6737
        %v6755 = vsub.f32 %v6642, %v6737
        %v6756 = vsub.f32 %v6643, %v6737
        %v6757 = vsub.f32 %v6644, %v6737
        %v6758 = vsub.f32 %v6645, %v6737
        %v6759 = vsub.f32 %v6646, %v6737
        %v6760 = vsub.f32 %v6647, %v6737
        %v6761 = vsub.f32 %v6648, %v6737
        %v6762 = vsub.f32 %v6649, %v6737
        %v6763 = vsub.f32 %v6650, %v6737
        %v6764 = vsub.f32 %v6651, %v6737
        %v6765 = vsub.f32 %v6652, %v6737
        %v6766 = vsub.f32 %v6653, %v6737
        %v6767 = vsub.f32 %v6654, %v6737
        %v6768 = vsub.f32 %v6655, %v6737
        %v6769 = vsub.f32 %v6656, %v6737
        %v6770 = vsub.f32 %v6657, %v6737
        %v6771 = vmul.f32 %v6739, 1.442695
        %v6772 = vpow.pop %v6771
        %v6773 = vmul.f32 %v6740, 1.442695
        %v6774 = vpow.pop %v6773
        %v6775 = vmul.f32 %v6741, 1.442695
        %v6776 = vpow.pop %v6775
        %v6777 = vmul.f32 %v6742, 1.442695
        %v6778 = vpow.pop %v6777
        %v6779 = vmul.f32 %v6743, 1.442695
        %v6780 = vpow.pop %v6779
        %v6781 = vmul.f32 %v6744, 1.442695
        %v6782 = vpow.pop %v6781
        %v6783 = vmul.f32 %v6745, 1.442695
        %v6784 = vpow.pop %v6783
        %v6785 = vmul.f32 %v6746, 1.442695
        %v6786 = vpow.pop %v6785
        %v6787 = vmul.f32 %v6747, 1.442695
        %v6788 = vpow.pop %v6787
        %v6789 = vmul.f32 %v6748, 1.442695
        %v6790 = vpow.pop %v6789
        %v6791 = vmul.f32 %v6749, 1.442695
        %v6792 = vpow.pop %v6791
        %v6793 = vmul.f32 %v6750, 1.442695
        %v6794 = vpow.pop %v6793
        %v6795 = vmul.f32 %v6751, 1.442695
        %v6796 = vpow.pop %v6795
        %v6797 = vmul.f32 %v6752, 1.442695
        %v6798 = vpow.pop %v6797
        %v6799 = vmul.f32 %v6753, 1.442695
        %v6800 = vpow.pop %v6799
        %v6801 = vmul.f32 %v6754, 1.442695
        %v6802 = vpow.pop %v6801
        %v6803 = vmul.f32 %v6755, 1.442695
        %v6804 = vpow.pop %v6803
        %v6805 = vmul.f32 %v6756, 1.442695
        %v6806 = vpow.pop %v6805
        %v6807 = vmul.f32 %v6757, 1.442695
        %v6808 = vpow.pop %v6807
        %v6809 = vmul.f32 %v6758, 1.442695
        %v6810 = vpow.pop %v6809
        %v6811 = vmul.f32 %v6759, 1.442695
        %v6812 = vpow.pop %v6811
        %v6813 = vmul.f32 %v6760, 1.442695
        %v6814 = vpow.pop %v6813
        %v6815 = vmul.f32 %v6761, 1.442695
        %v6816 = vpow.pop %v6815
        %v6817 = vmul.f32 %v6762, 1.442695
        %v6818 = vpow.pop %v6817
        %v6819 = vmul.f32 %v6763, 1.442695
        %v6820 = vpow.pop %v6819
        %v6821 = vmul.f32 %v6764, 1.442695
        %v6822 = vpow.pop %v6821
        %v6823 = vmul.f32 %v6765, 1.442695
        %v6824 = vpow.pop %v6823
        %v6825 = vmul.f32 %v6766, 1.442695
        %v6826 = vpow.pop %v6825
        %v6827 = vmul.f32 %v6767, 1.442695
        %v6828 = vpow.pop %v6827
        %v6829 = vmul.f32 %v6768, 1.442695
        %v6830 = vpow.pop %v6829
        %v6831 = vmul.f32 %v6769, 1.442695
        %v6832 = vpow.pop %v6831
        %v6833 = vmul.f32 %v6770, 1.442695
        %v6834 = vpow.pop %v6833
        %v6835 = vld [vmem:[#allocation3] sm:$0x1]
        %v6836 = vmul.f32 %v6732, %v6835
        %v6837 = vsel %vm6659, %v6772, 0.0
        %v6838 = vsel %vm6659, %v6774, 0.0
        %v6839 = vadd.f32 %v6837, %v6838
        %v6840 = vsel %vm6659, %v6776, 0.0
        %v6841 = vadd.f32 %v6839, %v6840
        %v6842 = vsel %vm6659, %v6778, 0.0
        %v6843 = vadd.f32 %v6841, %v6842
        %v6844 = vsel %vm6659, %v6780, 0.0
        %v6845 = vadd.f32 %v6843, %v6844
        %v6846 = vsel %vm6659, %v6782, 0.0
        %v6847 = vadd.f32 %v6845, %v6846
        %v6848 = vsel %vm6659, %v6784, 0.0
        %v6849 = vadd.f32 %v6847, %v6848
        %v6850 = vsel %vm6659, %v6786, 0.0
        %v6851 = vadd.f32 %v6849, %v6850
        %v6852 = vsel %vm6659, %v6788, 0.0
        %v6853 = vadd.f32 %v6851, %v6852
        %v6854 = vsel %vm6659, %v6790, 0.0
        %v6855 = vadd.f32 %v6853, %v6854
        %v6856 = vsel %vm6659, %v6792, 0.0
        %v6857 = vadd.f32 %v6855, %v6856
        %v6858 = vsel %vm6659, %v6794, 0.0
        %v6859 = vadd.f32 %v6857, %v6858
        %v6860 = vsel %vm6659, %v6796, 0.0
        %v6861 = vadd.f32 %v6859, %v6860
        %v6862 = vsel %vm6659, %v6798, 0.0
        %v6863 = vadd.f32 %v6861, %v6862
        %v6864 = vsel %vm6659, %v6800, 0.0
        %v6865 = vadd.f32 %v6863, %v6864
        %v6866 = vsel %vm6659, %v6802, 0.0
        %v6867 = vadd.f32 %v6865, %v6866
        %v6868 = vsel %vm6659, %v6804, 0.0
        %v6869 = vadd.f32 %v6867, %v6868
        %v6870 = vsel %vm6659, %v6806, 0.0
        %v6871 = vadd.f32 %v6869, %v6870
        %v6872 = vsel %vm6659, %v6808, 0.0
        %v6873 = vadd.f32 %v6871, %v6872
        %v6874 = vsel %vm6659, %v6810, 0.0
        %v6875 = vadd.f32 %v6873, %v6874
        %v6876 = vsel %vm6659, %v6812, 0.0
        %v6877 = vadd.f32 %v6875, %v6876
        %v6878 = vsel %vm6659, %v6814, 0.0
        %v6879 = vadd.f32 %v6877, %v6878
        %v6880 = vsel %vm6659, %v6816, 0.0
        %v6881 = vadd.f32 %v6879, %v6880
        %v6882 = vsel %vm6659, %v6818, 0.0
        %v6883 = vadd.f32 %v6881, %v6882
        %v6884 = vsel %vm6659, %v6820, 0.0
        %v6885 = vadd.f32 %v6883, %v6884
        %v6886 = vsel %vm6659, %v6822, 0.0
        %v6887 = vadd.f32 %v6885, %v6886
        %v6888 = vsel %vm6659, %v6824, 0.0
        %v6889 = vadd.f32 %v6887, %v6888
        %v6890 = vsel %vm6659, %v6826, 0.0
        %v6891 = vadd.f32 %v6889, %v6890
        %v6892 = vsel %vm6659, %v6828, 0.0
        %v6893 = vadd.f32 %v6891, %v6892
        %v6894 = vsel %vm6659, %v6830, 0.0
        %v6895 = vadd.f32 %v6893, %v6894
        %v6896 = vsel %vm6659, %v6832, 0.0
        %v6897 = vadd.f32 %v6895, %v6896
        %v6898 = vsel %vm6659, %v6834, 0.0
        %v6899 = vadd.f32 %v6897, %v6898
        %v6900 = vrot.slane %v6899, 4
        %v6901 = vadd.f32 %v6899, %v6900
        %v6902 = vrot.slane %v6901, 2
        %v6903 = vadd.f32 %v6901, %v6902
        %v6904 = vrot.slane %v6903, 1
        %v6905 = vadd.f32 %v6903, %v6904
        %v6906 = vadd.f32 %v6836, %v6905
        %vm6907 = vcmask 0
        %6908 = vst.msk [vmem:[#allocation3] sm:$0x1] %vm6907, %v6906
        %v6909 = vld [vmem:[#allocation4] sm:$0xf]
        %6911 = vset.pattern.permute.xlu0 0
        %6912 = vperm.xlu0 %6911, %v6732
        %v6913 = vpop.permute.xlu0 %6912
        %v6915 = vlaneseq
        %v6916 = vshrl.u32 %v6915, 7
        %v6917 = vsub.s32 0, %v6916
        %v6918 = vrot.slane %v6913, %v6917
        %v6919 = vmul.f32 %v6918, %v6909
        %6921 = vset.pattern.permute.xlu0 0
        %6922 = vperm.xlu0 %6921, %v6772
        %v6923 = vpop.permute.xlu0 %6922
        %6926 = vset.pattern.permute.xlu0 0
        %6927 = vperm.xlu0 %6926, %v6774
        %v6928 = vpop.permute.xlu0 %6927
        %6931 = vset.pattern.permute.xlu0 0
        %6932 = vperm.xlu0 %6931, %v6776
        %v6933 = vpop.permute.xlu0 %6932
        %6936 = vset.pattern.permute.xlu0 0
        %6937 = vperm.xlu0 %6936, %v6778
        %v6938 = vpop.permute.xlu0 %6937
        %6941 = vset.pattern.permute.xlu0 0
        %6942 = vperm.xlu0 %6941, %v6780
        %v6943 = vpop.permute.xlu0 %6942
        %6946 = vset.pattern.permute.xlu0 0
        %6947 = vperm.xlu0 %6946, %v6782
        %v6948 = vpop.permute.xlu0 %6947
        %6951 = vset.pattern.permute.xlu0 0
        %6952 = vperm.xlu0 %6951, %v6784
        %v6953 = vpop.permute.xlu0 %6952
        %6956 = vset.pattern.permute.xlu0 0
        %6957 = vperm.xlu0 %6956, %v6786
        %v6958 = vpop.permute.xlu0 %6957
        %6961 = vset.pattern.permute.xlu0 0
        %6962 = vperm.xlu0 %6961, %v6788
        %v6963 = vpop.permute.xlu0 %6962
        %6966 = vset.pattern.permute.xlu0 0
        %6967 = vperm.xlu0 %6966, %v6790
        %v6968 = vpop.permute.xlu0 %6967
        %6971 = vset.pattern.permute.xlu0 0
        %6972 = vperm.xlu0 %6971, %v6792
        %v6973 = vpop.permute.xlu0 %6972
        %6976 = vset.pattern.permute.xlu0 0
        %6977 = vperm.xlu0 %6976, %v6794
        %v6978 = vpop.permute.xlu0 %6977
        %6981 = vset.pattern.permute.xlu0 0
        %6982 = vperm.xlu0 %6981, %v6796
        %v6983 = vpop.permute.xlu0 %6982
        %6986 = vset.pattern.permute.xlu0 0
        %6987 = vperm.xlu0 %6986, %v6798
        %v6988 = vpop.permute.xlu0 %6987
        %6991 = vset.pattern.permute.xlu0 0
        %6992 = vperm.xlu0 %6991, %v6800
        %v6993 = vpop.permute.xlu0 %6992
        %6996 = vset.pattern.permute.xlu0 0
        %6997 = vperm.xlu0 %6996, %v6802
        %v6998 = vpop.permute.xlu0 %6997
        %7001 = vset.pattern.permute.xlu0 0
        %7002 = vperm.xlu0 %7001, %v6804
        %v7003 = vpop.permute.xlu0 %7002
        %7006 = vset.pattern.permute.xlu0 0
        %7007 = vperm.xlu0 %7006, %v6806
        %v7008 = vpop.permute.xlu0 %7007
        %7011 = vset.pattern.permute.xlu0 0
        %7012 = vperm.xlu0 %7011, %v6808
        %v7013 = vpop.permute.xlu0 %7012
        %7016 = vset.pattern.permute.xlu0 0
        %7017 = vperm.xlu0 %7016, %v6810
        %v7018 = vpop.permute.xlu0 %7017
        %7021 = vset.pattern.permute.xlu0 0
        %7022 = vperm.xlu0 %7021, %v6812
        %v7023 = vpop.permute.xlu0 %7022
        %7026 = vset.pattern.permute.xlu0 0
        %7027 = vperm.xlu0 %7026, %v6814
        %v7028 = vpop.permute.xlu0 %7027
        %7031 = vset.pattern.permute.xlu0 0
        %7032 = vperm.xlu0 %7031, %v6816
        %v7033 = vpop.permute.xlu0 %7032
        %7036 = vset.pattern.permute.xlu0 0
        %7037 = vperm.xlu0 %7036, %v6818
        %v7038 = vpop.permute.xlu0 %7037
        %7041 = vset.pattern.permute.xlu0 0
        %7042 = vperm.xlu0 %7041, %v6820
        %v7043 = vpop.permute.xlu0 %7042
        %7046 = vset.pattern.permute.xlu0 0
        %7047 = vperm.xlu0 %7046, %v6822
        %v7048 = vpop.permute.xlu0 %7047
        %7051 = vset.pattern.permute.xlu0 0
        %7052 = vperm.xlu0 %7051, %v6824
        %v7053 = vpop.permute.xlu0 %7052
        %7056 = vset.pattern.permute.xlu0 0
        %7057 = vperm.xlu0 %7056, %v6826
        %v7058 = vpop.permute.xlu0 %7057
        %7061 = vset.pattern.permute.xlu0 0
        %7062 = vperm.xlu0 %7061, %v6828
        %v7063 = vpop.permute.xlu0 %7062
        %7066 = vset.pattern.permute.xlu0 0
        %7067 = vperm.xlu0 %7066, %v6830
        %v7068 = vpop.permute.xlu0 %7067
        %7071 = vset.pattern.permute.xlu0 0
        %7072 = vperm.xlu0 %7071, %v6832
        %v7073 = vpop.permute.xlu0 %7072
        %7076 = vset.pattern.permute.xlu0 0
        %7077 = vperm.xlu0 %7076, %v6834
        %v7078 = vpop.permute.xlu0 %7077
        %v7080 = vmul.f32 %v6923, %v4179
        %v7081 = vmul.f32 %v6923, %v4180
        %v7082 = vmul.f32 %v6923, %v4181
        %v7083 = vmul.f32 %v6923, %v4182
        %v7084 = vmul.f32 %v6928, %v4183
        %v7085 = vmul.f32 %v6928, %v4184
        %v7086 = vmul.f32 %v6928, %v4185
        %v7087 = vmul.f32 %v6928, %v4186
        %v7088 = vmul.f32 %v6933, %v4187
        %v7089 = vmul.f32 %v6933, %v4188
        %v7090 = vmul.f32 %v6933, %v4189
        %v7091 = vmul.f32 %v6933, %v4190
        %v7092 = vmul.f32 %v6938, %v4191
        %v7093 = vmul.f32 %v6938, %v4192
        %v7094 = vmul.f32 %v6938, %v4193
        %v7095 = vmul.f32 %v6938, %v4194
        %v7096 = vmul.f32 %v6943, %v4195
        %v7097 = vmul.f32 %v6943, %v4196
        %v7098 = vmul.f32 %v6943, %v4197
        %v7099 = vmul.f32 %v6943, %v4198
        %v7100 = vmul.f32 %v6948, %v4199
        %v7101 = vmul.f32 %v6948, %v4200
        %v7102 = vmul.f32 %v6948, %v4201
        %v7103 = vmul.f32 %v6948, %v4202
        %v7104 = vmul.f32 %v6953, %v4203
        %v7105 = vmul.f32 %v6953, %v4204
        %v7106 = vmul.f32 %v6953, %v4205
        %v7107 = vmul.f32 %v6953, %v4206
        %v7108 = vmul.f32 %v6958, %v4207
        %v7109 = vmul.f32 %v6958, %v4208
        %v7110 = vmul.f32 %v6958, %v4209
        %v7111 = vmul.f32 %v6958, %v4210
        %v7112 = vmul.f32 %v6963, %v4211
        %v7113 = vmul.f32 %v6963, %v4212
        %v7114 = vmul.f32 %v6963, %v4213
        %v7115 = vmul.f32 %v6963, %v4214
        %v7116 = vmul.f32 %v6968, %v4215
        %v7117 = vmul.f32 %v6968, %v4216
        %v7118 = vmul.f32 %v6968, %v4217
        %v7119 = vmul.f32 %v6968, %v4218
        %v7120 = vmul.f32 %v6973, %v4219
        %v7121 = vmul.f32 %v6973, %v4220
        %v7122 = vmul.f32 %v6973, %v4221
        %v7123 = vmul.f32 %v6973, %v4222
        %v7124 = vmul.f32 %v6978, %v4223
        %v7125 = vmul.f32 %v6978, %v4224
        %v7126 = vmul.f32 %v6978, %v4225
        %v7127 = vmul.f32 %v6978, %v4226
        %v7128 = vmul.f32 %v6983, %v4227
        %v7129 = vmul.f32 %v6983, %v4228
        %v7130 = vmul.f32 %v6983, %v4229
        %v7131 = vmul.f32 %v6983, %v4230
        %v7132 = vmul.f32 %v6988, %v4231
        %v7133 = vmul.f32 %v6988, %v4232
        %v7134 = vmul.f32 %v6988, %v4233
        %v7135 = vmul.f32 %v6988, %v4234
        %v7136 = vmul.f32 %v6993, %v4235
        %v7137 = vmul.f32 %v6993, %v4236
        %v7138 = vmul.f32 %v6993, %v4237
        %v7139 = vmul.f32 %v6993, %v4238
        %v7140 = vmul.f32 %v6998, %v4239
        %v7141 = vmul.f32 %v6998, %v4240
        %v7142 = vmul.f32 %v6998, %v4241
        %v7143 = vmul.f32 %v6998, %v4242
        %v7144 = vmul.f32 %v7003, %v4243
        %v7145 = vmul.f32 %v7003, %v4244
        %v7146 = vmul.f32 %v7003, %v4245
        %v7147 = vmul.f32 %v7003, %v4246
        %v7148 = vmul.f32 %v7008, %v4247
        %v7149 = vmul.f32 %v7008, %v4248
        %v7150 = vmul.f32 %v7008, %v4249
        %v7151 = vmul.f32 %v7008, %v4250
        %v7152 = vmul.f32 %v7013, %v4251
        %v7153 = vmul.f32 %v7013, %v4252
        %v7154 = vmul.f32 %v7013, %v4253
        %v7155 = vmul.f32 %v7013, %v4254
        %v7156 = vmul.f32 %v7018, %v4255
        %v7157 = vmul.f32 %v7018, %v4256
        %v7158 = vmul.f32 %v7018, %v4257
        %v7159 = vmul.f32 %v7018, %v4258
        %v7160 = vmul.f32 %v7023, %v4259
        %v7161 = vmul.f32 %v7023, %v4260
        %v7162 = vmul.f32 %v7023, %v4261
        %v7163 = vmul.f32 %v7023, %v4262
        %v7164 = vmul.f32 %v7028, %v4263
        %v7165 = vmul.f32 %v7028, %v4264
        %v7166 = vmul.f32 %v7028, %v4265
        %v7167 = vmul.f32 %v7028, %v4266
        %v7168 = vmul.f32 %v7033, %v4267
        %v7169 = vmul.f32 %v7033, %v4268
        %v7170 = vmul.f32 %v7033, %v4269
        %v7171 = vmul.f32 %v7033, %v4270
        %v7172 = vmul.f32 %v7038, %v4271
        %v7173 = vmul.f32 %v7038, %v4272
        %v7174 = vmul.f32 %v7038, %v4273
        %v7175 = vmul.f32 %v7038, %v4274
        %v7176 = vmul.f32 %v7043, %v4275
        %v7177 = vmul.f32 %v7043, %v4276
        %v7178 = vmul.f32 %v7043, %v4277
        %v7179 = vmul.f32 %v7043, %v4278
        %v7180 = vmul.f32 %v7048, %v4279
        %v7181 = vmul.f32 %v7048, %v4280
        %v7182 = vmul.f32 %v7048, %v4281
        %v7183 = vmul.f32 %v7048, %v4282
        %v7184 = vmul.f32 %v7053, %v4283
        %v7185 = vmul.f32 %v7053, %v4284
        %v7186 = vmul.f32 %v7053, %v4285
        %v7187 = vmul.f32 %v7053, %v4286
        %v7188 = vmul.f32 %v7058, %v4287
        %v7189 = vmul.f32 %v7058, %v4288
        %v7190 = vmul.f32 %v7058, %v4289
        %v7191 = vmul.f32 %v7058, %v4290
        %v7192 = vmul.f32 %v7063, %v4291
        %v7193 = vmul.f32 %v7063, %v4292
        %v7194 = vmul.f32 %v7063, %v4293
        %v7195 = vmul.f32 %v7063, %v4294
        %v7196 = vmul.f32 %v7068, %v4295
        %v7197 = vmul.f32 %v7068, %v4296
        %v7198 = vmul.f32 %v7068, %v4297
        %v7199 = vmul.f32 %v7068, %v4298
        %v7200 = vmul.f32 %v7073, %v4299
        %v7201 = vmul.f32 %v7073, %v4300
        %v7202 = vmul.f32 %v7073, %v4301
        %v7203 = vmul.f32 %v7073, %v4302
        %v7204 = vmul.f32 %v7078, %v4303
        %v7205 = vmul.f32 %v7078, %v4304
        %v7206 = vmul.f32 %v7078, %v4305
        %v7207 = vmul.f32 %v7078, %v4306
        %v7208 = vadd.f32 %v7080, %v7084
        %v7209 = vadd.f32 %v7208, %v7088
        %v7210 = vadd.f32 %v7209, %v7092
        %v7211 = vadd.f32 %v7210, %v7096
        %v7212 = vadd.f32 %v7211, %v7100
        %v7213 = vadd.f32 %v7212, %v7104
        %v7214 = vadd.f32 %v7213, %v7108
        %v7215 = vadd.f32 %v7214, %v7112
        %v7216 = vadd.f32 %v7215, %v7116
        %v7217 = vadd.f32 %v7216, %v7120
        %v7218 = vadd.f32 %v7217, %v7124
        %v7219 = vadd.f32 %v7218, %v7128
        %v7220 = vadd.f32 %v7219, %v7132
        %v7221 = vadd.f32 %v7220, %v7136
        %v7222 = vadd.f32 %v7221, %v7140
        %v7223 = vadd.f32 %v7222, %v7144
        %v7224 = vadd.f32 %v7223, %v7148
        %v7225 = vadd.f32 %v7224, %v7152
        %v7226 = vadd.f32 %v7225, %v7156
        %v7227 = vadd.f32 %v7226, %v7160
        %v7228 = vadd.f32 %v7227, %v7164
        %v7229 = vadd.f32 %v7228, %v7168
        %v7230 = vadd.f32 %v7229, %v7172
        %v7231 = vadd.f32 %v7230, %v7176
        %v7232 = vadd.f32 %v7231, %v7180
        %v7233 = vadd.f32 %v7232, %v7184
        %v7234 = vadd.f32 %v7233, %v7188
        %v7235 = vadd.f32 %v7234, %v7192
        %v7236 = vadd.f32 %v7235, %v7196
        %v7237 = vadd.f32 %v7236, %v7200
        %v7238 = vadd.f32 %v7237, %v7204
        %v7239 = vrot.slane %v7238, 4
        %v7240 = vadd.f32 %v7238, %v7239
        %v7241 = vrot.slane %v7240, 2
        %v7242 = vadd.f32 %v7240, %v7241
        %v7243 = vrot.slane %v7242, 1
        %v7244 = vadd.f32 %v7242, %v7243
        %v7245 = vadd.f32 %v7081, %v7085
        %v7246 = vadd.f32 %v7245, %v7089
        %v7247 = vadd.f32 %v7246, %v7093
        %v7248 = vadd.f32 %v7247, %v7097
        %v7249 = vadd.f32 %v7248, %v7101
        %v7250 = vadd.f32 %v7249, %v7105
        %v7251 = vadd.f32 %v7250, %v7109
        %v7252 = vadd.f32 %v7251, %v7113
        %v7253 = vadd.f32 %v7252, %v7117
        %v7254 = vadd.f32 %v7253, %v7121
        %v7255 = vadd.f32 %v7254, %v7125
        %v7256 = vadd.f32 %v7255, %v7129
        %v7257 = vadd.f32 %v7256, %v7133
        %v7258 = vadd.f32 %v7257, %v7137
        %v7259 = vadd.f32 %v7258, %v7141
        %v7260 = vadd.f32 %v7259, %v7145
        %v7261 = vadd.f32 %v7260, %v7149
        %v7262 = vadd.f32 %v7261, %v7153
        %v7263 = vadd.f32 %v7262, %v7157
        %v7264 = vadd.f32 %v7263, %v7161
        %v7265 = vadd.f32 %v7264, %v7165
        %v7266 = vadd.f32 %v7265, %v7169
        %v7267 = vadd.f32 %v7266, %v7173
        %v7268 = vadd.f32 %v7267, %v7177
        %v7269 = vadd.f32 %v7268, %v7181
        %v7270 = vadd.f32 %v7269, %v7185
        %v7271 = vadd.f32 %v7270, %v7189
        %v7272 = vadd.f32 %v7271, %v7193
        %v7273 = vadd.f32 %v7272, %v7197
        %v7274 = vadd.f32 %v7273, %v7201
        %v7275 = vadd.f32 %v7274, %v7205
        %v7276 = vrot.slane %v7275, 4
        %v7277 = vadd.f32 %v7275, %v7276
        %v7278 = vrot.slane %v7277, 2
        %v7279 = vadd.f32 %v7277, %v7278
        %v7280 = vrot.slane %v7279, 1
        %v7281 = vadd.f32 %v7279, %v7280
        %v7282 = vadd.f32 %v7082, %v7086
        %v7283 = vadd.f32 %v7282, %v7090
        %v7284 = vadd.f32 %v7283, %v7094
        %v7285 = vadd.f32 %v7284, %v7098
        %v7286 = vadd.f32 %v7285, %v7102
        %v7287 = vadd.f32 %v7286, %v7106
        %v7288 = vadd.f32 %v7287, %v7110
        %v7289 = vadd.f32 %v7288, %v7114
        %v7290 = vadd.f32 %v7289, %v7118
        %v7291 = vadd.f32 %v7290, %v7122
        %v7292 = vadd.f32 %v7291, %v7126
        %v7293 = vadd.f32 %v7292, %v7130
        %v7294 = vadd.f32 %v7293, %v7134
        %v7295 = vadd.f32 %v7294, %v7138
        %v7296 = vadd.f32 %v7295, %v7142
        %v7297 = vadd.f32 %v7296, %v7146
        %v7298 = vadd.f32 %v7297, %v7150
        %v7299 = vadd.f32 %v7298, %v7154
        %v7300 = vadd.f32 %v7299, %v7158
        %v7301 = vadd.f32 %v7300, %v7162
        %v7302 = vadd.f32 %v7301, %v7166
        %v7303 = vadd.f32 %v7302, %v7170
        %v7304 = vadd.f32 %v7303, %v7174
        %v7305 = vadd.f32 %v7304, %v7178
        %v7306 = vadd.f32 %v7305, %v7182
        %v7307 = vadd.f32 %v7306, %v7186
        %v7308 = vadd.f32 %v7307, %v7190
        %v7309 = vadd.f32 %v7308, %v7194
        %v7310 = vadd.f32 %v7309, %v7198
        %v7311 = vadd.f32 %v7310, %v7202
        %v7312 = vadd.f32 %v7311, %v7206
        %v7313 = vrot.slane %v7312, 4
        %v7314 = vadd.f32 %v7312, %v7313
        %v7315 = vrot.slane %v7314, 2
        %v7316 = vadd.f32 %v7314, %v7315
        %v7317 = vrot.slane %v7316, 1
        %v7318 = vadd.f32 %v7316, %v7317
        %v7319 = vadd.f32 %v7083, %v7087
        %v7320 = vadd.f32 %v7319, %v7091
        %v7321 = vadd.f32 %v7320, %v7095
        %v7322 = vadd.f32 %v7321, %v7099
        %v7323 = vadd.f32 %v7322, %v7103
        %v7324 = vadd.f32 %v7323, %v7107
        %v7325 = vadd.f32 %v7324, %v7111
        %v7326 = vadd.f32 %v7325, %v7115
        %v7327 = vadd.f32 %v7326, %v7119
        %v7328 = vadd.f32 %v7327, %v7123
        %v7329 = vadd.f32 %v7328, %v7127
        %v7330 = vadd.f32 %v7329, %v7131
        %v7331 = vadd.f32 %v7330, %v7135
        %v7332 = vadd.f32 %v7331, %v7139
        %v7333 = vadd.f32 %v7332, %v7143
        %v7334 = vadd.f32 %v7333, %v7147
        %v7335 = vadd.f32 %v7334, %v7151
        %v7336 = vadd.f32 %v7335, %v7155
        %v7337 = vadd.f32 %v7336, %v7159
        %v7338 = vadd.f32 %v7337, %v7163
        %v7339 = vadd.f32 %v7338, %v7167
        %v7340 = vadd.f32 %v7339, %v7171
        %v7341 = vadd.f32 %v7340, %v7175
        %v7342 = vadd.f32 %v7341, %v7179
        %v7343 = vadd.f32 %v7342, %v7183
        %v7344 = vadd.f32 %v7343, %v7187
        %v7345 = vadd.f32 %v7344, %v7191
        %v7346 = vadd.f32 %v7345, %v7195
        %v7347 = vadd.f32 %v7346, %v7199
        %v7348 = vadd.f32 %v7347, %v7203
        %v7349 = vadd.f32 %v7348, %v7207
        %v7350 = vrot.slane %v7349, 4
        %v7351 = vadd.f32 %v7349, %v7350
        %v7352 = vrot.slane %v7351, 2
        %v7353 = vadd.f32 %v7351, %v7352
        %v7354 = vrot.slane %v7353, 1
        %v7355 = vadd.f32 %v7353, %v7354
        %v7360 = vcombine.low %v7244, %v7281
        %v7361 = vcombine.low %v7318, %v7355
        %v7363 = vunpack.c.l.s4 1966171168
        %v7364 = vunpack.c.0.s8 %v7363
        %v7365 = vlaneseq
        %v7366 = vshrl.u32 %v7365, 7
        %v7367 = vsub.s32 %v7364, %v7366
        %v7368 = vrot.slane %v7360, %v7367
        %v7370 = vunpack.c.l.s4 1966171168
        %v7371 = vunpack.c.0.s8 %v7370
        %v7372 = vlaneseq
        %v7373 = vshrl.u32 %v7372, 7
        %v7374 = vsub.s32 %v7371, %v7373
        %v7375 = vrot.slane %v7361, %v7374
        %v7376 = vcombine.low %v7368, %v7375
        %v7378 = vunpack.c.l.s4 1966171168
        %v7379 = vunpack.c.0.s8 %v7378
        %v7380 = vlaneseq
        %v7381 = vshrl.u32 %v7380, 7
        %v7382 = vsub.s32 %v7379, %v7381
        %v7383 = vrot.slane %v7376, %v7382
        %v7385 = vadd.f32 %v6919, %v7383
        %v7386 = vlaneseq
        %vm7387 = vcmp.ge.s32.totalorder %v7386, 0
        %vm7388 = vcmp.lt.s32.totalorder %v7386, 512
        %vm7389 = vmand %vm7387, %vm7388
        %7390 = vst.msk [vmem:[#allocation4] sm:$0xf] %vm7389, %v7385
        %7391 = vst.msk [vmem:[#allocation2] sm:$0x1] %vm6907, %v6729
        %p7392 = scmp.eq.s32.totalorder %s48, 1
        // Predicated region
        $region121: #{tpu_custom_call.1} parent=71 // pred_check
          %p7393 = pneg %p7392
        $region122: #{tpu_custom_call.1} parent=71 // pred_check_branch
          %7395 = sbr.rel (%p7393) target = $region124
        $region123: #{tpu_custom_call.1} parent=71 // pred_region
          %v7396 = vld [vmem:[#allocation4] sm:$0xf]
          %v7397 = vld [vmem:[#allocation3] sm:$0x1]
          %7399 = vset.pattern.permute.xlu0 0
          %7400 = vperm.xlu0 %7399, %v7397
          %v7401 = vpop.permute.xlu0 %7400
          %v7403 = vlaneseq
          %v7404 = vshrl.u32 %v7403, 7
          %v7405 = vsub.s32 0, %v7404
          %v7406 = vrot.slane %v7401, %v7405
          %v7407 = vrcp.pop %v7406
          %v7408 = vmul.f32 %v7396, %v7407
          %v7409 = vld [vmem:[#allocation20] sm:$0xff]
          %v7410 = vld [vmem:[#allocation20 + $0x8] sm:$0xff]
          %v7411 = vld [vmem:[#allocation20 + $0x10] sm:$0xff]
          %v7412 = vld [vmem:[#allocation20 + $0x18] sm:$0xff]
          %v7413 = vld [vmem:[#allocation20 + $0x20] sm:$0xff]
          %v7414 = vld [vmem:[#allocation20 + $0x28] sm:$0xff]
          %v7415 = vld [vmem:[#allocation20 + $0x30] sm:$0xff]
          %v7416 = vld [vmem:[#allocation20 + $0x38] sm:$0xff]
          %v7417 = vld [vmem:[#allocation20 + $0x40] sm:$0xff]
          %v7418 = vld [vmem:[#allocation20 + $0x48] sm:$0xff]
          %v7419 = vld [vmem:[#allocation20 + $0x50] sm:$0xff]
          %v7420 = vld [vmem:[#allocation20 + $0x58] sm:$0xff]
          %v7421 = vld [vmem:[#allocation20 + $0x60] sm:$0xff]
          %v7422 = vld [vmem:[#allocation20 + $0x68] sm:$0xff]
          %v7423 = vld [vmem:[#allocation20 + $0x70] sm:$0xff]
          %v7424 = vld [vmem:[#allocation20 + $0x78] sm:$0xff]
          %v7425 = vld [vmem:[#allocation20 + $0x80] sm:$0xff]
          %v7426 = vld [vmem:[#allocation20 + $0x88] sm:$0xff]
          %v7427 = vld [vmem:[#allocation20 + $0x90] sm:$0xff]
          %v7428 = vld [vmem:[#allocation20 + $0x98] sm:$0xff]
          %v7429 = vld [vmem:[#allocation20 + $0xa0] sm:$0xff]
          %v7430 = vld [vmem:[#allocation20 + $0xa8] sm:$0xff]
          %v7431 = vld [vmem:[#allocation20 + $0xb0] sm:$0xff]
          %v7432 = vld [vmem:[#allocation20 + $0xb8] sm:$0xff]
          %v7433 = vld [vmem:[#allocation20 + $0xc0] sm:$0xff]
          %v7434 = vld [vmem:[#allocation20 + $0xc8] sm:$0xff]
          %v7435 = vld [vmem:[#allocation20 + $0xd0] sm:$0xff]
          %v7436 = vld [vmem:[#allocation20 + $0xd8] sm:$0xff]
          %v7437 = vld [vmem:[#allocation20 + $0xe0] sm:$0xff]
          %v7438 = vld [vmem:[#allocation20 + $0xe8] sm:$0xff]
          %v7439 = vld [vmem:[#allocation20 + $0xf0] sm:$0xff]
          %v7440 = vld [vmem:[#allocation20 + $0xf8] sm:$0xff]
          %v7441 = vld [vmem:[#allocation20 + $0x100] sm:$0xff]
          %v7442 = vld [vmem:[#allocation20 + $0x108] sm:$0xff]
          %v7443 = vld [vmem:[#allocation20 + $0x110] sm:$0xff]
          %v7444 = vld [vmem:[#allocation20 + $0x118] sm:$0xff]
          %v7445 = vld [vmem:[#allocation20 + $0x120] sm:$0xff]
          %v7446 = vld [vmem:[#allocation20 + $0x128] sm:$0xff]
          %v7447 = vld [vmem:[#allocation20 + $0x130] sm:$0xff]
          %v7448 = vld [vmem:[#allocation20 + $0x138] sm:$0xff]
          %v7449 = vld [vmem:[#allocation20 + $0x140] sm:$0xff]
          %v7450 = vld [vmem:[#allocation20 + $0x148] sm:$0xff]
          %v7451 = vld [vmem:[#allocation20 + $0x150] sm:$0xff]
          %v7452 = vld [vmem:[#allocation20 + $0x158] sm:$0xff]
          %v7453 = vld [vmem:[#allocation20 + $0x160] sm:$0xff]
          %v7454 = vld [vmem:[#allocation20 + $0x168] sm:$0xff]
          %v7455 = vld [vmem:[#allocation20 + $0x170] sm:$0xff]
          %v7456 = vld [vmem:[#allocation20 + $0x178] sm:$0xff]
          %v7457 = vld [vmem:[#allocation20 + $0x180] sm:$0xff]
          %v7458 = vld [vmem:[#allocation20 + $0x188] sm:$0xff]
          %v7459 = vld [vmem:[#allocation20 + $0x190] sm:$0xff]
          %v7460 = vld [vmem:[#allocation20 + $0x198] sm:$0xff]
          %v7461 = vld [vmem:[#allocation20 + $0x1a0] sm:$0xff]
          %v7462 = vld [vmem:[#allocation20 + $0x1a8] sm:$0xff]
          %v7463 = vld [vmem:[#allocation20 + $0x1b0] sm:$0xff]
          %v7464 = vld [vmem:[#allocation20 + $0x1b8] sm:$0xff]
          %v7465 = vld [vmem:[#allocation20 + $0x1c0] sm:$0xff]
          %v7466 = vld [vmem:[#allocation20 + $0x1c8] sm:$0xff]
          %v7467 = vld [vmem:[#allocation20 + $0x1d0] sm:$0xff]
          %v7468 = vld [vmem:[#allocation20 + $0x1d8] sm:$0xff]
          %v7469 = vld [vmem:[#allocation20 + $0x1e0] sm:$0xff]
          %v7470 = vld [vmem:[#allocation20 + $0x1e8] sm:$0xff]
          %v7471 = vld [vmem:[#allocation20 + $0x1f0] sm:$0xff]
          %v7472 = vld [vmem:[#allocation20 + $0x1f8] sm:$0xff]
          %v7473 = vld [vmem:[#allocation20 + $0x200] sm:$0xff]
          %v7474 = vld [vmem:[#allocation20 + $0x208] sm:$0xff]
          %v7475 = vld [vmem:[#allocation20 + $0x210] sm:$0xff]
          %v7476 = vld [vmem:[#allocation20 + $0x218] sm:$0xff]
          %v7477 = vld [vmem:[#allocation20 + $0x220] sm:$0xff]
          %v7478 = vld [vmem:[#allocation20 + $0x228] sm:$0xff]
          %v7479 = vld [vmem:[#allocation20 + $0x230] sm:$0xff]
          %v7480 = vld [vmem:[#allocation20 + $0x238] sm:$0xff]
          %v7481 = vld [vmem:[#allocation20 + $0x240] sm:$0xff]
          %v7482 = vld [vmem:[#allocation20 + $0x248] sm:$0xff]
          %v7483 = vld [vmem:[#allocation20 + $0x250] sm:$0xff]
          %v7484 = vld [vmem:[#allocation20 + $0x258] sm:$0xff]
          %v7485 = vld [vmem:[#allocation20 + $0x260] sm:$0xff]
          %v7486 = vld [vmem:[#allocation20 + $0x268] sm:$0xff]
          %v7487 = vld [vmem:[#allocation20 + $0x270] sm:$0xff]
          %v7488 = vld [vmem:[#allocation20 + $0x278] sm:$0xff]
          %v7489 = vld [vmem:[#allocation20 + $0x280] sm:$0xff]
          %v7490 = vld [vmem:[#allocation20 + $0x288] sm:$0xff]
          %v7491 = vld [vmem:[#allocation20 + $0x290] sm:$0xff]
          %v7492 = vld [vmem:[#allocation20 + $0x298] sm:$0xff]
          %v7493 = vld [vmem:[#allocation20 + $0x2a0] sm:$0xff]
          %v7494 = vld [vmem:[#allocation20 + $0x2a8] sm:$0xff]
          %v7495 = vld [vmem:[#allocation20 + $0x2b0] sm:$0xff]
          %v7496 = vld [vmem:[#allocation20 + $0x2b8] sm:$0xff]
          %v7497 = vld [vmem:[#allocation20 + $0x2c0] sm:$0xff]
          %v7498 = vld [vmem:[#allocation20 + $0x2c8] sm:$0xff]
          %v7499 = vld [vmem:[#allocation20 + $0x2d0] sm:$0xff]
          %v7500 = vld [vmem:[#allocation20 + $0x2d8] sm:$0xff]
          %v7501 = vld [vmem:[#allocation20 + $0x2e0] sm:$0xff]
          %v7502 = vld [vmem:[#allocation20 + $0x2e8] sm:$0xff]
          %v7503 = vld [vmem:[#allocation20 + $0x2f0] sm:$0xff]
          %v7504 = vld [vmem:[#allocation20 + $0x2f8] sm:$0xff]
          %v7505 = vld [vmem:[#allocation20 + $0x300] sm:$0xff]
          %v7506 = vld [vmem:[#allocation20 + $0x308] sm:$0xff]
          %v7507 = vld [vmem:[#allocation20 + $0x310] sm:$0xff]
          %v7508 = vld [vmem:[#allocation20 + $0x318] sm:$0xff]
          %v7509 = vld [vmem:[#allocation20 + $0x320] sm:$0xff]
          %v7510 = vld [vmem:[#allocation20 + $0x328] sm:$0xff]
          %v7511 = vld [vmem:[#allocation20 + $0x330] sm:$0xff]
          %v7512 = vld [vmem:[#allocation20 + $0x338] sm:$0xff]
          %v7513 = vld [vmem:[#allocation20 + $0x340] sm:$0xff]
          %v7514 = vld [vmem:[#allocation20 + $0x348] sm:$0xff]
          %v7515 = vld [vmem:[#allocation20 + $0x350] sm:$0xff]
          %v7516 = vld [vmem:[#allocation20 + $0x358] sm:$0xff]
          %v7517 = vld [vmem:[#allocation20 + $0x360] sm:$0xff]
          %v7518 = vld [vmem:[#allocation20 + $0x368] sm:$0xff]
          %v7519 = vld [vmem:[#allocation20 + $0x370] sm:$0xff]
          %v7520 = vld [vmem:[#allocation20 + $0x378] sm:$0xff]
          %v7521 = vld [vmem:[#allocation20 + $0x380] sm:$0xff]
          %v7522 = vld [vmem:[#allocation20 + $0x388] sm:$0xff]
          %v7523 = vld [vmem:[#allocation20 + $0x390] sm:$0xff]
          %v7524 = vld [vmem:[#allocation20 + $0x398] sm:$0xff]
          %v7525 = vld [vmem:[#allocation20 + $0x3a0] sm:$0xff]
          %v7526 = vld [vmem:[#allocation20 + $0x3a8] sm:$0xff]
          %v7527 = vld [vmem:[#allocation20 + $0x3b0] sm:$0xff]
          %v7528 = vld [vmem:[#allocation20 + $0x3b8] sm:$0xff]
          %v7529 = vld [vmem:[#allocation20 + $0x3c0] sm:$0xff]
          %v7530 = vld [vmem:[#allocation20 + $0x3c8] sm:$0xff]
          %v7531 = vld [vmem:[#allocation20 + $0x3d0] sm:$0xff]
          %v7532 = vld [vmem:[#allocation20 + $0x3d8] sm:$0xff]
          %v7533 = vld [vmem:[#allocation20 + $0x3e0] sm:$0xff]
          %v7534 = vld [vmem:[#allocation20 + $0x3e8] sm:$0xff]
          %v7535 = vld [vmem:[#allocation20 + $0x3f0] sm:$0xff]
          %v7536 = vld [vmem:[#allocation20 + $0x3f8] sm:$0xff]
          %v7537 = vld [vmem:[#allocation21] sm:$0x3]
          %v7539 = vlaneseq
          %v7540 = vshrl.u32 %v7539, 7
          %v7541 = vsub.s32 0, %v7540
          %v7542 = vrot.slane %v7408, %v7541
          %v7543 = vlaneseq
          %v7544 = vshrl.u32 %v7543, 7
          %v7545 = vsub.s32 1, %v7544
          %v7546 = vrot.slane %v7408, %v7545
          %v7547 = vlaneseq
          %v7548 = vshrl.u32 %v7547, 7
          %v7549 = vsub.s32 2, %v7548
          %v7550 = vrot.slane %v7408, %v7549
          %v7551 = vlaneseq
          %v7552 = vshrl.u32 %v7551, 7
          %v7553 = vsub.s32 3, %v7552
          %v7554 = vrot.slane %v7408, %v7553
          %v7560 = vlaneseq
          %v7561 = vshrl.u32 %v7560, 7
          %v7562 = vsub.s32 0, %v7561
          %v7563 = vrot.slane %v7537, %v7562
          %v7564 = vlaneseq
          %v7565 = vshrl.u32 %v7564, 7
          %v7566 = vsub.s32 1, %v7565
          %v7567 = vrot.slane %v7537, %v7566
          %7570 = vmatprep.subr.mxu0 %v7440
          %7571 = vmatpush1.msra.mxu0 %v7439
          %7572 = vmatprep.subr.mxu0 %v7438
          %7573 = vmatpush1.msra.mxu0 %v7437
          %7574 = vmatprep.subr.mxu0 %v7436
          %7575 = vmatpush1.msra.mxu0 %v7435
          %7576 = vmatprep.subr.mxu0 %v7434
          %7577 = vmatpush1.msra.mxu0 %v7433
          %7578 = vmatprep.subr.mxu0 %v7432
          %7579 = vmatpush1.msra.mxu0 %v7431
          %7580 = vmatprep.subr.mxu0 %v7430
          %7581 = vmatpush1.msra.mxu0 %v7429
          %7582 = vmatprep.subr.mxu0 %v7428
          %7583 = vmatpush1.msra.mxu0 %v7427
          %7584 = vmatprep.subr.mxu0 %v7426
          %7585 = vmatpush1.msra.mxu0 %v7425
          %7586 = vmatprep.subr.mxu0 %v7424
          %7587 = vmatpush1.msra.mxu0 %v7423
          %7588 = vmatprep.subr.mxu0 %v7422
          %7589 = vmatpush1.msra.mxu0 %v7421
          %7590 = vmatprep.subr.mxu0 %v7420
          %7591 = vmatpush1.msra.mxu0 %v7419
          %7592 = vmatprep.subr.mxu0 %v7418
          %7593 = vmatpush1.msra.mxu0 %v7417
          %7594 = vmatprep.subr.mxu0 %v7416
          %7595 = vmatpush1.msra.mxu0 %v7415
          %7596 = vmatprep.subr.mxu0 %v7414
          %7597 = vmatpush1.msra.mxu0 %v7413
          %7598 = vmatprep.subr.mxu0 %v7412
          %7599 = vmatpush1.msra.mxu0 %v7411
          %7600 = vmatprep.subr.mxu0 %v7410
          %7601 = vmatpush1.msra.mxu0 %v7409
          %7602 = vmatprep.subr.mxu0 %v7472
          %7603 = vmatpush2.msra.mxu0 %v7471
          %7604 = vmatprep.subr.mxu0 %v7470
          %7605 = vmatpush2.msra.mxu0 %v7469
          %7606 = vmatprep.subr.mxu0 %v7468
          %7607 = vmatpush2.msra.mxu0 %v7467
          %7608 = vmatprep.subr.mxu0 %v7466
          %7609 = vmatpush2.msra.mxu0 %v7465
          %7610 = vmatprep.subr.mxu0 %v7464
          %7611 = vmatpush2.msra.mxu0 %v7463
          %7612 = vmatprep.subr.mxu0 %v7462
          %7613 = vmatpush2.msra.mxu0 %v7461
          %7614 = vmatprep.subr.mxu0 %v7460
          %7615 = vmatpush2.msra.mxu0 %v7459
          %7616 = vmatprep.subr.mxu0 %v7458
          %7617 = vmatpush2.msra.mxu0 %v7457
          %7618 = vmatprep.subr.mxu0 %v7456
          %7619 = vmatpush2.msra.mxu0 %v7455
          %7620 = vmatprep.subr.mxu0 %v7454
          %7621 = vmatpush2.msra.mxu0 %v7453
          %7622 = vmatprep.subr.mxu0 %v7452
          %7623 = vmatpush2.msra.mxu0 %v7451
          %7624 = vmatprep.subr.mxu0 %v7450
          %7625 = vmatpush2.msra.mxu0 %v7449
          %7626 = vmatprep.subr.mxu0 %v7448
          %7627 = vmatpush2.msra.mxu0 %v7447
          %7628 = vmatprep.subr.mxu0 %v7446
          %7629 = vmatpush2.msra.mxu0 %v7445
          %7630 = vmatprep.subr.mxu0 %v7444
          %7631 = vmatpush2.msra.mxu0 %v7443
          %7632 = vmatprep.subr.mxu0 %v7442
          %7633 = vmatpush2.msra.mxu0 %v7441
          %7634 = vmatprep.mubr.f32.mxu0 %v7546
          %7635 = vmatmul.mubr.f32.gmra.mxu0 %v7542
          %v7636 = vpop.f32.mrf.mxu0
          %v7637 = vadd.f32 %v7563, %v7636
          %v7638 = vpop.f32.mrf.mxu0
          %v7639 = vadd.f32 %v7567, %v7638
          %7640 = vdwg.mxu0
          %7641 = vmatprep.subr.mxu0 %v7504
          %7642 = vmatpush1.msra.mxu0 %v7503
          %7643 = vmatprep.subr.mxu0 %v7502
          %7644 = vmatpush1.msra.mxu0 %v7501
          %7645 = vmatprep.subr.mxu0 %v7500
          %7646 = vmatpush1.msra.mxu0 %v7499
          %7647 = vmatprep.subr.mxu0 %v7498
          %7648 = vmatpush1.msra.mxu0 %v7497
          %7649 = vmatprep.subr.mxu0 %v7496
          %7650 = vmatpush1.msra.mxu0 %v7495
          %7651 = vmatprep.subr.mxu0 %v7494
          %7652 = vmatpush1.msra.mxu0 %v7493
          %7653 = vmatprep.subr.mxu0 %v7492
          %7654 = vmatpush1.msra.mxu0 %v7491
          %7655 = vmatprep.subr.mxu0 %v7490
          %7656 = vmatpush1.msra.mxu0 %v7489
          %7657 = vmatprep.subr.mxu0 %v7488
          %7658 = vmatpush1.msra.mxu0 %v7487
          %7659 = vmatprep.subr.mxu0 %v7486
          %7660 = vmatpush1.msra.mxu0 %v7485
          %7661 = vmatprep.subr.mxu0 %v7484
          %7662 = vmatpush1.msra.mxu0 %v7483
          %7663 = vmatprep.subr.mxu0 %v7482
          %7664 = vmatpush1.msra.mxu0 %v7481
          %7665 = vmatprep.subr.mxu0 %v7480
          %7666 = vmatpush1.msra.mxu0 %v7479
          %7667 = vmatprep.subr.mxu0 %v7478
          %7668 = vmatpush1.msra.mxu0 %v7477
          %7669 = vmatprep.subr.mxu0 %v7476
          %7670 = vmatpush1.msra.mxu0 %v7475
          %7671 = vmatprep.subr.mxu0 %v7474
          %7672 = vmatpush1.msra.mxu0 %v7473
          %7673 = vmatprep.subr.mxu0 %v7536
          %7674 = vmatpush2.msra.mxu0 %v7535
          %7675 = vmatprep.subr.mxu0 %v7534
          %7676 = vmatpush2.msra.mxu0 %v7533
          %7677 = vmatprep.subr.mxu0 %v7532
          %7678 = vmatpush2.msra.mxu0 %v7531
          %7679 = vmatprep.subr.mxu0 %v7530
          %7680 = vmatpush2.msra.mxu0 %v7529
          %7681 = vmatprep.subr.mxu0 %v7528
          %7682 = vmatpush2.msra.mxu0 %v7527
          %7683 = vmatprep.subr.mxu0 %v7526
          %7684 = vmatpush2.msra.mxu0 %v7525
          %7685 = vmatprep.subr.mxu0 %v7524
          %7686 = vmatpush2.msra.mxu0 %v7523
          %7687 = vmatprep.subr.mxu0 %v7522
          %7688 = vmatpush2.msra.mxu0 %v7521
          %7689 = vmatprep.subr.mxu0 %v7520
          %7690 = vmatpush2.msra.mxu0 %v7519
          %7691 = vmatprep.subr.mxu0 %v7518
          %7692 = vmatpush2.msra.mxu0 %v7517
          %7693 = vmatprep.subr.mxu0 %v7516
          %7694 = vmatpush2.msra.mxu0 %v7515
          %7695 = vmatprep.subr.mxu0 %v7514
          %7696 = vmatpush2.msra.mxu0 %v7513
          %7697 = vmatprep.subr.mxu0 %v7512
          %7698 = vmatpush2.msra.mxu0 %v7511
          %7699 = vmatprep.subr.mxu0 %v7510
          %7700 = vmatpush2.msra.mxu0 %v7509
          %7701 = vmatprep.subr.mxu0 %v7508
          %7702 = vmatpush2.msra.mxu0 %v7507
          %7703 = vmatprep.subr.mxu0 %v7506
          %7704 = vmatpush2.msra.mxu0 %v7505
          %7705 = vmatprep.mubr.f32.mxu0 %v7554
          %7706 = vmatmul.mubr.f32.gmra.mxu0 %v7550
          %v7707 = vpop.f32.mrf.mxu0
          %v7708 = vadd.f32 %v7637, %v7707
          %v7709 = vpop.f32.mrf.mxu0
          %v7710 = vadd.f32 %v7639, %v7709
          %7711 = vdwg.mxu0
          %v7712 = vmax.f32 %v7708, 0.0
          %v7713 = vmax.f32 %v7710, 0.0
          %v7714 = vld [vmem:[%s11] sm:$0xff]
          %v7715 = vld [vmem:[%s11 + $0x8] sm:$0xff]
          %v7716 = vld [vmem:[%s11 + $0x10] sm:$0xff]
          %v7717 = vld [vmem:[%s11 + $0x18] sm:$0xff]
          %v7718 = vld [vmem:[%s11 + $0x20] sm:$0xff]
          %v7719 = vld [vmem:[%s11 + $0x28] sm:$0xff]
          %v7720 = vld [vmem:[%s11 + $0x30] sm:$0xff]
          %v7721 = vld [vmem:[%s11 + $0x38] sm:$0xff]
          %v7722 = vld [vmem:[%s11 + $0x40] sm:$0xff]
          %v7723 = vld [vmem:[%s11 + $0x48] sm:$0xff]
          %v7724 = vld [vmem:[%s11 + $0x50] sm:$0xff]
          %v7725 = vld [vmem:[%s11 + $0x58] sm:$0xff]
          %v7726 = vld [vmem:[%s11 + $0x60] sm:$0xff]
          %v7727 = vld [vmem:[%s11 + $0x68] sm:$0xff]
          %v7728 = vld [vmem:[%s11 + $0x70] sm:$0xff]
          %v7729 = vld [vmem:[%s11 + $0x78] sm:$0xff]
          %v7730 = vld [vmem:[%s11 + $0x80] sm:$0xff]
          %v7731 = vld [vmem:[%s11 + $0x88] sm:$0xff]
          %v7732 = vld [vmem:[%s11 + $0x90] sm:$0xff]
          %v7733 = vld [vmem:[%s11 + $0x98] sm:$0xff]
          %v7734 = vld [vmem:[%s11 + $0xa0] sm:$0xff]
          %v7735 = vld [vmem:[%s11 + $0xa8] sm:$0xff]
          %v7736 = vld [vmem:[%s11 + $0xb0] sm:$0xff]
          %v7737 = vld [vmem:[%s11 + $0xb8] sm:$0xff]
          %v7738 = vld [vmem:[%s11 + $0xc0] sm:$0xff]
          %v7739 = vld [vmem:[%s11 + $0xc8] sm:$0xff]
          %v7740 = vld [vmem:[%s11 + $0xd0] sm:$0xff]
          %v7741 = vld [vmem:[%s11 + $0xd8] sm:$0xff]
          %v7742 = vld [vmem:[%s11 + $0xe0] sm:$0xff]
          %v7743 = vld [vmem:[%s11 + $0xe8] sm:$0xff]
          %v7744 = vld [vmem:[%s11 + $0xf0] sm:$0xff]
          %v7745 = vld [vmem:[%s11 + $0xf8] sm:$0xff]
          %v7746 = vld [vmem:[#allocation23] sm:$0x1]
          %7747 = vmatprep.subr.mxu0 0.0
          %7748 = vmatpush1.msra.mxu0 %v7729
          %7749 = vmatprep.subr.mxu0 0.0
          %7750 = vmatpush1.msra.mxu0 %v7728
          %7751 = vmatprep.subr.mxu0 0.0
          %7752 = vmatpush1.msra.mxu0 %v7727
          %7753 = vmatprep.subr.mxu0 0.0
          %7754 = vmatpush1.msra.mxu0 %v7726
          %7755 = vmatprep.subr.mxu0 0.0
          %7756 = vmatpush1.msra.mxu0 %v7725
          %7757 = vmatprep.subr.mxu0 0.0
          %7758 = vmatpush1.msra.mxu0 %v7724
          %7759 = vmatprep.subr.mxu0 0.0
          %7760 = vmatpush1.msra.mxu0 %v7723
          %7761 = vmatprep.subr.mxu0 0.0
          %7762 = vmatpush1.msra.mxu0 %v7722
          %7763 = vmatprep.subr.mxu0 0.0
          %7764 = vmatpush1.msra.mxu0 %v7721
          %7765 = vmatprep.subr.mxu0 0.0
          %7766 = vmatpush1.msra.mxu0 %v7720
          %7767 = vmatprep.subr.mxu0 0.0
          %7768 = vmatpush1.msra.mxu0 %v7719
          %7769 = vmatprep.subr.mxu0 0.0
          %7770 = vmatpush1.msra.mxu0 %v7718
          %7771 = vmatprep.subr.mxu0 0.0
          %7772 = vmatpush1.msra.mxu0 %v7717
          %7773 = vmatprep.subr.mxu0 0.0
          %7774 = vmatpush1.msra.mxu0 %v7716
          %7775 = vmatprep.subr.mxu0 0.0
          %7776 = vmatpush1.msra.mxu0 %v7715
          %7777 = vmatprep.subr.mxu0 0.0
          %7778 = vmatpush1.msra.mxu0 %v7714
          %7779 = vmatprep.subr.mxu0 0.0
          %7780 = vmatpush2.msra.mxu0 %v7745
          %7781 = vmatprep.subr.mxu0 0.0
          %7782 = vmatpush2.msra.mxu0 %v7744
          %7783 = vmatprep.subr.mxu0 0.0
          %7784 = vmatpush2.msra.mxu0 %v7743
          %7785 = vmatprep.subr.mxu0 0.0
          %7786 = vmatpush2.msra.mxu0 %v7742
          %7787 = vmatprep.subr.mxu0 0.0
          %7788 = vmatpush2.msra.mxu0 %v7741
          %7789 = vmatprep.subr.mxu0 0.0
          %7790 = vmatpush2.msra.mxu0 %v7740
          %7791 = vmatprep.subr.mxu0 0.0
          %7792 = vmatpush2.msra.mxu0 %v7739
          %7793 = vmatprep.subr.mxu0 0.0
          %7794 = vmatpush2.msra.mxu0 %v7738
          %7795 = vmatprep.subr.mxu0 0.0
          %7796 = vmatpush2.msra.mxu0 %v7737
          %7797 = vmatprep.subr.mxu0 0.0
          %7798 = vmatpush2.msra.mxu0 %v7736
          %7799 = vmatprep.subr.mxu0 0.0
          %7800 = vmatpush2.msra.mxu0 %v7735
          %7801 = vmatprep.subr.mxu0 0.0
          %7802 = vmatpush2.msra.mxu0 %v7734
          %7803 = vmatprep.subr.mxu0 0.0
          %7804 = vmatpush2.msra.mxu0 %v7733
          %7805 = vmatprep.subr.mxu0 0.0
          %7806 = vmatpush2.msra.mxu0 %v7732
          %7807 = vmatprep.subr.mxu0 0.0
          %7808 = vmatpush2.msra.mxu0 %v7731
          %7809 = vmatprep.subr.mxu0 0.0
          %7810 = vmatpush2.msra.mxu0 %v7730
          %7811 = vmatprep.mubr.f32.mxu0 %v7713
          %7812 = vmatmul.mubr.f32.gmra.mxu0 %v7712
          %v7813 = vpop.f32.mrf.mxu0
          %v7814 = vadd.f32 %v7746, %v7813
          %v7815 = vpop.f32.mrf.mxu0
          %7816 = vdwg.mxu0
          %v7817 = vxor.u32 %v7814, 2147483648
          %v7818 = vmul.f32 %v7817, 1.442695
          %v7819 = vpow.pop %v7818
          %v7820 = vadd.f32 %v7819, 1.0
          %v7821 = vrcp.pop %v7820
          %v7822 = vmul.f32 1.0, %v7821
          %vm7823 = vcmask 24576
          %7824 = vst.msk [vmem:[%s667] sm:$0x1] %vm7823, %v7814
          %7825 = vst.msk [vmem:[%s673] sm:$0x1] %vm7823, %v7822
          %v7826 = vsub.f32 1.0, %v7822
          %7828 = vrot.lane.b32.xlu0 %v7826, 127
          %v7829 = vpop.permute.xlu0 %7828
          %v7831 = vmul.f32 %v7826, %v7829
          %7832 = vrot.lane.b32.xlu0 %v7826, 126
          %v7833 = vpop.permute.xlu0 %7832
          %v7835 = vmul.f32 %v7831, %v7833
          %7836 = vrot.lane.b32.xlu0 %v7826, 125
          %v7837 = vpop.permute.xlu0 %7836
          %v7839 = vmul.f32 %v7835, %v7837
          %7841 = vrot.lane.b32.xlu0 %v7831, 1
          %v7842 = vpop.permute.xlu0 %7841
          %7845 = vrot.lane.b32.xlu0 %v7835, 2
          %v7846 = vpop.permute.xlu0 %7845
          %7849 = vrot.lane.b32.xlu0 %v7839, 3
          %v7850 = vpop.permute.xlu0 %7849
          %v7852 = vsel %vm6659, %v7826, %v7842
          %vm7853 = vcmask 15360
          %v7854 = vsel %vm7853, %v7852, %v7846
          %vm7855 = vcmask 23552
          %v7856 = vsel %vm7855, %v7854, %v7850
          %7857 = vst.msk [vmem:[%s679] sm:$0x1] %vm7823, %v7856
        $region124: #{tpu_custom_call.1} parent=71 // pred_fallthru
          _
        %s7858 = sand.u32 %s343, 1
        %s7859 = scalar_lea.sflag [#allocation8], %s7858
        %s7860 = sand.u32 %s343, 1
        %s7861 = scalar_lea.vmem [#allocation24], %s7860
        %s7862 = sand.u32 %s43, 1
        %s7863 = scalar_lea.sflag [#allocation26], %s7862
        %s7864 = sand.u32 %s369, 1
        %s7865 = scalar_lea.vmem [#allocation25], %s7864
        %s7866 = sand.u32 %s43, 1
        %s7867 = scalar_lea.sflag [#allocation26], %s7866
        %s7868 = sand.u32 %s395, 1
        %s7869 = scalar_lea.vmem [#allocation27], %s7868
        // Predicated region
        $region125: #{tpu_custom_call.1} parent=71 // pred_check
          %p7870 = pneg %p353
        $region126: #{tpu_custom_call.1} parent=71 // pred_check_branch
          %7872 = sbr.rel (%p7870) target = $region128
        $region127: #{tpu_custom_call.1} parent=71 // pred_region
          %s7874 = ssub.s32 16, 16
          %7875 = vsyncadd %s7859, %s7874
          %s7876 = smul.addr %s47, 16
          %s7877 = scalar_lea.hbm %s13, %s7876
          %s7879 = sshll.u32 %s7861, 4
          %s7880 = int_to_ptr.vmem [resolvable:$true] %s7879
          %7882 = dma.vmem_to_hbm [thread:$0]  %s7880, 16, %s7877, %s7859
        $region128: #{tpu_custom_call.1} parent=71 // pred_fallthru
          _
        // Predicated region
        $region129: #{tpu_custom_call.1} parent=71 // pred_check
          %p7883 = pneg %p379
        $region130: #{tpu_custom_call.1} parent=71 // pred_check_branch
          %7885 = sbr.rel (%p7883) target = $region132
        $region131: #{tpu_custom_call.1} parent=71 // pred_region
          %s7887 = ssub.s32 16, 16
          %7888 = vsyncadd %s7863, %s7887
          %s7889 = smul.addr %s47, 16
          %s7890 = scalar_lea.hbm %s14, %s7889
          %s7892 = sshll.u32 %s7865, 4
          %s7893 = int_to_ptr.vmem [resolvable:$true] %s7892
          %7895 = dma.vmem_to_hbm [thread:$0]  %s7893, 16, %s7890, %s7863
        $region132: #{tpu_custom_call.1} parent=71 // pred_fallthru
          _
        // Predicated region
        $region133: #{tpu_custom_call.1} parent=71 // pred_check
          %p7896 = pneg %p405
        $region134: #{tpu_custom_call.1} parent=71 // pred_check_branch
          %7898 = sbr.rel (%p7896) target = $region136
        $region135: #{tpu_custom_call.1} parent=71 // pred_region
          %s7900 = ssub.s32 16, 16
          %7901 = vsyncadd %s7867, %s7900
          %s7902 = smul.addr %s47, 16
          %s7903 = scalar_lea.hbm %s15, %s7902
          %s7905 = sshll.u32 %s7869, 4
          %s7906 = int_to_ptr.vmem [resolvable:$true] %s7905
          %7908 = dma.vmem_to_hbm [thread:$0]  %s7906, 16, %s7903, %s7867
        $region136: #{tpu_custom_call.1} parent=71 // pred_fallthru
          _
      $region72: #{tpu_custom_call.1} parent=5 // pred_fallthru
        _
      %p7909 = scmp.le.s32.totalorder 2, %s38
      // Predicated region
      $region137: #{tpu_custom_call.1} parent=5 // pred_check
        %p7910 = pneg %p7909
      $region138: #{tpu_custom_call.1} parent=5 // pred_check_branch
        %7912 = sbr.rel (%p7910) target = $region140
      $region139: #{tpu_custom_call.1} parent=5 // pred_region
        %s7913 = ssub.s32 %s38, 2
        // Predicated region
        $region141: #{tpu_custom_call.1} parent=139 // pred_check
          %p7914 = pneg %p359
        $region142: #{tpu_custom_call.1} parent=139 // pred_check_branch
          %7916 = sbr.rel (%p7914) target = $region144
        $region143: #{tpu_custom_call.1} parent=139 // pred_region
          %s7917 = sand.u32 %s344, 1
          %s7918 = scalar_lea.sflag [#allocation8], %s7917
          %s7919 = sand.u32 %s344, 1
          %s7920 = scalar_lea.vmem [#allocation24], %s7919
          %7921 = dma.done %s7918, 16
        $region144: #{tpu_custom_call.1} parent=139 // pred_fallthru
          _
        // Predicated region
        $region145: #{tpu_custom_call.1} parent=139 // pred_check
          %p7922 = pneg %p385
        $region146: #{tpu_custom_call.1} parent=139 // pred_check_branch
          %7924 = sbr.rel (%p7922) target = $region148
        $region147: #{tpu_custom_call.1} parent=139 // pred_region
          %s7925 = sand.u32 %s44, 1
          %s7926 = scalar_lea.sflag [#allocation26], %s7925
          %s7927 = sand.u32 %s370, 1
          %s7928 = scalar_lea.vmem [#allocation25], %s7927
          %7929 = dma.done %s7926, 16
        $region148: #{tpu_custom_call.1} parent=139 // pred_fallthru
          _
        // Predicated region
        $region149: #{tpu_custom_call.1} parent=139 // pred_check
          %p7930 = pneg %p411
        $region150: #{tpu_custom_call.1} parent=139 // pred_check_branch
          %7932 = sbr.rel (%p7930) target = $region152
        $region151: #{tpu_custom_call.1} parent=139 // pred_region
          %s7933 = sand.u32 %s44, 1
          %s7934 = scalar_lea.sflag [#allocation26], %s7933
          %s7935 = sand.u32 %s396, 1
          %s7936 = scalar_lea.vmem [#allocation27], %s7935
          %7937 = dma.done %s7934, 16
        $region152: #{tpu_custom_call.1} parent=139 // pred_fallthru
          _
      $region140: #{tpu_custom_call.1} parent=5 // pred_fallthru
        _
    $region6: #{tpu_custom_call.1} parent=1 // loop_footer
      %s42 = sadd.s32 1, %s38
    $region7: #{tpu_custom_call.1} parent=1 // loop_footer_branch
      %37 = sbr.rel target = $region3
    $region8: #{tpu_custom_call.1} parent=1 // loop_exit
      _
    %7938 = vsyncpa [#allocation7], 1
    %s7939 = scalar_lea.sflag [#allocation7], 1
    %7940 = vsyncpa %s7939, 1
    %7941 = vsyncpa [#allocation10], 1
    %7942 = vsyncpa [#allocation13], 1
    %7943 = vsyncpa [#allocation16], 1
    %7944 = vsyncpa [#allocation19], 1
    %7945 = vsyncpa [#allocation22], 1
    %7946 = vsyncpa [#allocation8], 1
    %s7947 = scalar_lea.sflag [#allocation8], 1
    %7948 = vsyncpa %s7947, 1
    %7949 = vsyncpa [#allocation26], 1
    %s7950 = scalar_lea.sflag [#allocation26], 1
    %7951 = vsyncpa %s7950, 1

</llo_original>
